<compile_context>
chip_gen: v5e
topology: v5e:2x2
jax: 0.10.0
libtpu: 0.0.40
codegen_flags: <defaults>
</compile_context>

<pallas_src>
import functools
import math

import numpy as np
import jax
import jax.numpy as jnp
from jax import lax
from jax.experimental import pallas as pl
from jax.experimental.pallas import tpu as pltpu  # noqa: F401

# ---------------- model hyper-params (small, consistent with the module) ----
TEXT_IN_DIM = 128     # text_input_dim   (768 in original)
IMG_IN_DIM = 256      # image_input_dim  (1024 in original)
EMBED_DIM = 128       # embed_dim        (256 in original)
NUM_HEADS = 4         # num_heads        (8 in original)
HEAD_DIM = EMBED_DIM // NUM_HEADS
MLP_RATIO = 4.0
MLP_HIDDEN = int(EMBED_DIM * MLP_RATIO)
LN_EPS = 1e-5

B = 2                 # batch
LQ = 8                # claim sequence length
LK = 8                # evidence sequence length

_NEG = -1e30          # additive mask value for cross-batch attention scores


def _layer_norm(x, gamma, beta):
    mu = jnp.mean(x, axis=-1, keepdims=True)
    var = jnp.mean(jnp.square(x - mu), axis=-1, keepdims=True)
    return (x - mu) * jax.lax.rsqrt(var + LN_EPS) * gamma + beta


def _erf_approx(x):
    # Abramowitz & Stegun 7.1.26 (max abs err ~1.5e-7): avoids relying on an
    # erf primitive lowering inside Mosaic while staying essentially exact.
    a1, a2, a3, a4, a5 = (0.254829592, -0.284496736, 1.421413741,
                          -1.453152027, 1.061405429)
    p_ = 0.3275911
    sgn = jnp.where(x >= 0.0, 1.0, -1.0).astype(x.dtype)
    ax = jnp.abs(x)
    t = 1.0 / (1.0 + p_ * ax)
    poly = ((((a5 * t + a4) * t + a3) * t + a2) * t + a1) * t
    return sgn * (1.0 - poly * jnp.exp(-ax * ax))


def _gelu_exact(x):
    # Exact (erf-based) GELU, matching PyTorch's default nn.GELU.
    return 0.5 * x * (1.0 + _erf_approx(x * (1.0 / math.sqrt(2.0))))


# --------------------------------- kernel -----------------------------------
def _fused_kernel(ht_ref, hi_ref, et_ref, ei_ref, mask_ref,
                  wq_ref, wkv_t_ref, wkv_i_ref, wo_ref, w1_ref, w2_ref,
                  vpack_ref, b1pack_ref,
                  o_ref):
    """All four cross-attention branches, all batch rows, one invocation.

    vpack rows: 0 bq_t | 1 bq_i | 2 bk_t | 3 bv_t | 4 bk_i | 5 bv_i
                6 b2_t | 7 b2_i | 8+5*br.. per branch [bo, g1, be1, g2, be2]
    b1pack rows: 0 b1_t | 1 b1_i
    """
    bf16 = jnp.bfloat16
    f32 = jnp.float32
    scale = 1.0 / math.sqrt(HEAD_DIM)

    vp = vpack_ref[...]            # (32, 128) f32
    b1p = b1pack_ref[...]          # (8, 512)  f32
    mask_bias = mask_ref[...]      # (BL, BK)  f32 block-diagonal bias

    ht = ht_ref[...]               # (B*LQ, D) f32
    hi = hi_ref[...]

    # ---- shared projections: once per claim / evidence type ----------------
    q_t = (jnp.dot(ht.astype(bf16), wq_ref[0],
                   preferred_element_type=f32) + vp[0:1, :]) * scale
    q_i = (jnp.dot(hi.astype(bf16), wq_ref[1],
                   preferred_element_type=f32) + vp[1:2, :]) * scale
    kv_t = jnp.dot(et_ref[...].astype(bf16), wkv_t_ref[...],
                   preferred_element_type=f32)
    kv_i = jnp.dot(ei_ref[...].astype(bf16), wkv_i_ref[...],
                   preferred_element_type=f32)
    k_t = kv_t[:, :EMBED_DIM] + vp[2:3, :]
    v_t = kv_t[:, EMBED_DIM:] + vp[3:4, :]
    k_i = kv_i[:, :EMBED_DIM] + vp[4:5, :]
    v_i = kv_i[:, EMBED_DIM:] + vp[5:6, :]

    def head_split(x):
        return [x[:, h * HEAD_DIM:(h + 1) * HEAD_DIM].astype(bf16)
                for h in range(NUM_HEADS)]

    qh = (head_split(q_t), head_split(q_i))     # per claim type
    kh = (head_split(k_t), head_split(k_i))     # per evidence type
    vh = (head_split(v_t), head_split(v_i))
    h_in = (ht, hi)

    # ---- four branches, statically unrolled: (claim, evidence) -------------
    for br, (ci, ei) in enumerate(((0, 0), (0, 1), (1, 0), (1, 1))):
        base = 8 + 5 * br
        bo = vp[base + 0:base + 1, :]
        g1 = vp[base + 1:base + 2, :]
        be1 = vp[base + 2:base + 3, :]
        g2 = vp[base + 3:base + 4, :]
        be2 = vp[base + 4:base + 5, :]
        wo = wo_ref[br]                                   # (D, D) bf16

        attn = None
        for hd in range(NUM_HEADS):
            # scores over all batch rows; cross-batch pairs masked out.
            s = lax.dot_general(qh[ci][hd], kh[ei][hd],
                                dimension_numbers=(((1,), (1,)), ((), ())),
                                preferred_element_type=f32)
            s = s + mask_bias
            s = s - jnp.max(s, axis=-1, keepdims=True)
            p = jnp.exp(s)
            p = p * pl.reciprocal(jnp.sum(p, axis=-1, keepdims=True),
                                  approx=True)
            ctx = jnp.dot(p.astype(bf16), vh[ei][hd],
                          preferred_element_type=f32)      # (BL, HEAD_DIM)
            contrib = jnp.dot(ctx.astype(bf16),
                              wo[hd * HEAD_DIM:(hd + 1) * HEAD_DIM, :],
                              preferred_element_type=f32)  # (BL, D)
            attn = contrib if attn is None else attn + contrib

        x = h_in[ci] + attn + bo
        x = _layer_norm(x, g1, be1)

        hid = jnp.dot(x.astype(bf16), w1_ref[ci],
                      preferred_element_type=f32) + b1p[ci:ci + 1, :]
        hid = _gelu_exact(hid)
        mlp = jnp.dot(hid.astype(bf16), w2_ref[ci],
                      preferred_element_type=f32) + vp[6 + ci:7 + ci, :]
        x = x + mlp
        x = _layer_norm(x, g2, be2)

        o_ref[br] = x.astype(o_ref.dtype)


# --------------------------- one-time weight staging -------------------------
def prepare_params(params):
    """Stack / cast / pack all weights once (kept resident; not per-call)."""
    bf16 = jnp.bfloat16
    f32 = jnp.float32

    def w(t):
        return jnp.asarray(t[0], bf16)

    def b(t):
        return jnp.asarray(t[1], f32).reshape(-1)

    wq = jnp.stack([w(params['text_WQ']), w(params['image_WQ'])])
    wkv_t = jnp.concatenate([w(params['text_ev_key']),
                             w(params['text_ev_val'])], axis=1)
    wkv_i = jnp.concatenate([w(params['image_ev_key']),
                             w(params['image_ev_val'])], axis=1)
    wo = jnp.stack([w(params['tt_out']), w(params['ti_out']),
                    w(params['it_out']), w(params['ii_out'])])
    w1 = jnp.stack([w(params['text_mlp_1']), w(params['image_mlp_1'])])
    w2 = jnp.stack([w(params['text_mlp_2']), w(params['image_mlp_2'])])

    rows = [
        b(params['text_WQ']), b(params['image_WQ']),
        b(params['text_ev_key']), b(params['text_ev_val']),
        b(params['image_ev_key']), b(params['image_ev_val']),
        b(params['text_mlp_2']), b(params['image_mlp_2']),
    ]
    for tag in ('tt', 'ti', 'it', 'ii'):
        rows.append(b(params[tag + '_out']))
        rows.append(jnp.asarray(params[tag + '_ln1'][0], f32).reshape(-1))
        rows.append(jnp.asarray(params[tag + '_ln1'][1], f32).reshape(-1))
        rows.append(jnp.asarray(params[tag + '_ln2'][0], f32).reshape(-1))
        rows.append(jnp.asarray(params[tag + '_ln2'][1], f32).reshape(-1))
    vpack = jnp.stack(rows)                                        # (28, 128)
    vpack = jnp.pad(vpack, ((0, 32 - vpack.shape[0]), (0, 0)))     # (32, 128)

    b1pack = jnp.stack([b(params['text_mlp_1']),
                        b(params['image_mlp_1'])])                 # (2, 512)
    b1pack = jnp.pad(b1pack, ((0, 6), (0, 0)))                     # (8, 512)

    prep = dict(wq=wq, wkv_t=wkv_t, wkv_i=wkv_i, wo=wo, w1=w1, w2=w2,
                vpack=vpack, b1pack=b1pack)
    return jax.block_until_ready(prep)


# --------------------------------- forward ----------------------------------
@jax.jit
def _fused_forward(prep, H_t, H_i, E_t, E_i):
    bsz, lq, d = H_t.shape
    lk = E_t.shape[1]
    f32 = jnp.float32
    ht = H_t.reshape(bsz * lq, d).astype(f32)
    hi = H_i.reshape(bsz * lq, d).astype(f32)
    et = E_t.reshape(bsz * lk, E_t.shape[2]).astype(f32)
    ei = E_i.reshape(bsz * lk, E_i.shape[2]).astype(f32)

    # Block-diagonal batch mask: constant (shape-only), built once on host.
    rb = np.arange(bsz * lq)[:, None] // lq
    cb = np.arange(bsz * lk)[None, :] // lk
    mask = jnp.asarray(np.where(rb == cb, 0.0, _NEG).astype(np.float32))

    out = pl.pallas_call(
        _fused_kernel,
        out_shape=jax.ShapeDtypeStruct((4, bsz * lq, d), f32),
    )(ht, hi, et, ei, mask,
      prep['wq'], prep['wkv_t'], prep['wkv_i'], prep['wo'],
      prep['w1'], prep['w2'], prep['vpack'], prep['b1pack'])
    return out.reshape(4, bsz, lq, d)


def cross_attention_evidence_conditioning(prep, H_t=None, H_i=None,
                                          E_t=None, E_i=None):
    """Mirrors CrossAttentionEvidenceConditioning.forward (eval mode)."""
    has_ht, has_hi = H_t is not None, H_i is not None
    has_et, has_ei = E_t is not None, E_i is not None
    if not ((has_ht or has_hi) and (has_et or has_ei)):
        return ((None, None), (None, None))

    ref_h = H_t if has_ht else H_i
    ref_e = E_t if has_et else E_i
    bsz, lq = ref_h.shape[0], ref_h.shape[1]
    lk = ref_e.shape[1]
    # Zero-fill missing operands; the corresponding branches are discarded.
    H_t_ = H_t if has_ht else jnp.zeros((bsz, lq, EMBED_DIM), jnp.float32)
    H_i_ = H_i if has_hi else jnp.zeros((bsz, lq, EMBED_DIM), jnp.float32)
    E_t_ = E_t if has_et else jnp.zeros((bsz, lk, TEXT_IN_DIM), jnp.float32)
    E_i_ = E_i if has_ei else jnp.zeros((bsz, lk, IMG_IN_DIM), jnp.float32)

    out = _fused_forward(prep, H_t_, H_i_, E_t_, E_i_)
    S_tt = out[0] if (has_ht and has_et) else None
    S_ti = out[1] if (has_ht and has_ei) else None
    S_it = out[2] if (has_hi and has_et) else None
    S_ii = out[3] if (has_hi and has_ei) else None
    return ((S_tt, S_ti), (S_it, S_ii))


# ------------------------- parameter construction ---------------------------
def _linear_params(key, in_dim, out_dim):
    k1, k2 = jax.random.split(key)
    bound = 1.0 / math.sqrt(in_dim)
    w = jax.random.uniform(k1, (in_dim, out_dim), jnp.float32, -bound, bound)
    b = jax.random.uniform(k2, (1, out_dim), jnp.float32, -bound, bound)
    return w, b


def make_params(key):
    keys = jax.random.split(key, 16)
    p = {}
    p['text_WQ'] = _linear_params(keys[0], EMBED_DIM, EMBED_DIM)
    p['image_WQ'] = _linear_params(keys[1], EMBED_DIM, EMBED_DIM)
    p['text_ev_key'] = _linear_params(keys[2], TEXT_IN_DIM, EMBED_DIM)
    p['text_ev_val'] = _linear_params(keys[3], TEXT_IN_DIM, EMBED_DIM)
    p['image_ev_key'] = _linear_params(keys[4], IMG_IN_DIM, EMBED_DIM)
    p['image_ev_val'] = _linear_params(keys[5], IMG_IN_DIM, EMBED_DIM)
    p['tt_out'] = _linear_params(keys[6], EMBED_DIM, EMBED_DIM)
    p['ti_out'] = _linear_params(keys[7], EMBED_DIM, EMBED_DIM)
    p['it_out'] = _linear_params(keys[8], EMBED_DIM, EMBED_DIM)
    p['ii_out'] = _linear_params(keys[9], EMBED_DIM, EMBED_DIM)
    for name in ['tt_ln1', 'tt_ln2', 'ti_ln1', 'ti_ln2',
                 'it_ln1', 'it_ln2', 'ii_ln1', 'ii_ln2']:
        p[name] = (jnp.ones((1, EMBED_DIM), jnp.float32),
                   jnp.zeros((1, EMBED_DIM), jnp.float32))
    p['text_mlp_1'] = _linear_params(keys[10], EMBED_DIM, MLP_HIDDEN)
    p['text_mlp_2'] = _linear_params(keys[11], MLP_HIDDEN, EMBED_DIM)
    p['image_mlp_1'] = _linear_params(keys[12], EMBED_DIM, MLP_HIDDEN)
    p['image_mlp_2'] = _linear_params(keys[13], MLP_HIDDEN, EMBED_DIM)
    return p


def _branch_dict(wq, kv_key, kv_val, out, ln1, ln2, mlp1, mlp2):
    return dict(
        wq=wq[0], bq=wq[1], wk=kv_key[0], bk=kv_key[1],
        wv=kv_val[0], bv=kv_val[1], wo=out[0], bo=out[1],
        ln1_g=ln1[0], ln1_b=ln1[1], ln2_g=ln2[0], ln2_b=ln2[1],
        mlp_w1=mlp1[0], mlp_b1=mlp1[1], mlp_w2=mlp2[0], mlp_b2=mlp2[1],
    )


# --------------------------- pure-JAX reference -----------------------------
def _mm_bf16(x, w):
    """Matmul with the same bf16-operand / f32-accumulate scheme as the kernel."""
    return jax.lax.dot_general(
        x.astype(jnp.bfloat16), w.astype(jnp.bfloat16),
        dimension_numbers=(((x.ndim - 1,), (0,)), ((), ())),
        preferred_element_type=jnp.float32)


def _branch_ref(H, E, p):
    bf16 = jnp.bfloat16
    f32 = jnp.float32
    q = _mm_bf16(H, p['wq']) + p['bq']
    k = _mm_bf16(E, p['wk']) + p['bk']
    v = _mm_bf16(E, p['wv']) + p['bv']
    b, lq, d = q.shape
    lk = k.shape[1]
    qh = q.reshape(b, lq, NUM_HEADS, HEAD_DIM)
    kh = k.reshape(b, lk, NUM_HEADS, HEAD_DIM)
    vh = v.reshape(b, lk, NUM_HEADS, HEAD_DIM)
    sc = jnp.einsum('bqhd,bkhd->bhqk', qh.astype(bf16), kh.astype(bf16),
                    preferred_element_type=f32) / math.sqrt(HEAD_DIM)
    pr = jax.nn.softmax(sc, axis=-1)
    ctx = jnp.einsum('bhqk,bkhd->bqhd', pr.astype(bf16), vh.astype(bf16),
                     preferred_element_type=f32).reshape(b, lq, d)
    attn = _mm_bf16(ctx, p['wo']) + p['bo']
    x = H + attn
    x = _layer_norm(x, p['ln1_g'], p['ln1_b'])
    hid = jax.nn.gelu(_mm_bf16(x, p['mlp_w1']) + p['mlp_b1'], approximate=False)
    x = x + _mm_bf16(hid, p['mlp_w2']) + p['mlp_b2']
    return _layer_norm(x, p['ln2_g'], p['ln2_b'])


if __name__ == "__main__":
    key = jax.random.PRNGKey(0)
    kp, kh_t, kh_i, ke_t, ke_i = jax.random.split(key, 5)
    params = make_params(kp)
    prep = prepare_params(params)          # one-time staging (hot path is jitted)

    H_t = jax.random.normal(kh_t, (B, LQ, EMBED_DIM), jnp.float32)
    H_i = jax.random.normal(kh_i, (B, LQ, EMBED_DIM), jnp.float32)
    E_t = jax.random.normal(ke_t, (B, LK, TEXT_IN_DIM), jnp.float32)
    E_i = jax.random.normal(ke_i, (B, LK, IMG_IN_DIM), jnp.float32)

    (S_t_t, S_t_i), (S_i_t, S_i_i) = cross_attention_evidence_conditioning(
        prep, H_t=H_t, H_i=H_i, E_t=E_t, E_i=E_i)
    jax.block_until_ready((S_t_t, S_t_i, S_i_t, S_i_i))

    combos = [
        ('S_t_t', S_t_t, H_t, E_t,
         _branch_dict(params['text_WQ'], params['text_ev_key'],
                      params['text_ev_val'], params['tt_out'],
                      params['tt_ln1'], params['tt_ln2'],
                      params['text_mlp_1'], params['text_mlp_2'])),
        ('S_t_i', S_t_i, H_t, E_i,
         _branch_dict(params['text_WQ'], params['image_ev_key'],
                      params['image_ev_val'], params['ti_out'],
                      params['ti_ln1'], params['ti_ln2'],
                      params['text_mlp_1'], params['text_mlp_2'])),
        ('S_i_t', S_i_t, H_i, E_t,
         _branch_dict(params['image_WQ'], params['text_ev_key'],
                      params['text_ev_val'], params['it_out'],
                      params['it_ln1'], params['it_ln2'],
                      params['image_mlp_1'], params['image_mlp_2'])),
        ('S_i_i', S_i_i, H_i, E_i,
         _branch_dict(params['image_WQ'], params['image_ev_key'],
                      params['image_ev_val'], params['ii_out'],
                      params['ii_ln1'], params['ii_ln2'],
                      params['image_mlp_1'], params['image_mlp_2'])),
    ]
    # Tolerance covers the approx-reciprocal softmax, the ~1.5e-7 erf poly, and
    # MXU accumulation-order differences vs. a bf16-matched pure-JAX reference
    # (outputs are post-LN, ~N(0,1); wiring bugs would show O(1) errors).
    for name, out, Hc, Ec, pdict in combos:
        ref = _branch_ref(Hc, Ec, pdict)
        err = float(jnp.max(jnp.abs(out - ref)))
        assert err < 5e-2, f"{name} mismatch vs reference: max abs err {err}"

    # TODO(synk): dropout layers are identity here (eval mode); training-time
    # stochastic dropout would use pltpu.prng_seed / stateful_bernoulli.
    print("KERNEL_OK")
</pallas_src>

<mosaic_0001>
module attributes {stable_mosaic.version = 11 : i64} {
  func.func @_fused_kernel(%arg0: memref<16x128xf32, #tpu.memory_space<vmem>>, %arg1: memref<16x128xf32, #tpu.memory_space<vmem>>, %arg2: memref<16x128xf32, #tpu.memory_space<vmem>>, %arg3: memref<16x256xf32, #tpu.memory_space<vmem>>, %arg4: memref<16x16xf32, #tpu.memory_space<vmem>>, %arg5: memref<2x128x128xbf16, #tpu.memory_space<vmem>>, %arg6: memref<128x256xbf16, #tpu.memory_space<vmem>>, %arg7: memref<256x256xbf16, #tpu.memory_space<vmem>>, %arg8: memref<4x128x128xbf16, #tpu.memory_space<vmem>>, %arg9: memref<2x128x512xbf16, #tpu.memory_space<vmem>>, %arg10: memref<2x512x128xbf16, #tpu.memory_space<vmem>>, %arg11: memref<32x128xf32, #tpu.memory_space<vmem>>, %arg12: memref<8x512xf32, #tpu.memory_space<vmem>>, %arg13: memref<4x16x128xf32, #tpu.memory_space<vmem>>) attributes {dimension_semantics = [], scalar_prefetch = 0 : i64, scratch_operands = 0 : i64, tpu.core_type = #tpu.core_type<tc>} {
    %c0 = arith.constant 0 : index
    %c0_0 = arith.constant 0 : index
    %0 = vector.load %arg11[%c0, %c0_0] : memref<32x128xf32, #tpu.memory_space<vmem>>, vector<32x128xf32>
    %c0_1 = arith.constant 0 : index
    %c0_2 = arith.constant 0 : index
    %1 = vector.load %arg12[%c0_1, %c0_2] : memref<8x512xf32, #tpu.memory_space<vmem>>, vector<8x512xf32>
    %c0_3 = arith.constant 0 : index
    %c0_4 = arith.constant 0 : index
    %2 = vector.load %arg4[%c0_3, %c0_4] : memref<16x16xf32, #tpu.memory_space<vmem>>, vector<16x16xf32>
    %c0_5 = arith.constant 0 : index
    %c0_6 = arith.constant 0 : index
    %3 = vector.load %arg0[%c0_5, %c0_6] : memref<16x128xf32, #tpu.memory_space<vmem>>, vector<16x128xf32>
    %c0_7 = arith.constant 0 : index
    %c0_8 = arith.constant 0 : index
    %4 = vector.load %arg1[%c0_7, %c0_8] : memref<16x128xf32, #tpu.memory_space<vmem>>, vector<16x128xf32>
    %5 = arith.truncf %3 : vector<16x128xf32> to vector<16x128xbf16>
    %c0_9 = arith.constant 0 : index
    %c0_10 = arith.constant 0 : index
    %c0_11 = arith.constant 0 : index
    %6 = vector.load %arg5[%c0_9, %c0_10, %c0_11] : memref<2x128x128xbf16, #tpu.memory_space<vmem>>, vector<1x128x128xbf16>
    %7 = vector.shape_cast %6 : vector<1x128x128xbf16> to vector<128x128xbf16>
    %cst = arith.constant dense<0.000000e+00> : vector<16x128xf32>
    %8 = tpu.matmul %5, %7, %cst {dimension_numbers = #tpu.dot_dimension_numbers<[1], [0], [0], [1], [0, 0, 1, 1], [], []>} : vector<16x128xbf16>, vector<128x128xbf16>, vector<16x128xf32> -> vector<16x128xf32>
    %9 = vector.extract_strided_slice %0 {offsets = [0, 0], sizes = [1, 128], strides = [1, 1]} : vector<32x128xf32> to vector<1x128xf32>
    %10 = vector.broadcast %9 : vector<1x128xf32> to vector<16x128xf32>
    %11 = arith.addf %8, %10 : vector<16x128xf32>
    %cst_12 = arith.constant 0.176776692 : f32
    %12 = vector.broadcast %cst_12 : f32 to vector<16x128xf32>
    %13 = arith.mulf %11, %12 : vector<16x128xf32>
    %14 = arith.truncf %4 : vector<16x128xf32> to vector<16x128xbf16>
    %c1 = arith.constant 1 : index
    %c0_13 = arith.constant 0 : index
    %c0_14 = arith.constant 0 : index
    %15 = vector.load %arg5[%c1, %c0_13, %c0_14] : memref<2x128x128xbf16, #tpu.memory_space<vmem>>, vector<1x128x128xbf16>
    %16 = vector.shape_cast %15 : vector<1x128x128xbf16> to vector<128x128xbf16>
    %cst_15 = arith.constant dense<0.000000e+00> : vector<16x128xf32>
    %17 = tpu.matmul %14, %16, %cst_15 {dimension_numbers = #tpu.dot_dimension_numbers<[1], [0], [0], [1], [0, 0, 1, 1], [], []>} : vector<16x128xbf16>, vector<128x128xbf16>, vector<16x128xf32> -> vector<16x128xf32>
    %18 = vector.extract_strided_slice %0 {offsets = [1, 0], sizes = [1, 128], strides = [1, 1]} : vector<32x128xf32> to vector<1x128xf32>
    %19 = vector.broadcast %18 : vector<1x128xf32> to vector<16x128xf32>
    %20 = arith.addf %17, %19 : vector<16x128xf32>
    %cst_16 = arith.constant 0.176776692 : f32
    %21 = vector.broadcast %cst_16 : f32 to vector<16x128xf32>
    %22 = arith.mulf %20, %21 : vector<16x128xf32>
    %c0_17 = arith.constant 0 : index
    %c0_18 = arith.constant 0 : index
    %23 = vector.load %arg2[%c0_17, %c0_18] : memref<16x128xf32, #tpu.memory_space<vmem>>, vector<16x128xf32>
    %24 = arith.truncf %23 : vector<16x128xf32> to vector<16x128xbf16>
    %c0_19 = arith.constant 0 : index
    %c0_20 = arith.constant 0 : index
    %25 = vector.load %arg6[%c0_19, %c0_20] : memref<128x256xbf16, #tpu.memory_space<vmem>>, vector<128x256xbf16>
    %cst_21 = arith.constant dense<0.000000e+00> : vector<16x256xf32>
    %26 = tpu.matmul %24, %25, %cst_21 {dimension_numbers = #tpu.dot_dimension_numbers<[1], [0], [0], [1], [0, 0, 1, 1], [], []>} : vector<16x128xbf16>, vector<128x256xbf16>, vector<16x256xf32> -> vector<16x256xf32>
    %c0_22 = arith.constant 0 : index
    %c0_23 = arith.constant 0 : index
    %27 = vector.load %arg3[%c0_22, %c0_23] : memref<16x256xf32, #tpu.memory_space<vmem>>, vector<16x256xf32>
    %28 = arith.truncf %27 : vector<16x256xf32> to vector<16x256xbf16>
    %c0_24 = arith.constant 0 : index
    %c0_25 = arith.constant 0 : index
    %29 = vector.load %arg7[%c0_24, %c0_25] : memref<256x256xbf16, #tpu.memory_space<vmem>>, vector<256x256xbf16>
    %cst_26 = arith.constant dense<0.000000e+00> : vector<16x256xf32>
    %30 = tpu.matmul %28, %29, %cst_26 {dimension_numbers = #tpu.dot_dimension_numbers<[1], [0], [0], [1], [0, 0, 1, 1], [], []>} : vector<16x256xbf16>, vector<256x256xbf16>, vector<16x256xf32> -> vector<16x256xf32>
    %31 = vector.extract_strided_slice %26 {offsets = [0, 0], sizes = [16, 128], strides = [1, 1]} : vector<16x256xf32> to vector<16x128xf32>
    %32 = vector.extract_strided_slice %0 {offsets = [2, 0], sizes = [1, 128], strides = [1, 1]} : vector<32x128xf32> to vector<1x128xf32>
    %33 = vector.broadcast %32 : vector<1x128xf32> to vector<16x128xf32>
    %34 = arith.addf %31, %33 : vector<16x128xf32>
    %35 = vector.extract_strided_slice %26 {offsets = [0, 128], sizes = [16, 128], strides = [1, 1]} : vector<16x256xf32> to vector<16x128xf32>
    %36 = vector.extract_strided_slice %0 {offsets = [3, 0], sizes = [1, 128], strides = [1, 1]} : vector<32x128xf32> to vector<1x128xf32>
    %37 = vector.broadcast %36 : vector<1x128xf32> to vector<16x128xf32>
    %38 = arith.addf %35, %37 : vector<16x128xf32>
    %39 = vector.extract_strided_slice %30 {offsets = [0, 0], sizes = [16, 128], strides = [1, 1]} : vector<16x256xf32> to vector<16x128xf32>
    %40 = vector.extract_strided_slice %0 {offsets = [4, 0], sizes = [1, 128], strides = [1, 1]} : vector<32x128xf32> to vector<1x128xf32>
    %41 = vector.broadcast %40 : vector<1x128xf32> to vector<16x128xf32>
    %42 = arith.addf %39, %41 : vector<16x128xf32>
    %43 = vector.extract_strided_slice %30 {offsets = [0, 128], sizes = [16, 128], strides = [1, 1]} : vector<16x256xf32> to vector<16x128xf32>
    %44 = vector.extract_strided_slice %0 {offsets = [5, 0], sizes = [1, 128], strides = [1, 1]} : vector<32x128xf32> to vector<1x128xf32>
    %45 = vector.broadcast %44 : vector<1x128xf32> to vector<16x128xf32>
    %46 = arith.addf %43, %45 : vector<16x128xf32>
    %47 = vector.extract_strided_slice %13 {offsets = [0, 0], sizes = [16, 32], strides = [1, 1]} : vector<16x128xf32> to vector<16x32xf32>
    %48 = arith.truncf %47 : vector<16x32xf32> to vector<16x32xbf16>
    %49 = vector.extract_strided_slice %13 {offsets = [0, 32], sizes = [16, 32], strides = [1, 1]} : vector<16x128xf32> to vector<16x32xf32>
    %50 = arith.truncf %49 : vector<16x32xf32> to vector<16x32xbf16>
    %51 = vector.extract_strided_slice %13 {offsets = [0, 64], sizes = [16, 32], strides = [1, 1]} : vector<16x128xf32> to vector<16x32xf32>
    %52 = arith.truncf %51 : vector<16x32xf32> to vector<16x32xbf16>
    %53 = vector.extract_strided_slice %13 {offsets = [0, 96], sizes = [16, 32], strides = [1, 1]} : vector<16x128xf32> to vector<16x32xf32>
    %54 = arith.truncf %53 : vector<16x32xf32> to vector<16x32xbf16>
    %55 = vector.extract_strided_slice %22 {offsets = [0, 0], sizes = [16, 32], strides = [1, 1]} : vector<16x128xf32> to vector<16x32xf32>
    %56 = arith.truncf %55 : vector<16x32xf32> to vector<16x32xbf16>
    %57 = vector.extract_strided_slice %22 {offsets = [0, 32], sizes = [16, 32], strides = [1, 1]} : vector<16x128xf32> to vector<16x32xf32>
    %58 = arith.truncf %57 : vector<16x32xf32> to vector<16x32xbf16>
    %59 = vector.extract_strided_slice %22 {offsets = [0, 64], sizes = [16, 32], strides = [1, 1]} : vector<16x128xf32> to vector<16x32xf32>
    %60 = arith.truncf %59 : vector<16x32xf32> to vector<16x32xbf16>
    %61 = vector.extract_strided_slice %22 {offsets = [0, 96], sizes = [16, 32], strides = [1, 1]} : vector<16x128xf32> to vector<16x32xf32>
    %62 = arith.truncf %61 : vector<16x32xf32> to vector<16x32xbf16>
    %63 = vector.extract_strided_slice %34 {offsets = [0, 0], sizes = [16, 32], strides = [1, 1]} : vector<16x128xf32> to vector<16x32xf32>
    %64 = arith.truncf %63 : vector<16x32xf32> to vector<16x32xbf16>
    %65 = vector.extract_strided_slice %34 {offsets = [0, 32], sizes = [16, 32], strides = [1, 1]} : vector<16x128xf32> to vector<16x32xf32>
    %66 = arith.truncf %65 : vector<16x32xf32> to vector<16x32xbf16>
    %67 = vector.extract_strided_slice %34 {offsets = [0, 64], sizes = [16, 32], strides = [1, 1]} : vector<16x128xf32> to vector<16x32xf32>
    %68 = arith.truncf %67 : vector<16x32xf32> to vector<16x32xbf16>
    %69 = vector.extract_strided_slice %34 {offsets = [0, 96], sizes = [16, 32], strides = [1, 1]} : vector<16x128xf32> to vector<16x32xf32>
    %70 = arith.truncf %69 : vector<16x32xf32> to vector<16x32xbf16>
    %71 = vector.extract_strided_slice %42 {offsets = [0, 0], sizes = [16, 32], strides = [1, 1]} : vector<16x128xf32> to vector<16x32xf32>
    %72 = arith.truncf %71 : vector<16x32xf32> to vector<16x32xbf16>
    %73 = vector.extract_strided_slice %42 {offsets = [0, 32], sizes = [16, 32], strides = [1, 1]} : vector<16x128xf32> to vector<16x32xf32>
    %74 = arith.truncf %73 : vector<16x32xf32> to vector<16x32xbf16>
    %75 = vector.extract_strided_slice %42 {offsets = [0, 64], sizes = [16, 32], strides = [1, 1]} : vector<16x128xf32> to vector<16x32xf32>
    %76 = arith.truncf %75 : vector<16x32xf32> to vector<16x32xbf16>
    %77 = vector.extract_strided_slice %42 {offsets = [0, 96], sizes = [16, 32], strides = [1, 1]} : vector<16x128xf32> to vector<16x32xf32>
    %78 = arith.truncf %77 : vector<16x32xf32> to vector<16x32xbf16>
    %79 = vector.extract_strided_slice %38 {offsets = [0, 0], sizes = [16, 32], strides = [1, 1]} : vector<16x128xf32> to vector<16x32xf32>
    %80 = arith.truncf %79 : vector<16x32xf32> to vector<16x32xbf16>
    %81 = vector.extract_strided_slice %38 {offsets = [0, 32], sizes = [16, 32], strides = [1, 1]} : vector<16x128xf32> to vector<16x32xf32>
    %82 = arith.truncf %81 : vector<16x32xf32> to vector<16x32xbf16>
    %83 = vector.extract_strided_slice %38 {offsets = [0, 64], sizes = [16, 32], strides = [1, 1]} : vector<16x128xf32> to vector<16x32xf32>
    %84 = arith.truncf %83 : vector<16x32xf32> to vector<16x32xbf16>
    %85 = vector.extract_strided_slice %38 {offsets = [0, 96], sizes = [16, 32], strides = [1, 1]} : vector<16x128xf32> to vector<16x32xf32>
    %86 = arith.truncf %85 : vector<16x32xf32> to vector<16x32xbf16>
    %87 = vector.extract_strided_slice %46 {offsets = [0, 0], sizes = [16, 32], strides = [1, 1]} : vector<16x128xf32> to vector<16x32xf32>
    %88 = arith.truncf %87 : vector<16x32xf32> to vector<16x32xbf16>
    %89 = vector.extract_strided_slice %46 {offsets = [0, 32], sizes = [16, 32], strides = [1, 1]} : vector<16x128xf32> to vector<16x32xf32>
    %90 = arith.truncf %89 : vector<16x32xf32> to vector<16x32xbf16>
    %91 = vector.extract_strided_slice %46 {offsets = [0, 64], sizes = [16, 32], strides = [1, 1]} : vector<16x128xf32> to vector<16x32xf32>
    %92 = arith.truncf %91 : vector<16x32xf32> to vector<16x32xbf16>
    %93 = vector.extract_strided_slice %46 {offsets = [0, 96], sizes = [16, 32], strides = [1, 1]} : vector<16x128xf32> to vector<16x32xf32>
    %94 = arith.truncf %93 : vector<16x32xf32> to vector<16x32xbf16>
    %95 = vector.extract_strided_slice %0 {offsets = [8, 0], sizes = [1, 128], strides = [1, 1]} : vector<32x128xf32> to vector<1x128xf32>
    %96 = vector.extract_strided_slice %0 {offsets = [9, 0], sizes = [1, 128], strides = [1, 1]} : vector<32x128xf32> to vector<1x128xf32>
    %97 = vector.extract_strided_slice %0 {offsets = [10, 0], sizes = [1, 128], strides = [1, 1]} : vector<32x128xf32> to vector<1x128xf32>
    %98 = vector.extract_strided_slice %0 {offsets = [11, 0], sizes = [1, 128], strides = [1, 1]} : vector<32x128xf32> to vector<1x128xf32>
    %99 = vector.extract_strided_slice %0 {offsets = [12, 0], sizes = [1, 128], strides = [1, 1]} : vector<32x128xf32> to vector<1x128xf32>
    %c0_27 = arith.constant 0 : index
    %c0_28 = arith.constant 0 : index
    %c0_29 = arith.constant 0 : index
    %100 = vector.load %arg8[%c0_27, %c0_28, %c0_29] : memref<4x128x128xbf16, #tpu.memory_space<vmem>>, vector<1x128x128xbf16>
    %101 = vector.shape_cast %100 : vector<1x128x128xbf16> to vector<128x128xbf16>
    %cst_30 = arith.constant dense<0.000000e+00> : vector<16x16xf32>
    %102 = tpu.matmul %48, %64, %cst_30 {dimension_numbers = #tpu.dot_dimension_numbers<[1], [1], [0], [0], [0, 0, 1, 0], [], []>} : vector<16x32xbf16>, vector<16x32xbf16>, vector<16x16xf32> -> vector<16x16xf32>
    %103 = arith.addf %102, %2 : vector<16x16xf32>
    %cst_31 = arith.constant dense<0xFF800000> : vector<16xf32>
    %104 = vector.multi_reduction <maximumf>, %103, %cst_31 [1] : vector<16x16xf32> to vector<16xf32>
    %105 = vector.shape_cast %104 : vector<16xf32> to vector<16x1xf32>
    %106 = vector.broadcast %105 : vector<16x1xf32> to vector<16x16xf32>
    %107 = arith.subf %103, %106 : vector<16x16xf32>
    %108 = math.exp %107 : vector<16x16xf32>
    %cst_32 = arith.constant dense<0.000000e+00> : vector<16xf32>
    %109 = vector.multi_reduction <add>, %108, %cst_32 [1] : vector<16x16xf32> to vector<16xf32>
    %110 = vector.shape_cast %109 : vector<16xf32> to vector<16x1xf32>
    %111 = tpu.reciprocal %110 {approx = true} : vector<16x1xf32> -> vector<16x1xf32>
    %112 = vector.broadcast %111 : vector<16x1xf32> to vector<16x16xf32>
    %113 = arith.mulf %108, %112 : vector<16x16xf32>
    %114 = arith.truncf %113 : vector<16x16xf32> to vector<16x16xbf16>
    %cst_33 = arith.constant dense<0.000000e+00> : vector<16x32xf32>
    %115 = tpu.matmul %114, %80, %cst_33 {dimension_numbers = #tpu.dot_dimension_numbers<[1], [0], [0], [1], [0, 0, 1, 1], [], []>} : vector<16x16xbf16>, vector<16x32xbf16>, vector<16x32xf32> -> vector<16x32xf32>
    %116 = arith.truncf %115 : vector<16x32xf32> to vector<16x32xbf16>
    %117 = vector.extract_strided_slice %101 {offsets = [0, 0], sizes = [32, 128], strides = [1, 1]} : vector<128x128xbf16> to vector<32x128xbf16>
    %cst_34 = arith.constant dense<0.000000e+00> : vector<16x128xf32>
    %118 = tpu.matmul %116, %117, %cst_34 {dimension_numbers = #tpu.dot_dimension_numbers<[1], [0], [0], [1], [0, 0, 1, 1], [], []>} : vector<16x32xbf16>, vector<32x128xbf16>, vector<16x128xf32> -> vector<16x128xf32>
    %cst_35 = arith.constant dense<0.000000e+00> : vector<16x16xf32>
    %119 = tpu.matmul %50, %66, %cst_35 {dimension_numbers = #tpu.dot_dimension_numbers<[1], [1], [0], [0], [0, 0, 1, 0], [], []>} : vector<16x32xbf16>, vector<16x32xbf16>, vector<16x16xf32> -> vector<16x16xf32>
    %120 = arith.addf %119, %2 : vector<16x16xf32>
    %cst_36 = arith.constant dense<0xFF800000> : vector<16xf32>
    %121 = vector.multi_reduction <maximumf>, %120, %cst_36 [1] : vector<16x16xf32> to vector<16xf32>
    %122 = vector.shape_cast %121 : vector<16xf32> to vector<16x1xf32>
    %123 = vector.broadcast %122 : vector<16x1xf32> to vector<16x16xf32>
    %124 = arith.subf %120, %123 : vector<16x16xf32>
    %125 = math.exp %124 : vector<16x16xf32>
    %cst_37 = arith.constant dense<0.000000e+00> : vector<16xf32>
    %126 = vector.multi_reduction <add>, %125, %cst_37 [1] : vector<16x16xf32> to vector<16xf32>
    %127 = vector.shape_cast %126 : vector<16xf32> to vector<16x1xf32>
    %128 = tpu.reciprocal %127 {approx = true} : vector<16x1xf32> -> vector<16x1xf32>
    %129 = vector.broadcast %128 : vector<16x1xf32> to vector<16x16xf32>
    %130 = arith.mulf %125, %129 : vector<16x16xf32>
    %131 = arith.truncf %130 : vector<16x16xf32> to vector<16x16xbf16>
    %cst_38 = arith.constant dense<0.000000e+00> : vector<16x32xf32>
    %132 = tpu.matmul %131, %82, %cst_38 {dimension_numbers = #tpu.dot_dimension_numbers<[1], [0], [0], [1], [0, 0, 1, 1], [], []>} : vector<16x16xbf16>, vector<16x32xbf16>, vector<16x32xf32> -> vector<16x32xf32>
    %133 = arith.truncf %132 : vector<16x32xf32> to vector<16x32xbf16>
    %134 = vector.extract_strided_slice %101 {offsets = [32, 0], sizes = [32, 128], strides = [1, 1]} : vector<128x128xbf16> to vector<32x128xbf16>
    %cst_39 = arith.constant dense<0.000000e+00> : vector<16x128xf32>
    %135 = tpu.matmul %133, %134, %cst_39 {dimension_numbers = #tpu.dot_dimension_numbers<[1], [0], [0], [1], [0, 0, 1, 1], [], []>} : vector<16x32xbf16>, vector<32x128xbf16>, vector<16x128xf32> -> vector<16x128xf32>
    %136 = arith.addf %118, %135 : vector<16x128xf32>
    %cst_40 = arith.constant dense<0.000000e+00> : vector<16x16xf32>
    %137 = tpu.matmul %52, %68, %cst_40 {dimension_numbers = #tpu.dot_dimension_numbers<[1], [1], [0], [0], [0, 0, 1, 0], [], []>} : vector<16x32xbf16>, vector<16x32xbf16>, vector<16x16xf32> -> vector<16x16xf32>
    %138 = arith.addf %137, %2 : vector<16x16xf32>
    %cst_41 = arith.constant dense<0xFF800000> : vector<16xf32>
    %139 = vector.multi_reduction <maximumf>, %138, %cst_41 [1] : vector<16x16xf32> to vector<16xf32>
    %140 = vector.shape_cast %139 : vector<16xf32> to vector<16x1xf32>
    %141 = vector.broadcast %140 : vector<16x1xf32> to vector<16x16xf32>
    %142 = arith.subf %138, %141 : vector<16x16xf32>
    %143 = math.exp %142 : vector<16x16xf32>
    %cst_42 = arith.constant dense<0.000000e+00> : vector<16xf32>
    %144 = vector.multi_reduction <add>, %143, %cst_42 [1] : vector<16x16xf32> to vector<16xf32>
    %145 = vector.shape_cast %144 : vector<16xf32> to vector<16x1xf32>
    %146 = tpu.reciprocal %145 {approx = true} : vector<16x1xf32> -> vector<16x1xf32>
    %147 = vector.broadcast %146 : vector<16x1xf32> to vector<16x16xf32>
    %148 = arith.mulf %143, %147 : vector<16x16xf32>
    %149 = arith.truncf %148 : vector<16x16xf32> to vector<16x16xbf16>
    %cst_43 = arith.constant dense<0.000000e+00> : vector<16x32xf32>
    %150 = tpu.matmul %149, %84, %cst_43 {dimension_numbers = #tpu.dot_dimension_numbers<[1], [0], [0], [1], [0, 0, 1, 1], [], []>} : vector<16x16xbf16>, vector<16x32xbf16>, vector<16x32xf32> -> vector<16x32xf32>
    %151 = arith.truncf %150 : vector<16x32xf32> to vector<16x32xbf16>
    %152 = vector.extract_strided_slice %101 {offsets = [64, 0], sizes = [32, 128], strides = [1, 1]} : vector<128x128xbf16> to vector<32x128xbf16>
    %cst_44 = arith.constant dense<0.000000e+00> : vector<16x128xf32>
    %153 = tpu.matmul %151, %152, %cst_44 {dimension_numbers = #tpu.dot_dimension_numbers<[1], [0], [0], [1], [0, 0, 1, 1], [], []>} : vector<16x32xbf16>, vector<32x128xbf16>, vector<16x128xf32> -> vector<16x128xf32>
    %154 = arith.addf %136, %153 : vector<16x128xf32>
    %cst_45 = arith.constant dense<0.000000e+00> : vector<16x16xf32>
    %155 = tpu.matmul %54, %70, %cst_45 {dimension_numbers = #tpu.dot_dimension_numbers<[1], [1], [0], [0], [0, 0, 1, 0], [], []>} : vector<16x32xbf16>, vector<16x32xbf16>, vector<16x16xf32> -> vector<16x16xf32>
    %156 = arith.addf %155, %2 : vector<16x16xf32>
    %cst_46 = arith.constant dense<0xFF800000> : vector<16xf32>
    %157 = vector.multi_reduction <maximumf>, %156, %cst_46 [1] : vector<16x16xf32> to vector<16xf32>
    %158 = vector.shape_cast %157 : vector<16xf32> to vector<16x1xf32>
    %159 = vector.broadcast %158 : vector<16x1xf32> to vector<16x16xf32>
    %160 = arith.subf %156, %159 : vector<16x16xf32>
    %161 = math.exp %160 : vector<16x16xf32>
    %cst_47 = arith.constant dense<0.000000e+00> : vector<16xf32>
    %162 = vector.multi_reduction <add>, %161, %cst_47 [1] : vector<16x16xf32> to vector<16xf32>
    %163 = vector.shape_cast %162 : vector<16xf32> to vector<16x1xf32>
    %164 = tpu.reciprocal %163 {approx = true} : vector<16x1xf32> -> vector<16x1xf32>
    %165 = vector.broadcast %164 : vector<16x1xf32> to vector<16x16xf32>
    %166 = arith.mulf %161, %165 : vector<16x16xf32>
    %167 = arith.truncf %166 : vector<16x16xf32> to vector<16x16xbf16>
    %cst_48 = arith.constant dense<0.000000e+00> : vector<16x32xf32>
    %168 = tpu.matmul %167, %86, %cst_48 {dimension_numbers = #tpu.dot_dimension_numbers<[1], [0], [0], [1], [0, 0, 1, 1], [], []>} : vector<16x16xbf16>, vector<16x32xbf16>, vector<16x32xf32> -> vector<16x32xf32>
    %169 = arith.truncf %168 : vector<16x32xf32> to vector<16x32xbf16>
    %170 = vector.extract_strided_slice %101 {offsets = [96, 0], sizes = [32, 128], strides = [1, 1]} : vector<128x128xbf16> to vector<32x128xbf16>
    %cst_49 = arith.constant dense<0.000000e+00> : vector<16x128xf32>
    %171 = tpu.matmul %169, %170, %cst_49 {dimension_numbers = #tpu.dot_dimension_numbers<[1], [0], [0], [1], [0, 0, 1, 1], [], []>} : vector<16x32xbf16>, vector<32x128xbf16>, vector<16x128xf32> -> vector<16x128xf32>
    %172 = arith.addf %154, %171 : vector<16x128xf32>
    %173 = arith.addf %3, %172 : vector<16x128xf32>
    %174 = vector.broadcast %95 : vector<1x128xf32> to vector<16x128xf32>
    %175 = arith.addf %173, %174 : vector<16x128xf32>
    %cst_50 = arith.constant dense<0.000000e+00> : vector<16xf32>
    %176 = vector.multi_reduction <add>, %175, %cst_50 [1] : vector<16x128xf32> to vector<16xf32>
    %177 = vector.shape_cast %176 : vector<16xf32> to vector<16x1xf32>
    %cst_51 = arith.constant 1.280000e+02 : f32
    %178 = vector.broadcast %cst_51 : f32 to vector<16x1xf32>
    %179 = arith.divf %177, %178 : vector<16x1xf32>
    %180 = vector.broadcast %179 : vector<16x1xf32> to vector<16x128xf32>
    %181 = arith.subf %175, %180 : vector<16x128xf32>
    %182 = arith.mulf %181, %181 : vector<16x128xf32>
    %cst_52 = arith.constant dense<0.000000e+00> : vector<16xf32>
    %183 = vector.multi_reduction <add>, %182, %cst_52 [1] : vector<16x128xf32> to vector<16xf32>
    %184 = vector.shape_cast %183 : vector<16xf32> to vector<16x1xf32>
    %cst_53 = arith.constant 1.280000e+02 : f32
    %185 = vector.broadcast %cst_53 : f32 to vector<16x1xf32>
    %186 = arith.divf %184, %185 : vector<16x1xf32>
    %187 = vector.broadcast %179 : vector<16x1xf32> to vector<16x128xf32>
    %188 = arith.subf %175, %187 : vector<16x128xf32>
    %cst_54 = arith.constant 9.99999974E-6 : f32
    %189 = vector.broadcast %cst_54 : f32 to vector<16x1xf32>
    %190 = arith.addf %186, %189 : vector<16x1xf32>
    %191 = math.rsqrt %190 : vector<16x1xf32>
    %192 = vector.broadcast %191 : vector<16x1xf32> to vector<16x128xf32>
    %193 = arith.mulf %188, %192 : vector<16x128xf32>
    %194 = vector.broadcast %96 : vector<1x128xf32> to vector<16x128xf32>
    %195 = arith.mulf %193, %194 : vector<16x128xf32>
    %196 = vector.broadcast %97 : vector<1x128xf32> to vector<16x128xf32>
    %197 = arith.addf %195, %196 : vector<16x128xf32>
    %198 = arith.truncf %197 : vector<16x128xf32> to vector<16x128xbf16>
    %c0_55 = arith.constant 0 : index
    %c0_56 = arith.constant 0 : index
    %c0_57 = arith.constant 0 : index
    %199 = vector.load %arg9[%c0_55, %c0_56, %c0_57] : memref<2x128x512xbf16, #tpu.memory_space<vmem>>, vector<1x128x512xbf16>
    %200 = vector.shape_cast %199 : vector<1x128x512xbf16> to vector<128x512xbf16>
    %cst_58 = arith.constant dense<0.000000e+00> : vector<16x512xf32>
    %201 = tpu.matmul %198, %200, %cst_58 {dimension_numbers = #tpu.dot_dimension_numbers<[1], [0], [0], [1], [0, 0, 1, 1], [], []>} : vector<16x128xbf16>, vector<128x512xbf16>, vector<16x512xf32> -> vector<16x512xf32>
    %202 = vector.extract_strided_slice %1 {offsets = [0, 0], sizes = [1, 512], strides = [1, 1]} : vector<8x512xf32> to vector<1x512xf32>
    %203 = vector.broadcast %202 : vector<1x512xf32> to vector<16x512xf32>
    %204 = arith.addf %201, %203 : vector<16x512xf32>
    %cst_59 = arith.constant 5.000000e-01 : f32
    %205 = vector.broadcast %cst_59 : f32 to vector<16x512xf32>
    %206 = arith.mulf %205, %204 : vector<16x512xf32>
    %cst_60 = arith.constant 0.707106769 : f32
    %207 = vector.broadcast %cst_60 : f32 to vector<16x512xf32>
    %208 = arith.mulf %204, %207 : vector<16x512xf32>
    %cst_61 = arith.constant 0.000000e+00 : f32
    %209 = vector.broadcast %cst_61 : f32 to vector<16x512xf32>
    %210 = arith.cmpf oge, %208, %209 : vector<16x512xf32>
    %cst_62 = arith.constant 1.000000e+00 : f32
    %cst_63 = arith.constant -1.000000e+00 : f32
    %211 = vector.broadcast %cst_62 : f32 to vector<16x512xf32>
    %212 = vector.broadcast %cst_63 : f32 to vector<16x512xf32>
    %213 = arith.select %210, %211, %212 : vector<16x512xi1>, vector<16x512xf32>
    %214 = math.absf %208 : vector<16x512xf32>
    %cst_64 = arith.constant 0.327591091 : f32
    %215 = vector.broadcast %cst_64 : f32 to vector<16x512xf32>
    %216 = arith.mulf %215, %214 : vector<16x512xf32>
    %cst_65 = arith.constant 1.000000e+00 : f32
    %217 = vector.broadcast %cst_65 : f32 to vector<16x512xf32>
    %218 = arith.addf %217, %216 : vector<16x512xf32>
    %cst_66 = arith.constant 1.000000e+00 : f32
    %219 = vector.broadcast %cst_66 : f32 to vector<16x512xf32>
    %220 = arith.divf %219, %218 : vector<16x512xf32>
    %cst_67 = arith.constant 1.06140542 : f32
    %221 = vector.broadcast %cst_67 : f32 to vector<16x512xf32>
    %222 = arith.mulf %221, %220 : vector<16x512xf32>
    %cst_68 = arith.constant -1.45315206 : f32
    %223 = vector.broadcast %cst_68 : f32 to vector<16x512xf32>
    %224 = arith.addf %222, %223 : vector<16x512xf32>
    %225 = arith.mulf %224, %220 : vector<16x512xf32>
    %cst_69 = arith.constant 1.42141378 : f32
    %226 = vector.broadcast %cst_69 : f32 to vector<16x512xf32>
    %227 = arith.addf %225, %226 : vector<16x512xf32>
    %228 = arith.mulf %227, %220 : vector<16x512xf32>
    %cst_70 = arith.constant -0.284496725 : f32
    %229 = vector.broadcast %cst_70 : f32 to vector<16x512xf32>
    %230 = arith.addf %228, %229 : vector<16x512xf32>
    %231 = arith.mulf %230, %220 : vector<16x512xf32>
    %cst_71 = arith.constant 0.254829586 : f32
    %232 = vector.broadcast %cst_71 : f32 to vector<16x512xf32>
    %233 = arith.addf %231, %232 : vector<16x512xf32>
    %234 = arith.mulf %233, %220 : vector<16x512xf32>
    %cst_72 = arith.constant 0.000000e+00 : f32
    %235 = vector.broadcast %cst_72 : f32 to vector<16x512xf32>
    %236 = arith.subf %235, %214 : vector<16x512xf32>
    %237 = arith.mulf %236, %214 : vector<16x512xf32>
    %238 = math.exp %237 : vector<16x512xf32>
    %239 = arith.mulf %234, %238 : vector<16x512xf32>
    %cst_73 = arith.constant 1.000000e+00 : f32
    %240 = vector.broadcast %cst_73 : f32 to vector<16x512xf32>
    %241 = arith.subf %240, %239 : vector<16x512xf32>
    %242 = arith.mulf %213, %241 : vector<16x512xf32>
    %cst_74 = arith.constant 1.000000e+00 : f32
    %243 = vector.broadcast %cst_74 : f32 to vector<16x512xf32>
    %244 = arith.addf %243, %242 : vector<16x512xf32>
    %245 = arith.mulf %206, %244 : vector<16x512xf32>
    %246 = arith.truncf %245 : vector<16x512xf32> to vector<16x512xbf16>
    %c0_75 = arith.constant 0 : index
    %c0_76 = arith.constant 0 : index
    %c0_77 = arith.constant 0 : index
    %247 = vector.load %arg10[%c0_75, %c0_76, %c0_77] : memref<2x512x128xbf16, #tpu.memory_space<vmem>>, vector<1x512x128xbf16>
    %248 = vector.shape_cast %247 : vector<1x512x128xbf16> to vector<512x128xbf16>
    %cst_78 = arith.constant dense<0.000000e+00> : vector<16x128xf32>
    %249 = tpu.matmul %246, %248, %cst_78 {dimension_numbers = #tpu.dot_dimension_numbers<[1], [0], [0], [1], [0, 0, 1, 1], [], []>} : vector<16x512xbf16>, vector<512x128xbf16>, vector<16x128xf32> -> vector<16x128xf32>
    %250 = vector.extract_strided_slice %0 {offsets = [6, 0], sizes = [1, 128], strides = [1, 1]} : vector<32x128xf32> to vector<1x128xf32>
    %251 = vector.broadcast %250 : vector<1x128xf32> to vector<16x128xf32>
    %252 = arith.addf %249, %251 : vector<16x128xf32>
    %253 = arith.addf %197, %252 : vector<16x128xf32>
    %cst_79 = arith.constant dense<0.000000e+00> : vector<16xf32>
    %254 = vector.multi_reduction <add>, %253, %cst_79 [1] : vector<16x128xf32> to vector<16xf32>
    %255 = vector.shape_cast %254 : vector<16xf32> to vector<16x1xf32>
    %cst_80 = arith.constant 1.280000e+02 : f32
    %256 = vector.broadcast %cst_80 : f32 to vector<16x1xf32>
    %257 = arith.divf %255, %256 : vector<16x1xf32>
    %258 = vector.broadcast %257 : vector<16x1xf32> to vector<16x128xf32>
    %259 = arith.subf %253, %258 : vector<16x128xf32>
    %260 = arith.mulf %259, %259 : vector<16x128xf32>
    %cst_81 = arith.constant dense<0.000000e+00> : vector<16xf32>
    %261 = vector.multi_reduction <add>, %260, %cst_81 [1] : vector<16x128xf32> to vector<16xf32>
    %262 = vector.shape_cast %261 : vector<16xf32> to vector<16x1xf32>
    %cst_82 = arith.constant 1.280000e+02 : f32
    %263 = vector.broadcast %cst_82 : f32 to vector<16x1xf32>
    %264 = arith.divf %262, %263 : vector<16x1xf32>
    %265 = vector.broadcast %257 : vector<16x1xf32> to vector<16x128xf32>
    %266 = arith.subf %253, %265 : vector<16x128xf32>
    %cst_83 = arith.constant 9.99999974E-6 : f32
    %267 = vector.broadcast %cst_83 : f32 to vector<16x1xf32>
    %268 = arith.addf %264, %267 : vector<16x1xf32>
    %269 = math.rsqrt %268 : vector<16x1xf32>
    %270 = vector.broadcast %269 : vector<16x1xf32> to vector<16x128xf32>
    %271 = arith.mulf %266, %270 : vector<16x128xf32>
    %272 = vector.broadcast %98 : vector<1x128xf32> to vector<16x128xf32>
    %273 = arith.mulf %271, %272 : vector<16x128xf32>
    %274 = vector.broadcast %99 : vector<1x128xf32> to vector<16x128xf32>
    %275 = arith.addf %273, %274 : vector<16x128xf32>
    %c0_84 = arith.constant 0 : index
    %c0_85 = arith.constant 0 : index
    %c0_86 = arith.constant 0 : index
    %276 = vector.load %arg13[%c0_84, %c0_85, %c0_86] : memref<4x16x128xf32, #tpu.memory_space<vmem>>, vector<1x16x128xf32>
    %277 = vector.shape_cast %276 : vector<1x16x128xf32> to vector<16x128xf32>
    %278 = vector.shape_cast %275 : vector<16x128xf32> to vector<1x16x128xf32>
    tpu.vector_store %arg13[%c0_84, %c0_85, %c0_86], %278 {strides = array<i32>} : memref<4x16x128xf32, #tpu.memory_space<vmem>>, vector<1x16x128xf32>,
    %279 = vector.extract_strided_slice %0 {offsets = [13, 0], sizes = [1, 128], strides = [1, 1]} : vector<32x128xf32> to vector<1x128xf32>
    %280 = vector.extract_strided_slice %0 {offsets = [14, 0], sizes = [1, 128], strides = [1, 1]} : vector<32x128xf32> to vector<1x128xf32>
    %281 = vector.extract_strided_slice %0 {offsets = [15, 0], sizes = [1, 128], strides = [1, 1]} : vector<32x128xf32> to vector<1x128xf32>
    %282 = vector.extract_strided_slice %0 {offsets = [16, 0], sizes = [1, 128], strides = [1, 1]} : vector<32x128xf32> to vector<1x128xf32>
    %283 = vector.extract_strided_slice %0 {offsets = [17, 0], sizes = [1, 128], strides = [1, 1]} : vector<32x128xf32> to vector<1x128xf32>
    %c1_87 = arith.constant 1 : index
    %c0_88 = arith.constant 0 : index
    %c0_89 = arith.constant 0 : index
    %284 = vector.load %arg8[%c1_87, %c0_88, %c0_89] : memref<4x128x128xbf16, #tpu.memory_space<vmem>>, vector<1x128x128xbf16>
    %285 = vector.shape_cast %284 : vector<1x128x128xbf16> to vector<128x128xbf16>
    %cst_90 = arith.constant dense<0.000000e+00> : vector<16x16xf32>
    %286 = tpu.matmul %48, %72, %cst_90 {dimension_numbers = #tpu.dot_dimension_numbers<[1], [1], [0], [0], [0, 0, 1, 0], [], []>} : vector<16x32xbf16>, vector<16x32xbf16>, vector<16x16xf32> -> vector<16x16xf32>
    %287 = arith.addf %286, %2 : vector<16x16xf32>
    %cst_91 = arith.constant dense<0xFF800000> : vector<16xf32>
    %288 = vector.multi_reduction <maximumf>, %287, %cst_91 [1] : vector<16x16xf32> to vector<16xf32>
    %289 = vector.shape_cast %288 : vector<16xf32> to vector<16x1xf32>
    %290 = vector.broadcast %289 : vector<16x1xf32> to vector<16x16xf32>
    %291 = arith.subf %287, %290 : vector<16x16xf32>
    %292 = math.exp %291 : vector<16x16xf32>
    %cst_92 = arith.constant dense<0.000000e+00> : vector<16xf32>
    %293 = vector.multi_reduction <add>, %292, %cst_92 [1] : vector<16x16xf32> to vector<16xf32>
    %294 = vector.shape_cast %293 : vector<16xf32> to vector<16x1xf32>
    %295 = tpu.reciprocal %294 {approx = true} : vector<16x1xf32> -> vector<16x1xf32>
    %296 = vector.broadcast %295 : vector<16x1xf32> to vector<16x16xf32>
    %297 = arith.mulf %292, %296 : vector<16x16xf32>
    %298 = arith.truncf %297 : vector<16x16xf32> to vector<16x16xbf16>
    %cst_93 = arith.constant dense<0.000000e+00> : vector<16x32xf32>
    %299 = tpu.matmul %298, %88, %cst_93 {dimension_numbers = #tpu.dot_dimension_numbers<[1], [0], [0], [1], [0, 0, 1, 1], [], []>} : vector<16x16xbf16>, vector<16x32xbf16>, vector<16x32xf32> -> vector<16x32xf32>
    %300 = arith.truncf %299 : vector<16x32xf32> to vector<16x32xbf16>
    %301 = vector.extract_strided_slice %285 {offsets = [0, 0], sizes = [32, 128], strides = [1, 1]} : vector<128x128xbf16> to vector<32x128xbf16>
    %cst_94 = arith.constant dense<0.000000e+00> : vector<16x128xf32>
    %302 = tpu.matmul %300, %301, %cst_94 {dimension_numbers = #tpu.dot_dimension_numbers<[1], [0], [0], [1], [0, 0, 1, 1], [], []>} : vector<16x32xbf16>, vector<32x128xbf16>, vector<16x128xf32> -> vector<16x128xf32>
    %cst_95 = arith.constant dense<0.000000e+00> : vector<16x16xf32>
    %303 = tpu.matmul %50, %74, %cst_95 {dimension_numbers = #tpu.dot_dimension_numbers<[1], [1], [0], [0], [0, 0, 1, 0], [], []>} : vector<16x32xbf16>, vector<16x32xbf16>, vector<16x16xf32> -> vector<16x16xf32>
    %304 = arith.addf %303, %2 : vector<16x16xf32>
    %cst_96 = arith.constant dense<0xFF800000> : vector<16xf32>
    %305 = vector.multi_reduction <maximumf>, %304, %cst_96 [1] : vector<16x16xf32> to vector<16xf32>
    %306 = vector.shape_cast %305 : vector<16xf32> to vector<16x1xf32>
    %307 = vector.broadcast %306 : vector<16x1xf32> to vector<16x16xf32>
    %308 = arith.subf %304, %307 : vector<16x16xf32>
    %309 = math.exp %308 : vector<16x16xf32>
    %cst_97 = arith.constant dense<0.000000e+00> : vector<16xf32>
    %310 = vector.multi_reduction <add>, %309, %cst_97 [1] : vector<16x16xf32> to vector<16xf32>
    %311 = vector.shape_cast %310 : vector<16xf32> to vector<16x1xf32>
    %312 = tpu.reciprocal %311 {approx = true} : vector<16x1xf32> -> vector<16x1xf32>
    %313 = vector.broadcast %312 : vector<16x1xf32> to vector<16x16xf32>
    %314 = arith.mulf %309, %313 : vector<16x16xf32>
    %315 = arith.truncf %314 : vector<16x16xf32> to vector<16x16xbf16>
    %cst_98 = arith.constant dense<0.000000e+00> : vector<16x32xf32>
    %316 = tpu.matmul %315, %90, %cst_98 {dimension_numbers = #tpu.dot_dimension_numbers<[1], [0], [0], [1], [0, 0, 1, 1], [], []>} : vector<16x16xbf16>, vector<16x32xbf16>, vector<16x32xf32> -> vector<16x32xf32>
    %317 = arith.truncf %316 : vector<16x32xf32> to vector<16x32xbf16>
    %318 = vector.extract_strided_slice %285 {offsets = [32, 0], sizes = [32, 128], strides = [1, 1]} : vector<128x128xbf16> to vector<32x128xbf16>
    %cst_99 = arith.constant dense<0.000000e+00> : vector<16x128xf32>
    %319 = tpu.matmul %317, %318, %cst_99 {dimension_numbers = #tpu.dot_dimension_numbers<[1], [0], [0], [1], [0, 0, 1, 1], [], []>} : vector<16x32xbf16>, vector<32x128xbf16>, vector<16x128xf32> -> vector<16x128xf32>
    %320 = arith.addf %302, %319 : vector<16x128xf32>
    %cst_100 = arith.constant dense<0.000000e+00> : vector<16x16xf32>
    %321 = tpu.matmul %52, %76, %cst_100 {dimension_numbers = #tpu.dot_dimension_numbers<[1], [1], [0], [0], [0, 0, 1, 0], [], []>} : vector<16x32xbf16>, vector<16x32xbf16>, vector<16x16xf32> -> vector<16x16xf32>
    %322 = arith.addf %321, %2 : vector<16x16xf32>
    %cst_101 = arith.constant dense<0xFF800000> : vector<16xf32>
    %323 = vector.multi_reduction <maximumf>, %322, %cst_101 [1] : vector<16x16xf32> to vector<16xf32>
    %324 = vector.shape_cast %323 : vector<16xf32> to vector<16x1xf32>
    %325 = vector.broadcast %324 : vector<16x1xf32> to vector<16x16xf32>
    %326 = arith.subf %322, %325 : vector<16x16xf32>
    %327 = math.exp %326 : vector<16x16xf32>
    %cst_102 = arith.constant dense<0.000000e+00> : vector<16xf32>
    %328 = vector.multi_reduction <add>, %327, %cst_102 [1] : vector<16x16xf32> to vector<16xf32>
    %329 = vector.shape_cast %328 : vector<16xf32> to vector<16x1xf32>
    %330 = tpu.reciprocal %329 {approx = true} : vector<16x1xf32> -> vector<16x1xf32>
    %331 = vector.broadcast %330 : vector<16x1xf32> to vector<16x16xf32>
    %332 = arith.mulf %327, %331 : vector<16x16xf32>
    %333 = arith.truncf %332 : vector<16x16xf32> to vector<16x16xbf16>
    %cst_103 = arith.constant dense<0.000000e+00> : vector<16x32xf32>
    %334 = tpu.matmul %333, %92, %cst_103 {dimension_numbers = #tpu.dot_dimension_numbers<[1], [0], [0], [1], [0, 0, 1, 1], [], []>} : vector<16x16xbf16>, vector<16x32xbf16>, vector<16x32xf32> -> vector<16x32xf32>
    %335 = arith.truncf %334 : vector<16x32xf32> to vector<16x32xbf16>
    %336 = vector.extract_strided_slice %285 {offsets = [64, 0], sizes = [32, 128], strides = [1, 1]} : vector<128x128xbf16> to vector<32x128xbf16>
    %cst_104 = arith.constant dense<0.000000e+00> : vector<16x128xf32>
    %337 = tpu.matmul %335, %336, %cst_104 {dimension_numbers = #tpu.dot_dimension_numbers<[1], [0], [0], [1], [0, 0, 1, 1], [], []>} : vector<16x32xbf16>, vector<32x128xbf16>, vector<16x128xf32> -> vector<16x128xf32>
    %338 = arith.addf %320, %337 : vector<16x128xf32>
    %cst_105 = arith.constant dense<0.000000e+00> : vector<16x16xf32>
    %339 = tpu.matmul %54, %78, %cst_105 {dimension_numbers = #tpu.dot_dimension_numbers<[1], [1], [0], [0], [0, 0, 1, 0], [], []>} : vector<16x32xbf16>, vector<16x32xbf16>, vector<16x16xf32> -> vector<16x16xf32>
    %340 = arith.addf %339, %2 : vector<16x16xf32>
    %cst_106 = arith.constant dense<0xFF800000> : vector<16xf32>
    %341 = vector.multi_reduction <maximumf>, %340, %cst_106 [1] : vector<16x16xf32> to vector<16xf32>
    %342 = vector.shape_cast %341 : vector<16xf32> to vector<16x1xf32>
    %343 = vector.broadcast %342 : vector<16x1xf32> to vector<16x16xf32>
    %344 = arith.subf %340, %343 : vector<16x16xf32>
    %345 = math.exp %344 : vector<16x16xf32>
    %cst_107 = arith.constant dense<0.000000e+00> : vector<16xf32>
    %346 = vector.multi_reduction <add>, %345, %cst_107 [1] : vector<16x16xf32> to vector<16xf32>
    %347 = vector.shape_cast %346 : vector<16xf32> to vector<16x1xf32>
    %348 = tpu.reciprocal %347 {approx = true} : vector<16x1xf32> -> vector<16x1xf32>
    %349 = vector.broadcast %348 : vector<16x1xf32> to vector<16x16xf32>
    %350 = arith.mulf %345, %349 : vector<16x16xf32>
    %351 = arith.truncf %350 : vector<16x16xf32> to vector<16x16xbf16>
    %cst_108 = arith.constant dense<0.000000e+00> : vector<16x32xf32>
    %352 = tpu.matmul %351, %94, %cst_108 {dimension_numbers = #tpu.dot_dimension_numbers<[1], [0], [0], [1], [0, 0, 1, 1], [], []>} : vector<16x16xbf16>, vector<16x32xbf16>, vector<16x32xf32> -> vector<16x32xf32>
    %353 = arith.truncf %352 : vector<16x32xf32> to vector<16x32xbf16>
    %354 = vector.extract_strided_slice %285 {offsets = [96, 0], sizes = [32, 128], strides = [1, 1]} : vector<128x128xbf16> to vector<32x128xbf16>
    %cst_109 = arith.constant dense<0.000000e+00> : vector<16x128xf32>
    %355 = tpu.matmul %353, %354, %cst_109 {dimension_numbers = #tpu.dot_dimension_numbers<[1], [0], [0], [1], [0, 0, 1, 1], [], []>} : vector<16x32xbf16>, vector<32x128xbf16>, vector<16x128xf32> -> vector<16x128xf32>
    %356 = arith.addf %338, %355 : vector<16x128xf32>
    %357 = arith.addf %3, %356 : vector<16x128xf32>
    %358 = vector.broadcast %279 : vector<1x128xf32> to vector<16x128xf32>
    %359 = arith.addf %357, %358 : vector<16x128xf32>
    %cst_110 = arith.constant dense<0.000000e+00> : vector<16xf32>
    %360 = vector.multi_reduction <add>, %359, %cst_110 [1] : vector<16x128xf32> to vector<16xf32>
    %361 = vector.shape_cast %360 : vector<16xf32> to vector<16x1xf32>
    %cst_111 = arith.constant 1.280000e+02 : f32
    %362 = vector.broadcast %cst_111 : f32 to vector<16x1xf32>
    %363 = arith.divf %361, %362 : vector<16x1xf32>
    %364 = vector.broadcast %363 : vector<16x1xf32> to vector<16x128xf32>
    %365 = arith.subf %359, %364 : vector<16x128xf32>
    %366 = arith.mulf %365, %365 : vector<16x128xf32>
    %cst_112 = arith.constant dense<0.000000e+00> : vector<16xf32>
    %367 = vector.multi_reduction <add>, %366, %cst_112 [1] : vector<16x128xf32> to vector<16xf32>
    %368 = vector.shape_cast %367 : vector<16xf32> to vector<16x1xf32>
    %cst_113 = arith.constant 1.280000e+02 : f32
    %369 = vector.broadcast %cst_113 : f32 to vector<16x1xf32>
    %370 = arith.divf %368, %369 : vector<16x1xf32>
    %371 = vector.broadcast %363 : vector<16x1xf32> to vector<16x128xf32>
    %372 = arith.subf %359, %371 : vector<16x128xf32>
    %cst_114 = arith.constant 9.99999974E-6 : f32
    %373 = vector.broadcast %cst_114 : f32 to vector<16x1xf32>
    %374 = arith.addf %370, %373 : vector<16x1xf32>
    %375 = math.rsqrt %374 : vector<16x1xf32>
    %376 = vector.broadcast %375 : vector<16x1xf32> to vector<16x128xf32>
    %377 = arith.mulf %372, %376 : vector<16x128xf32>
    %378 = vector.broadcast %280 : vector<1x128xf32> to vector<16x128xf32>
    %379 = arith.mulf %377, %378 : vector<16x128xf32>
    %380 = vector.broadcast %281 : vector<1x128xf32> to vector<16x128xf32>
    %381 = arith.addf %379, %380 : vector<16x128xf32>
    %382 = arith.truncf %381 : vector<16x128xf32> to vector<16x128xbf16>
    %c0_115 = arith.constant 0 : index
    %c0_116 = arith.constant 0 : index
    %c0_117 = arith.constant 0 : index
    %383 = vector.load %arg9[%c0_115, %c0_116, %c0_117] : memref<2x128x512xbf16, #tpu.memory_space<vmem>>, vector<1x128x512xbf16>
    %384 = vector.shape_cast %383 : vector<1x128x512xbf16> to vector<128x512xbf16>
    %cst_118 = arith.constant dense<0.000000e+00> : vector<16x512xf32>
    %385 = tpu.matmul %382, %384, %cst_118 {dimension_numbers = #tpu.dot_dimension_numbers<[1], [0], [0], [1], [0, 0, 1, 1], [], []>} : vector<16x128xbf16>, vector<128x512xbf16>, vector<16x512xf32> -> vector<16x512xf32>
    %386 = vector.extract_strided_slice %1 {offsets = [0, 0], sizes = [1, 512], strides = [1, 1]} : vector<8x512xf32> to vector<1x512xf32>
    %387 = vector.broadcast %386 : vector<1x512xf32> to vector<16x512xf32>
    %388 = arith.addf %385, %387 : vector<16x512xf32>
    %cst_119 = arith.constant 5.000000e-01 : f32
    %389 = vector.broadcast %cst_119 : f32 to vector<16x512xf32>
    %390 = arith.mulf %389, %388 : vector<16x512xf32>
    %cst_120 = arith.constant 0.707106769 : f32
    %391 = vector.broadcast %cst_120 : f32 to vector<16x512xf32>
    %392 = arith.mulf %388, %391 : vector<16x512xf32>
    %cst_121 = arith.constant 0.000000e+00 : f32
    %393 = vector.broadcast %cst_121 : f32 to vector<16x512xf32>
    %394 = arith.cmpf oge, %392, %393 : vector<16x512xf32>
    %cst_122 = arith.constant 1.000000e+00 : f32
    %cst_123 = arith.constant -1.000000e+00 : f32
    %395 = vector.broadcast %cst_122 : f32 to vector<16x512xf32>
    %396 = vector.broadcast %cst_123 : f32 to vector<16x512xf32>
    %397 = arith.select %394, %395, %396 : vector<16x512xi1>, vector<16x512xf32>
    %398 = math.absf %392 : vector<16x512xf32>
    %cst_124 = arith.constant 0.327591091 : f32
    %399 = vector.broadcast %cst_124 : f32 to vector<16x512xf32>
    %400 = arith.mulf %399, %398 : vector<16x512xf32>
    %cst_125 = arith.constant 1.000000e+00 : f32
    %401 = vector.broadcast %cst_125 : f32 to vector<16x512xf32>
    %402 = arith.addf %401, %400 : vector<16x512xf32>
    %cst_126 = arith.constant 1.000000e+00 : f32
    %403 = vector.broadcast %cst_126 : f32 to vector<16x512xf32>
    %404 = arith.divf %403, %402 : vector<16x512xf32>
    %cst_127 = arith.constant 1.06140542 : f32
    %405 = vector.broadcast %cst_127 : f32 to vector<16x512xf32>
    %406 = arith.mulf %405, %404 : vector<16x512xf32>
    %cst_128 = arith.constant -1.45315206 : f32
    %407 = vector.broadcast %cst_128 : f32 to vector<16x512xf32>
    %408 = arith.addf %406, %407 : vector<16x512xf32>
    %409 = arith.mulf %408, %404 : vector<16x512xf32>
    %cst_129 = arith.constant 1.42141378 : f32
    %410 = vector.broadcast %cst_129 : f32 to vector<16x512xf32>
    %411 = arith.addf %409, %410 : vector<16x512xf32>
    %412 = arith.mulf %411, %404 : vector<16x512xf32>
    %cst_130 = arith.constant -0.284496725 : f32
    %413 = vector.broadcast %cst_130 : f32 to vector<16x512xf32>
    %414 = arith.addf %412, %413 : vector<16x512xf32>
    %415 = arith.mulf %414, %404 : vector<16x512xf32>
    %cst_131 = arith.constant 0.254829586 : f32
    %416 = vector.broadcast %cst_131 : f32 to vector<16x512xf32>
    %417 = arith.addf %415, %416 : vector<16x512xf32>
    %418 = arith.mulf %417, %404 : vector<16x512xf32>
    %cst_132 = arith.constant 0.000000e+00 : f32
    %419 = vector.broadcast %cst_132 : f32 to vector<16x512xf32>
    %420 = arith.subf %419, %398 : vector<16x512xf32>
    %421 = arith.mulf %420, %398 : vector<16x512xf32>
    %422 = math.exp %421 : vector<16x512xf32>
    %423 = arith.mulf %418, %422 : vector<16x512xf32>
    %cst_133 = arith.constant 1.000000e+00 : f32
    %424 = vector.broadcast %cst_133 : f32 to vector<16x512xf32>
    %425 = arith.subf %424, %423 : vector<16x512xf32>
    %426 = arith.mulf %397, %425 : vector<16x512xf32>
    %cst_134 = arith.constant 1.000000e+00 : f32
    %427 = vector.broadcast %cst_134 : f32 to vector<16x512xf32>
    %428 = arith.addf %427, %426 : vector<16x512xf32>
    %429 = arith.mulf %390, %428 : vector<16x512xf32>
    %430 = arith.truncf %429 : vector<16x512xf32> to vector<16x512xbf16>
    %c0_135 = arith.constant 0 : index
    %c0_136 = arith.constant 0 : index
    %c0_137 = arith.constant 0 : index
    %431 = vector.load %arg10[%c0_135, %c0_136, %c0_137] : memref<2x512x128xbf16, #tpu.memory_space<vmem>>, vector<1x512x128xbf16>
    %432 = vector.shape_cast %431 : vector<1x512x128xbf16> to vector<512x128xbf16>
    %cst_138 = arith.constant dense<0.000000e+00> : vector<16x128xf32>
    %433 = tpu.matmul %430, %432, %cst_138 {dimension_numbers = #tpu.dot_dimension_numbers<[1], [0], [0], [1], [0, 0, 1, 1], [], []>} : vector<16x512xbf16>, vector<512x128xbf16>, vector<16x128xf32> -> vector<16x128xf32>
    %434 = vector.extract_strided_slice %0 {offsets = [6, 0], sizes = [1, 128], strides = [1, 1]} : vector<32x128xf32> to vector<1x128xf32>
    %435 = vector.broadcast %434 : vector<1x128xf32> to vector<16x128xf32>
    %436 = arith.addf %433, %435 : vector<16x128xf32>
    %437 = arith.addf %381, %436 : vector<16x128xf32>
    %cst_139 = arith.constant dense<0.000000e+00> : vector<16xf32>
    %438 = vector.multi_reduction <add>, %437, %cst_139 [1] : vector<16x128xf32> to vector<16xf32>
    %439 = vector.shape_cast %438 : vector<16xf32> to vector<16x1xf32>
    %cst_140 = arith.constant 1.280000e+02 : f32
    %440 = vector.broadcast %cst_140 : f32 to vector<16x1xf32>
    %441 = arith.divf %439, %440 : vector<16x1xf32>
    %442 = vector.broadcast %441 : vector<16x1xf32> to vector<16x128xf32>
    %443 = arith.subf %437, %442 : vector<16x128xf32>
    %444 = arith.mulf %443, %443 : vector<16x128xf32>
    %cst_141 = arith.constant dense<0.000000e+00> : vector<16xf32>
    %445 = vector.multi_reduction <add>, %444, %cst_141 [1] : vector<16x128xf32> to vector<16xf32>
    %446 = vector.shape_cast %445 : vector<16xf32> to vector<16x1xf32>
    %cst_142 = arith.constant 1.280000e+02 : f32
    %447 = vector.broadcast %cst_142 : f32 to vector<16x1xf32>
    %448 = arith.divf %446, %447 : vector<16x1xf32>
    %449 = vector.broadcast %441 : vector<16x1xf32> to vector<16x128xf32>
    %450 = arith.subf %437, %449 : vector<16x128xf32>
    %cst_143 = arith.constant 9.99999974E-6 : f32
    %451 = vector.broadcast %cst_143 : f32 to vector<16x1xf32>
    %452 = arith.addf %448, %451 : vector<16x1xf32>
    %453 = math.rsqrt %452 : vector<16x1xf32>
    %454 = vector.broadcast %453 : vector<16x1xf32> to vector<16x128xf32>
    %455 = arith.mulf %450, %454 : vector<16x128xf32>
    %456 = vector.broadcast %282 : vector<1x128xf32> to vector<16x128xf32>
    %457 = arith.mulf %455, %456 : vector<16x128xf32>
    %458 = vector.broadcast %283 : vector<1x128xf32> to vector<16x128xf32>
    %459 = arith.addf %457, %458 : vector<16x128xf32>
    %c1_144 = arith.constant 1 : index
    %c0_145 = arith.constant 0 : index
    %c0_146 = arith.constant 0 : index
    %460 = vector.load %arg13[%c1_144, %c0_145, %c0_146] : memref<4x16x128xf32, #tpu.memory_space<vmem>>, vector<1x16x128xf32>
    %461 = vector.shape_cast %460 : vector<1x16x128xf32> to vector<16x128xf32>
    %462 = vector.shape_cast %459 : vector<16x128xf32> to vector<1x16x128xf32>
    tpu.vector_store %arg13[%c1_144, %c0_145, %c0_146], %462 {strides = array<i32>} : memref<4x16x128xf32, #tpu.memory_space<vmem>>, vector<1x16x128xf32>,
    %463 = vector.extract_strided_slice %0 {offsets = [18, 0], sizes = [1, 128], strides = [1, 1]} : vector<32x128xf32> to vector<1x128xf32>
    %464 = vector.extract_strided_slice %0 {offsets = [19, 0], sizes = [1, 128], strides = [1, 1]} : vector<32x128xf32> to vector<1x128xf32>
    %465 = vector.extract_strided_slice %0 {offsets = [20, 0], sizes = [1, 128], strides = [1, 1]} : vector<32x128xf32> to vector<1x128xf32>
    %466 = vector.extract_strided_slice %0 {offsets = [21, 0], sizes = [1, 128], strides = [1, 1]} : vector<32x128xf32> to vector<1x128xf32>
    %467 = vector.extract_strided_slice %0 {offsets = [22, 0], sizes = [1, 128], strides = [1, 1]} : vector<32x128xf32> to vector<1x128xf32>
    %c2 = arith.constant 2 : index
    %c0_147 = arith.constant 0 : index
    %c0_148 = arith.constant 0 : index
    %468 = vector.load %arg8[%c2, %c0_147, %c0_148] : memref<4x128x128xbf16, #tpu.memory_space<vmem>>, vector<1x128x128xbf16>
    %469 = vector.shape_cast %468 : vector<1x128x128xbf16> to vector<128x128xbf16>
    %cst_149 = arith.constant dense<0.000000e+00> : vector<16x16xf32>
    %470 = tpu.matmul %56, %64, %cst_149 {dimension_numbers = #tpu.dot_dimension_numbers<[1], [1], [0], [0], [0, 0, 1, 0], [], []>} : vector<16x32xbf16>, vector<16x32xbf16>, vector<16x16xf32> -> vector<16x16xf32>
    %471 = arith.addf %470, %2 : vector<16x16xf32>
    %cst_150 = arith.constant dense<0xFF800000> : vector<16xf32>
    %472 = vector.multi_reduction <maximumf>, %471, %cst_150 [1] : vector<16x16xf32> to vector<16xf32>
    %473 = vector.shape_cast %472 : vector<16xf32> to vector<16x1xf32>
    %474 = vector.broadcast %473 : vector<16x1xf32> to vector<16x16xf32>
    %475 = arith.subf %471, %474 : vector<16x16xf32>
    %476 = math.exp %475 : vector<16x16xf32>
    %cst_151 = arith.constant dense<0.000000e+00> : vector<16xf32>
    %477 = vector.multi_reduction <add>, %476, %cst_151 [1] : vector<16x16xf32> to vector<16xf32>
    %478 = vector.shape_cast %477 : vector<16xf32> to vector<16x1xf32>
    %479 = tpu.reciprocal %478 {approx = true} : vector<16x1xf32> -> vector<16x1xf32>
    %480 = vector.broadcast %479 : vector<16x1xf32> to vector<16x16xf32>
    %481 = arith.mulf %476, %480 : vector<16x16xf32>
    %482 = arith.truncf %481 : vector<16x16xf32> to vector<16x16xbf16>
    %cst_152 = arith.constant dense<0.000000e+00> : vector<16x32xf32>
    %483 = tpu.matmul %482, %80, %cst_152 {dimension_numbers = #tpu.dot_dimension_numbers<[1], [0], [0], [1], [0, 0, 1, 1], [], []>} : vector<16x16xbf16>, vector<16x32xbf16>, vector<16x32xf32> -> vector<16x32xf32>
    %484 = arith.truncf %483 : vector<16x32xf32> to vector<16x32xbf16>
    %485 = vector.extract_strided_slice %469 {offsets = [0, 0], sizes = [32, 128], strides = [1, 1]} : vector<128x128xbf16> to vector<32x128xbf16>
    %cst_153 = arith.constant dense<0.000000e+00> : vector<16x128xf32>
    %486 = tpu.matmul %484, %485, %cst_153 {dimension_numbers = #tpu.dot_dimension_numbers<[1], [0], [0], [1], [0, 0, 1, 1], [], []>} : vector<16x32xbf16>, vector<32x128xbf16>, vector<16x128xf32> -> vector<16x128xf32>
    %cst_154 = arith.constant dense<0.000000e+00> : vector<16x16xf32>
    %487 = tpu.matmul %58, %66, %cst_154 {dimension_numbers = #tpu.dot_dimension_numbers<[1], [1], [0], [0], [0, 0, 1, 0], [], []>} : vector<16x32xbf16>, vector<16x32xbf16>, vector<16x16xf32> -> vector<16x16xf32>
    %488 = arith.addf %487, %2 : vector<16x16xf32>
    %cst_155 = arith.constant dense<0xFF800000> : vector<16xf32>
    %489 = vector.multi_reduction <maximumf>, %488, %cst_155 [1] : vector<16x16xf32> to vector<16xf32>
    %490 = vector.shape_cast %489 : vector<16xf32> to vector<16x1xf32>
    %491 = vector.broadcast %490 : vector<16x1xf32> to vector<16x16xf32>
    %492 = arith.subf %488, %491 : vector<16x16xf32>
    %493 = math.exp %492 : vector<16x16xf32>
    %cst_156 = arith.constant dense<0.000000e+00> : vector<16xf32>
    %494 = vector.multi_reduction <add>, %493, %cst_156 [1] : vector<16x16xf32> to vector<16xf32>
    %495 = vector.shape_cast %494 : vector<16xf32> to vector<16x1xf32>
    %496 = tpu.reciprocal %495 {approx = true} : vector<16x1xf32> -> vector<16x1xf32>
    %497 = vector.broadcast %496 : vector<16x1xf32> to vector<16x16xf32>
    %498 = arith.mulf %493, %497 : vector<16x16xf32>
    %499 = arith.truncf %498 : vector<16x16xf32> to vector<16x16xbf16>
    %cst_157 = arith.constant dense<0.000000e+00> : vector<16x32xf32>
    %500 = tpu.matmul %499, %82, %cst_157 {dimension_numbers = #tpu.dot_dimension_numbers<[1], [0], [0], [1], [0, 0, 1, 1], [], []>} : vector<16x16xbf16>, vector<16x32xbf16>, vector<16x32xf32> -> vector<16x32xf32>
    %501 = arith.truncf %500 : vector<16x32xf32> to vector<16x32xbf16>
    %502 = vector.extract_strided_slice %469 {offsets = [32, 0], sizes = [32, 128], strides = [1, 1]} : vector<128x128xbf16> to vector<32x128xbf16>
    %cst_158 = arith.constant dense<0.000000e+00> : vector<16x128xf32>
    %503 = tpu.matmul %501, %502, %cst_158 {dimension_numbers = #tpu.dot_dimension_numbers<[1], [0], [0], [1], [0, 0, 1, 1], [], []>} : vector<16x32xbf16>, vector<32x128xbf16>, vector<16x128xf32> -> vector<16x128xf32>
    %504 = arith.addf %486, %503 : vector<16x128xf32>
    %cst_159 = arith.constant dense<0.000000e+00> : vector<16x16xf32>
    %505 = tpu.matmul %60, %68, %cst_159 {dimension_numbers = #tpu.dot_dimension_numbers<[1], [1], [0], [0], [0, 0, 1, 0], [], []>} : vector<16x32xbf16>, vector<16x32xbf16>, vector<16x16xf32> -> vector<16x16xf32>
    %506 = arith.addf %505, %2 : vector<16x16xf32>
    %cst_160 = arith.constant dense<0xFF800000> : vector<16xf32>
    %507 = vector.multi_reduction <maximumf>, %506, %cst_160 [1] : vector<16x16xf32> to vector<16xf32>
    %508 = vector.shape_cast %507 : vector<16xf32> to vector<16x1xf32>
    %509 = vector.broadcast %508 : vector<16x1xf32> to vector<16x16xf32>
    %510 = arith.subf %506, %509 : vector<16x16xf32>
    %511 = math.exp %510 : vector<16x16xf32>
    %cst_161 = arith.constant dense<0.000000e+00> : vector<16xf32>
    %512 = vector.multi_reduction <add>, %511, %cst_161 [1] : vector<16x16xf32> to vector<16xf32>
    %513 = vector.shape_cast %512 : vector<16xf32> to vector<16x1xf32>
    %514 = tpu.reciprocal %513 {approx = true} : vector<16x1xf32> -> vector<16x1xf32>
    %515 = vector.broadcast %514 : vector<16x1xf32> to vector<16x16xf32>
    %516 = arith.mulf %511, %515 : vector<16x16xf32>
    %517 = arith.truncf %516 : vector<16x16xf32> to vector<16x16xbf16>
    %cst_162 = arith.constant dense<0.000000e+00> : vector<16x32xf32>
    %518 = tpu.matmul %517, %84, %cst_162 {dimension_numbers = #tpu.dot_dimension_numbers<[1], [0], [0], [1], [0, 0, 1, 1], [], []>} : vector<16x16xbf16>, vector<16x32xbf16>, vector<16x32xf32> -> vector<16x32xf32>
    %519 = arith.truncf %518 : vector<16x32xf32> to vector<16x32xbf16>
    %520 = vector.extract_strided_slice %469 {offsets = [64, 0], sizes = [32, 128], strides = [1, 1]} : vector<128x128xbf16> to vector<32x128xbf16>
    %cst_163 = arith.constant dense<0.000000e+00> : vector<16x128xf32>
    %521 = tpu.matmul %519, %520, %cst_163 {dimension_numbers = #tpu.dot_dimension_numbers<[1], [0], [0], [1], [0, 0, 1, 1], [], []>} : vector<16x32xbf16>, vector<32x128xbf16>, vector<16x128xf32> -> vector<16x128xf32>
    %522 = arith.addf %504, %521 : vector<16x128xf32>
    %cst_164 = arith.constant dense<0.000000e+00> : vector<16x16xf32>
    %523 = tpu.matmul %62, %70, %cst_164 {dimension_numbers = #tpu.dot_dimension_numbers<[1], [1], [0], [0], [0, 0, 1, 0], [], []>} : vector<16x32xbf16>, vector<16x32xbf16>, vector<16x16xf32> -> vector<16x16xf32>
    %524 = arith.addf %523, %2 : vector<16x16xf32>
    %cst_165 = arith.constant dense<0xFF800000> : vector<16xf32>
    %525 = vector.multi_reduction <maximumf>, %524, %cst_165 [1] : vector<16x16xf32> to vector<16xf32>
    %526 = vector.shape_cast %525 : vector<16xf32> to vector<16x1xf32>
    %527 = vector.broadcast %526 : vector<16x1xf32> to vector<16x16xf32>
    %528 = arith.subf %524, %527 : vector<16x16xf32>
    %529 = math.exp %528 : vector<16x16xf32>
    %cst_166 = arith.constant dense<0.000000e+00> : vector<16xf32>
    %530 = vector.multi_reduction <add>, %529, %cst_166 [1] : vector<16x16xf32> to vector<16xf32>
    %531 = vector.shape_cast %530 : vector<16xf32> to vector<16x1xf32>
    %532 = tpu.reciprocal %531 {approx = true} : vector<16x1xf32> -> vector<16x1xf32>
    %533 = vector.broadcast %532 : vector<16x1xf32> to vector<16x16xf32>
    %534 = arith.mulf %529, %533 : vector<16x16xf32>
    %535 = arith.truncf %534 : vector<16x16xf32> to vector<16x16xbf16>
    %cst_167 = arith.constant dense<0.000000e+00> : vector<16x32xf32>
    %536 = tpu.matmul %535, %86, %cst_167 {dimension_numbers = #tpu.dot_dimension_numbers<[1], [0], [0], [1], [0, 0, 1, 1], [], []>} : vector<16x16xbf16>, vector<16x32xbf16>, vector<16x32xf32> -> vector<16x32xf32>
    %537 = arith.truncf %536 : vector<16x32xf32> to vector<16x32xbf16>
    %538 = vector.extract_strided_slice %469 {offsets = [96, 0], sizes = [32, 128], strides = [1, 1]} : vector<128x128xbf16> to vector<32x128xbf16>
    %cst_168 = arith.constant dense<0.000000e+00> : vector<16x128xf32>
    %539 = tpu.matmul %537, %538, %cst_168 {dimension_numbers = #tpu.dot_dimension_numbers<[1], [0], [0], [1], [0, 0, 1, 1], [], []>} : vector<16x32xbf16>, vector<32x128xbf16>, vector<16x128xf32> -> vector<16x128xf32>
    %540 = arith.addf %522, %539 : vector<16x128xf32>
    %541 = arith.addf %4, %540 : vector<16x128xf32>
    %542 = vector.broadcast %463 : vector<1x128xf32> to vector<16x128xf32>
    %543 = arith.addf %541, %542 : vector<16x128xf32>
    %cst_169 = arith.constant dense<0.000000e+00> : vector<16xf32>
    %544 = vector.multi_reduction <add>, %543, %cst_169 [1] : vector<16x128xf32> to vector<16xf32>
    %545 = vector.shape_cast %544 : vector<16xf32> to vector<16x1xf32>
    %cst_170 = arith.constant 1.280000e+02 : f32
    %546 = vector.broadcast %cst_170 : f32 to vector<16x1xf32>
    %547 = arith.divf %545, %546 : vector<16x1xf32>
    %548 = vector.broadcast %547 : vector<16x1xf32> to vector<16x128xf32>
    %549 = arith.subf %543, %548 : vector<16x128xf32>
    %550 = arith.mulf %549, %549 : vector<16x128xf32>
    %cst_171 = arith.constant dense<0.000000e+00> : vector<16xf32>
    %551 = vector.multi_reduction <add>, %550, %cst_171 [1] : vector<16x128xf32> to vector<16xf32>
    %552 = vector.shape_cast %551 : vector<16xf32> to vector<16x1xf32>
    %cst_172 = arith.constant 1.280000e+02 : f32
    %553 = vector.broadcast %cst_172 : f32 to vector<16x1xf32>
    %554 = arith.divf %552, %553 : vector<16x1xf32>
    %555 = vector.broadcast %547 : vector<16x1xf32> to vector<16x128xf32>
    %556 = arith.subf %543, %555 : vector<16x128xf32>
    %cst_173 = arith.constant 9.99999974E-6 : f32
    %557 = vector.broadcast %cst_173 : f32 to vector<16x1xf32>
    %558 = arith.addf %554, %557 : vector<16x1xf32>
    %559 = math.rsqrt %558 : vector<16x1xf32>
    %560 = vector.broadcast %559 : vector<16x1xf32> to vector<16x128xf32>
    %561 = arith.mulf %556, %560 : vector<16x128xf32>
    %562 = vector.broadcast %464 : vector<1x128xf32> to vector<16x128xf32>
    %563 = arith.mulf %561, %562 : vector<16x128xf32>
    %564 = vector.broadcast %465 : vector<1x128xf32> to vector<16x128xf32>
    %565 = arith.addf %563, %564 : vector<16x128xf32>
    %566 = arith.truncf %565 : vector<16x128xf32> to vector<16x128xbf16>
    %c1_174 = arith.constant 1 : index
    %c0_175 = arith.constant 0 : index
    %c0_176 = arith.constant 0 : index
    %567 = vector.load %arg9[%c1_174, %c0_175, %c0_176] : memref<2x128x512xbf16, #tpu.memory_space<vmem>>, vector<1x128x512xbf16>
    %568 = vector.shape_cast %567 : vector<1x128x512xbf16> to vector<128x512xbf16>
    %cst_177 = arith.constant dense<0.000000e+00> : vector<16x512xf32>
    %569 = tpu.matmul %566, %568, %cst_177 {dimension_numbers = #tpu.dot_dimension_numbers<[1], [0], [0], [1], [0, 0, 1, 1], [], []>} : vector<16x128xbf16>, vector<128x512xbf16>, vector<16x512xf32> -> vector<16x512xf32>
    %570 = vector.extract_strided_slice %1 {offsets = [1, 0], sizes = [1, 512], strides = [1, 1]} : vector<8x512xf32> to vector<1x512xf32>
    %571 = vector.broadcast %570 : vector<1x512xf32> to vector<16x512xf32>
    %572 = arith.addf %569, %571 : vector<16x512xf32>
    %cst_178 = arith.constant 5.000000e-01 : f32
    %573 = vector.broadcast %cst_178 : f32 to vector<16x512xf32>
    %574 = arith.mulf %573, %572 : vector<16x512xf32>
    %cst_179 = arith.constant 0.707106769 : f32
    %575 = vector.broadcast %cst_179 : f32 to vector<16x512xf32>
    %576 = arith.mulf %572, %575 : vector<16x512xf32>
    %cst_180 = arith.constant 0.000000e+00 : f32
    %577 = vector.broadcast %cst_180 : f32 to vector<16x512xf32>
    %578 = arith.cmpf oge, %576, %577 : vector<16x512xf32>
    %cst_181 = arith.constant 1.000000e+00 : f32
    %cst_182 = arith.constant -1.000000e+00 : f32
    %579 = vector.broadcast %cst_181 : f32 to vector<16x512xf32>
    %580 = vector.broadcast %cst_182 : f32 to vector<16x512xf32>
    %581 = arith.select %578, %579, %580 : vector<16x512xi1>, vector<16x512xf32>
    %582 = math.absf %576 : vector<16x512xf32>
    %cst_183 = arith.constant 0.327591091 : f32
    %583 = vector.broadcast %cst_183 : f32 to vector<16x512xf32>
    %584 = arith.mulf %583, %582 : vector<16x512xf32>
    %cst_184 = arith.constant 1.000000e+00 : f32
    %585 = vector.broadcast %cst_184 : f32 to vector<16x512xf32>
    %586 = arith.addf %585, %584 : vector<16x512xf32>
    %cst_185 = arith.constant 1.000000e+00 : f32
    %587 = vector.broadcast %cst_185 : f32 to vector<16x512xf32>
    %588 = arith.divf %587, %586 : vector<16x512xf32>
    %cst_186 = arith.constant 1.06140542 : f32
    %589 = vector.broadcast %cst_186 : f32 to vector<16x512xf32>
    %590 = arith.mulf %589, %588 : vector<16x512xf32>
    %cst_187 = arith.constant -1.45315206 : f32
    %591 = vector.broadcast %cst_187 : f32 to vector<16x512xf32>
    %592 = arith.addf %590, %591 : vector<16x512xf32>
    %593 = arith.mulf %592, %588 : vector<16x512xf32>
    %cst_188 = arith.constant 1.42141378 : f32
    %594 = vector.broadcast %cst_188 : f32 to vector<16x512xf32>
    %595 = arith.addf %593, %594 : vector<16x512xf32>
    %596 = arith.mulf %595, %588 : vector<16x512xf32>
    %cst_189 = arith.constant -0.284496725 : f32
    %597 = vector.broadcast %cst_189 : f32 to vector<16x512xf32>
    %598 = arith.addf %596, %597 : vector<16x512xf32>
    %599 = arith.mulf %598, %588 : vector<16x512xf32>
    %cst_190 = arith.constant 0.254829586 : f32
    %600 = vector.broadcast %cst_190 : f32 to vector<16x512xf32>
    %601 = arith.addf %599, %600 : vector<16x512xf32>
    %602 = arith.mulf %601, %588 : vector<16x512xf32>
    %cst_191 = arith.constant 0.000000e+00 : f32
    %603 = vector.broadcast %cst_191 : f32 to vector<16x512xf32>
    %604 = arith.subf %603, %582 : vector<16x512xf32>
    %605 = arith.mulf %604, %582 : vector<16x512xf32>
    %606 = math.exp %605 : vector<16x512xf32>
    %607 = arith.mulf %602, %606 : vector<16x512xf32>
    %cst_192 = arith.constant 1.000000e+00 : f32
    %608 = vector.broadcast %cst_192 : f32 to vector<16x512xf32>
    %609 = arith.subf %608, %607 : vector<16x512xf32>
    %610 = arith.mulf %581, %609 : vector<16x512xf32>
    %cst_193 = arith.constant 1.000000e+00 : f32
    %611 = vector.broadcast %cst_193 : f32 to vector<16x512xf32>
    %612 = arith.addf %611, %610 : vector<16x512xf32>
    %613 = arith.mulf %574, %612 : vector<16x512xf32>
    %614 = arith.truncf %613 : vector<16x512xf32> to vector<16x512xbf16>
    %c1_194 = arith.constant 1 : index
    %c0_195 = arith.constant 0 : index
    %c0_196 = arith.constant 0 : index
    %615 = vector.load %arg10[%c1_194, %c0_195, %c0_196] : memref<2x512x128xbf16, #tpu.memory_space<vmem>>, vector<1x512x128xbf16>
    %616 = vector.shape_cast %615 : vector<1x512x128xbf16> to vector<512x128xbf16>
    %cst_197 = arith.constant dense<0.000000e+00> : vector<16x128xf32>
    %617 = tpu.matmul %614, %616, %cst_197 {dimension_numbers = #tpu.dot_dimension_numbers<[1], [0], [0], [1], [0, 0, 1, 1], [], []>} : vector<16x512xbf16>, vector<512x128xbf16>, vector<16x128xf32> -> vector<16x128xf32>
    %618 = vector.extract_strided_slice %0 {offsets = [7, 0], sizes = [1, 128], strides = [1, 1]} : vector<32x128xf32> to vector<1x128xf32>
    %619 = vector.broadcast %618 : vector<1x128xf32> to vector<16x128xf32>
    %620 = arith.addf %617, %619 : vector<16x128xf32>
    %621 = arith.addf %565, %620 : vector<16x128xf32>
    %cst_198 = arith.constant dense<0.000000e+00> : vector<16xf32>
    %622 = vector.multi_reduction <add>, %621, %cst_198 [1] : vector<16x128xf32> to vector<16xf32>
    %623 = vector.shape_cast %622 : vector<16xf32> to vector<16x1xf32>
    %cst_199 = arith.constant 1.280000e+02 : f32
    %624 = vector.broadcast %cst_199 : f32 to vector<16x1xf32>
    %625 = arith.divf %623, %624 : vector<16x1xf32>
    %626 = vector.broadcast %625 : vector<16x1xf32> to vector<16x128xf32>
    %627 = arith.subf %621, %626 : vector<16x128xf32>
    %628 = arith.mulf %627, %627 : vector<16x128xf32>
    %cst_200 = arith.constant dense<0.000000e+00> : vector<16xf32>
    %629 = vector.multi_reduction <add>, %628, %cst_200 [1] : vector<16x128xf32> to vector<16xf32>
    %630 = vector.shape_cast %629 : vector<16xf32> to vector<16x1xf32>
    %cst_201 = arith.constant 1.280000e+02 : f32
    %631 = vector.broadcast %cst_201 : f32 to vector<16x1xf32>
    %632 = arith.divf %630, %631 : vector<16x1xf32>
    %633 = vector.broadcast %625 : vector<16x1xf32> to vector<16x128xf32>
    %634 = arith.subf %621, %633 : vector<16x128xf32>
    %cst_202 = arith.constant 9.99999974E-6 : f32
    %635 = vector.broadcast %cst_202 : f32 to vector<16x1xf32>
    %636 = arith.addf %632, %635 : vector<16x1xf32>
    %637 = math.rsqrt %636 : vector<16x1xf32>
    %638 = vector.broadcast %637 : vector<16x1xf32> to vector<16x128xf32>
    %639 = arith.mulf %634, %638 : vector<16x128xf32>
    %640 = vector.broadcast %466 : vector<1x128xf32> to vector<16x128xf32>
    %641 = arith.mulf %639, %640 : vector<16x128xf32>
    %642 = vector.broadcast %467 : vector<1x128xf32> to vector<16x128xf32>
    %643 = arith.addf %641, %642 : vector<16x128xf32>
    %c2_203 = arith.constant 2 : index
    %c0_204 = arith.constant 0 : index
    %c0_205 = arith.constant 0 : index
    %644 = vector.load %arg13[%c2_203, %c0_204, %c0_205] : memref<4x16x128xf32, #tpu.memory_space<vmem>>, vector<1x16x128xf32>
    %645 = vector.shape_cast %644 : vector<1x16x128xf32> to vector<16x128xf32>
    %646 = vector.shape_cast %643 : vector<16x128xf32> to vector<1x16x128xf32>
    tpu.vector_store %arg13[%c2_203, %c0_204, %c0_205], %646 {strides = array<i32>} : memref<4x16x128xf32, #tpu.memory_space<vmem>>, vector<1x16x128xf32>,
    %647 = vector.extract_strided_slice %0 {offsets = [23, 0], sizes = [1, 128], strides = [1, 1]} : vector<32x128xf32> to vector<1x128xf32>
    %648 = vector.extract_strided_slice %0 {offsets = [24, 0], sizes = [1, 128], strides = [1, 1]} : vector<32x128xf32> to vector<1x128xf32>
    %649 = vector.extract_strided_slice %0 {offsets = [25, 0], sizes = [1, 128], strides = [1, 1]} : vector<32x128xf32> to vector<1x128xf32>
    %650 = vector.extract_strided_slice %0 {offsets = [26, 0], sizes = [1, 128], strides = [1, 1]} : vector<32x128xf32> to vector<1x128xf32>
    %651 = vector.extract_strided_slice %0 {offsets = [27, 0], sizes = [1, 128], strides = [1, 1]} : vector<32x128xf32> to vector<1x128xf32>
    %c3 = arith.constant 3 : index
    %c0_206 = arith.constant 0 : index
    %c0_207 = arith.constant 0 : index
    %652 = vector.load %arg8[%c3, %c0_206, %c0_207] : memref<4x128x128xbf16, #tpu.memory_space<vmem>>, vector<1x128x128xbf16>
    %653 = vector.shape_cast %652 : vector<1x128x128xbf16> to vector<128x128xbf16>
    %cst_208 = arith.constant dense<0.000000e+00> : vector<16x16xf32>
    %654 = tpu.matmul %56, %72, %cst_208 {dimension_numbers = #tpu.dot_dimension_numbers<[1], [1], [0], [0], [0, 0, 1, 0], [], []>} : vector<16x32xbf16>, vector<16x32xbf16>, vector<16x16xf32> -> vector<16x16xf32>
    %655 = arith.addf %654, %2 : vector<16x16xf32>
    %cst_209 = arith.constant dense<0xFF800000> : vector<16xf32>
    %656 = vector.multi_reduction <maximumf>, %655, %cst_209 [1] : vector<16x16xf32> to vector<16xf32>
    %657 = vector.shape_cast %656 : vector<16xf32> to vector<16x1xf32>
    %658 = vector.broadcast %657 : vector<16x1xf32> to vector<16x16xf32>
    %659 = arith.subf %655, %658 : vector<16x16xf32>
    %660 = math.exp %659 : vector<16x16xf32>
    %cst_210 = arith.constant dense<0.000000e+00> : vector<16xf32>
    %661 = vector.multi_reduction <add>, %660, %cst_210 [1] : vector<16x16xf32> to vector<16xf32>
    %662 = vector.shape_cast %661 : vector<16xf32> to vector<16x1xf32>
    %663 = tpu.reciprocal %662 {approx = true} : vector<16x1xf32> -> vector<16x1xf32>
    %664 = vector.broadcast %663 : vector<16x1xf32> to vector<16x16xf32>
    %665 = arith.mulf %660, %664 : vector<16x16xf32>
    %666 = arith.truncf %665 : vector<16x16xf32> to vector<16x16xbf16>
    %cst_211 = arith.constant dense<0.000000e+00> : vector<16x32xf32>
    %667 = tpu.matmul %666, %88, %cst_211 {dimension_numbers = #tpu.dot_dimension_numbers<[1], [0], [0], [1], [0, 0, 1, 1], [], []>} : vector<16x16xbf16>, vector<16x32xbf16>, vector<16x32xf32> -> vector<16x32xf32>
    %668 = arith.truncf %667 : vector<16x32xf32> to vector<16x32xbf16>
    %669 = vector.extract_strided_slice %653 {offsets = [0, 0], sizes = [32, 128], strides = [1, 1]} : vector<128x128xbf16> to vector<32x128xbf16>
    %cst_212 = arith.constant dense<0.000000e+00> : vector<16x128xf32>
    %670 = tpu.matmul %668, %669, %cst_212 {dimension_numbers = #tpu.dot_dimension_numbers<[1], [0], [0], [1], [0, 0, 1, 1], [], []>} : vector<16x32xbf16>, vector<32x128xbf16>, vector<16x128xf32> -> vector<16x128xf32>
    %cst_213 = arith.constant dense<0.000000e+00> : vector<16x16xf32>
    %671 = tpu.matmul %58, %74, %cst_213 {dimension_numbers = #tpu.dot_dimension_numbers<[1], [1], [0], [0], [0, 0, 1, 0], [], []>} : vector<16x32xbf16>, vector<16x32xbf16>, vector<16x16xf32> -> vector<16x16xf32>
    %672 = arith.addf %671, %2 : vector<16x16xf32>
    %cst_214 = arith.constant dense<0xFF800000> : vector<16xf32>
    %673 = vector.multi_reduction <maximumf>, %672, %cst_214 [1] : vector<16x16xf32> to vector<16xf32>
    %674 = vector.shape_cast %673 : vector<16xf32> to vector<16x1xf32>
    %675 = vector.broadcast %674 : vector<16x1xf32> to vector<16x16xf32>
    %676 = arith.subf %672, %675 : vector<16x16xf32>
    %677 = math.exp %676 : vector<16x16xf32>
    %cst_215 = arith.constant dense<0.000000e+00> : vector<16xf32>
    %678 = vector.multi_reduction <add>, %677, %cst_215 [1] : vector<16x16xf32> to vector<16xf32>
    %679 = vector.shape_cast %678 : vector<16xf32> to vector<16x1xf32>
    %680 = tpu.reciprocal %679 {approx = true} : vector<16x1xf32> -> vector<16x1xf32>
    %681 = vector.broadcast %680 : vector<16x1xf32> to vector<16x16xf32>
    %682 = arith.mulf %677, %681 : vector<16x16xf32>
    %683 = arith.truncf %682 : vector<16x16xf32> to vector<16x16xbf16>
    %cst_216 = arith.constant dense<0.000000e+00> : vector<16x32xf32>
    %684 = tpu.matmul %683, %90, %cst_216 {dimension_numbers = #tpu.dot_dimension_numbers<[1], [0], [0], [1], [0, 0, 1, 1], [], []>} : vector<16x16xbf16>, vector<16x32xbf16>, vector<16x32xf32> -> vector<16x32xf32>
    %685 = arith.truncf %684 : vector<16x32xf32> to vector<16x32xbf16>
    %686 = vector.extract_strided_slice %653 {offsets = [32, 0], sizes = [32, 128], strides = [1, 1]} : vector<128x128xbf16> to vector<32x128xbf16>
    %cst_217 = arith.constant dense<0.000000e+00> : vector<16x128xf32>
    %687 = tpu.matmul %685, %686, %cst_217 {dimension_numbers = #tpu.dot_dimension_numbers<[1], [0], [0], [1], [0, 0, 1, 1], [], []>} : vector<16x32xbf16>, vector<32x128xbf16>, vector<16x128xf32> -> vector<16x128xf32>
    %688 = arith.addf %670, %687 : vector<16x128xf32>
    %cst_218 = arith.constant dense<0.000000e+00> : vector<16x16xf32>
    %689 = tpu.matmul %60, %76, %cst_218 {dimension_numbers = #tpu.dot_dimension_numbers<[1], [1], [0], [0], [0, 0, 1, 0], [], []>} : vector<16x32xbf16>, vector<16x32xbf16>, vector<16x16xf32> -> vector<16x16xf32>
    %690 = arith.addf %689, %2 : vector<16x16xf32>
    %cst_219 = arith.constant dense<0xFF800000> : vector<16xf32>
    %691 = vector.multi_reduction <maximumf>, %690, %cst_219 [1] : vector<16x16xf32> to vector<16xf32>
    %692 = vector.shape_cast %691 : vector<16xf32> to vector<16x1xf32>
    %693 = vector.broadcast %692 : vector<16x1xf32> to vector<16x16xf32>
    %694 = arith.subf %690, %693 : vector<16x16xf32>
    %695 = math.exp %694 : vector<16x16xf32>
    %cst_220 = arith.constant dense<0.000000e+00> : vector<16xf32>
    %696 = vector.multi_reduction <add>, %695, %cst_220 [1] : vector<16x16xf32> to vector<16xf32>
    %697 = vector.shape_cast %696 : vector<16xf32> to vector<16x1xf32>
    %698 = tpu.reciprocal %697 {approx = true} : vector<16x1xf32> -> vector<16x1xf32>
    %699 = vector.broadcast %698 : vector<16x1xf32> to vector<16x16xf32>
    %700 = arith.mulf %695, %699 : vector<16x16xf32>
    %701 = arith.truncf %700 : vector<16x16xf32> to vector<16x16xbf16>
    %cst_221 = arith.constant dense<0.000000e+00> : vector<16x32xf32>
    %702 = tpu.matmul %701, %92, %cst_221 {dimension_numbers = #tpu.dot_dimension_numbers<[1], [0], [0], [1], [0, 0, 1, 1], [], []>} : vector<16x16xbf16>, vector<16x32xbf16>, vector<16x32xf32> -> vector<16x32xf32>
    %703 = arith.truncf %702 : vector<16x32xf32> to vector<16x32xbf16>
    %704 = vector.extract_strided_slice %653 {offsets = [64, 0], sizes = [32, 128], strides = [1, 1]} : vector<128x128xbf16> to vector<32x128xbf16>
    %cst_222 = arith.constant dense<0.000000e+00> : vector<16x128xf32>
    %705 = tpu.matmul %703, %704, %cst_222 {dimension_numbers = #tpu.dot_dimension_numbers<[1], [0], [0], [1], [0, 0, 1, 1], [], []>} : vector<16x32xbf16>, vector<32x128xbf16>, vector<16x128xf32> -> vector<16x128xf32>
    %706 = arith.addf %688, %705 : vector<16x128xf32>
    %cst_223 = arith.constant dense<0.000000e+00> : vector<16x16xf32>
    %707 = tpu.matmul %62, %78, %cst_223 {dimension_numbers = #tpu.dot_dimension_numbers<[1], [1], [0], [0], [0, 0, 1, 0], [], []>} : vector<16x32xbf16>, vector<16x32xbf16>, vector<16x16xf32> -> vector<16x16xf32>
    %708 = arith.addf %707, %2 : vector<16x16xf32>
    %cst_224 = arith.constant dense<0xFF800000> : vector<16xf32>
    %709 = vector.multi_reduction <maximumf>, %708, %cst_224 [1] : vector<16x16xf32> to vector<16xf32>
    %710 = vector.shape_cast %709 : vector<16xf32> to vector<16x1xf32>
    %711 = vector.broadcast %710 : vector<16x1xf32> to vector<16x16xf32>
    %712 = arith.subf %708, %711 : vector<16x16xf32>
    %713 = math.exp %712 : vector<16x16xf32>
    %cst_225 = arith.constant dense<0.000000e+00> : vector<16xf32>
    %714 = vector.multi_reduction <add>, %713, %cst_225 [1] : vector<16x16xf32> to vector<16xf32>
    %715 = vector.shape_cast %714 : vector<16xf32> to vector<16x1xf32>
    %716 = tpu.reciprocal %715 {approx = true} : vector<16x1xf32> -> vector<16x1xf32>
    %717 = vector.broadcast %716 : vector<16x1xf32> to vector<16x16xf32>
    %718 = arith.mulf %713, %717 : vector<16x16xf32>
    %719 = arith.truncf %718 : vector<16x16xf32> to vector<16x16xbf16>
    %cst_226 = arith.constant dense<0.000000e+00> : vector<16x32xf32>
    %720 = tpu.matmul %719, %94, %cst_226 {dimension_numbers = #tpu.dot_dimension_numbers<[1], [0], [0], [1], [0, 0, 1, 1], [], []>} : vector<16x16xbf16>, vector<16x32xbf16>, vector<16x32xf32> -> vector<16x32xf32>
    %721 = arith.truncf %720 : vector<16x32xf32> to vector<16x32xbf16>
    %722 = vector.extract_strided_slice %653 {offsets = [96, 0], sizes = [32, 128], strides = [1, 1]} : vector<128x128xbf16> to vector<32x128xbf16>
    %cst_227 = arith.constant dense<0.000000e+00> : vector<16x128xf32>
    %723 = tpu.matmul %721, %722, %cst_227 {dimension_numbers = #tpu.dot_dimension_numbers<[1], [0], [0], [1], [0, 0, 1, 1], [], []>} : vector<16x32xbf16>, vector<32x128xbf16>, vector<16x128xf32> -> vector<16x128xf32>
    %724 = arith.addf %706, %723 : vector<16x128xf32>
    %725 = arith.addf %4, %724 : vector<16x128xf32>
    %726 = vector.broadcast %647 : vector<1x128xf32> to vector<16x128xf32>
    %727 = arith.addf %725, %726 : vector<16x128xf32>
    %cst_228 = arith.constant dense<0.000000e+00> : vector<16xf32>
    %728 = vector.multi_reduction <add>, %727, %cst_228 [1] : vector<16x128xf32> to vector<16xf32>
    %729 = vector.shape_cast %728 : vector<16xf32> to vector<16x1xf32>
    %cst_229 = arith.constant 1.280000e+02 : f32
    %730 = vector.broadcast %cst_229 : f32 to vector<16x1xf32>
    %731 = arith.divf %729, %730 : vector<16x1xf32>
    %732 = vector.broadcast %731 : vector<16x1xf32> to vector<16x128xf32>
    %733 = arith.subf %727, %732 : vector<16x128xf32>
    %734 = arith.mulf %733, %733 : vector<16x128xf32>
    %cst_230 = arith.constant dense<0.000000e+00> : vector<16xf32>
    %735 = vector.multi_reduction <add>, %734, %cst_230 [1] : vector<16x128xf32> to vector<16xf32>
    %736 = vector.shape_cast %735 : vector<16xf32> to vector<16x1xf32>
    %cst_231 = arith.constant 1.280000e+02 : f32
    %737 = vector.broadcast %cst_231 : f32 to vector<16x1xf32>
    %738 = arith.divf %736, %737 : vector<16x1xf32>
    %739 = vector.broadcast %731 : vector<16x1xf32> to vector<16x128xf32>
    %740 = arith.subf %727, %739 : vector<16x128xf32>
    %cst_232 = arith.constant 9.99999974E-6 : f32
    %741 = vector.broadcast %cst_232 : f32 to vector<16x1xf32>
    %742 = arith.addf %738, %741 : vector<16x1xf32>
    %743 = math.rsqrt %742 : vector<16x1xf32>
    %744 = vector.broadcast %743 : vector<16x1xf32> to vector<16x128xf32>
    %745 = arith.mulf %740, %744 : vector<16x128xf32>
    %746 = vector.broadcast %648 : vector<1x128xf32> to vector<16x128xf32>
    %747 = arith.mulf %745, %746 : vector<16x128xf32>
    %748 = vector.broadcast %649 : vector<1x128xf32> to vector<16x128xf32>
    %749 = arith.addf %747, %748 : vector<16x128xf32>
    %750 = arith.truncf %749 : vector<16x128xf32> to vector<16x128xbf16>
    %c1_233 = arith.constant 1 : index
    %c0_234 = arith.constant 0 : index
    %c0_235 = arith.constant 0 : index
    %751 = vector.load %arg9[%c1_233, %c0_234, %c0_235] : memref<2x128x512xbf16, #tpu.memory_space<vmem>>, vector<1x128x512xbf16>
    %752 = vector.shape_cast %751 : vector<1x128x512xbf16> to vector<128x512xbf16>
    %cst_236 = arith.constant dense<0.000000e+00> : vector<16x512xf32>
    %753 = tpu.matmul %750, %752, %cst_236 {dimension_numbers = #tpu.dot_dimension_numbers<[1], [0], [0], [1], [0, 0, 1, 1], [], []>} : vector<16x128xbf16>, vector<128x512xbf16>, vector<16x512xf32> -> vector<16x512xf32>
    %754 = vector.extract_strided_slice %1 {offsets = [1, 0], sizes = [1, 512], strides = [1, 1]} : vector<8x512xf32> to vector<1x512xf32>
    %755 = vector.broadcast %754 : vector<1x512xf32> to vector<16x512xf32>
    %756 = arith.addf %753, %755 : vector<16x512xf32>
    %cst_237 = arith.constant 5.000000e-01 : f32
    %757 = vector.broadcast %cst_237 : f32 to vector<16x512xf32>
    %758 = arith.mulf %757, %756 : vector<16x512xf32>
    %cst_238 = arith.constant 0.707106769 : f32
    %759 = vector.broadcast %cst_238 : f32 to vector<16x512xf32>
    %760 = arith.mulf %756, %759 : vector<16x512xf32>
    %cst_239 = arith.constant 0.000000e+00 : f32
    %761 = vector.broadcast %cst_239 : f32 to vector<16x512xf32>
    %762 = arith.cmpf oge, %760, %761 : vector<16x512xf32>
    %cst_240 = arith.constant 1.000000e+00 : f32
    %cst_241 = arith.constant -1.000000e+00 : f32
    %763 = vector.broadcast %cst_240 : f32 to vector<16x512xf32>
    %764 = vector.broadcast %cst_241 : f32 to vector<16x512xf32>
    %765 = arith.select %762, %763, %764 : vector<16x512xi1>, vector<16x512xf32>
    %766 = math.absf %760 : vector<16x512xf32>
    %cst_242 = arith.constant 0.327591091 : f32
    %767 = vector.broadcast %cst_242 : f32 to vector<16x512xf32>
    %768 = arith.mulf %767, %766 : vector<16x512xf32>
    %cst_243 = arith.constant 1.000000e+00 : f32
    %769 = vector.broadcast %cst_243 : f32 to vector<16x512xf32>
    %770 = arith.addf %769, %768 : vector<16x512xf32>
    %cst_244 = arith.constant 1.000000e+00 : f32
    %771 = vector.broadcast %cst_244 : f32 to vector<16x512xf32>
    %772 = arith.divf %771, %770 : vector<16x512xf32>
    %cst_245 = arith.constant 1.06140542 : f32
    %773 = vector.broadcast %cst_245 : f32 to vector<16x512xf32>
    %774 = arith.mulf %773, %772 : vector<16x512xf32>
    %cst_246 = arith.constant -1.45315206 : f32
    %775 = vector.broadcast %cst_246 : f32 to vector<16x512xf32>
    %776 = arith.addf %774, %775 : vector<16x512xf32>
    %777 = arith.mulf %776, %772 : vector<16x512xf32>
    %cst_247 = arith.constant 1.42141378 : f32
    %778 = vector.broadcast %cst_247 : f32 to vector<16x512xf32>
    %779 = arith.addf %777, %778 : vector<16x512xf32>
    %780 = arith.mulf %779, %772 : vector<16x512xf32>
    %cst_248 = arith.constant -0.284496725 : f32
    %781 = vector.broadcast %cst_248 : f32 to vector<16x512xf32>
    %782 = arith.addf %780, %781 : vector<16x512xf32>
    %783 = arith.mulf %782, %772 : vector<16x512xf32>
    %cst_249 = arith.constant 0.254829586 : f32
    %784 = vector.broadcast %cst_249 : f32 to vector<16x512xf32>
    %785 = arith.addf %783, %784 : vector<16x512xf32>
    %786 = arith.mulf %785, %772 : vector<16x512xf32>
    %cst_250 = arith.constant 0.000000e+00 : f32
    %787 = vector.broadcast %cst_250 : f32 to vector<16x512xf32>
    %788 = arith.subf %787, %766 : vector<16x512xf32>
    %789 = arith.mulf %788, %766 : vector<16x512xf32>
    %790 = math.exp %789 : vector<16x512xf32>
    %791 = arith.mulf %786, %790 : vector<16x512xf32>
    %cst_251 = arith.constant 1.000000e+00 : f32
    %792 = vector.broadcast %cst_251 : f32 to vector<16x512xf32>
    %793 = arith.subf %792, %791 : vector<16x512xf32>
    %794 = arith.mulf %765, %793 : vector<16x512xf32>
    %cst_252 = arith.constant 1.000000e+00 : f32
    %795 = vector.broadcast %cst_252 : f32 to vector<16x512xf32>
    %796 = arith.addf %795, %794 : vector<16x512xf32>
    %797 = arith.mulf %758, %796 : vector<16x512xf32>
    %798 = arith.truncf %797 : vector<16x512xf32> to vector<16x512xbf16>
    %c1_253 = arith.constant 1 : index
    %c0_254 = arith.constant 0 : index
    %c0_255 = arith.constant 0 : index
    %799 = vector.load %arg10[%c1_253, %c0_254, %c0_255] : memref<2x512x128xbf16, #tpu.memory_space<vmem>>, vector<1x512x128xbf16>
    %800 = vector.shape_cast %799 : vector<1x512x128xbf16> to vector<512x128xbf16>
    %cst_256 = arith.constant dense<0.000000e+00> : vector<16x128xf32>
    %801 = tpu.matmul %798, %800, %cst_256 {dimension_numbers = #tpu.dot_dimension_numbers<[1], [0], [0], [1], [0, 0, 1, 1], [], []>} : vector<16x512xbf16>, vector<512x128xbf16>, vector<16x128xf32> -> vector<16x128xf32>
    %802 = vector.extract_strided_slice %0 {offsets = [7, 0], sizes = [1, 128], strides = [1, 1]} : vector<32x128xf32> to vector<1x128xf32>
    %803 = vector.broadcast %802 : vector<1x128xf32> to vector<16x128xf32>
    %804 = arith.addf %801, %803 : vector<16x128xf32>
    %805 = arith.addf %749, %804 : vector<16x128xf32>
    %cst_257 = arith.constant dense<0.000000e+00> : vector<16xf32>
    %806 = vector.multi_reduction <add>, %805, %cst_257 [1] : vector<16x128xf32> to vector<16xf32>
    %807 = vector.shape_cast %806 : vector<16xf32> to vector<16x1xf32>
    %cst_258 = arith.constant 1.280000e+02 : f32
    %808 = vector.broadcast %cst_258 : f32 to vector<16x1xf32>
    %809 = arith.divf %807, %808 : vector<16x1xf32>
    %810 = vector.broadcast %809 : vector<16x1xf32> to vector<16x128xf32>
    %811 = arith.subf %805, %810 : vector<16x128xf32>
    %812 = arith.mulf %811, %811 : vector<16x128xf32>
    %cst_259 = arith.constant dense<0.000000e+00> : vector<16xf32>
    %813 = vector.multi_reduction <add>, %812, %cst_259 [1] : vector<16x128xf32> to vector<16xf32>
    %814 = vector.shape_cast %813 : vector<16xf32> to vector<16x1xf32>
    %cst_260 = arith.constant 1.280000e+02 : f32
    %815 = vector.broadcast %cst_260 : f32 to vector<16x1xf32>
    %816 = arith.divf %814, %815 : vector<16x1xf32>
    %817 = vector.broadcast %809 : vector<16x1xf32> to vector<16x128xf32>
    %818 = arith.subf %805, %817 : vector<16x128xf32>
    %cst_261 = arith.constant 9.99999974E-6 : f32
    %819 = vector.broadcast %cst_261 : f32 to vector<16x1xf32>
    %820 = arith.addf %816, %819 : vector<16x1xf32>
    %821 = math.rsqrt %820 : vector<16x1xf32>
    %822 = vector.broadcast %821 : vector<16x1xf32> to vector<16x128xf32>
    %823 = arith.mulf %818, %822 : vector<16x128xf32>
    %824 = vector.broadcast %650 : vector<1x128xf32> to vector<16x128xf32>
    %825 = arith.mulf %823, %824 : vector<16x128xf32>
    %826 = vector.broadcast %651 : vector<1x128xf32> to vector<16x128xf32>
    %827 = arith.addf %825, %826 : vector<16x128xf32>
    %c3_262 = arith.constant 3 : index
    %c0_263 = arith.constant 0 : index
    %c0_264 = arith.constant 0 : index
    %828 = vector.load %arg13[%c3_262, %c0_263, %c0_264] : memref<4x16x128xf32, #tpu.memory_space<vmem>>, vector<1x16x128xf32>
    %829 = vector.shape_cast %828 : vector<1x16x128xf32> to vector<16x128xf32>
    %830 = vector.shape_cast %827 : vector<16x128xf32> to vector<1x16x128xf32>
    tpu.vector_store %arg13[%c3_262, %c0_263, %c0_264], %830 {strides = array<i32>} : memref<4x16x128xf32, #tpu.memory_space<vmem>>, vector<1x16x128xf32>,
    return
  }
}

</mosaic_0001>

<llo_original>
// kernel: _fused_forward.1
$region0: #{_fused_forward.1}
  #allocation0 [shape = 'u32[]', space=smem, size = 0x4, offset = 0x4, fixed_abs, tag = 'smem constant byte address 0x4 - core index']
  #allocation1 [shape = 'u32[72,128]{1,0:T(1,128)}', space=vmem, size = 0x9000, scoped, tag = 'internal scratch']
  %s0 = inlined_call_operand.hbm [shape: f32[16,128], index: 0, kind: input, shape index: {}]
  %s1 = inlined_call_operand.hbm [shape: f32[16,128], index: 1, kind: input, shape index: {}]
  %s2 = inlined_call_operand.hbm [shape: f32[16,128], index: 2, kind: input, shape index: {}]
  %s3 = inlined_call_operand.hbm [shape: f32[16,256], index: 3, kind: input, shape index: {}]
  %s4 = inlined_call_operand.hbm [shape: f32[16,16], index: 4, kind: input, shape index: {}]
  %s5 = inlined_call_operand.hbm [shape: bf16[2,128,128], index: 5, kind: input, shape index: {}]
  %s6 = inlined_call_operand.hbm [shape: bf16[128,256], index: 6, kind: input, shape index: {}]
  %s7 = inlined_call_operand.hbm [shape: bf16[256,256], index: 7, kind: input, shape index: {}]
  %s8 = inlined_call_operand.hbm [shape: bf16[4,128,128], index: 8, kind: input, shape index: {}]
  %s9 = inlined_call_operand.hbm [shape: bf16[2,128,512], index: 9, kind: input, shape index: {}]
  %s10 = inlined_call_operand.hbm [shape: bf16[2,512,128], index: 10, kind: input, shape index: {}]
  %s11 = inlined_call_operand.hbm [shape: f32[32,128], index: 11, kind: input, shape index: {}]
  %s12 = inlined_call_operand.hbm [shape: f32[8,512], index: 12, kind: input, shape index: {}]
  %s13 = inlined_call_operand.hbm [shape: f32[4,16,128], index: 13, kind: output, shape index: {}]
  %s14 = sld [smem:[#allocation0]]
  $region114: #{_fused_forward.1} parent=0
    _
  %s16 = ssub.s32 1, %s14
  %s17 = scalar_select 0, %s16, %s14
  $region1: #{_fused_forward.1} parent=0
    #allocation2 [shape = 'u8[8192]{0}', space=vmem, size = 0x2000, scoped, tag = 'input window, operand 0, single buffered']
    #allocation3 [shape = 's32[1]{0}', space=sflag, size = 0x4, scoped, tag = 'scoped memory for _fused_forward.1']
    #allocation4 [shape = 's32[1]{0}', space=sflag, size = 0x4, scoped, tag = 'scoped memory for _fused_forward.1']
    #allocation5 [shape = 'u8[8192]{0}', space=vmem, size = 0x2000, scoped, tag = 'input window, operand 1, single buffered']
    #allocation6 [shape = 's32[1]{0}', space=sflag, size = 0x4, scoped, tag = 'scoped memory for _fused_forward.1']
    #allocation7 [shape = 'u8[8192]{0}', space=vmem, size = 0x2000, scoped, tag = 'input window, operand 2, single buffered']
    #allocation8 [shape = 'u8[16384]{0}', space=vmem, size = 0x4000, scoped, tag = 'input window, operand 3, single buffered']
    #allocation9 [shape = 's32[1]{0}', space=sflag, size = 0x4, scoped, tag = 'scoped memory for _fused_forward.1']
    #allocation10 [shape = 'u8[8192]{0}', space=vmem, size = 0x2000, scoped, tag = 'input window, operand 4, single buffered']
    #allocation11 [shape = 'u8[65536]{0}', space=vmem, size = 0x10000, scoped, tag = 'input window, operand 5, single buffered']
    #allocation12 [shape = 's32[1]{0}', space=sflag, size = 0x4, scoped, tag = 'scoped memory for _fused_forward.1']
    #allocation13 [shape = 'u8[65536]{0}', space=vmem, size = 0x10000, scoped, tag = 'input window, operand 6, single buffered']
    #allocation14 [shape = 'u8[131072]{0}', space=vmem, size = 0x20000, scoped, tag = 'input window, operand 7, single buffered']
    #allocation15 [shape = 's32[1]{0}', space=sflag, size = 0x4, scoped, tag = 'scoped memory for _fused_forward.1']
    #allocation16 [shape = 'u8[131072]{0}', space=vmem, size = 0x20000, scoped, tag = 'input window, operand 8, single buffered']
    #allocation17 [shape = 'u8[262144]{0}', space=vmem, size = 0x40000, scoped, tag = 'input window, operand 9, single buffered']
    #allocation18 [shape = 's32[1]{0}', space=sflag, size = 0x4, scoped, tag = 'scoped memory for _fused_forward.1']
    #allocation19 [shape = 'u8[262144]{0}', space=vmem, size = 0x40000, scoped, tag = 'input window, operand 10, single buffered']
    #allocation20 [shape = 'u8[16384]{0}', space=vmem, size = 0x4000, scoped, tag = 'input window, operand 11, single buffered']
    #allocation21 [shape = 's32[1]{0}', space=sflag, size = 0x4, scoped, tag = 'scoped memory for _fused_forward.1']
    #allocation22 [shape = 'u8[16384]{0}', space=vmem, size = 0x4000, scoped, tag = 'input window, operand 12, single buffered']
    #allocation23 [shape = 'u8[32768]{0}', space=vmem, size = 0x8000, scoped, tag = 'output window, operand 0, single buffered']
    %18 = vsyncpa [#allocation3], 0
    %19 = vsyncpa [#allocation6], 0
    %20 = vsyncpa [#allocation9], 0
    %21 = vsyncpa [#allocation12], 0
    %22 = vsyncpa [#allocation15], 0
    %23 = vsyncpa [#allocation18], 0
    %24 = vsyncpa [#allocation21], 0
    %25 = vsyncpa [#allocation4], 0
    // Predicated region
    $region2: #{_fused_forward.1} parent=1 // pred_check
      _
    $region3: #{_fused_forward.1} parent=1 // pred_check_branch
      %27 = sbr.rel (0) target = $region5
    $region4: #{_fused_forward.1} parent=1 // pred_region
      %29 = vsyncadd [#allocation3], 0
      %s30 = sshll.u32 %s0, 4
      %s31 = int_to_ptr.hbm [resolvable:$true] %s30
      %s32 = sshll.u32 [#allocation2], 4
      %s33 = int_to_ptr.vmem [resolvable:$true] %s32
      %38 = dma.hbm_to_vmem [thread:$0]  %s31, 256, %s33, [#allocation3], 128, 128, 8
    $region5: #{_fused_forward.1} parent=1 // pred_fallthru
      _
    // Predicated region
    $region6: #{_fused_forward.1} parent=1 // pred_check
      _
    $region7: #{_fused_forward.1} parent=1 // pred_check_branch
      %40 = sbr.rel (0) target = $region9
    $region8: #{_fused_forward.1} parent=1 // pred_region
      %42 = vsyncadd [#allocation6], 0
      %s43 = sshll.u32 %s1, 4
      %s44 = int_to_ptr.hbm [resolvable:$true] %s43
      %s45 = sshll.u32 [#allocation5], 4
      %s46 = int_to_ptr.vmem [resolvable:$true] %s45
      %51 = dma.hbm_to_vmem [thread:$0]  %s44, 256, %s46, [#allocation6], 128, 128, 8
    $region9: #{_fused_forward.1} parent=1 // pred_fallthru
      _
    // Predicated region
    $region10: #{_fused_forward.1} parent=1 // pred_check
      _
    $region11: #{_fused_forward.1} parent=1 // pred_check_branch
      %53 = sbr.rel (0) target = $region13
    $region12: #{_fused_forward.1} parent=1 // pred_region
      %55 = vsyncadd [#allocation6], 0
      %s56 = sshll.u32 %s2, 4
      %s57 = int_to_ptr.hbm [resolvable:$true] %s56
      %s58 = sshll.u32 [#allocation7], 4
      %s59 = int_to_ptr.vmem [resolvable:$true] %s58
      %64 = dma.hbm_to_vmem [thread:$0]  %s57, 256, %s59, [#allocation6], 128, 128, 8
    $region13: #{_fused_forward.1} parent=1 // pred_fallthru
      _
    // Predicated region
    $region14: #{_fused_forward.1} parent=1 // pred_check
      _
    $region15: #{_fused_forward.1} parent=1 // pred_check_branch
      %66 = sbr.rel (0) target = $region17
    $region16: #{_fused_forward.1} parent=1 // pred_region
      %68 = vsyncadd [#allocation9], 0
      %s69 = sshll.u32 %s3, 4
      %s70 = int_to_ptr.hbm [resolvable:$true] %s69
      %s71 = sshll.u32 [#allocation8], 4
      %s72 = int_to_ptr.vmem [resolvable:$true] %s71
      %77 = dma.hbm_to_vmem [thread:$0]  %s70, 512, %s72, [#allocation9], 256, 256, 16
    $region17: #{_fused_forward.1} parent=1 // pred_fallthru
      _
    // Predicated region
    $region18: #{_fused_forward.1} parent=1 // pred_check
      _
    $region19: #{_fused_forward.1} parent=1 // pred_check_branch
      %79 = sbr.rel (0) target = $region21
    $region20: #{_fused_forward.1} parent=1 // pred_region
      %81 = vsyncadd [#allocation9], 0
      %s82 = sshll.u32 %s4, 4
      %s83 = int_to_ptr.hbm [resolvable:$true] %s82
      %s84 = sshll.u32 [#allocation10], 4
      %s85 = int_to_ptr.vmem [resolvable:$true] %s84
      %90 = dma.hbm_to_vmem [thread:$0]  %s83, 256, %s85, [#allocation9], 128, 128, 8
    $region21: #{_fused_forward.1} parent=1 // pred_fallthru
      _
    // Predicated region
    $region22: #{_fused_forward.1} parent=1 // pred_check
      _
    $region23: #{_fused_forward.1} parent=1 // pred_check_branch
      %92 = sbr.rel (0) target = $region25
    $region24: #{_fused_forward.1} parent=1 // pred_region
      %94 = vsyncadd [#allocation12], 0
      %s95 = sshll.u32 %s5, 4
      %s96 = int_to_ptr.hbm [resolvable:$true] %s95
      %s97 = sshll.u32 [#allocation11], 4
      %s98 = int_to_ptr.vmem [resolvable:$true] %s97
      %103 = dma.hbm_to_vmem [thread:$0]  %s96, 2048, %s98, [#allocation12], 64, 64, 4
    $region25: #{_fused_forward.1} parent=1 // pred_fallthru
      _
    // Predicated region
    $region26: #{_fused_forward.1} parent=1 // pred_check
      _
    $region27: #{_fused_forward.1} parent=1 // pred_check_branch
      %105 = sbr.rel (0) target = $region29
    $region28: #{_fused_forward.1} parent=1 // pred_region
      %107 = vsyncadd [#allocation12], 0
      %s108 = sshll.u32 %s6, 4
      %s109 = int_to_ptr.hbm [resolvable:$true] %s108
      %s110 = sshll.u32 [#allocation13], 4
      %s111 = int_to_ptr.vmem [resolvable:$true] %s110
      %116 = dma.hbm_to_vmem [thread:$0]  %s109, 2048, %s111, [#allocation12], 128, 128, 8
    $region29: #{_fused_forward.1} parent=1 // pred_fallthru
      _
    // Predicated region
    $region30: #{_fused_forward.1} parent=1 // pred_check
      _
    $region31: #{_fused_forward.1} parent=1 // pred_check_branch
      %118 = sbr.rel (0) target = $region33
    $region32: #{_fused_forward.1} parent=1 // pred_region
      %120 = vsyncadd [#allocation15], 0
      %s121 = sshll.u32 %s7, 4
      %s122 = int_to_ptr.hbm [resolvable:$true] %s121
      %s123 = sshll.u32 [#allocation14], 4
      %s124 = int_to_ptr.vmem [resolvable:$true] %s123
      %129 = dma.hbm_to_vmem [thread:$0]  %s122, 4096, %s124, [#allocation15], 128, 128, 8
    $region33: #{_fused_forward.1} parent=1 // pred_fallthru
      _
    // Predicated region
    $region34: #{_fused_forward.1} parent=1 // pred_check
      _
    $region35: #{_fused_forward.1} parent=1 // pred_check_branch
      %131 = sbr.rel (0) target = $region37
    $region36: #{_fused_forward.1} parent=1 // pred_region
      %133 = vsyncadd [#allocation15], 0
      %s134 = sshll.u32 %s8, 4
      %s135 = int_to_ptr.hbm [resolvable:$true] %s134
      %s136 = sshll.u32 [#allocation16], 4
      %s137 = int_to_ptr.vmem [resolvable:$true] %s136
      %142 = dma.hbm_to_vmem [thread:$0]  %s135, 4096, %s137, [#allocation15], 64, 64, 4
    $region37: #{_fused_forward.1} parent=1 // pred_fallthru
      _
    // Predicated region
    $region38: #{_fused_forward.1} parent=1 // pred_check
      _
    $region39: #{_fused_forward.1} parent=1 // pred_check_branch
      %144 = sbr.rel (0) target = $region41
    $region40: #{_fused_forward.1} parent=1 // pred_region
      %146 = vsyncadd [#allocation18], 0
      %s147 = sshll.u32 %s9, 4
      %s148 = int_to_ptr.hbm [resolvable:$true] %s147
      %s149 = sshll.u32 [#allocation17], 4
      %s150 = int_to_ptr.vmem [resolvable:$true] %s149
      %155 = dma.hbm_to_vmem [thread:$0]  %s148, 8192, %s150, [#allocation18], 256, 256, 16
    $region41: #{_fused_forward.1} parent=1 // pred_fallthru
      _
    // Predicated region
    $region42: #{_fused_forward.1} parent=1 // pred_check
      _
    $region43: #{_fused_forward.1} parent=1 // pred_check_branch
      %157 = sbr.rel (0) target = $region45
    $region44: #{_fused_forward.1} parent=1 // pred_region
      %159 = vsyncadd [#allocation18], 0
      %s160 = sshll.u32 %s10, 4
      %s161 = int_to_ptr.hbm [resolvable:$true] %s160
      %s162 = sshll.u32 [#allocation19], 4
      %s163 = int_to_ptr.vmem [resolvable:$true] %s162
      %168 = dma.hbm_to_vmem [thread:$0]  %s161, 8192, %s163, [#allocation18], 64, 64, 4
    $region45: #{_fused_forward.1} parent=1 // pred_fallthru
      _
    // Predicated region
    $region46: #{_fused_forward.1} parent=1 // pred_check
      _
    $region47: #{_fused_forward.1} parent=1 // pred_check_branch
      %170 = sbr.rel (0) target = $region49
    $region48: #{_fused_forward.1} parent=1 // pred_region
      %172 = vsyncadd [#allocation21], 0
      %s173 = sshll.u32 %s11, 4
      %s174 = int_to_ptr.hbm [resolvable:$true] %s173
      %s175 = sshll.u32 [#allocation20], 4
      %s176 = int_to_ptr.vmem [resolvable:$true] %s175
      %181 = dma.hbm_to_vmem [thread:$0]  %s174, 512, %s176, [#allocation21], 128, 128, 8
    $region49: #{_fused_forward.1} parent=1 // pred_fallthru
      _
    // Predicated region
    $region50: #{_fused_forward.1} parent=1 // pred_check
      _
    $region51: #{_fused_forward.1} parent=1 // pred_check_branch
      %183 = sbr.rel (0) target = $region53
    $region52: #{_fused_forward.1} parent=1 // pred_region
      %185 = vsyncadd [#allocation21], 0
      %s187 = sshll.u32 %s12, 4
      %s188 = int_to_ptr.hbm [resolvable:$true] %s187
      %s189 = sshll.u32 [#allocation22], 4
      %s190 = int_to_ptr.vmem [resolvable:$true] %s189
      %192 = dma.hbm_to_vmem [thread:$0]  %s188, 512, %s190, [#allocation21]
    $region53: #{_fused_forward.1} parent=1 // pred_fallthru
      _
    // Predicated region
    $region54: #{_fused_forward.1} parent=1 // pred_check
      _
    $region55: #{_fused_forward.1} parent=1 // pred_check_branch
      %194 = sbr.rel (0) target = $region57
    $region56: #{_fused_forward.1} parent=1 // pred_region
      %196 = dma.done [#allocation3], 256
    $region57: #{_fused_forward.1} parent=1 // pred_fallthru
      _
    // Predicated region
    $region58: #{_fused_forward.1} parent=1 // pred_check
      _
    $region59: #{_fused_forward.1} parent=1 // pred_check_branch
      %198 = sbr.rel (0) target = $region61
    $region60: #{_fused_forward.1} parent=1 // pred_region
      %200 = dma.done [#allocation6], 256
    $region61: #{_fused_forward.1} parent=1 // pred_fallthru
      _
    // Predicated region
    $region62: #{_fused_forward.1} parent=1 // pred_check
      _
    $region63: #{_fused_forward.1} parent=1 // pred_check_branch
      %202 = sbr.rel (0) target = $region65
    $region64: #{_fused_forward.1} parent=1 // pred_region
      %204 = dma.done [#allocation6], 256
    $region65: #{_fused_forward.1} parent=1 // pred_fallthru
      _
    // Predicated region
    $region66: #{_fused_forward.1} parent=1 // pred_check
      _
    $region67: #{_fused_forward.1} parent=1 // pred_check_branch
      %206 = sbr.rel (0) target = $region69
    $region68: #{_fused_forward.1} parent=1 // pred_region
      %208 = dma.done [#allocation9], 512
    $region69: #{_fused_forward.1} parent=1 // pred_fallthru
      _
    // Predicated region
    $region70: #{_fused_forward.1} parent=1 // pred_check
      _
    $region71: #{_fused_forward.1} parent=1 // pred_check_branch
      %210 = sbr.rel (0) target = $region73
    $region72: #{_fused_forward.1} parent=1 // pred_region
      %212 = dma.done [#allocation9], 256
    $region73: #{_fused_forward.1} parent=1 // pred_fallthru
      _
    // Predicated region
    $region74: #{_fused_forward.1} parent=1 // pred_check
      _
    $region75: #{_fused_forward.1} parent=1 // pred_check_branch
      %214 = sbr.rel (0) target = $region77
    $region76: #{_fused_forward.1} parent=1 // pred_region
      %216 = dma.done [#allocation12], 2048
    $region77: #{_fused_forward.1} parent=1 // pred_fallthru
      _
    // Predicated region
    $region78: #{_fused_forward.1} parent=1 // pred_check
      _
    $region79: #{_fused_forward.1} parent=1 // pred_check_branch
      %218 = sbr.rel (0) target = $region81
    $region80: #{_fused_forward.1} parent=1 // pred_region
      %220 = dma.done [#allocation12], 2048
    $region81: #{_fused_forward.1} parent=1 // pred_fallthru
      _
    // Predicated region
    $region82: #{_fused_forward.1} parent=1 // pred_check
      _
    $region83: #{_fused_forward.1} parent=1 // pred_check_branch
      %222 = sbr.rel (0) target = $region85
    $region84: #{_fused_forward.1} parent=1 // pred_region
      %224 = dma.done [#allocation15], 4096
    $region85: #{_fused_forward.1} parent=1 // pred_fallthru
      _
    // Predicated region
    $region86: #{_fused_forward.1} parent=1 // pred_check
      _
    $region87: #{_fused_forward.1} parent=1 // pred_check_branch
      %226 = sbr.rel (0) target = $region89
    $region88: #{_fused_forward.1} parent=1 // pred_region
      %228 = dma.done [#allocation15], 4096
    $region89: #{_fused_forward.1} parent=1 // pred_fallthru
      _
    // Predicated region
    $region90: #{_fused_forward.1} parent=1 // pred_check
      _
    $region91: #{_fused_forward.1} parent=1 // pred_check_branch
      %230 = sbr.rel (0) target = $region93
    $region92: #{_fused_forward.1} parent=1 // pred_region
      %232 = dma.done [#allocation18], 8192
    $region93: #{_fused_forward.1} parent=1 // pred_fallthru
      _
    // Predicated region
    $region94: #{_fused_forward.1} parent=1 // pred_check
      _
    $region95: #{_fused_forward.1} parent=1 // pred_check_branch
      %234 = sbr.rel (0) target = $region97
    $region96: #{_fused_forward.1} parent=1 // pred_region
      %236 = dma.done [#allocation18], 8192
    $region97: #{_fused_forward.1} parent=1 // pred_fallthru
      _
    // Predicated region
    $region98: #{_fused_forward.1} parent=1 // pred_check
      _
    $region99: #{_fused_forward.1} parent=1 // pred_check_branch
      %238 = sbr.rel (0) target = $region101
    $region100: #{_fused_forward.1} parent=1 // pred_region
      %240 = dma.done [#allocation21], 512
    $region101: #{_fused_forward.1} parent=1 // pred_fallthru
      _
    // Predicated region
    $region102: #{_fused_forward.1} parent=1 // pred_check
      _
    $region103: #{_fused_forward.1} parent=1 // pred_check_branch
      %242 = sbr.rel (0) target = $region105
    $region104: #{_fused_forward.1} parent=1 // pred_region
      %244 = dma.done [#allocation21], 512
    $region105: #{_fused_forward.1} parent=1 // pred_fallthru
      _
    %v246 = vld [vmem:[#allocation20] sm:$0xff]
    %v247 = vld [vmem:[#allocation20 + $0x8] sm:$0xff]
    %v248 = vld [vmem:[#allocation20 + $0x10] sm:$0xff]
    %v249 = vld [vmem:[#allocation20 + $0x18] sm:$0xff]
    %v250 = vld [vmem:[#allocation22] sm:$0xff]
    %v251 = vld [vmem:[#allocation22 + $0x8] sm:$0xff]
    %v252 = vld [vmem:[#allocation22 + $0x10] sm:$0xff]
    %v253 = vld [vmem:[#allocation22 + $0x18] sm:$0xff]
    %v254 = vld [vmem:[#allocation10] sm:$0xff]
    %v255 = vld [vmem:[#allocation10 + $0x8] sm:$0xff]
    %v256 = vld [vmem:[#allocation2] sm:$0xff]
    %v257 = vld [vmem:[#allocation2 + $0x8] sm:$0xff]
    %v258 = vld [vmem:[#allocation5] sm:$0xff]
    %v259 = vld [vmem:[#allocation5 + $0x8] sm:$0xff]
    %v260 = vpack.c.bf16 %v257, %v256
    %v261 = vld [vmem:[#allocation11] sm:$0xf]
    %v262 = vld [vmem:[#allocation11 + $0x4] sm:$0xf]
    %v263 = vld [vmem:[#allocation11 + $0x8] sm:$0xf]
    %v264 = vld [vmem:[#allocation11 + $0xc] sm:$0xf]
    %v265 = vld [vmem:[#allocation11 + $0x10] sm:$0xf]
    %v266 = vld [vmem:[#allocation11 + $0x14] sm:$0xf]
    %v267 = vld [vmem:[#allocation11 + $0x18] sm:$0xf]
    %v268 = vld [vmem:[#allocation11 + $0x1c] sm:$0xf]
    %v269 = vld [vmem:[#allocation11 + $0x20] sm:$0xf]
    %v270 = vld [vmem:[#allocation11 + $0x24] sm:$0xf]
    %v271 = vld [vmem:[#allocation11 + $0x28] sm:$0xf]
    %v272 = vld [vmem:[#allocation11 + $0x2c] sm:$0xf]
    %v273 = vld [vmem:[#allocation11 + $0x30] sm:$0xf]
    %v274 = vld [vmem:[#allocation11 + $0x34] sm:$0xf]
    %v275 = vld [vmem:[#allocation11 + $0x38] sm:$0xf]
    %v276 = vld [vmem:[#allocation11 + $0x3c] sm:$0xf]
    %v277 = vperm.slane %v246, 0
    %v294 = vunpack.c.l.b16 %v261
    %v295 = vunpack.c.l.b16 %v262
    %v296 = vunpack.c.l.b16 %v263
    %v297 = vunpack.c.l.b16 %v264
    %v298 = vunpack.c.l.b16 %v265
    %v299 = vunpack.c.l.b16 %v266
    %v300 = vunpack.c.l.b16 %v267
    %v301 = vunpack.c.l.b16 %v268
    %v302 = vunpack.c.l.b16 %v269
    %v303 = vunpack.c.l.b16 %v270
    %v304 = vunpack.c.l.b16 %v271
    %v305 = vunpack.c.l.b16 %v272
    %v306 = vunpack.c.l.b16 %v273
    %v307 = vunpack.c.l.b16 %v274
    %v308 = vunpack.c.l.b16 %v275
    %v309 = vunpack.c.l.b16 %v276
    %v310 = vpack.c.b16 %v295, %v294
    %v311 = vpack.c.b16 %v297, %v296
    %v312 = vpack.c.b16 %v299, %v298
    %v313 = vpack.c.b16 %v301, %v300
    %v314 = vpack.c.b16 %v303, %v302
    %v315 = vpack.c.b16 %v305, %v304
    %v316 = vpack.c.b16 %v307, %v306
    %v317 = vpack.c.b16 %v309, %v308
    %326 = vmatpush.bf16.msra.mxu0 %v317
    %327 = vmatpush.bf16.msra.mxu0 %v316
    %328 = vmatpush.bf16.msra.mxu0 %v315
    %329 = vmatpush.bf16.msra.mxu0 %v314
    %330 = vmatpush.bf16.msra.mxu0 %v313
    %331 = vmatpush.bf16.msra.mxu0 %v312
    %332 = vmatpush.bf16.msra.mxu0 %v311
    %333 = vmatpush.bf16.msra.mxu0 %v310
    %334 = vmatmul.bf16.gmra.mxu0 %v260
    %v335 = vpop.f32.mrf.mxu0
    %v336 = vadd.f32 %v277, %v335
    %v337 = vpop.f32.mrf.mxu0
    %v338 = vadd.f32 %v277, %v337
    %339 = vdwg.mxu0
    %v340 = vmul.f32 %v336, 0.17677669
    %v341 = vmul.f32 %v338, 0.17677669
    %v342 = vpack.c.bf16 %v259, %v258
    %s343 = scalar_lea.vmem [#allocation11], 64
    %v344 = vld [vmem:[%s343] sm:$0xf]
    %v345 = vld [vmem:[%s343 + $0x4] sm:$0xf]
    %v346 = vld [vmem:[%s343 + $0x8] sm:$0xf]
    %v347 = vld [vmem:[%s343 + $0xc] sm:$0xf]
    %v348 = vld [vmem:[%s343 + $0x10] sm:$0xf]
    %v349 = vld [vmem:[%s343 + $0x14] sm:$0xf]
    %v350 = vld [vmem:[%s343 + $0x18] sm:$0xf]
    %v351 = vld [vmem:[%s343 + $0x1c] sm:$0xf]
    %v352 = vld [vmem:[%s343 + $0x20] sm:$0xf]
    %v353 = vld [vmem:[%s343 + $0x24] sm:$0xf]
    %v354 = vld [vmem:[%s343 + $0x28] sm:$0xf]
    %v355 = vld [vmem:[%s343 + $0x2c] sm:$0xf]
    %v356 = vld [vmem:[%s343 + $0x30] sm:$0xf]
    %v357 = vld [vmem:[%s343 + $0x34] sm:$0xf]
    %v358 = vld [vmem:[%s343 + $0x38] sm:$0xf]
    %v359 = vld [vmem:[%s343 + $0x3c] sm:$0xf]
    %v360 = vperm.slane %v246, 1
    %v377 = vunpack.c.l.b16 %v344
    %v378 = vunpack.c.l.b16 %v345
    %v379 = vunpack.c.l.b16 %v346
    %v380 = vunpack.c.l.b16 %v347
    %v381 = vunpack.c.l.b16 %v348
    %v382 = vunpack.c.l.b16 %v349
    %v383 = vunpack.c.l.b16 %v350
    %v384 = vunpack.c.l.b16 %v351
    %v385 = vunpack.c.l.b16 %v352
    %v386 = vunpack.c.l.b16 %v353
    %v387 = vunpack.c.l.b16 %v354
    %v388 = vunpack.c.l.b16 %v355
    %v389 = vunpack.c.l.b16 %v356
    %v390 = vunpack.c.l.b16 %v357
    %v391 = vunpack.c.l.b16 %v358
    %v392 = vunpack.c.l.b16 %v359
    %v393 = vpack.c.b16 %v378, %v377
    %v394 = vpack.c.b16 %v380, %v379
    %v395 = vpack.c.b16 %v382, %v381
    %v396 = vpack.c.b16 %v384, %v383
    %v397 = vpack.c.b16 %v386, %v385
    %v398 = vpack.c.b16 %v388, %v387
    %v399 = vpack.c.b16 %v390, %v389
    %v400 = vpack.c.b16 %v392, %v391
    %409 = vmatpush.bf16.msra.mxu0 %v400
    %410 = vmatpush.bf16.msra.mxu0 %v399
    %411 = vmatpush.bf16.msra.mxu0 %v398
    %412 = vmatpush.bf16.msra.mxu0 %v397
    %413 = vmatpush.bf16.msra.mxu0 %v396
    %414 = vmatpush.bf16.msra.mxu0 %v395
    %415 = vmatpush.bf16.msra.mxu0 %v394
    %416 = vmatpush.bf16.msra.mxu0 %v393
    %417 = vmatmul.bf16.gmra.mxu0 %v342
    %v418 = vpop.f32.mrf.mxu0
    %v419 = vadd.f32 %v360, %v418
    %v420 = vpop.f32.mrf.mxu0
    %v421 = vadd.f32 %v360, %v420
    %422 = vdwg.mxu0
    %v423 = vmul.f32 %v419, 0.17677669
    %v424 = vmul.f32 %v421, 0.17677669
    %v425 = vld [vmem:[#allocation7] sm:$0xff]
    %v426 = vld [vmem:[#allocation7 + $0x8] sm:$0xff]
    %v427 = vpack.c.bf16 %v426, %v425
    %v428 = vld [vmem:[#allocation13] sm:$0xff]
    %v429 = vld [vmem:[#allocation13 + $0x8] sm:$0xff]
    %v430 = vld [vmem:[#allocation13 + $0x10] sm:$0xff]
    %v431 = vld [vmem:[#allocation13 + $0x18] sm:$0xff]
    %v432 = vld [vmem:[#allocation13 + $0x20] sm:$0xff]
    %v433 = vld [vmem:[#allocation13 + $0x28] sm:$0xff]
    %v434 = vld [vmem:[#allocation13 + $0x30] sm:$0xff]
    %v435 = vld [vmem:[#allocation13 + $0x38] sm:$0xff]
    %v436 = vld [vmem:[#allocation13 + $0x40] sm:$0xff]
    %v437 = vld [vmem:[#allocation13 + $0x48] sm:$0xff]
    %v438 = vld [vmem:[#allocation13 + $0x50] sm:$0xff]
    %v439 = vld [vmem:[#allocation13 + $0x58] sm:$0xff]
    %v440 = vld [vmem:[#allocation13 + $0x60] sm:$0xff]
    %v441 = vld [vmem:[#allocation13 + $0x68] sm:$0xff]
    %v442 = vld [vmem:[#allocation13 + $0x70] sm:$0xff]
    %v443 = vld [vmem:[#allocation13 + $0x78] sm:$0xff]
    %v460 = vunpack.c.l.b16 %v428
    %v461 = vunpack.c.h.b16 %v428
    %v462 = vunpack.c.l.b16 %v429
    %v463 = vunpack.c.h.b16 %v429
    %v464 = vunpack.c.l.b16 %v430
    %v465 = vunpack.c.h.b16 %v430
    %v466 = vunpack.c.l.b16 %v431
    %v467 = vunpack.c.h.b16 %v431
    %v468 = vunpack.c.l.b16 %v432
    %v469 = vunpack.c.h.b16 %v432
    %v470 = vunpack.c.l.b16 %v433
    %v471 = vunpack.c.h.b16 %v433
    %v472 = vunpack.c.l.b16 %v434
    %v473 = vunpack.c.h.b16 %v434
    %v474 = vunpack.c.l.b16 %v435
    %v475 = vunpack.c.h.b16 %v435
    %v476 = vunpack.c.l.b16 %v436
    %v477 = vunpack.c.h.b16 %v436
    %v478 = vunpack.c.l.b16 %v437
    %v479 = vunpack.c.h.b16 %v437
    %v480 = vunpack.c.l.b16 %v438
    %v481 = vunpack.c.h.b16 %v438
    %v482 = vunpack.c.l.b16 %v439
    %v483 = vunpack.c.h.b16 %v439
    %v484 = vunpack.c.l.b16 %v440
    %v485 = vunpack.c.h.b16 %v440
    %v486 = vunpack.c.l.b16 %v441
    %v487 = vunpack.c.h.b16 %v441
    %v488 = vunpack.c.l.b16 %v442
    %v489 = vunpack.c.h.b16 %v442
    %v490 = vunpack.c.l.b16 %v443
    %v491 = vunpack.c.h.b16 %v443
    %v492 = vpack.c.b16 %v462, %v460
    %v493 = vpack.c.b16 %v463, %v461
    %v494 = vpack.c.b16 %v466, %v464
    %v495 = vpack.c.b16 %v467, %v465
    %v496 = vpack.c.b16 %v470, %v468
    %v497 = vpack.c.b16 %v471, %v469
    %v498 = vpack.c.b16 %v474, %v472
    %v499 = vpack.c.b16 %v475, %v473
    %v500 = vpack.c.b16 %v478, %v476
    %v501 = vpack.c.b16 %v479, %v477
    %v502 = vpack.c.b16 %v482, %v480
    %v503 = vpack.c.b16 %v483, %v481
    %v504 = vpack.c.b16 %v486, %v484
    %v505 = vpack.c.b16 %v487, %v485
    %v506 = vpack.c.b16 %v490, %v488
    %v507 = vpack.c.b16 %v491, %v489
    %524 = vmatpush.bf16.msra.mxu0 %v506
    %525 = vmatpush.bf16.msra.mxu0 %v504
    %526 = vmatpush.bf16.msra.mxu0 %v502
    %527 = vmatpush.bf16.msra.mxu0 %v500
    %528 = vmatpush.bf16.msra.mxu0 %v498
    %529 = vmatpush.bf16.msra.mxu0 %v496
    %530 = vmatpush.bf16.msra.mxu0 %v494
    %531 = vmatpush.bf16.msra.mxu0 %v492
    %532 = vmatmul.bf16.gmra.mxu0 %v427
    %v533 = vpop.f32.mrf.mxu0
    %v534 = vadd.f32 0.0, %v533
    %v535 = vpop.f32.mrf.mxu0
    %v536 = vadd.f32 0.0, %v535
    %537 = vdwg.mxu0
    %538 = vmatpush.bf16.msra.mxu0 %v507
    %539 = vmatpush.bf16.msra.mxu0 %v505
    %540 = vmatpush.bf16.msra.mxu0 %v503
    %541 = vmatpush.bf16.msra.mxu0 %v501
    %542 = vmatpush.bf16.msra.mxu0 %v499
    %543 = vmatpush.bf16.msra.mxu0 %v497
    %544 = vmatpush.bf16.msra.mxu0 %v495
    %545 = vmatpush.bf16.msra.mxu0 %v493
    %546 = vmatmul.bf16.gmra.mxu0 %v427
    %v547 = vpop.f32.mrf.mxu0
    %v548 = vadd.f32 0.0, %v547
    %v549 = vpop.f32.mrf.mxu0
    %v550 = vadd.f32 0.0, %v549
    %551 = vdwg.mxu0
    %v552 = vld [vmem:[#allocation8] sm:$0xff]
    %v553 = vld [vmem:[#allocation8 + $0x8] sm:$0xff]
    %v554 = vld [vmem:[#allocation8 + $0x10] sm:$0xff]
    %v555 = vld [vmem:[#allocation8 + $0x18] sm:$0xff]
    %v556 = vpack.c.bf16 %v554, %v552
    %v557 = vpack.c.bf16 %v555, %v553
    %v558 = vld [vmem:[#allocation14] sm:$0xff]
    %v559 = vld [vmem:[#allocation14 + $0x8] sm:$0xff]
    %v560 = vld [vmem:[#allocation14 + $0x10] sm:$0xff]
    %v561 = vld [vmem:[#allocation14 + $0x18] sm:$0xff]
    %v562 = vld [vmem:[#allocation14 + $0x20] sm:$0xff]
    %v563 = vld [vmem:[#allocation14 + $0x28] sm:$0xff]
    %v564 = vld [vmem:[#allocation14 + $0x30] sm:$0xff]
    %v565 = vld [vmem:[#allocation14 + $0x38] sm:$0xff]
    %v566 = vld [vmem:[#allocation14 + $0x40] sm:$0xff]
    %v567 = vld [vmem:[#allocation14 + $0x48] sm:$0xff]
    %v568 = vld [vmem:[#allocation14 + $0x50] sm:$0xff]
    %v569 = vld [vmem:[#allocation14 + $0x58] sm:$0xff]
    %v570 = vld [vmem:[#allocation14 + $0x60] sm:$0xff]
    %v571 = vld [vmem:[#allocation14 + $0x68] sm:$0xff]
    %v572 = vld [vmem:[#allocation14 + $0x70] sm:$0xff]
    %v573 = vld [vmem:[#allocation14 + $0x78] sm:$0xff]
    %v574 = vld [vmem:[#allocation14 + $0x80] sm:$0xff]
    %v575 = vld [vmem:[#allocation14 + $0x88] sm:$0xff]
    %v576 = vld [vmem:[#allocation14 + $0x90] sm:$0xff]
    %v577 = vld [vmem:[#allocation14 + $0x98] sm:$0xff]
    %v578 = vld [vmem:[#allocation14 + $0xa0] sm:$0xff]
    %v579 = vld [vmem:[#allocation14 + $0xa8] sm:$0xff]
    %v580 = vld [vmem:[#allocation14 + $0xb0] sm:$0xff]
    %v581 = vld [vmem:[#allocation14 + $0xb8] sm:$0xff]
    %v582 = vld [vmem:[#allocation14 + $0xc0] sm:$0xff]
    %v583 = vld [vmem:[#allocation14 + $0xc8] sm:$0xff]
    %v584 = vld [vmem:[#allocation14 + $0xd0] sm:$0xff]
    %v585 = vld [vmem:[#allocation14 + $0xd8] sm:$0xff]
    %v586 = vld [vmem:[#allocation14 + $0xe0] sm:$0xff]
    %v587 = vld [vmem:[#allocation14 + $0xe8] sm:$0xff]
    %v588 = vld [vmem:[#allocation14 + $0xf0] sm:$0xff]
    %v589 = vld [vmem:[#allocation14 + $0xf8] sm:$0xff]
    %v622 = vunpack.c.l.b16 %v558
    %v623 = vunpack.c.h.b16 %v558
    %v624 = vunpack.c.l.b16 %v559
    %v625 = vunpack.c.h.b16 %v559
    %v626 = vunpack.c.l.b16 %v560
    %v627 = vunpack.c.h.b16 %v560
    %v628 = vunpack.c.l.b16 %v561
    %v629 = vunpack.c.h.b16 %v561
    %v630 = vunpack.c.l.b16 %v562
    %v631 = vunpack.c.h.b16 %v562
    %v632 = vunpack.c.l.b16 %v563
    %v633 = vunpack.c.h.b16 %v563
    %v634 = vunpack.c.l.b16 %v564
    %v635 = vunpack.c.h.b16 %v564
    %v636 = vunpack.c.l.b16 %v565
    %v637 = vunpack.c.h.b16 %v565
    %v638 = vunpack.c.l.b16 %v566
    %v639 = vunpack.c.h.b16 %v566
    %v640 = vunpack.c.l.b16 %v567
    %v641 = vunpack.c.h.b16 %v567
    %v642 = vunpack.c.l.b16 %v568
    %v643 = vunpack.c.h.b16 %v568
    %v644 = vunpack.c.l.b16 %v569
    %v645 = vunpack.c.h.b16 %v569
    %v646 = vunpack.c.l.b16 %v570
    %v647 = vunpack.c.h.b16 %v570
    %v648 = vunpack.c.l.b16 %v571
    %v649 = vunpack.c.h.b16 %v571
    %v650 = vunpack.c.l.b16 %v572
    %v651 = vunpack.c.h.b16 %v572
    %v652 = vunpack.c.l.b16 %v573
    %v653 = vunpack.c.h.b16 %v573
    %v654 = vunpack.c.l.b16 %v574
    %v655 = vunpack.c.h.b16 %v574
    %v656 = vunpack.c.l.b16 %v575
    %v657 = vunpack.c.h.b16 %v575
    %v658 = vunpack.c.l.b16 %v576
    %v659 = vunpack.c.h.b16 %v576
    %v660 = vunpack.c.l.b16 %v577
    %v661 = vunpack.c.h.b16 %v577
    %v662 = vunpack.c.l.b16 %v578
    %v663 = vunpack.c.h.b16 %v578
    %v664 = vunpack.c.l.b16 %v579
    %v665 = vunpack.c.h.b16 %v579
    %v666 = vunpack.c.l.b16 %v580
    %v667 = vunpack.c.h.b16 %v580
    %v668 = vunpack.c.l.b16 %v581
    %v669 = vunpack.c.h.b16 %v581
    %v670 = vunpack.c.l.b16 %v582
    %v671 = vunpack.c.h.b16 %v582
    %v672 = vunpack.c.l.b16 %v583
    %v673 = vunpack.c.h.b16 %v583
    %v674 = vunpack.c.l.b16 %v584
    %v675 = vunpack.c.h.b16 %v584
    %v676 = vunpack.c.l.b16 %v585
    %v677 = vunpack.c.h.b16 %v585
    %v678 = vunpack.c.l.b16 %v586
    %v679 = vunpack.c.h.b16 %v586
    %v680 = vunpack.c.l.b16 %v587
    %v681 = vunpack.c.h.b16 %v587
    %v682 = vunpack.c.l.b16 %v588
    %v683 = vunpack.c.h.b16 %v588
    %v684 = vunpack.c.l.b16 %v589
    %v685 = vunpack.c.h.b16 %v589
    %v686 = vpack.c.b16 %v624, %v622
    %v687 = vpack.c.b16 %v625, %v623
    %v688 = vpack.c.b16 %v628, %v626
    %v689 = vpack.c.b16 %v629, %v627
    %v690 = vpack.c.b16 %v632, %v630
    %v691 = vpack.c.b16 %v633, %v631
    %v692 = vpack.c.b16 %v636, %v634
    %v693 = vpack.c.b16 %v637, %v635
    %v694 = vpack.c.b16 %v640, %v638
    %v695 = vpack.c.b16 %v641, %v639
    %v696 = vpack.c.b16 %v644, %v642
    %v697 = vpack.c.b16 %v645, %v643
    %v698 = vpack.c.b16 %v648, %v646
    %v699 = vpack.c.b16 %v649, %v647
    %v700 = vpack.c.b16 %v652, %v650
    %v701 = vpack.c.b16 %v653, %v651
    %v702 = vpack.c.b16 %v656, %v654
    %v703 = vpack.c.b16 %v657, %v655
    %v704 = vpack.c.b16 %v660, %v658
    %v705 = vpack.c.b16 %v661, %v659
    %v706 = vpack.c.b16 %v664, %v662
    %v707 = vpack.c.b16 %v665, %v663
    %v708 = vpack.c.b16 %v668, %v666
    %v709 = vpack.c.b16 %v669, %v667
    %v710 = vpack.c.b16 %v672, %v670
    %v711 = vpack.c.b16 %v673, %v671
    %v712 = vpack.c.b16 %v676, %v674
    %v713 = vpack.c.b16 %v677, %v675
    %v714 = vpack.c.b16 %v680, %v678
    %v715 = vpack.c.b16 %v681, %v679
    %v716 = vpack.c.b16 %v684, %v682
    %v717 = vpack.c.b16 %v685, %v683
    %750 = vmatpush.bf16.msra.mxu0 %v700
    %751 = vmatpush.bf16.msra.mxu0 %v698
    %752 = vmatpush.bf16.msra.mxu0 %v696
    %753 = vmatpush.bf16.msra.mxu0 %v694
    %754 = vmatpush.bf16.msra.mxu0 %v692
    %755 = vmatpush.bf16.msra.mxu0 %v690
    %756 = vmatpush.bf16.msra.mxu0 %v688
    %757 = vmatpush.bf16.msra.mxu0 %v686
    %758 = vmatmul.bf16.gmra.mxu0 %v556
    %v759 = vpop.f32.mrf.mxu0
    %v760 = vadd.f32 0.0, %v759
    %v761 = vpop.f32.mrf.mxu0
    %v762 = vadd.f32 0.0, %v761
    %763 = vdwg.mxu0
    %764 = vmatpush.bf16.msra.mxu0 %v716
    %765 = vmatpush.bf16.msra.mxu0 %v714
    %766 = vmatpush.bf16.msra.mxu0 %v712
    %767 = vmatpush.bf16.msra.mxu0 %v710
    %768 = vmatpush.bf16.msra.mxu0 %v708
    %769 = vmatpush.bf16.msra.mxu0 %v706
    %770 = vmatpush.bf16.msra.mxu0 %v704
    %771 = vmatpush.bf16.msra.mxu0 %v702
    %772 = vmatmul.bf16.gmra.mxu0 %v557
    %v773 = vpop.f32.mrf.mxu0
    %v774 = vadd.f32 %v760, %v773
    %v775 = vpop.f32.mrf.mxu0
    %v776 = vadd.f32 %v762, %v775
    %777 = vdwg.mxu0
    %778 = vmatpush.bf16.msra.mxu0 %v701
    %779 = vmatpush.bf16.msra.mxu0 %v699
    %780 = vmatpush.bf16.msra.mxu0 %v697
    %781 = vmatpush.bf16.msra.mxu0 %v695
    %782 = vmatpush.bf16.msra.mxu0 %v693
    %783 = vmatpush.bf16.msra.mxu0 %v691
    %784 = vmatpush.bf16.msra.mxu0 %v689
    %785 = vmatpush.bf16.msra.mxu0 %v687
    %786 = vmatmul.bf16.gmra.mxu0 %v556
    %v787 = vpop.f32.mrf.mxu0
    %v788 = vadd.f32 0.0, %v787
    %v789 = vpop.f32.mrf.mxu0
    %v790 = vadd.f32 0.0, %v789
    %791 = vdwg.mxu0
    %792 = vmatpush.bf16.msra.mxu0 %v717
    %793 = vmatpush.bf16.msra.mxu0 %v715
    %794 = vmatpush.bf16.msra.mxu0 %v713
    %795 = vmatpush.bf16.msra.mxu0 %v711
    %796 = vmatpush.bf16.msra.mxu0 %v709
    %797 = vmatpush.bf16.msra.mxu0 %v707
    %798 = vmatpush.bf16.msra.mxu0 %v705
    %799 = vmatpush.bf16.msra.mxu0 %v703
    %800 = vmatmul.bf16.gmra.mxu0 %v557
    %v801 = vpop.f32.mrf.mxu0
    %v802 = vadd.f32 %v788, %v801
    %v803 = vpop.f32.mrf.mxu0
    %v804 = vadd.f32 %v790, %v803
    %805 = vdwg.mxu0
    %v806 = vperm.slane %v246, 2
    %v807 = vadd.f32 %v534, %v806
    %v808 = vadd.f32 %v536, %v806
    %v809 = vperm.slane %v246, 3
    %v810 = vadd.f32 %v548, %v809
    %v811 = vadd.f32 %v550, %v809
    %v812 = vperm.slane %v246, 4
    %v813 = vadd.f32 %v774, %v812
    %v814 = vadd.f32 %v776, %v812
    %v815 = vperm.slane %v246, 5
    %v816 = vadd.f32 %v802, %v815
    %v817 = vadd.f32 %v804, %v815
    %v818 = vpack.c.bf16 %v341, %v340
    %v819 = vpack.c.bf16 %v424, %v423
    %v820 = vpack.c.bf16 %v808, %v807
    %v821 = vpack.c.bf16 %v814, %v813
    %v822 = vpack.c.bf16 %v811, %v810
    %v823 = vpack.c.bf16 %v817, %v816
    %v824 = vld [vmem:[#allocation16] sm:$0xf]
    %v825 = vld [vmem:[#allocation16 + $0x4] sm:$0xf]
    %v826 = vld [vmem:[#allocation16 + $0x8] sm:$0xf]
    %v827 = vld [vmem:[#allocation16 + $0xc] sm:$0xf]
    %v828 = vld [vmem:[#allocation16 + $0x10] sm:$0xf]
    %v829 = vld [vmem:[#allocation16 + $0x14] sm:$0xf]
    %v830 = vld [vmem:[#allocation16 + $0x18] sm:$0xf]
    %v831 = vld [vmem:[#allocation16 + $0x1c] sm:$0xf]
    %v832 = vld [vmem:[#allocation16 + $0x20] sm:$0xf]
    %v833 = vld [vmem:[#allocation16 + $0x24] sm:$0xf]
    %v834 = vld [vmem:[#allocation16 + $0x28] sm:$0xf]
    %v835 = vld [vmem:[#allocation16 + $0x2c] sm:$0xf]
    %v836 = vld [vmem:[#allocation16 + $0x30] sm:$0xf]
    %v837 = vld [vmem:[#allocation16 + $0x34] sm:$0xf]
    %v838 = vld [vmem:[#allocation16 + $0x38] sm:$0xf]
    %v839 = vld [vmem:[#allocation16 + $0x3c] sm:$0xf]
    %vm840 = vcmask 261120
    %v842 = vsel %vm840, %v818, 0
    %v845 = vsel %vm840, %v820, 0
    %847 = vmatpush.bf16.xpose.msra.mxu0 0
    %848 = vmatpush.bf16.xpose.msra.mxu0 0
    %849 = vmatpush.bf16.xpose.msra.mxu0 0
    %850 = vmatpush.bf16.xpose.msra.mxu0 0
    %851 = vmatpush.bf16.xpose.msra.mxu0 0
    %852 = vmatpush.bf16.xpose.msra.mxu0 0
    %853 = vmatpush.bf16.xpose.msra.mxu0 0
    %854 = vmatpush.bf16.xpose.msra.mxu0 %v845
    %855 = vmatmul.bf16.gmra.mxu0 %v842
    %v856 = vpop.f32.mrf.mxu0
    %v857 = vadd.f32 %v254, %v856
    %v858 = vpop.f32.mrf.mxu0
    %v859 = vadd.f32 %v255, %v858
    %860 = vdwg.mxu0
    %vm861 = vcmask 130048
    %v862 = vsel %vm861, %v857, -inf
    %863 = vmax.xlane.f32.xlu0 %v862
    %v864 = vpop.xlane.xlu0 %863
    %v865 = vsel %vm861, %v859, -inf
    %866 = vmax.xlane.f32.xlu0 %v865
    %v867 = vpop.xlane.xlu0 %866
    %v868 = vsub.f32 %v857, %v864
    %v869 = vsub.f32 %v859, %v867
    %v870 = vmul.f32 %v868, 1.442695
    %v871 = vpow.pop %v870
    %v872 = vmul.f32 %v869, 1.442695
    %v873 = vpow.pop %v872
    %v874 = vsel %vm861, %v871, 0.0
    %875 = vadd.xlane.f32.xlu0 %v874
    %v876 = vpop.xlane.xlu0 %875
    %v877 = vsel %vm861, %v873, 0.0
    %878 = vadd.xlane.f32.xlu0 %v877
    %v879 = vpop.xlane.xlu0 %878
    %v880 = vrcp.pop %v876
    %v881 = vrcp.pop %v879
    %v882 = vmul.f32 %v871, %v880
    %v883 = vmul.f32 %v873, %v881
    %v884 = vpack.c.bf16 %v883, %v882
    %v886 = vsel %vm861, %v884, 0
    %888 = vmatpush.bf16.msra.mxu0 0
    %889 = vmatpush.bf16.msra.mxu0 0
    %890 = vmatpush.bf16.msra.mxu0 0
    %891 = vmatpush.bf16.msra.mxu0 0
    %892 = vmatpush.bf16.msra.mxu0 0
    %893 = vmatpush.bf16.msra.mxu0 0
    %894 = vmatpush.bf16.msra.mxu0 0
    %895 = vmatpush.bf16.msra.mxu0 %v822
    %896 = vmatmul.bf16.gmra.mxu0 %v886
    %v897 = vpop.f32.mrf.mxu0
    %v898 = vadd.f32 0.0, %v897
    %v899 = vpop.f32.mrf.mxu0
    %v900 = vadd.f32 0.0, %v899
    %901 = vdwg.mxu0
    %v902 = vpack.c.bf16 %v900, %v898
    %904 = vrot.lane.b32.xlu0 %v818, 96
    %v905 = vpop.permute.xlu0 %904
    %907 = vrot.lane.b32.xlu0 %v820, 96
    %v908 = vpop.permute.xlu0 %907
    %v910 = vsel %vm840, %v905, 0
    %v913 = vsel %vm840, %v908, 0
    %915 = vmatpush.bf16.xpose.msra.mxu0 0
    %916 = vmatpush.bf16.xpose.msra.mxu0 0
    %917 = vmatpush.bf16.xpose.msra.mxu0 0
    %918 = vmatpush.bf16.xpose.msra.mxu0 0
    %919 = vmatpush.bf16.xpose.msra.mxu0 0
    %920 = vmatpush.bf16.xpose.msra.mxu0 0
    %921 = vmatpush.bf16.xpose.msra.mxu0 0
    %922 = vmatpush.bf16.xpose.msra.mxu0 %v913
    %923 = vmatmul.bf16.gmra.mxu0 %v910
    %v924 = vpop.f32.mrf.mxu0
    %v925 = vadd.f32 %v254, %v924
    %v926 = vpop.f32.mrf.mxu0
    %v927 = vadd.f32 %v255, %v926
    %928 = vdwg.mxu0
    %v929 = vsel %vm861, %v925, -inf
    %930 = vmax.xlane.f32.xlu0 %v929
    %v931 = vpop.xlane.xlu0 %930
    %v932 = vsel %vm861, %v927, -inf
    %933 = vmax.xlane.f32.xlu0 %v932
    %v934 = vpop.xlane.xlu0 %933
    %v935 = vsub.f32 %v925, %v931
    %v936 = vsub.f32 %v927, %v934
    %v937 = vmul.f32 %v935, 1.442695
    %v938 = vpow.pop %v937
    %v939 = vmul.f32 %v936, 1.442695
    %v940 = vpow.pop %v939
    %v941 = vsel %vm861, %v938, 0.0
    %942 = vadd.xlane.f32.xlu0 %v941
    %v943 = vpop.xlane.xlu0 %942
    %v944 = vsel %vm861, %v940, 0.0
    %945 = vadd.xlane.f32.xlu0 %v944
    %v946 = vpop.xlane.xlu0 %945
    %v947 = vrcp.pop %v943
    %v948 = vrcp.pop %v946
    %v949 = vmul.f32 %v938, %v947
    %v950 = vmul.f32 %v940, %v948
    %v951 = vpack.c.bf16 %v950, %v949
    %953 = vrot.lane.b32.xlu0 %v822, 96
    %v954 = vpop.permute.xlu0 %953
    %v957 = vsel %vm861, %v951, 0
    %959 = vmatpush.bf16.msra.mxu0 0
    %960 = vmatpush.bf16.msra.mxu0 0
    %961 = vmatpush.bf16.msra.mxu0 0
    %962 = vmatpush.bf16.msra.mxu0 0
    %963 = vmatpush.bf16.msra.mxu0 0
    %964 = vmatpush.bf16.msra.mxu0 0
    %965 = vmatpush.bf16.msra.mxu0 0
    %966 = vmatpush.bf16.msra.mxu0 %v954
    %967 = vmatmul.bf16.gmra.mxu0 %v957
    %v968 = vpop.f32.mrf.mxu0
    %v969 = vadd.f32 0.0, %v968
    %v970 = vpop.f32.mrf.mxu0
    %v971 = vadd.f32 0.0, %v970
    %972 = vdwg.mxu0
    %v973 = vpack.c.bf16 %v971, %v969
    %v978 = vunpack.c.l.b16 %v828
    %v979 = vunpack.c.l.b16 %v829
    %v980 = vunpack.c.l.b16 %v830
    %v981 = vunpack.c.l.b16 %v831
    %v982 = vpack.c.b16 %v979, %v978
    %v983 = vpack.c.b16 %v981, %v980
    %v987 = vsel %vm840, %v973, 0
    %989 = vmatpush.bf16.msra.mxu0 0
    %990 = vmatpush.bf16.msra.mxu0 0
    %991 = vmatpush.bf16.msra.mxu0 0
    %992 = vmatpush.bf16.msra.mxu0 0
    %993 = vmatpush.bf16.msra.mxu0 0
    %994 = vmatpush.bf16.msra.mxu0 0
    %995 = vmatpush.bf16.msra.mxu0 %v983
    %996 = vmatpush.bf16.msra.mxu0 %v982
    %997 = vmatmul.bf16.gmra.mxu0 %v987
    %v998 = vpop.f32.mrf.mxu0
    %v999 = vadd.f32 0.0, %v998
    %v1000 = vpop.f32.mrf.mxu0
    %v1001 = vadd.f32 0.0, %v1000
    %1002 = vdwg.mxu0
    %v1007 = vunpack.c.l.b16 %v824
    %v1008 = vunpack.c.l.b16 %v825
    %v1009 = vunpack.c.l.b16 %v826
    %v1010 = vunpack.c.l.b16 %v827
    %v1011 = vpack.c.b16 %v1008, %v1007
    %v1012 = vpack.c.b16 %v1010, %v1009
    %v1016 = vsel %vm840, %v902, 0
    %1018 = vmatpush.bf16.msra.mxu0 0
    %1019 = vmatpush.bf16.msra.mxu0 0
    %1020 = vmatpush.bf16.msra.mxu0 0
    %1021 = vmatpush.bf16.msra.mxu0 0
    %1022 = vmatpush.bf16.msra.mxu0 0
    %1023 = vmatpush.bf16.msra.mxu0 0
    %1024 = vmatpush.bf16.msra.mxu0 %v1012
    %1025 = vmatpush.bf16.msra.mxu0 %v1011
    %1026 = vmatmul.bf16.gmra.mxu0 %v1016
    %v1027 = vpop.f32.mrf.mxu0
    %v1028 = vadd.f32 %v999, %v1027
    %v1029 = vpop.f32.mrf.mxu0
    %v1030 = vadd.f32 %v1001, %v1029
    %1031 = vdwg.mxu0
    %1032 = vrot.lane.b32.xlu0 %v818, 64
    %v1033 = vpop.permute.xlu0 %1032
    %1034 = vrot.lane.b32.xlu0 %v820, 64
    %v1035 = vpop.permute.xlu0 %1034
    %v1037 = vsel %vm840, %v1033, 0
    %v1040 = vsel %vm840, %v1035, 0
    %1042 = vmatpush.bf16.xpose.msra.mxu0 0
    %1043 = vmatpush.bf16.xpose.msra.mxu0 0
    %1044 = vmatpush.bf16.xpose.msra.mxu0 0
    %1045 = vmatpush.bf16.xpose.msra.mxu0 0
    %1046 = vmatpush.bf16.xpose.msra.mxu0 0
    %1047 = vmatpush.bf16.xpose.msra.mxu0 0
    %1048 = vmatpush.bf16.xpose.msra.mxu0 0
    %1049 = vmatpush.bf16.xpose.msra.mxu0 %v1040
    %1050 = vmatmul.bf16.gmra.mxu0 %v1037
    %v1051 = vpop.f32.mrf.mxu0
    %v1052 = vadd.f32 %v254, %v1051
    %v1053 = vpop.f32.mrf.mxu0
    %v1054 = vadd.f32 %v255, %v1053
    %1055 = vdwg.mxu0
    %v1056 = vsel %vm861, %v1052, -inf
    %1057 = vmax.xlane.f32.xlu0 %v1056
    %v1058 = vpop.xlane.xlu0 %1057
    %v1059 = vsel %vm861, %v1054, -inf
    %1060 = vmax.xlane.f32.xlu0 %v1059
    %v1061 = vpop.xlane.xlu0 %1060
    %v1062 = vsub.f32 %v1052, %v1058
    %v1063 = vsub.f32 %v1054, %v1061
    %v1064 = vmul.f32 %v1062, 1.442695
    %v1065 = vpow.pop %v1064
    %v1066 = vmul.f32 %v1063, 1.442695
    %v1067 = vpow.pop %v1066
    %v1068 = vsel %vm861, %v1065, 0.0
    %1069 = vadd.xlane.f32.xlu0 %v1068
    %v1070 = vpop.xlane.xlu0 %1069
    %v1071 = vsel %vm861, %v1067, 0.0
    %1072 = vadd.xlane.f32.xlu0 %v1071
    %v1073 = vpop.xlane.xlu0 %1072
    %v1074 = vrcp.pop %v1070
    %v1075 = vrcp.pop %v1073
    %v1076 = vmul.f32 %v1065, %v1074
    %v1077 = vmul.f32 %v1067, %v1075
    %v1078 = vpack.c.bf16 %v1077, %v1076
    %1079 = vrot.lane.b32.xlu0 %v822, 64
    %v1080 = vpop.permute.xlu0 %1079
    %v1083 = vsel %vm861, %v1078, 0
    %1085 = vmatpush.bf16.msra.mxu0 0
    %1086 = vmatpush.bf16.msra.mxu0 0
    %1087 = vmatpush.bf16.msra.mxu0 0
    %1088 = vmatpush.bf16.msra.mxu0 0
    %1089 = vmatpush.bf16.msra.mxu0 0
    %1090 = vmatpush.bf16.msra.mxu0 0
    %1091 = vmatpush.bf16.msra.mxu0 0
    %1092 = vmatpush.bf16.msra.mxu0 %v1080
    %1093 = vmatmul.bf16.gmra.mxu0 %v1083
    %v1094 = vpop.f32.mrf.mxu0
    %v1095 = vadd.f32 0.0, %v1094
    %v1096 = vpop.f32.mrf.mxu0
    %v1097 = vadd.f32 0.0, %v1096
    %1098 = vdwg.mxu0
    %v1099 = vpack.c.bf16 %v1097, %v1095
    %v1104 = vunpack.c.l.b16 %v832
    %v1105 = vunpack.c.l.b16 %v833
    %v1106 = vunpack.c.l.b16 %v834
    %v1107 = vunpack.c.l.b16 %v835
    %v1108 = vpack.c.b16 %v1105, %v1104
    %v1109 = vpack.c.b16 %v1107, %v1106
    %v1113 = vsel %vm840, %v1099, 0
    %1115 = vmatpush.bf16.msra.mxu0 0
    %1116 = vmatpush.bf16.msra.mxu0 0
    %1117 = vmatpush.bf16.msra.mxu0 0
    %1118 = vmatpush.bf16.msra.mxu0 0
    %1119 = vmatpush.bf16.msra.mxu0 0
    %1120 = vmatpush.bf16.msra.mxu0 0
    %1121 = vmatpush.bf16.msra.mxu0 %v1109
    %1122 = vmatpush.bf16.msra.mxu0 %v1108
    %1123 = vmatmul.bf16.gmra.mxu0 %v1113
    %v1124 = vpop.f32.mrf.mxu0
    %v1125 = vadd.f32 0.0, %v1124
    %v1126 = vpop.f32.mrf.mxu0
    %v1127 = vadd.f32 0.0, %v1126
    %1128 = vdwg.mxu0
    %v1129 = vadd.f32 %v1028, %v1125
    %v1130 = vadd.f32 %v1030, %v1127
    %1131 = vrot.lane.b32.xlu0 %v818, 32
    %v1132 = vpop.permute.xlu0 %1131
    %1133 = vrot.lane.b32.xlu0 %v820, 32
    %v1134 = vpop.permute.xlu0 %1133
    %v1136 = vsel %vm840, %v1132, 0
    %v1139 = vsel %vm840, %v1134, 0
    %1141 = vmatpush.bf16.xpose.msra.mxu0 0
    %1142 = vmatpush.bf16.xpose.msra.mxu0 0
    %1143 = vmatpush.bf16.xpose.msra.mxu0 0
    %1144 = vmatpush.bf16.xpose.msra.mxu0 0
    %1145 = vmatpush.bf16.xpose.msra.mxu0 0
    %1146 = vmatpush.bf16.xpose.msra.mxu0 0
    %1147 = vmatpush.bf16.xpose.msra.mxu0 0
    %1148 = vmatpush.bf16.xpose.msra.mxu0 %v1139
    %1149 = vmatmul.bf16.gmra.mxu0 %v1136
    %v1150 = vpop.f32.mrf.mxu0
    %v1151 = vadd.f32 %v254, %v1150
    %v1152 = vpop.f32.mrf.mxu0
    %v1153 = vadd.f32 %v255, %v1152
    %1154 = vdwg.mxu0
    %v1155 = vsel %vm861, %v1151, -inf
    %1156 = vmax.xlane.f32.xlu0 %v1155
    %v1157 = vpop.xlane.xlu0 %1156
    %v1158 = vsel %vm861, %v1153, -inf
    %1159 = vmax.xlane.f32.xlu0 %v1158
    %v1160 = vpop.xlane.xlu0 %1159
    %v1161 = vsub.f32 %v1151, %v1157
    %v1162 = vsub.f32 %v1153, %v1160
    %v1163 = vmul.f32 %v1161, 1.442695
    %v1164 = vpow.pop %v1163
    %v1165 = vmul.f32 %v1162, 1.442695
    %v1166 = vpow.pop %v1165
    %v1167 = vsel %vm861, %v1164, 0.0
    %1168 = vadd.xlane.f32.xlu0 %v1167
    %v1169 = vpop.xlane.xlu0 %1168
    %v1170 = vsel %vm861, %v1166, 0.0
    %1171 = vadd.xlane.f32.xlu0 %v1170
    %v1172 = vpop.xlane.xlu0 %1171
    %v1173 = vrcp.pop %v1169
    %v1174 = vrcp.pop %v1172
    %v1175 = vmul.f32 %v1164, %v1173
    %v1176 = vmul.f32 %v1166, %v1174
    %v1177 = vpack.c.bf16 %v1176, %v1175
    %1178 = vrot.lane.b32.xlu0 %v822, 32
    %v1179 = vpop.permute.xlu0 %1178
    %v1182 = vsel %vm861, %v1177, 0
    %1184 = vmatpush.bf16.msra.mxu0 0
    %1185 = vmatpush.bf16.msra.mxu0 0
    %1186 = vmatpush.bf16.msra.mxu0 0
    %1187 = vmatpush.bf16.msra.mxu0 0
    %1188 = vmatpush.bf16.msra.mxu0 0
    %1189 = vmatpush.bf16.msra.mxu0 0
    %1190 = vmatpush.bf16.msra.mxu0 0
    %1191 = vmatpush.bf16.msra.mxu0 %v1179
    %1192 = vmatmul.bf16.gmra.mxu0 %v1182
    %v1193 = vpop.f32.mrf.mxu0
    %v1194 = vadd.f32 0.0, %v1193
    %v1195 = vpop.f32.mrf.mxu0
    %v1196 = vadd.f32 0.0, %v1195
    %1197 = vdwg.mxu0
    %v1198 = vpack.c.bf16 %v1196, %v1194
    %v1203 = vunpack.c.l.b16 %v836
    %v1204 = vunpack.c.l.b16 %v837
    %v1205 = vunpack.c.l.b16 %v838
    %v1206 = vunpack.c.l.b16 %v839
    %v1207 = vpack.c.b16 %v1204, %v1203
    %v1208 = vpack.c.b16 %v1206, %v1205
    %v1212 = vsel %vm840, %v1198, 0
    %1214 = vmatpush.bf16.msra.mxu0 0
    %1215 = vmatpush.bf16.msra.mxu0 0
    %1216 = vmatpush.bf16.msra.mxu0 0
    %1217 = vmatpush.bf16.msra.mxu0 0
    %1218 = vmatpush.bf16.msra.mxu0 0
    %1219 = vmatpush.bf16.msra.mxu0 0
    %1220 = vmatpush.bf16.msra.mxu0 %v1208
    %1221 = vmatpush.bf16.msra.mxu0 %v1207
    %1222 = vmatmul.bf16.gmra.mxu0 %v1212
    %v1223 = vpop.f32.mrf.mxu0
    %v1224 = vadd.f32 0.0, %v1223
    %v1225 = vpop.f32.mrf.mxu0
    %v1226 = vadd.f32 0.0, %v1225
    %1227 = vdwg.mxu0
    %v1228 = vadd.f32 %v1129, %v1224
    %v1229 = vadd.f32 %v1130, %v1226
    %v1230 = vadd.f32 %v256, %v1228
    %v1231 = vadd.f32 %v257, %v1229
    %v1232 = vperm.slane %v247, 0
    %v1233 = vadd.f32 %v1230, %v1232
    %v1234 = vadd.f32 %v1231, %v1232
    %1235 = vadd.xlane.f32.xlu0 %v1233
    %v1236 = vpop.xlane.xlu0 %1235
    %1237 = vadd.xlane.f32.xlu0 %v1234
    %v1238 = vpop.xlane.xlu0 %1237
    %v1239 = vrcp.pop 128.0
    %v1240 = vmul.f32 128.0, %v1239
    %v1241 = vsub.f32 1.0, %v1240
    %v1242 = vmul.f32 %v1239, %v1241
    %v1243 = vadd.f32 %v1239, %v1242
    %vm1244 = vweird.f32 %v1239
    %v1245 = vsel %vm1244, %v1239, %v1243
    %v1246 = vmul.f32 %v1236, %v1245
    %v1247 = vmul.f32 %v1238, %v1245
    %v1248 = vsub.f32 %v1233, %v1246
    %v1249 = vsub.f32 %v1234, %v1247
    %v1250 = vmul.f32 %v1248, %v1248
    %v1251 = vmul.f32 %v1249, %v1249
    %1252 = vadd.xlane.f32.xlu0 %v1250
    %v1253 = vpop.xlane.xlu0 %1252
    %1254 = vadd.xlane.f32.xlu0 %v1251
    %v1255 = vpop.xlane.xlu0 %1254
    %v1256 = vmul.f32 %v1253, %v1245
    %v1257 = vmul.f32 %v1255, %v1245
    %v1258 = vadd.f32 %v1256, 1e-05
    %v1259 = vadd.f32 %v1257, 1e-05
    %v1260 = vrsqrt.pop %v1258
    %v1261 = vmul.f32 %v1260, %v1258
    %v1262 = vmul.f32 %v1261, %v1260
    %v1263 = vmul.f32 0.5, %v1262
    %v1264 = vsub.f32 1.5, %v1263
    %v1265 = vmul.f32 %v1260, %v1264
    %vm1266 = vweird.f32 %v1258
    %vm1267 = vweird.f32 %v1260
    %vm1268 = vmor %vm1266, %vm1267
    %v1269 = vsel %vm1268, %v1260, %v1265
    %v1270 = vrsqrt.pop %v1259
    %v1271 = vmul.f32 %v1270, %v1259
    %v1272 = vmul.f32 %v1271, %v1270
    %v1273 = vmul.f32 0.5, %v1272
    %v1274 = vsub.f32 1.5, %v1273
    %v1275 = vmul.f32 %v1270, %v1274
    %vm1276 = vweird.f32 %v1259
    %vm1277 = vweird.f32 %v1270
    %vm1278 = vmor %vm1276, %vm1277
    %v1279 = vsel %vm1278, %v1270, %v1275
    %v1280 = vmul.f32 %v1248, %v1269
    %v1281 = vmul.f32 %v1249, %v1279
    %v1282 = vperm.slane %v247, 1
    %v1283 = vmul.f32 %v1280, %v1282
    %v1284 = vmul.f32 %v1281, %v1282
    %v1285 = vperm.slane %v247, 2
    %v1286 = vadd.f32 %v1283, %v1285
    %v1287 = vadd.f32 %v1284, %v1285
    %v1288 = vpack.c.bf16 %v1287, %v1286
    %v1289 = vld [vmem:[#allocation17] sm:$0xff]
    %v1290 = vld [vmem:[#allocation17 + $0x8] sm:$0xff]
    %v1291 = vld [vmem:[#allocation17 + $0x10] sm:$0xff]
    %v1292 = vld [vmem:[#allocation17 + $0x18] sm:$0xff]
    %v1293 = vld [vmem:[#allocation17 + $0x20] sm:$0xff]
    %v1294 = vld [vmem:[#allocation17 + $0x28] sm:$0xff]
    %v1295 = vld [vmem:[#allocation17 + $0x30] sm:$0xff]
    %v1296 = vld [vmem:[#allocation17 + $0x38] sm:$0xff]
    %v1297 = vld [vmem:[#allocation17 + $0x40] sm:$0xff]
    %v1298 = vld [vmem:[#allocation17 + $0x48] sm:$0xff]
    %v1299 = vld [vmem:[#allocation17 + $0x50] sm:$0xff]
    %v1300 = vld [vmem:[#allocation17 + $0x58] sm:$0xff]
    %v1301 = vld [vmem:[#allocation17 + $0x60] sm:$0xff]
    %v1302 = vld [vmem:[#allocation17 + $0x68] sm:$0xff]
    %v1303 = vld [vmem:[#allocation17 + $0x70] sm:$0xff]
    %v1304 = vld [vmem:[#allocation17 + $0x78] sm:$0xff]
    %v1305 = vld [vmem:[#allocation17 + $0x80] sm:$0xff]
    %v1306 = vld [vmem:[#allocation17 + $0x88] sm:$0xff]
    %v1307 = vld [vmem:[#allocation17 + $0x90] sm:$0xff]
    %v1308 = vld [vmem:[#allocation17 + $0x98] sm:$0xff]
    %v1309 = vld [vmem:[#allocation17 + $0xa0] sm:$0xff]
    %v1310 = vld [vmem:[#allocation17 + $0xa8] sm:$0xff]
    %v1311 = vld [vmem:[#allocation17 + $0xb0] sm:$0xff]
    %v1312 = vld [vmem:[#allocation17 + $0xb8] sm:$0xff]
    %v1313 = vld [vmem:[#allocation17 + $0xc0] sm:$0xff]
    %v1314 = vld [vmem:[#allocation17 + $0xc8] sm:$0xff]
    %v1315 = vld [vmem:[#allocation17 + $0xd0] sm:$0xff]
    %v1316 = vld [vmem:[#allocation17 + $0xd8] sm:$0xff]
    %v1317 = vld [vmem:[#allocation17 + $0xe0] sm:$0xff]
    %v1318 = vld [vmem:[#allocation17 + $0xe8] sm:$0xff]
    %v1319 = vld [vmem:[#allocation17 + $0xf0] sm:$0xff]
    %v1320 = vld [vmem:[#allocation17 + $0xf8] sm:$0xff]
    %v1321 = vperm.slane %v250, 0
    %v1322 = vperm.slane %v251, 0
    %v1323 = vperm.slane %v252, 0
    %v1324 = vperm.slane %v253, 0
    %v1357 = vunpack.c.l.b16 %v1289
    %v1358 = vunpack.c.h.b16 %v1289
    %v1359 = vunpack.c.l.b16 %v1290
    %v1360 = vunpack.c.h.b16 %v1290
    %v1361 = vunpack.c.l.b16 %v1291
    %v1362 = vunpack.c.h.b16 %v1291
    %v1363 = vunpack.c.l.b16 %v1292
    %v1364 = vunpack.c.h.b16 %v1292
    %v1365 = vunpack.c.l.b16 %v1293
    %v1366 = vunpack.c.h.b16 %v1293
    %v1367 = vunpack.c.l.b16 %v1294
    %v1368 = vunpack.c.h.b16 %v1294
    %v1369 = vunpack.c.l.b16 %v1295
    %v1370 = vunpack.c.h.b16 %v1295
    %v1371 = vunpack.c.l.b16 %v1296
    %v1372 = vunpack.c.h.b16 %v1296
    %v1373 = vunpack.c.l.b16 %v1297
    %v1374 = vunpack.c.h.b16 %v1297
    %v1375 = vunpack.c.l.b16 %v1298
    %v1376 = vunpack.c.h.b16 %v1298
    %v1377 = vunpack.c.l.b16 %v1299
    %v1378 = vunpack.c.h.b16 %v1299
    %v1379 = vunpack.c.l.b16 %v1300
    %v1380 = vunpack.c.h.b16 %v1300
    %v1381 = vunpack.c.l.b16 %v1301
    %v1382 = vunpack.c.h.b16 %v1301
    %v1383 = vunpack.c.l.b16 %v1302
    %v1384 = vunpack.c.h.b16 %v1302
    %v1385 = vunpack.c.l.b16 %v1303
    %v1386 = vunpack.c.h.b16 %v1303
    %v1387 = vunpack.c.l.b16 %v1304
    %v1388 = vunpack.c.h.b16 %v1304
    %v1389 = vunpack.c.l.b16 %v1305
    %v1390 = vunpack.c.h.b16 %v1305
    %v1391 = vunpack.c.l.b16 %v1306
    %v1392 = vunpack.c.h.b16 %v1306
    %v1393 = vunpack.c.l.b16 %v1307
    %v1394 = vunpack.c.h.b16 %v1307
    %v1395 = vunpack.c.l.b16 %v1308
    %v1396 = vunpack.c.h.b16 %v1308
    %v1397 = vunpack.c.l.b16 %v1309
    %v1398 = vunpack.c.h.b16 %v1309
    %v1399 = vunpack.c.l.b16 %v1310
    %v1400 = vunpack.c.h.b16 %v1310
    %v1401 = vunpack.c.l.b16 %v1311
    %v1402 = vunpack.c.h.b16 %v1311
    %v1403 = vunpack.c.l.b16 %v1312
    %v1404 = vunpack.c.h.b16 %v1312
    %v1405 = vunpack.c.l.b16 %v1313
    %v1406 = vunpack.c.h.b16 %v1313
    %v1407 = vunpack.c.l.b16 %v1314
    %v1408 = vunpack.c.h.b16 %v1314
    %v1409 = vunpack.c.l.b16 %v1315
    %v1410 = vunpack.c.h.b16 %v1315
    %v1411 = vunpack.c.l.b16 %v1316
    %v1412 = vunpack.c.h.b16 %v1316
    %v1413 = vunpack.c.l.b16 %v1317
    %v1414 = vunpack.c.h.b16 %v1317
    %v1415 = vunpack.c.l.b16 %v1318
    %v1416 = vunpack.c.h.b16 %v1318
    %v1417 = vunpack.c.l.b16 %v1319
    %v1418 = vunpack.c.h.b16 %v1319
    %v1419 = vunpack.c.l.b16 %v1320
    %v1420 = vunpack.c.h.b16 %v1320
    %v1421 = vpack.c.b16 %v1361, %v1357
    %v1422 = vpack.c.b16 %v1362, %v1358
    %v1423 = vpack.c.b16 %v1363, %v1359
    %v1424 = vpack.c.b16 %v1364, %v1360
    %v1425 = vpack.c.b16 %v1369, %v1365
    %v1426 = vpack.c.b16 %v1370, %v1366
    %v1427 = vpack.c.b16 %v1371, %v1367
    %v1428 = vpack.c.b16 %v1372, %v1368
    %v1429 = vpack.c.b16 %v1377, %v1373
    %v1430 = vpack.c.b16 %v1378, %v1374
    %v1431 = vpack.c.b16 %v1379, %v1375
    %v1432 = vpack.c.b16 %v1380, %v1376
    %v1433 = vpack.c.b16 %v1385, %v1381
    %v1434 = vpack.c.b16 %v1386, %v1382
    %v1435 = vpack.c.b16 %v1387, %v1383
    %v1436 = vpack.c.b16 %v1388, %v1384
    %v1437 = vpack.c.b16 %v1393, %v1389
    %v1438 = vpack.c.b16 %v1394, %v1390
    %v1439 = vpack.c.b16 %v1395, %v1391
    %v1440 = vpack.c.b16 %v1396, %v1392
    %v1441 = vpack.c.b16 %v1401, %v1397
    %v1442 = vpack.c.b16 %v1402, %v1398
    %v1443 = vpack.c.b16 %v1403, %v1399
    %v1444 = vpack.c.b16 %v1404, %v1400
    %v1445 = vpack.c.b16 %v1409, %v1405
    %v1446 = vpack.c.b16 %v1410, %v1406
    %v1447 = vpack.c.b16 %v1411, %v1407
    %v1448 = vpack.c.b16 %v1412, %v1408
    %v1449 = vpack.c.b16 %v1417, %v1413
    %v1450 = vpack.c.b16 %v1418, %v1414
    %v1451 = vpack.c.b16 %v1419, %v1415
    %v1452 = vpack.c.b16 %v1420, %v1416
    %1485 = vmatpush.bf16.msra.mxu0 %v1449
    %1486 = vmatpush.bf16.msra.mxu0 %v1445
    %1487 = vmatpush.bf16.msra.mxu0 %v1441
    %1488 = vmatpush.bf16.msra.mxu0 %v1437
    %1489 = vmatpush.bf16.msra.mxu0 %v1433
    %1490 = vmatpush.bf16.msra.mxu0 %v1429
    %1491 = vmatpush.bf16.msra.mxu0 %v1425
    %1492 = vmatpush.bf16.msra.mxu0 %v1421
    %1493 = vmatmul.bf16.gmra.mxu0 %v1288
    %v1494 = vpop.f32.mrf.mxu0
    %v1495 = vadd.f32 %v1321, %v1494
    %v1496 = vpop.f32.mrf.mxu0
    %v1497 = vadd.f32 %v1321, %v1496
    %1498 = vdwg.mxu0
    %1499 = vmatpush.bf16.msra.mxu0 %v1450
    %1500 = vmatpush.bf16.msra.mxu0 %v1446
    %1501 = vmatpush.bf16.msra.mxu0 %v1442
    %1502 = vmatpush.bf16.msra.mxu0 %v1438
    %1503 = vmatpush.bf16.msra.mxu0 %v1434
    %1504 = vmatpush.bf16.msra.mxu0 %v1430
    %1505 = vmatpush.bf16.msra.mxu0 %v1426
    %1506 = vmatpush.bf16.msra.mxu0 %v1422
    %1507 = vmatmul.bf16.gmra.mxu0 %v1288
    %v1508 = vpop.f32.mrf.mxu0
    %v1509 = vadd.f32 %v1322, %v1508
    %v1510 = vpop.f32.mrf.mxu0
    %v1511 = vadd.f32 %v1322, %v1510
    %1512 = vdwg.mxu0
    %1513 = vmatpush.bf16.msra.mxu0 %v1451
    %1514 = vmatpush.bf16.msra.mxu0 %v1447
    %1515 = vmatpush.bf16.msra.mxu0 %v1443
    %1516 = vmatpush.bf16.msra.mxu0 %v1439
    %1517 = vmatpush.bf16.msra.mxu0 %v1435
    %1518 = vmatpush.bf16.msra.mxu0 %v1431
    %1519 = vmatpush.bf16.msra.mxu0 %v1427
    %1520 = vmatpush.bf16.msra.mxu0 %v1423
    %1521 = vmatmul.bf16.gmra.mxu0 %v1288
    %v1522 = vpop.f32.mrf.mxu0
    %v1523 = vadd.f32 %v1323, %v1522
    %v1524 = vpop.f32.mrf.mxu0
    %v1525 = vadd.f32 %v1323, %v1524
    %1526 = vdwg.mxu0
    %1527 = vmatpush.bf16.msra.mxu0 %v1452
    %1528 = vmatpush.bf16.msra.mxu0 %v1448
    %1529 = vmatpush.bf16.msra.mxu0 %v1444
    %1530 = vmatpush.bf16.msra.mxu0 %v1440
    %1531 = vmatpush.bf16.msra.mxu0 %v1436
    %1532 = vmatpush.bf16.msra.mxu0 %v1432
    %1533 = vmatpush.bf16.msra.mxu0 %v1428
    %1534 = vmatpush.bf16.msra.mxu0 %v1424
    %1535 = vmatmul.bf16.gmra.mxu0 %v1288
    %v1536 = vpop.f32.mrf.mxu0
    %v1537 = vadd.f32 %v1324, %v1536
    %v1538 = vpop.f32.mrf.mxu0
    %v1539 = vadd.f32 %v1324, %v1538
    %1540 = vdwg.mxu0
    %v1541 = vmul.f32 %v1495, 0.5
    %v1542 = vmul.f32 %v1509, 0.5
    %v1543 = vmul.f32 %v1523, 0.5
    %v1544 = vmul.f32 %v1537, 0.5
    %v1545 = vmul.f32 %v1497, 0.5
    %v1546 = vmul.f32 %v1511, 0.5
    %v1547 = vmul.f32 %v1525, 0.5
    %v1548 = vmul.f32 %v1539, 0.5
    %v1549 = vmul.f32 %v1495, 0.70710677
    %v1550 = vmul.f32 %v1509, 0.70710677
    %v1551 = vmul.f32 %v1523, 0.70710677
    %v1552 = vmul.f32 %v1537, 0.70710677
    %v1553 = vmul.f32 %v1497, 0.70710677
    %v1554 = vmul.f32 %v1511, 0.70710677
    %v1555 = vmul.f32 %v1525, 0.70710677
    %v1556 = vmul.f32 %v1539, 0.70710677
    %vm1557 = vcmp.ge.f32.partialorder %v1549, 0.0
    %vm1558 = vcmp.ge.f32.partialorder %v1550, 0.0
    %vm1559 = vcmp.ge.f32.partialorder %v1551, 0.0
    %vm1560 = vcmp.ge.f32.partialorder %v1552, 0.0
    %vm1561 = vcmp.ge.f32.partialorder %v1553, 0.0
    %vm1562 = vcmp.ge.f32.partialorder %v1554, 0.0
    %vm1563 = vcmp.ge.f32.partialorder %v1555, 0.0
    %vm1564 = vcmp.ge.f32.partialorder %v1556, 0.0
    %v1565 = vsel %vm1557, 1.0, -1.0
    %v1566 = vsel %vm1558, 1.0, -1.0
    %v1567 = vsel %vm1559, 1.0, -1.0
    %v1568 = vsel %vm1560, 1.0, -1.0
    %v1569 = vsel %vm1561, 1.0, -1.0
    %v1570 = vsel %vm1562, 1.0, -1.0
    %v1571 = vsel %vm1563, 1.0, -1.0
    %v1572 = vsel %vm1564, 1.0, -1.0
    %v1573 = vand.u32 2147483647, %v1549
    %v1574 = vand.u32 2147483647, %v1550
    %v1575 = vand.u32 2147483647, %v1551
    %v1576 = vand.u32 2147483647, %v1552
    %v1577 = vand.u32 2147483647, %v1553
    %v1578 = vand.u32 2147483647, %v1554
    %v1579 = vand.u32 2147483647, %v1555
    %v1580 = vand.u32 2147483647, %v1556
    %v1581 = vmul.f32 %v1573, 0.3275911
    %v1582 = vmul.f32 %v1574, 0.3275911
    %v1583 = vmul.f32 %v1575, 0.3275911
    %v1584 = vmul.f32 %v1576, 0.3275911
    %v1585 = vmul.f32 %v1577, 0.3275911
    %v1586 = vmul.f32 %v1578, 0.3275911
    %v1587 = vmul.f32 %v1579, 0.3275911
    %v1588 = vmul.f32 %v1580, 0.3275911
    %v1589 = vadd.f32 %v1581, 1.0
    %v1590 = vadd.f32 %v1582, 1.0
    %v1591 = vadd.f32 %v1583, 1.0
    %v1592 = vadd.f32 %v1584, 1.0
    %v1593 = vadd.f32 %v1585, 1.0
    %v1594 = vadd.f32 %v1586, 1.0
    %v1595 = vadd.f32 %v1587, 1.0
    %v1596 = vadd.f32 %v1588, 1.0
    %v1597 = vrcp.pop %v1589
    %v1598 = vmul.f32 %v1589, %v1597
    %v1599 = vsub.f32 1.0, %v1598
    %v1600 = vmul.f32 %v1597, %v1599
    %v1601 = vadd.f32 %v1597, %v1600
    %vm1602 = vweird.f32 %v1589
    %vm1603 = vweird.f32 %v1597
    %vm1604 = vmor %vm1602, %vm1603
    %v1605 = vsel %vm1604, %v1597, %v1601
    %v1606 = vand.u32 2147483647, %v1589
    %vm1607 = vcmp.eq.f32.partialorder %v1606, 8.507059e+37
    %v1608 = vand.u32 %v1589, 2147483648
    %v1609 = vor.u32 1.1754944e-38, %v1608
    %v1610 = vsel %vm1607, %v1609, %v1605
    %v1611 = vmul.f32 1.0, %v1610
    %v1612 = vrcp.pop %v1590
    %v1613 = vmul.f32 %v1590, %v1612
    %v1614 = vsub.f32 1.0, %v1613
    %v1615 = vmul.f32 %v1612, %v1614
    %v1616 = vadd.f32 %v1612, %v1615
    %vm1617 = vweird.f32 %v1590
    %vm1618 = vweird.f32 %v1612
    %vm1619 = vmor %vm1617, %vm1618
    %v1620 = vsel %vm1619, %v1612, %v1616
    %v1621 = vand.u32 2147483647, %v1590
    %vm1622 = vcmp.eq.f32.partialorder %v1621, 8.507059e+37
    %v1623 = vand.u32 %v1590, 2147483648
    %v1624 = vor.u32 1.1754944e-38, %v1623
    %v1625 = vsel %vm1622, %v1624, %v1620
    %v1626 = vmul.f32 1.0, %v1625
    %v1627 = vrcp.pop %v1591
    %v1628 = vmul.f32 %v1591, %v1627
    %v1629 = vsub.f32 1.0, %v1628
    %v1630 = vmul.f32 %v1627, %v1629
    %v1631 = vadd.f32 %v1627, %v1630
    %vm1632 = vweird.f32 %v1591
    %vm1633 = vweird.f32 %v1627
    %vm1634 = vmor %vm1632, %vm1633
    %v1635 = vsel %vm1634, %v1627, %v1631
    %v1636 = vand.u32 2147483647, %v1591
    %vm1637 = vcmp.eq.f32.partialorder %v1636, 8.507059e+37
    %v1638 = vand.u32 %v1591, 2147483648
    %v1639 = vor.u32 1.1754944e-38, %v1638
    %v1640 = vsel %vm1637, %v1639, %v1635
    %v1641 = vmul.f32 1.0, %v1640
    %v1642 = vrcp.pop %v1592
    %v1643 = vmul.f32 %v1592, %v1642
    %v1644 = vsub.f32 1.0, %v1643
    %v1645 = vmul.f32 %v1642, %v1644
    %v1646 = vadd.f32 %v1642, %v1645
    %vm1647 = vweird.f32 %v1592
    %vm1648 = vweird.f32 %v1642
    %vm1649 = vmor %vm1647, %vm1648
    %v1650 = vsel %vm1649, %v1642, %v1646
    %v1651 = vand.u32 2147483647, %v1592
    %vm1652 = vcmp.eq.f32.partialorder %v1651, 8.507059e+37
    %v1653 = vand.u32 %v1592, 2147483648
    %v1654 = vor.u32 1.1754944e-38, %v1653
    %v1655 = vsel %vm1652, %v1654, %v1650
    %v1656 = vmul.f32 1.0, %v1655
    %v1657 = vrcp.pop %v1593
    %v1658 = vmul.f32 %v1593, %v1657
    %v1659 = vsub.f32 1.0, %v1658
    %v1660 = vmul.f32 %v1657, %v1659
    %v1661 = vadd.f32 %v1657, %v1660
    %vm1662 = vweird.f32 %v1593
    %vm1663 = vweird.f32 %v1657
    %vm1664 = vmor %vm1662, %vm1663
    %v1665 = vsel %vm1664, %v1657, %v1661
    %v1666 = vand.u32 2147483647, %v1593
    %vm1667 = vcmp.eq.f32.partialorder %v1666, 8.507059e+37
    %v1668 = vand.u32 %v1593, 2147483648
    %v1669 = vor.u32 1.1754944e-38, %v1668
    %v1670 = vsel %vm1667, %v1669, %v1665
    %v1671 = vmul.f32 1.0, %v1670
    %v1672 = vrcp.pop %v1594
    %v1673 = vmul.f32 %v1594, %v1672
    %v1674 = vsub.f32 1.0, %v1673
    %v1675 = vmul.f32 %v1672, %v1674
    %v1676 = vadd.f32 %v1672, %v1675
    %vm1677 = vweird.f32 %v1594
    %vm1678 = vweird.f32 %v1672
    %vm1679 = vmor %vm1677, %vm1678
    %v1680 = vsel %vm1679, %v1672, %v1676
    %v1681 = vand.u32 2147483647, %v1594
    %vm1682 = vcmp.eq.f32.partialorder %v1681, 8.507059e+37
    %v1683 = vand.u32 %v1594, 2147483648
    %v1684 = vor.u32 1.1754944e-38, %v1683
    %v1685 = vsel %vm1682, %v1684, %v1680
    %v1686 = vmul.f32 1.0, %v1685
    %v1687 = vrcp.pop %v1595
    %v1688 = vmul.f32 %v1595, %v1687
    %v1689 = vsub.f32 1.0, %v1688
    %v1690 = vmul.f32 %v1687, %v1689
    %v1691 = vadd.f32 %v1687, %v1690
    %vm1692 = vweird.f32 %v1595
    %vm1693 = vweird.f32 %v1687
    %vm1694 = vmor %vm1692, %vm1693
    %v1695 = vsel %vm1694, %v1687, %v1691
    %v1696 = vand.u32 2147483647, %v1595
    %vm1697 = vcmp.eq.f32.partialorder %v1696, 8.507059e+37
    %v1698 = vand.u32 %v1595, 2147483648
    %v1699 = vor.u32 1.1754944e-38, %v1698
    %v1700 = vsel %vm1697, %v1699, %v1695
    %v1701 = vmul.f32 1.0, %v1700
    %v1702 = vrcp.pop %v1596
    %v1703 = vmul.f32 %v1596, %v1702
    %v1704 = vsub.f32 1.0, %v1703
    %v1705 = vmul.f32 %v1702, %v1704
    %v1706 = vadd.f32 %v1702, %v1705
    %vm1707 = vweird.f32 %v1596
    %vm1708 = vweird.f32 %v1702
    %vm1709 = vmor %vm1707, %vm1708
    %v1710 = vsel %vm1709, %v1702, %v1706
    %v1711 = vand.u32 2147483647, %v1596
    %vm1712 = vcmp.eq.f32.partialorder %v1711, 8.507059e+37
    %v1713 = vand.u32 %v1596, 2147483648
    %v1714 = vor.u32 1.1754944e-38, %v1713
    %v1715 = vsel %vm1712, %v1714, %v1710
    %v1716 = vmul.f32 1.0, %v1715
    %v1717 = vmul.f32 %v1611, 1.0614054
    %v1718 = vmul.f32 %v1626, 1.0614054
    %v1719 = vmul.f32 %v1641, 1.0614054
    %v1720 = vmul.f32 %v1656, 1.0614054
    %v1721 = vmul.f32 %v1671, 1.0614054
    %v1722 = vmul.f32 %v1686, 1.0614054
    %v1723 = vmul.f32 %v1701, 1.0614054
    %v1724 = vmul.f32 %v1716, 1.0614054
    %v1725 = vadd.f32 %v1717, -1.4531521
    %v1726 = vadd.f32 %v1718, -1.4531521
    %v1727 = vadd.f32 %v1719, -1.4531521
    %v1728 = vadd.f32 %v1720, -1.4531521
    %v1729 = vadd.f32 %v1721, -1.4531521
    %v1730 = vadd.f32 %v1722, -1.4531521
    %v1731 = vadd.f32 %v1723, -1.4531521
    %v1732 = vadd.f32 %v1724, -1.4531521
    %v1733 = vmul.f32 %v1725, %v1611
    %v1734 = vmul.f32 %v1726, %v1626
    %v1735 = vmul.f32 %v1727, %v1641
    %v1736 = vmul.f32 %v1728, %v1656
    %v1737 = vmul.f32 %v1729, %v1671
    %v1738 = vmul.f32 %v1730, %v1686
    %v1739 = vmul.f32 %v1731, %v1701
    %v1740 = vmul.f32 %v1732, %v1716
    %v1741 = vadd.f32 %v1733, 1.4214138
    %v1742 = vadd.f32 %v1734, 1.4214138
    %v1743 = vadd.f32 %v1735, 1.4214138
    %v1744 = vadd.f32 %v1736, 1.4214138
    %v1745 = vadd.f32 %v1737, 1.4214138
    %v1746 = vadd.f32 %v1738, 1.4214138
    %v1747 = vadd.f32 %v1739, 1.4214138
    %v1748 = vadd.f32 %v1740, 1.4214138
    %v1749 = vmul.f32 %v1741, %v1611
    %v1750 = vmul.f32 %v1742, %v1626
    %v1751 = vmul.f32 %v1743, %v1641
    %v1752 = vmul.f32 %v1744, %v1656
    %v1753 = vmul.f32 %v1745, %v1671
    %v1754 = vmul.f32 %v1746, %v1686
    %v1755 = vmul.f32 %v1747, %v1701
    %v1756 = vmul.f32 %v1748, %v1716
    %v1757 = vadd.f32 %v1749, -0.28449672
    %v1758 = vadd.f32 %v1750, -0.28449672
    %v1759 = vadd.f32 %v1751, -0.28449672
    %v1760 = vadd.f32 %v1752, -0.28449672
    %v1761 = vadd.f32 %v1753, -0.28449672
    %v1762 = vadd.f32 %v1754, -0.28449672
    %v1763 = vadd.f32 %v1755, -0.28449672
    %v1764 = vadd.f32 %v1756, -0.28449672
    %v1765 = vmul.f32 %v1757, %v1611
    %v1766 = vmul.f32 %v1758, %v1626
    %v1767 = vmul.f32 %v1759, %v1641
    %v1768 = vmul.f32 %v1760, %v1656
    %v1769 = vmul.f32 %v1761, %v1671
    %v1770 = vmul.f32 %v1762, %v1686
    %v1771 = vmul.f32 %v1763, %v1701
    %v1772 = vmul.f32 %v1764, %v1716
    %v1773 = vadd.f32 %v1765, 0.2548296
    %v1774 = vadd.f32 %v1766, 0.2548296
    %v1775 = vadd.f32 %v1767, 0.2548296
    %v1776 = vadd.f32 %v1768, 0.2548296
    %v1777 = vadd.f32 %v1769, 0.2548296
    %v1778 = vadd.f32 %v1770, 0.2548296
    %v1779 = vadd.f32 %v1771, 0.2548296
    %v1780 = vadd.f32 %v1772, 0.2548296
    %v1781 = vmul.f32 %v1773, %v1611
    %v1782 = vmul.f32 %v1774, %v1626
    %v1783 = vmul.f32 %v1775, %v1641
    %v1784 = vmul.f32 %v1776, %v1656
    %v1785 = vmul.f32 %v1777, %v1671
    %v1786 = vmul.f32 %v1778, %v1686
    %v1787 = vmul.f32 %v1779, %v1701
    %v1788 = vmul.f32 %v1780, %v1716
    %v1789 = vsub.f32 0.0, %v1573
    %v1790 = vsub.f32 0.0, %v1574
    %v1791 = vsub.f32 0.0, %v1575
    %v1792 = vsub.f32 0.0, %v1576
    %v1793 = vsub.f32 0.0, %v1577
    %v1794 = vsub.f32 0.0, %v1578
    %v1795 = vsub.f32 0.0, %v1579
    %v1796 = vsub.f32 0.0, %v1580
    %v1797 = vmul.f32 %v1789, %v1573
    %v1798 = vmul.f32 %v1790, %v1574
    %v1799 = vmul.f32 %v1791, %v1575
    %v1800 = vmul.f32 %v1792, %v1576
    %v1801 = vmul.f32 %v1793, %v1577
    %v1802 = vmul.f32 %v1794, %v1578
    %v1803 = vmul.f32 %v1795, %v1579
    %v1804 = vmul.f32 %v1796, %v1580
    %v1805 = vmul.f32 %v1797, 1.442695
    %v1806 = vpow.pop %v1805
    %v1807 = vmul.f32 %v1798, 1.442695
    %v1808 = vpow.pop %v1807
    %v1809 = vmul.f32 %v1799, 1.442695
    %v1810 = vpow.pop %v1809
    %v1811 = vmul.f32 %v1800, 1.442695
    %v1812 = vpow.pop %v1811
    %v1813 = vmul.f32 %v1801, 1.442695
    %v1814 = vpow.pop %v1813
    %v1815 = vmul.f32 %v1802, 1.442695
    %v1816 = vpow.pop %v1815
    %v1817 = vmul.f32 %v1803, 1.442695
    %v1818 = vpow.pop %v1817
    %v1819 = vmul.f32 %v1804, 1.442695
    %v1820 = vpow.pop %v1819
    %v1821 = vmul.f32 %v1781, %v1806
    %v1822 = vmul.f32 %v1782, %v1808
    %v1823 = vmul.f32 %v1783, %v1810
    %v1824 = vmul.f32 %v1784, %v1812
    %v1825 = vmul.f32 %v1785, %v1814
    %v1826 = vmul.f32 %v1786, %v1816
    %v1827 = vmul.f32 %v1787, %v1818
    %v1828 = vmul.f32 %v1788, %v1820
    %v1829 = vsub.f32 1.0, %v1821
    %v1830 = vsub.f32 1.0, %v1822
    %v1831 = vsub.f32 1.0, %v1823
    %v1832 = vsub.f32 1.0, %v1824
    %v1833 = vsub.f32 1.0, %v1825
    %v1834 = vsub.f32 1.0, %v1826
    %v1835 = vsub.f32 1.0, %v1827
    %v1836 = vsub.f32 1.0, %v1828
    %v1837 = vmul.f32 %v1565, %v1829
    %v1838 = vmul.f32 %v1566, %v1830
    %v1839 = vmul.f32 %v1567, %v1831
    %v1840 = vmul.f32 %v1568, %v1832
    %v1841 = vmul.f32 %v1569, %v1833
    %v1842 = vmul.f32 %v1570, %v1834
    %v1843 = vmul.f32 %v1571, %v1835
    %v1844 = vmul.f32 %v1572, %v1836
    %v1845 = vadd.f32 %v1837, 1.0
    %v1846 = vadd.f32 %v1838, 1.0
    %v1847 = vadd.f32 %v1839, 1.0
    %v1848 = vadd.f32 %v1840, 1.0
    %v1849 = vadd.f32 %v1841, 1.0
    %v1850 = vadd.f32 %v1842, 1.0
    %v1851 = vadd.f32 %v1843, 1.0
    %v1852 = vadd.f32 %v1844, 1.0
    %v1853 = vmul.f32 %v1541, %v1845
    %v1854 = vmul.f32 %v1542, %v1846
    %v1855 = vmul.f32 %v1543, %v1847
    %v1856 = vmul.f32 %v1544, %v1848
    %v1857 = vmul.f32 %v1545, %v1849
    %v1858 = vmul.f32 %v1546, %v1850
    %v1859 = vmul.f32 %v1547, %v1851
    %v1860 = vmul.f32 %v1548, %v1852
    %v1861 = vpack.c.bf16 %v1857, %v1853
    %v1862 = vpack.c.bf16 %v1858, %v1854
    %v1863 = vpack.c.bf16 %v1859, %v1855
    %v1864 = vpack.c.bf16 %v1860, %v1856
    %v1865 = vld [vmem:[#allocation19] sm:$0xf]
    %v1866 = vld [vmem:[#allocation19 + $0x4] sm:$0xf]
    %v1867 = vld [vmem:[#allocation19 + $0x8] sm:$0xf]
    %v1868 = vld [vmem:[#allocation19 + $0xc] sm:$0xf]
    %v1869 = vld [vmem:[#allocation19 + $0x10] sm:$0xf]
    %v1870 = vld [vmem:[#allocation19 + $0x14] sm:$0xf]
    %v1871 = vld [vmem:[#allocation19 + $0x18] sm:$0xf]
    %v1872 = vld [vmem:[#allocation19 + $0x1c] sm:$0xf]
    %v1873 = vld [vmem:[#allocation19 + $0x20] sm:$0xf]
    %v1874 = vld [vmem:[#allocation19 + $0x24] sm:$0xf]
    %v1875 = vld [vmem:[#allocation19 + $0x28] sm:$0xf]
    %v1876 = vld [vmem:[#allocation19 + $0x2c] sm:$0xf]
    %v1877 = vld [vmem:[#allocation19 + $0x30] sm:$0xf]
    %v1878 = vld [vmem:[#allocation19 + $0x34] sm:$0xf]
    %v1879 = vld [vmem:[#allocation19 + $0x38] sm:$0xf]
    %v1880 = vld [vmem:[#allocation19 + $0x3c] sm:$0xf]
    %v1881 = vld [vmem:[#allocation19 + $0x40] sm:$0xf]
    %v1882 = vld [vmem:[#allocation19 + $0x44] sm:$0xf]
    %v1883 = vld [vmem:[#allocation19 + $0x48] sm:$0xf]
    %v1884 = vld [vmem:[#allocation19 + $0x4c] sm:$0xf]
    %v1885 = vld [vmem:[#allocation19 + $0x50] sm:$0xf]
    %v1886 = vld [vmem:[#allocation19 + $0x54] sm:$0xf]
    %v1887 = vld [vmem:[#allocation19 + $0x58] sm:$0xf]
    %v1888 = vld [vmem:[#allocation19 + $0x5c] sm:$0xf]
    %v1889 = vld [vmem:[#allocation19 + $0x60] sm:$0xf]
    %v1890 = vld [vmem:[#allocation19 + $0x64] sm:$0xf]
    %v1891 = vld [vmem:[#allocation19 + $0x68] sm:$0xf]
    %v1892 = vld [vmem:[#allocation19 + $0x6c] sm:$0xf]
    %v1893 = vld [vmem:[#allocation19 + $0x70] sm:$0xf]
    %v1894 = vld [vmem:[#allocation19 + $0x74] sm:$0xf]
    %v1895 = vld [vmem:[#allocation19 + $0x78] sm:$0xf]
    %v1896 = vld [vmem:[#allocation19 + $0x7c] sm:$0xf]
    %v1897 = vld [vmem:[#allocation19 + $0x80] sm:$0xf]
    %v1898 = vld [vmem:[#allocation19 + $0x84] sm:$0xf]
    %v1899 = vld [vmem:[#allocation19 + $0x88] sm:$0xf]
    %v1900 = vld [vmem:[#allocation19 + $0x8c] sm:$0xf]
    %v1901 = vld [vmem:[#allocation19 + $0x90] sm:$0xf]
    %v1902 = vld [vmem:[#allocation19 + $0x94] sm:$0xf]
    %v1903 = vld [vmem:[#allocation19 + $0x98] sm:$0xf]
    %v1904 = vld [vmem:[#allocation19 + $0x9c] sm:$0xf]
    %v1905 = vld [vmem:[#allocation19 + $0xa0] sm:$0xf]
    %v1906 = vld [vmem:[#allocation19 + $0xa4] sm:$0xf]
    %v1907 = vld [vmem:[#allocation19 + $0xa8] sm:$0xf]
    %v1908 = vld [vmem:[#allocation19 + $0xac] sm:$0xf]
    %v1909 = vld [vmem:[#allocation19 + $0xb0] sm:$0xf]
    %v1910 = vld [vmem:[#allocation19 + $0xb4] sm:$0xf]
    %v1911 = vld [vmem:[#allocation19 + $0xb8] sm:$0xf]
    %v1912 = vld [vmem:[#allocation19 + $0xbc] sm:$0xf]
    %v1913 = vld [vmem:[#allocation19 + $0xc0] sm:$0xf]
    %v1914 = vld [vmem:[#allocation19 + $0xc4] sm:$0xf]
    %v1915 = vld [vmem:[#allocation19 + $0xc8] sm:$0xf]
    %v1916 = vld [vmem:[#allocation19 + $0xcc] sm:$0xf]
    %v1917 = vld [vmem:[#allocation19 + $0xd0] sm:$0xf]
    %v1918 = vld [vmem:[#allocation19 + $0xd4] sm:$0xf]
    %v1919 = vld [vmem:[#allocation19 + $0xd8] sm:$0xf]
    %v1920 = vld [vmem:[#allocation19 + $0xdc] sm:$0xf]
    %v1921 = vld [vmem:[#allocation19 + $0xe0] sm:$0xf]
    %v1922 = vld [vmem:[#allocation19 + $0xe4] sm:$0xf]
    %v1923 = vld [vmem:[#allocation19 + $0xe8] sm:$0xf]
    %v1924 = vld [vmem:[#allocation19 + $0xec] sm:$0xf]
    %v1925 = vld [vmem:[#allocation19 + $0xf0] sm:$0xf]
    %v1926 = vld [vmem:[#allocation19 + $0xf4] sm:$0xf]
    %v1927 = vld [vmem:[#allocation19 + $0xf8] sm:$0xf]
    %v1928 = vld [vmem:[#allocation19 + $0xfc] sm:$0xf]
    %v1929 = vperm.slane %v246, 6
    %v1994 = vunpack.c.l.b16 %v1865
    %v1995 = vunpack.c.l.b16 %v1866
    %v1996 = vunpack.c.l.b16 %v1867
    %v1997 = vunpack.c.l.b16 %v1868
    %v1998 = vunpack.c.l.b16 %v1869
    %v1999 = vunpack.c.l.b16 %v1870
    %v2000 = vunpack.c.l.b16 %v1871
    %v2001 = vunpack.c.l.b16 %v1872
    %v2002 = vunpack.c.l.b16 %v1873
    %v2003 = vunpack.c.l.b16 %v1874
    %v2004 = vunpack.c.l.b16 %v1875
    %v2005 = vunpack.c.l.b16 %v1876
    %v2006 = vunpack.c.l.b16 %v1877
    %v2007 = vunpack.c.l.b16 %v1878
    %v2008 = vunpack.c.l.b16 %v1879
    %v2009 = vunpack.c.l.b16 %v1880
    %v2010 = vunpack.c.l.b16 %v1881
    %v2011 = vunpack.c.l.b16 %v1882
    %v2012 = vunpack.c.l.b16 %v1883
    %v2013 = vunpack.c.l.b16 %v1884
    %v2014 = vunpack.c.l.b16 %v1885
    %v2015 = vunpack.c.l.b16 %v1886
    %v2016 = vunpack.c.l.b16 %v1887
    %v2017 = vunpack.c.l.b16 %v1888
    %v2018 = vunpack.c.l.b16 %v1889
    %v2019 = vunpack.c.l.b16 %v1890
    %v2020 = vunpack.c.l.b16 %v1891
    %v2021 = vunpack.c.l.b16 %v1892
    %v2022 = vunpack.c.l.b16 %v1893
    %v2023 = vunpack.c.l.b16 %v1894
    %v2024 = vunpack.c.l.b16 %v1895
    %v2025 = vunpack.c.l.b16 %v1896
    %v2026 = vunpack.c.l.b16 %v1897
    %v2027 = vunpack.c.l.b16 %v1898
    %v2028 = vunpack.c.l.b16 %v1899
    %v2029 = vunpack.c.l.b16 %v1900
    %v2030 = vunpack.c.l.b16 %v1901
    %v2031 = vunpack.c.l.b16 %v1902
    %v2032 = vunpack.c.l.b16 %v1903
    %v2033 = vunpack.c.l.b16 %v1904
    %v2034 = vunpack.c.l.b16 %v1905
    %v2035 = vunpack.c.l.b16 %v1906
    %v2036 = vunpack.c.l.b16 %v1907
    %v2037 = vunpack.c.l.b16 %v1908
    %v2038 = vunpack.c.l.b16 %v1909
    %v2039 = vunpack.c.l.b16 %v1910
    %v2040 = vunpack.c.l.b16 %v1911
    %v2041 = vunpack.c.l.b16 %v1912
    %v2042 = vunpack.c.l.b16 %v1913
    %v2043 = vunpack.c.l.b16 %v1914
    %v2044 = vunpack.c.l.b16 %v1915
    %v2045 = vunpack.c.l.b16 %v1916
    %v2046 = vunpack.c.l.b16 %v1917
    %v2047 = vunpack.c.l.b16 %v1918
    %v2048 = vunpack.c.l.b16 %v1919
    %v2049 = vunpack.c.l.b16 %v1920
    %v2050 = vunpack.c.l.b16 %v1921
    %v2051 = vunpack.c.l.b16 %v1922
    %v2052 = vunpack.c.l.b16 %v1923
    %v2053 = vunpack.c.l.b16 %v1924
    %v2054 = vunpack.c.l.b16 %v1925
    %v2055 = vunpack.c.l.b16 %v1926
    %v2056 = vunpack.c.l.b16 %v1927
    %v2057 = vunpack.c.l.b16 %v1928
    %v2058 = vpack.c.b16 %v1995, %v1994
    %v2059 = vpack.c.b16 %v1997, %v1996
    %v2060 = vpack.c.b16 %v1999, %v1998
    %v2061 = vpack.c.b16 %v2001, %v2000
    %v2062 = vpack.c.b16 %v2003, %v2002
    %v2063 = vpack.c.b16 %v2005, %v2004
    %v2064 = vpack.c.b16 %v2007, %v2006
    %v2065 = vpack.c.b16 %v2009, %v2008
    %v2066 = vpack.c.b16 %v2011, %v2010
    %v2067 = vpack.c.b16 %v2013, %v2012
    %v2068 = vpack.c.b16 %v2015, %v2014
    %v2069 = vpack.c.b16 %v2017, %v2016
    %v2070 = vpack.c.b16 %v2019, %v2018
    %v2071 = vpack.c.b16 %v2021, %v2020
    %v2072 = vpack.c.b16 %v2023, %v2022
    %v2073 = vpack.c.b16 %v2025, %v2024
    %v2074 = vpack.c.b16 %v2027, %v2026
    %v2075 = vpack.c.b16 %v2029, %v2028
    %v2076 = vpack.c.b16 %v2031, %v2030
    %v2077 = vpack.c.b16 %v2033, %v2032
    %v2078 = vpack.c.b16 %v2035, %v2034
    %v2079 = vpack.c.b16 %v2037, %v2036
    %v2080 = vpack.c.b16 %v2039, %v2038
    %v2081 = vpack.c.b16 %v2041, %v2040
    %v2082 = vpack.c.b16 %v2043, %v2042
    %v2083 = vpack.c.b16 %v2045, %v2044
    %v2084 = vpack.c.b16 %v2047, %v2046
    %v2085 = vpack.c.b16 %v2049, %v2048
    %v2086 = vpack.c.b16 %v2051, %v2050
    %v2087 = vpack.c.b16 %v2053, %v2052
    %v2088 = vpack.c.b16 %v2055, %v2054
    %v2089 = vpack.c.b16 %v2057, %v2056
    %2122 = vmatpush.bf16.msra.mxu0 %v2065
    %2123 = vmatpush.bf16.msra.mxu0 %v2064
    %2124 = vmatpush.bf16.msra.mxu0 %v2063
    %2125 = vmatpush.bf16.msra.mxu0 %v2062
    %2126 = vmatpush.bf16.msra.mxu0 %v2061
    %2127 = vmatpush.bf16.msra.mxu0 %v2060
    %2128 = vmatpush.bf16.msra.mxu0 %v2059
    %2129 = vmatpush.bf16.msra.mxu0 %v2058
    %2130 = vmatmul.bf16.gmra.mxu0 %v1861
    %v2131 = vpop.f32.mrf.mxu0
    %v2132 = vadd.f32 %v1929, %v2131
    %v2133 = vpop.f32.mrf.mxu0
    %v2134 = vadd.f32 %v1929, %v2133
    %2135 = vdwg.mxu0
    %2136 = vmatpush.bf16.msra.mxu0 %v2073
    %2137 = vmatpush.bf16.msra.mxu0 %v2072
    %2138 = vmatpush.bf16.msra.mxu0 %v2071
    %2139 = vmatpush.bf16.msra.mxu0 %v2070
    %2140 = vmatpush.bf16.msra.mxu0 %v2069
    %2141 = vmatpush.bf16.msra.mxu0 %v2068
    %2142 = vmatpush.bf16.msra.mxu0 %v2067
    %2143 = vmatpush.bf16.msra.mxu0 %v2066
    %2144 = vmatmul.bf16.gmra.mxu0 %v1862
    %v2145 = vpop.f32.mrf.mxu0
    %v2146 = vadd.f32 %v2132, %v2145
    %v2147 = vpop.f32.mrf.mxu0
    %v2148 = vadd.f32 %v2134, %v2147
    %2149 = vdwg.mxu0
    %2150 = vmatpush.bf16.msra.mxu0 %v2081
    %2151 = vmatpush.bf16.msra.mxu0 %v2080
    %2152 = vmatpush.bf16.msra.mxu0 %v2079
    %2153 = vmatpush.bf16.msra.mxu0 %v2078
    %2154 = vmatpush.bf16.msra.mxu0 %v2077
    %2155 = vmatpush.bf16.msra.mxu0 %v2076
    %2156 = vmatpush.bf16.msra.mxu0 %v2075
    %2157 = vmatpush.bf16.msra.mxu0 %v2074
    %2158 = vmatmul.bf16.gmra.mxu0 %v1863
    %v2159 = vpop.f32.mrf.mxu0
    %v2160 = vadd.f32 %v2146, %v2159
    %v2161 = vpop.f32.mrf.mxu0
    %v2162 = vadd.f32 %v2148, %v2161
    %2163 = vdwg.mxu0
    %2164 = vmatpush.bf16.msra.mxu0 %v2089
    %2165 = vmatpush.bf16.msra.mxu0 %v2088
    %2166 = vmatpush.bf16.msra.mxu0 %v2087
    %2167 = vmatpush.bf16.msra.mxu0 %v2086
    %2168 = vmatpush.bf16.msra.mxu0 %v2085
    %2169 = vmatpush.bf16.msra.mxu0 %v2084
    %2170 = vmatpush.bf16.msra.mxu0 %v2083
    %2171 = vmatpush.bf16.msra.mxu0 %v2082
    %2172 = vmatmul.bf16.gmra.mxu0 %v1864
    %v2173 = vpop.f32.mrf.mxu0
    %v2174 = vadd.f32 %v2160, %v2173
    %v2175 = vpop.f32.mrf.mxu0
    %v2176 = vadd.f32 %v2162, %v2175
    %2177 = vdwg.mxu0
    %v2178 = vadd.f32 %v1286, %v2174
    %v2179 = vadd.f32 %v1287, %v2176
    %2180 = vadd.xlane.f32.xlu0 %v2178
    %v2181 = vpop.xlane.xlu0 %2180
    %2182 = vadd.xlane.f32.xlu0 %v2179
    %v2183 = vpop.xlane.xlu0 %2182
    %v2184 = vmul.f32 %v2181, %v1245
    %v2185 = vmul.f32 %v2183, %v1245
    %v2186 = vsub.f32 %v2178, %v2184
    %v2187 = vsub.f32 %v2179, %v2185
    %v2188 = vmul.f32 %v2186, %v2186
    %v2189 = vmul.f32 %v2187, %v2187
    %2190 = vadd.xlane.f32.xlu0 %v2188
    %v2191 = vpop.xlane.xlu0 %2190
    %2192 = vadd.xlane.f32.xlu0 %v2189
    %v2193 = vpop.xlane.xlu0 %2192
    %v2194 = vmul.f32 %v2191, %v1245
    %v2195 = vmul.f32 %v2193, %v1245
    %v2196 = vadd.f32 %v2194, 1e-05
    %v2197 = vadd.f32 %v2195, 1e-05
    %v2198 = vrsqrt.pop %v2196
    %v2199 = vmul.f32 %v2198, %v2196
    %v2200 = vmul.f32 %v2199, %v2198
    %v2201 = vmul.f32 0.5, %v2200
    %v2202 = vsub.f32 1.5, %v2201
    %v2203 = vmul.f32 %v2198, %v2202
    %vm2204 = vweird.f32 %v2196
    %vm2205 = vweird.f32 %v2198
    %vm2206 = vmor %vm2204, %vm2205
    %v2207 = vsel %vm2206, %v2198, %v2203
    %v2208 = vrsqrt.pop %v2197
    %v2209 = vmul.f32 %v2208, %v2197
    %v2210 = vmul.f32 %v2209, %v2208
    %v2211 = vmul.f32 0.5, %v2210
    %v2212 = vsub.f32 1.5, %v2211
    %v2213 = vmul.f32 %v2208, %v2212
    %vm2214 = vweird.f32 %v2197
    %vm2215 = vweird.f32 %v2208
    %vm2216 = vmor %vm2214, %vm2215
    %v2217 = vsel %vm2216, %v2208, %v2213
    %v2218 = vmul.f32 %v2186, %v2207
    %v2219 = vmul.f32 %v2187, %v2217
    %v2220 = vperm.slane %v247, 3
    %v2221 = vmul.f32 %v2218, %v2220
    %v2222 = vmul.f32 %v2219, %v2220
    %v2223 = vperm.slane %v247, 4
    %v2224 = vadd.f32 %v2221, %v2223
    %v2225 = vadd.f32 %v2222, %v2223
    %2226 = vst [vmem:[#allocation23] sm:$0xff] %v2224
    %2227 = vst [vmem:[#allocation23 + $0x8] sm:$0xff] %v2225
    %s2228 = scalar_lea.vmem [#allocation16], 64
    %v2229 = vld [vmem:[%s2228] sm:$0xf]
    %v2230 = vld [vmem:[%s2228 + $0x4] sm:$0xf]
    %v2231 = vld [vmem:[%s2228 + $0x8] sm:$0xf]
    %v2232 = vld [vmem:[%s2228 + $0xc] sm:$0xf]
    %v2233 = vld [vmem:[%s2228 + $0x10] sm:$0xf]
    %v2234 = vld [vmem:[%s2228 + $0x14] sm:$0xf]
    %v2235 = vld [vmem:[%s2228 + $0x18] sm:$0xf]
    %v2236 = vld [vmem:[%s2228 + $0x1c] sm:$0xf]
    %v2237 = vld [vmem:[%s2228 + $0x20] sm:$0xf]
    %v2238 = vld [vmem:[%s2228 + $0x24] sm:$0xf]
    %v2239 = vld [vmem:[%s2228 + $0x28] sm:$0xf]
    %v2240 = vld [vmem:[%s2228 + $0x2c] sm:$0xf]
    %v2241 = vld [vmem:[%s2228 + $0x30] sm:$0xf]
    %v2242 = vld [vmem:[%s2228 + $0x34] sm:$0xf]
    %v2243 = vld [vmem:[%s2228 + $0x38] sm:$0xf]
    %v2244 = vld [vmem:[%s2228 + $0x3c] sm:$0xf]
    %v2246 = vsel %vm840, %v821, 0
    %2248 = vmatpush.bf16.xpose.msra.mxu0 0
    %2249 = vmatpush.bf16.xpose.msra.mxu0 0
    %2250 = vmatpush.bf16.xpose.msra.mxu0 0
    %2251 = vmatpush.bf16.xpose.msra.mxu0 0
    %2252 = vmatpush.bf16.xpose.msra.mxu0 0
    %2253 = vmatpush.bf16.xpose.msra.mxu0 0
    %2254 = vmatpush.bf16.xpose.msra.mxu0 0
    %2255 = vmatpush.bf16.xpose.msra.mxu0 %v2246
    %2256 = vmatmul.bf16.gmra.mxu0 %v842
    %v2257 = vpop.f32.mrf.mxu0
    %v2258 = vadd.f32 %v254, %v2257
    %v2259 = vpop.f32.mrf.mxu0
    %v2260 = vadd.f32 %v255, %v2259
    %2261 = vdwg.mxu0
    %v2262 = vsel %vm861, %v2258, -inf
    %2263 = vmax.xlane.f32.xlu0 %v2262
    %v2264 = vpop.xlane.xlu0 %2263
    %v2265 = vsel %vm861, %v2260, -inf
    %2266 = vmax.xlane.f32.xlu0 %v2265
    %v2267 = vpop.xlane.xlu0 %2266
    %v2268 = vsub.f32 %v2258, %v2264
    %v2269 = vsub.f32 %v2260, %v2267
    %v2270 = vmul.f32 %v2268, 1.442695
    %v2271 = vpow.pop %v2270
    %v2272 = vmul.f32 %v2269, 1.442695
    %v2273 = vpow.pop %v2272
    %v2274 = vsel %vm861, %v2271, 0.0
    %2275 = vadd.xlane.f32.xlu0 %v2274
    %v2276 = vpop.xlane.xlu0 %2275
    %v2277 = vsel %vm861, %v2273, 0.0
    %2278 = vadd.xlane.f32.xlu0 %v2277
    %v2279 = vpop.xlane.xlu0 %2278
    %v2280 = vrcp.pop %v2276
    %v2281 = vrcp.pop %v2279
    %v2282 = vmul.f32 %v2271, %v2280
    %v2283 = vmul.f32 %v2273, %v2281
    %v2284 = vpack.c.bf16 %v2283, %v2282
    %v2286 = vsel %vm861, %v2284, 0
    %2288 = vmatpush.bf16.msra.mxu0 0
    %2289 = vmatpush.bf16.msra.mxu0 0
    %2290 = vmatpush.bf16.msra.mxu0 0
    %2291 = vmatpush.bf16.msra.mxu0 0
    %2292 = vmatpush.bf16.msra.mxu0 0
    %2293 = vmatpush.bf16.msra.mxu0 0
    %2294 = vmatpush.bf16.msra.mxu0 0
    %2295 = vmatpush.bf16.msra.mxu0 %v823
    %2296 = vmatmul.bf16.gmra.mxu0 %v2286
    %v2297 = vpop.f32.mrf.mxu0
    %v2298 = vadd.f32 0.0, %v2297
    %v2299 = vpop.f32.mrf.mxu0
    %v2300 = vadd.f32 0.0, %v2299
    %2301 = vdwg.mxu0
    %v2302 = vpack.c.bf16 %v2300, %v2298
    %2304 = vrot.lane.b32.xlu0 %v821, 96
    %v2305 = vpop.permute.xlu0 %2304
    %v2307 = vsel %vm840, %v2305, 0
    %2309 = vmatpush.bf16.xpose.msra.mxu0 0
    %2310 = vmatpush.bf16.xpose.msra.mxu0 0
    %2311 = vmatpush.bf16.xpose.msra.mxu0 0
    %2312 = vmatpush.bf16.xpose.msra.mxu0 0
    %2313 = vmatpush.bf16.xpose.msra.mxu0 0
    %2314 = vmatpush.bf16.xpose.msra.mxu0 0
    %2315 = vmatpush.bf16.xpose.msra.mxu0 0
    %2316 = vmatpush.bf16.xpose.msra.mxu0 %v2307
    %2317 = vmatmul.bf16.gmra.mxu0 %v910
    %v2318 = vpop.f32.mrf.mxu0
    %v2319 = vadd.f32 %v254, %v2318
    %v2320 = vpop.f32.mrf.mxu0
    %v2321 = vadd.f32 %v255, %v2320
    %2322 = vdwg.mxu0
    %v2323 = vsel %vm861, %v2319, -inf
    %2324 = vmax.xlane.f32.xlu0 %v2323
    %v2325 = vpop.xlane.xlu0 %2324
    %v2326 = vsel %vm861, %v2321, -inf
    %2327 = vmax.xlane.f32.xlu0 %v2326
    %v2328 = vpop.xlane.xlu0 %2327
    %v2329 = vsub.f32 %v2319, %v2325
    %v2330 = vsub.f32 %v2321, %v2328
    %v2331 = vmul.f32 %v2329, 1.442695
    %v2332 = vpow.pop %v2331
    %v2333 = vmul.f32 %v2330, 1.442695
    %v2334 = vpow.pop %v2333
    %v2335 = vsel %vm861, %v2332, 0.0
    %2336 = vadd.xlane.f32.xlu0 %v2335
    %v2337 = vpop.xlane.xlu0 %2336
    %v2338 = vsel %vm861, %v2334, 0.0
    %2339 = vadd.xlane.f32.xlu0 %v2338
    %v2340 = vpop.xlane.xlu0 %2339
    %v2341 = vrcp.pop %v2337
    %v2342 = vrcp.pop %v2340
    %v2343 = vmul.f32 %v2332, %v2341
    %v2344 = vmul.f32 %v2334, %v2342
    %v2345 = vpack.c.bf16 %v2344, %v2343
    %2347 = vrot.lane.b32.xlu0 %v823, 96
    %v2348 = vpop.permute.xlu0 %2347
    %v2351 = vsel %vm861, %v2345, 0
    %2353 = vmatpush.bf16.msra.mxu0 0
    %2354 = vmatpush.bf16.msra.mxu0 0
    %2355 = vmatpush.bf16.msra.mxu0 0
    %2356 = vmatpush.bf16.msra.mxu0 0
    %2357 = vmatpush.bf16.msra.mxu0 0
    %2358 = vmatpush.bf16.msra.mxu0 0
    %2359 = vmatpush.bf16.msra.mxu0 0
    %2360 = vmatpush.bf16.msra.mxu0 %v2348
    %2361 = vmatmul.bf16.gmra.mxu0 %v2351
    %v2362 = vpop.f32.mrf.mxu0
    %v2363 = vadd.f32 0.0, %v2362
    %v2364 = vpop.f32.mrf.mxu0
    %v2365 = vadd.f32 0.0, %v2364
    %2366 = vdwg.mxu0
    %v2367 = vpack.c.bf16 %v2365, %v2363
    %v2372 = vunpack.c.l.b16 %v2233
    %v2373 = vunpack.c.l.b16 %v2234
    %v2374 = vunpack.c.l.b16 %v2235
    %v2375 = vunpack.c.l.b16 %v2236
    %v2376 = vpack.c.b16 %v2373, %v2372
    %v2377 = vpack.c.b16 %v2375, %v2374
    %v2381 = vsel %vm840, %v2367, 0
    %2383 = vmatpush.bf16.msra.mxu0 0
    %2384 = vmatpush.bf16.msra.mxu0 0
    %2385 = vmatpush.bf16.msra.mxu0 0
    %2386 = vmatpush.bf16.msra.mxu0 0
    %2387 = vmatpush.bf16.msra.mxu0 0
    %2388 = vmatpush.bf16.msra.mxu0 0
    %2389 = vmatpush.bf16.msra.mxu0 %v2377
    %2390 = vmatpush.bf16.msra.mxu0 %v2376
    %2391 = vmatmul.bf16.gmra.mxu0 %v2381
    %v2392 = vpop.f32.mrf.mxu0
    %v2393 = vadd.f32 0.0, %v2392
    %v2394 = vpop.f32.mrf.mxu0
    %v2395 = vadd.f32 0.0, %v2394
    %2396 = vdwg.mxu0
    %v2401 = vunpack.c.l.b16 %v2229
    %v2402 = vunpack.c.l.b16 %v2230
    %v2403 = vunpack.c.l.b16 %v2231
    %v2404 = vunpack.c.l.b16 %v2232
    %v2405 = vpack.c.b16 %v2402, %v2401
    %v2406 = vpack.c.b16 %v2404, %v2403
    %v2410 = vsel %vm840, %v2302, 0
    %2412 = vmatpush.bf16.msra.mxu0 0
    %2413 = vmatpush.bf16.msra.mxu0 0
    %2414 = vmatpush.bf16.msra.mxu0 0
    %2415 = vmatpush.bf16.msra.mxu0 0
    %2416 = vmatpush.bf16.msra.mxu0 0
    %2417 = vmatpush.bf16.msra.mxu0 0
    %2418 = vmatpush.bf16.msra.mxu0 %v2406
    %2419 = vmatpush.bf16.msra.mxu0 %v2405
    %2420 = vmatmul.bf16.gmra.mxu0 %v2410
    %v2421 = vpop.f32.mrf.mxu0
    %v2422 = vadd.f32 %v2393, %v2421
    %v2423 = vpop.f32.mrf.mxu0
    %v2424 = vadd.f32 %v2395, %v2423
    %2425 = vdwg.mxu0
    %2426 = vrot.lane.b32.xlu0 %v821, 64
    %v2427 = vpop.permute.xlu0 %2426
    %v2429 = vsel %vm840, %v2427, 0
    %2431 = vmatpush.bf16.xpose.msra.mxu0 0
    %2432 = vmatpush.bf16.xpose.msra.mxu0 0
    %2433 = vmatpush.bf16.xpose.msra.mxu0 0
    %2434 = vmatpush.bf16.xpose.msra.mxu0 0
    %2435 = vmatpush.bf16.xpose.msra.mxu0 0
    %2436 = vmatpush.bf16.xpose.msra.mxu0 0
    %2437 = vmatpush.bf16.xpose.msra.mxu0 0
    %2438 = vmatpush.bf16.xpose.msra.mxu0 %v2429
    %2439 = vmatmul.bf16.gmra.mxu0 %v1037
    %v2440 = vpop.f32.mrf.mxu0
    %v2441 = vadd.f32 %v254, %v2440
    %v2442 = vpop.f32.mrf.mxu0
    %v2443 = vadd.f32 %v255, %v2442
    %2444 = vdwg.mxu0
    %v2445 = vsel %vm861, %v2441, -inf
    %2446 = vmax.xlane.f32.xlu0 %v2445
    %v2447 = vpop.xlane.xlu0 %2446
    %v2448 = vsel %vm861, %v2443, -inf
    %2449 = vmax.xlane.f32.xlu0 %v2448
    %v2450 = vpop.xlane.xlu0 %2449
    %v2451 = vsub.f32 %v2441, %v2447
    %v2452 = vsub.f32 %v2443, %v2450
    %v2453 = vmul.f32 %v2451, 1.442695
    %v2454 = vpow.pop %v2453
    %v2455 = vmul.f32 %v2452, 1.442695
    %v2456 = vpow.pop %v2455
    %v2457 = vsel %vm861, %v2454, 0.0
    %2458 = vadd.xlane.f32.xlu0 %v2457
    %v2459 = vpop.xlane.xlu0 %2458
    %v2460 = vsel %vm861, %v2456, 0.0
    %2461 = vadd.xlane.f32.xlu0 %v2460
    %v2462 = vpop.xlane.xlu0 %2461
    %v2463 = vrcp.pop %v2459
    %v2464 = vrcp.pop %v2462
    %v2465 = vmul.f32 %v2454, %v2463
    %v2466 = vmul.f32 %v2456, %v2464
    %v2467 = vpack.c.bf16 %v2466, %v2465
    %2468 = vrot.lane.b32.xlu0 %v823, 64
    %v2469 = vpop.permute.xlu0 %2468
    %v2472 = vsel %vm861, %v2467, 0
    %2474 = vmatpush.bf16.msra.mxu0 0
    %2475 = vmatpush.bf16.msra.mxu0 0
    %2476 = vmatpush.bf16.msra.mxu0 0
    %2477 = vmatpush.bf16.msra.mxu0 0
    %2478 = vmatpush.bf16.msra.mxu0 0
    %2479 = vmatpush.bf16.msra.mxu0 0
    %2480 = vmatpush.bf16.msra.mxu0 0
    %2481 = vmatpush.bf16.msra.mxu0 %v2469
    %2482 = vmatmul.bf16.gmra.mxu0 %v2472
    %v2483 = vpop.f32.mrf.mxu0
    %v2484 = vadd.f32 0.0, %v2483
    %v2485 = vpop.f32.mrf.mxu0
    %v2486 = vadd.f32 0.0, %v2485
    %2487 = vdwg.mxu0
    %v2488 = vpack.c.bf16 %v2486, %v2484
    %v2493 = vunpack.c.l.b16 %v2237
    %v2494 = vunpack.c.l.b16 %v2238
    %v2495 = vunpack.c.l.b16 %v2239
    %v2496 = vunpack.c.l.b16 %v2240
    %v2497 = vpack.c.b16 %v2494, %v2493
    %v2498 = vpack.c.b16 %v2496, %v2495
    %v2502 = vsel %vm840, %v2488, 0
    %2504 = vmatpush.bf16.msra.mxu0 0
    %2505 = vmatpush.bf16.msra.mxu0 0
    %2506 = vmatpush.bf16.msra.mxu0 0
    %2507 = vmatpush.bf16.msra.mxu0 0
    %2508 = vmatpush.bf16.msra.mxu0 0
    %2509 = vmatpush.bf16.msra.mxu0 0
    %2510 = vmatpush.bf16.msra.mxu0 %v2498
    %2511 = vmatpush.bf16.msra.mxu0 %v2497
    %2512 = vmatmul.bf16.gmra.mxu0 %v2502
    %v2513 = vpop.f32.mrf.mxu0
    %v2514 = vadd.f32 0.0, %v2513
    %v2515 = vpop.f32.mrf.mxu0
    %v2516 = vadd.f32 0.0, %v2515
    %2517 = vdwg.mxu0
    %v2518 = vadd.f32 %v2422, %v2514
    %v2519 = vadd.f32 %v2424, %v2516
    %2520 = vrot.lane.b32.xlu0 %v821, 32
    %v2521 = vpop.permute.xlu0 %2520
    %v2523 = vsel %vm840, %v2521, 0
    %2525 = vmatpush.bf16.xpose.msra.mxu0 0
    %2526 = vmatpush.bf16.xpose.msra.mxu0 0
    %2527 = vmatpush.bf16.xpose.msra.mxu0 0
    %2528 = vmatpush.bf16.xpose.msra.mxu0 0
    %2529 = vmatpush.bf16.xpose.msra.mxu0 0
    %2530 = vmatpush.bf16.xpose.msra.mxu0 0
    %2531 = vmatpush.bf16.xpose.msra.mxu0 0
    %2532 = vmatpush.bf16.xpose.msra.mxu0 %v2523
    %2533 = vmatmul.bf16.gmra.mxu0 %v1136
    %v2534 = vpop.f32.mrf.mxu0
    %v2535 = vadd.f32 %v254, %v2534
    %v2536 = vpop.f32.mrf.mxu0
    %v2537 = vadd.f32 %v255, %v2536
    %2538 = vdwg.mxu0
    %v2539 = vsel %vm861, %v2535, -inf
    %2540 = vmax.xlane.f32.xlu0 %v2539
    %v2541 = vpop.xlane.xlu0 %2540
    %v2542 = vsel %vm861, %v2537, -inf
    %2543 = vmax.xlane.f32.xlu0 %v2542
    %v2544 = vpop.xlane.xlu0 %2543
    %v2545 = vsub.f32 %v2535, %v2541
    %v2546 = vsub.f32 %v2537, %v2544
    %v2547 = vmul.f32 %v2545, 1.442695
    %v2548 = vpow.pop %v2547
    %v2549 = vmul.f32 %v2546, 1.442695
    %v2550 = vpow.pop %v2549
    %v2551 = vsel %vm861, %v2548, 0.0
    %2552 = vadd.xlane.f32.xlu0 %v2551
    %v2553 = vpop.xlane.xlu0 %2552
    %v2554 = vsel %vm861, %v2550, 0.0
    %2555 = vadd.xlane.f32.xlu0 %v2554
    %v2556 = vpop.xlane.xlu0 %2555
    %v2557 = vrcp.pop %v2553
    %v2558 = vrcp.pop %v2556
    %v2559 = vmul.f32 %v2548, %v2557
    %v2560 = vmul.f32 %v2550, %v2558
    %v2561 = vpack.c.bf16 %v2560, %v2559
    %2562 = vrot.lane.b32.xlu0 %v823, 32
    %v2563 = vpop.permute.xlu0 %2562
    %v2566 = vsel %vm861, %v2561, 0
    %2568 = vmatpush.bf16.msra.mxu0 0
    %2569 = vmatpush.bf16.msra.mxu0 0
    %2570 = vmatpush.bf16.msra.mxu0 0
    %2571 = vmatpush.bf16.msra.mxu0 0
    %2572 = vmatpush.bf16.msra.mxu0 0
    %2573 = vmatpush.bf16.msra.mxu0 0
    %2574 = vmatpush.bf16.msra.mxu0 0
    %2575 = vmatpush.bf16.msra.mxu0 %v2563
    %2576 = vmatmul.bf16.gmra.mxu0 %v2566
    %v2577 = vpop.f32.mrf.mxu0
    %v2578 = vadd.f32 0.0, %v2577
    %v2579 = vpop.f32.mrf.mxu0
    %v2580 = vadd.f32 0.0, %v2579
    %2581 = vdwg.mxu0
    %v2582 = vpack.c.bf16 %v2580, %v2578
    %v2587 = vunpack.c.l.b16 %v2241
    %v2588 = vunpack.c.l.b16 %v2242
    %v2589 = vunpack.c.l.b16 %v2243
    %v2590 = vunpack.c.l.b16 %v2244
    %v2591 = vpack.c.b16 %v2588, %v2587
    %v2592 = vpack.c.b16 %v2590, %v2589
    %v2596 = vsel %vm840, %v2582, 0
    %2598 = vmatpush.bf16.msra.mxu0 0
    %2599 = vmatpush.bf16.msra.mxu0 0
    %2600 = vmatpush.bf16.msra.mxu0 0
    %2601 = vmatpush.bf16.msra.mxu0 0
    %2602 = vmatpush.bf16.msra.mxu0 0
    %2603 = vmatpush.bf16.msra.mxu0 0
    %2604 = vmatpush.bf16.msra.mxu0 %v2592
    %2605 = vmatpush.bf16.msra.mxu0 %v2591
    %2606 = vmatmul.bf16.gmra.mxu0 %v2596
    %v2607 = vpop.f32.mrf.mxu0
    %v2608 = vadd.f32 0.0, %v2607
    %v2609 = vpop.f32.mrf.mxu0
    %v2610 = vadd.f32 0.0, %v2609
    %2611 = vdwg.mxu0
    %v2612 = vadd.f32 %v2518, %v2608
    %v2613 = vadd.f32 %v2519, %v2610
    %v2614 = vadd.f32 %v256, %v2612
    %v2615 = vadd.f32 %v257, %v2613
    %v2616 = vperm.slane %v247, 5
    %v2617 = vadd.f32 %v2614, %v2616
    %v2618 = vadd.f32 %v2615, %v2616
    %2619 = vadd.xlane.f32.xlu0 %v2617
    %v2620 = vpop.xlane.xlu0 %2619
    %2621 = vadd.xlane.f32.xlu0 %v2618
    %v2622 = vpop.xlane.xlu0 %2621
    %v2623 = vmul.f32 %v2620, %v1245
    %v2624 = vmul.f32 %v2622, %v1245
    %v2625 = vsub.f32 %v2617, %v2623
    %v2626 = vsub.f32 %v2618, %v2624
    %v2627 = vmul.f32 %v2625, %v2625
    %v2628 = vmul.f32 %v2626, %v2626
    %2629 = vadd.xlane.f32.xlu0 %v2627
    %v2630 = vpop.xlane.xlu0 %2629
    %2631 = vadd.xlane.f32.xlu0 %v2628
    %v2632 = vpop.xlane.xlu0 %2631
    %v2633 = vmul.f32 %v2630, %v1245
    %v2634 = vmul.f32 %v2632, %v1245
    %v2635 = vadd.f32 %v2633, 1e-05
    %v2636 = vadd.f32 %v2634, 1e-05
    %v2637 = vrsqrt.pop %v2635
    %v2638 = vmul.f32 %v2637, %v2635
    %v2639 = vmul.f32 %v2638, %v2637
    %v2640 = vmul.f32 0.5, %v2639
    %v2641 = vsub.f32 1.5, %v2640
    %v2642 = vmul.f32 %v2637, %v2641
    %vm2643 = vweird.f32 %v2635
    %vm2644 = vweird.f32 %v2637
    %vm2645 = vmor %vm2643, %vm2644
    %v2646 = vsel %vm2645, %v2637, %v2642
    %v2647 = vrsqrt.pop %v2636
    %v2648 = vmul.f32 %v2647, %v2636
    %v2649 = vmul.f32 %v2648, %v2647
    %v2650 = vmul.f32 0.5, %v2649
    %v2651 = vsub.f32 1.5, %v2650
    %v2652 = vmul.f32 %v2647, %v2651
    %vm2653 = vweird.f32 %v2636
    %vm2654 = vweird.f32 %v2647
    %vm2655 = vmor %vm2653, %vm2654
    %v2656 = vsel %vm2655, %v2647, %v2652
    %v2657 = vmul.f32 %v2625, %v2646
    %v2658 = vmul.f32 %v2626, %v2656
    %v2659 = vperm.slane %v247, 6
    %v2660 = vmul.f32 %v2657, %v2659
    %v2661 = vmul.f32 %v2658, %v2659
    %v2662 = vperm.slane %v247, 7
    %v2663 = vadd.f32 %v2660, %v2662
    %v2664 = vadd.f32 %v2661, %v2662
    %v2665 = vpack.c.bf16 %v2664, %v2663
    %v2666 = vld [vmem:[#allocation17] sm:$0xff]
    %v2667 = vld [vmem:[#allocation17 + $0x8] sm:$0xff]
    %v2668 = vld [vmem:[#allocation17 + $0x10] sm:$0xff]
    %v2669 = vld [vmem:[#allocation17 + $0x18] sm:$0xff]
    %v2670 = vld [vmem:[#allocation17 + $0x20] sm:$0xff]
    %v2671 = vld [vmem:[#allocation17 + $0x28] sm:$0xff]
    %v2672 = vld [vmem:[#allocation17 + $0x30] sm:$0xff]
    %v2673 = vld [vmem:[#allocation17 + $0x38] sm:$0xff]
    %v2674 = vld [vmem:[#allocation17 + $0x40] sm:$0xff]
    %v2675 = vld [vmem:[#allocation17 + $0x48] sm:$0xff]
    %v2676 = vld [vmem:[#allocation17 + $0x50] sm:$0xff]
    %v2677 = vld [vmem:[#allocation17 + $0x58] sm:$0xff]
    %v2678 = vld [vmem:[#allocation17 + $0x60] sm:$0xff]
    %v2679 = vld [vmem:[#allocation17 + $0x68] sm:$0xff]
    %v2680 = vld [vmem:[#allocation17 + $0x70] sm:$0xff]
    %v2681 = vld [vmem:[#allocation17 + $0x78] sm:$0xff]
    %v2682 = vld [vmem:[#allocation17 + $0x80] sm:$0xff]
    %v2683 = vld [vmem:[#allocation17 + $0x88] sm:$0xff]
    %v2684 = vld [vmem:[#allocation17 + $0x90] sm:$0xff]
    %v2685 = vld [vmem:[#allocation17 + $0x98] sm:$0xff]
    %v2686 = vld [vmem:[#allocation17 + $0xa0] sm:$0xff]
    %v2687 = vld [vmem:[#allocation17 + $0xa8] sm:$0xff]
    %v2688 = vld [vmem:[#allocation17 + $0xb0] sm:$0xff]
    %v2689 = vld [vmem:[#allocation17 + $0xb8] sm:$0xff]
    %v2690 = vld [vmem:[#allocation17 + $0xc0] sm:$0xff]
    %v2691 = vld [vmem:[#allocation17 + $0xc8] sm:$0xff]
    %v2692 = vld [vmem:[#allocation17 + $0xd0] sm:$0xff]
    %v2693 = vld [vmem:[#allocation17 + $0xd8] sm:$0xff]
    %v2694 = vld [vmem:[#allocation17 + $0xe0] sm:$0xff]
    %v2695 = vld [vmem:[#allocation17 + $0xe8] sm:$0xff]
    %v2696 = vld [vmem:[#allocation17 + $0xf0] sm:$0xff]
    %v2697 = vld [vmem:[#allocation17 + $0xf8] sm:$0xff]
    %v2730 = vunpack.c.l.b16 %v2666
    %v2731 = vunpack.c.h.b16 %v2666
    %v2732 = vunpack.c.l.b16 %v2667
    %v2733 = vunpack.c.h.b16 %v2667
    %v2734 = vunpack.c.l.b16 %v2668
    %v2735 = vunpack.c.h.b16 %v2668
    %v2736 = vunpack.c.l.b16 %v2669
    %v2737 = vunpack.c.h.b16 %v2669
    %v2738 = vunpack.c.l.b16 %v2670
    %v2739 = vunpack.c.h.b16 %v2670
    %v2740 = vunpack.c.l.b16 %v2671
    %v2741 = vunpack.c.h.b16 %v2671
    %v2742 = vunpack.c.l.b16 %v2672
    %v2743 = vunpack.c.h.b16 %v2672
    %v2744 = vunpack.c.l.b16 %v2673
    %v2745 = vunpack.c.h.b16 %v2673
    %v2746 = vunpack.c.l.b16 %v2674
    %v2747 = vunpack.c.h.b16 %v2674
    %v2748 = vunpack.c.l.b16 %v2675
    %v2749 = vunpack.c.h.b16 %v2675
    %v2750 = vunpack.c.l.b16 %v2676
    %v2751 = vunpack.c.h.b16 %v2676
    %v2752 = vunpack.c.l.b16 %v2677
    %v2753 = vunpack.c.h.b16 %v2677
    %v2754 = vunpack.c.l.b16 %v2678
    %v2755 = vunpack.c.h.b16 %v2678
    %v2756 = vunpack.c.l.b16 %v2679
    %v2757 = vunpack.c.h.b16 %v2679
    %v2758 = vunpack.c.l.b16 %v2680
    %v2759 = vunpack.c.h.b16 %v2680
    %v2760 = vunpack.c.l.b16 %v2681
    %v2761 = vunpack.c.h.b16 %v2681
    %v2762 = vunpack.c.l.b16 %v2682
    %v2763 = vunpack.c.h.b16 %v2682
    %v2764 = vunpack.c.l.b16 %v2683
    %v2765 = vunpack.c.h.b16 %v2683
    %v2766 = vunpack.c.l.b16 %v2684
    %v2767 = vunpack.c.h.b16 %v2684
    %v2768 = vunpack.c.l.b16 %v2685
    %v2769 = vunpack.c.h.b16 %v2685
    %v2770 = vunpack.c.l.b16 %v2686
    %v2771 = vunpack.c.h.b16 %v2686
    %v2772 = vunpack.c.l.b16 %v2687
    %v2773 = vunpack.c.h.b16 %v2687
    %v2774 = vunpack.c.l.b16 %v2688
    %v2775 = vunpack.c.h.b16 %v2688
    %v2776 = vunpack.c.l.b16 %v2689
    %v2777 = vunpack.c.h.b16 %v2689
    %v2778 = vunpack.c.l.b16 %v2690
    %v2779 = vunpack.c.h.b16 %v2690
    %v2780 = vunpack.c.l.b16 %v2691
    %v2781 = vunpack.c.h.b16 %v2691
    %v2782 = vunpack.c.l.b16 %v2692
    %v2783 = vunpack.c.h.b16 %v2692
    %v2784 = vunpack.c.l.b16 %v2693
    %v2785 = vunpack.c.h.b16 %v2693
    %v2786 = vunpack.c.l.b16 %v2694
    %v2787 = vunpack.c.h.b16 %v2694
    %v2788 = vunpack.c.l.b16 %v2695
    %v2789 = vunpack.c.h.b16 %v2695
    %v2790 = vunpack.c.l.b16 %v2696
    %v2791 = vunpack.c.h.b16 %v2696
    %v2792 = vunpack.c.l.b16 %v2697
    %v2793 = vunpack.c.h.b16 %v2697
    %v2794 = vpack.c.b16 %v2734, %v2730
    %v2795 = vpack.c.b16 %v2735, %v2731
    %v2796 = vpack.c.b16 %v2736, %v2732
    %v2797 = vpack.c.b16 %v2737, %v2733
    %v2798 = vpack.c.b16 %v2742, %v2738
    %v2799 = vpack.c.b16 %v2743, %v2739
    %v2800 = vpack.c.b16 %v2744, %v2740
    %v2801 = vpack.c.b16 %v2745, %v2741
    %v2802 = vpack.c.b16 %v2750, %v2746
    %v2803 = vpack.c.b16 %v2751, %v2747
    %v2804 = vpack.c.b16 %v2752, %v2748
    %v2805 = vpack.c.b16 %v2753, %v2749
    %v2806 = vpack.c.b16 %v2758, %v2754
    %v2807 = vpack.c.b16 %v2759, %v2755
    %v2808 = vpack.c.b16 %v2760, %v2756
    %v2809 = vpack.c.b16 %v2761, %v2757
    %v2810 = vpack.c.b16 %v2766, %v2762
    %v2811 = vpack.c.b16 %v2767, %v2763
    %v2812 = vpack.c.b16 %v2768, %v2764
    %v2813 = vpack.c.b16 %v2769, %v2765
    %v2814 = vpack.c.b16 %v2774, %v2770
    %v2815 = vpack.c.b16 %v2775, %v2771
    %v2816 = vpack.c.b16 %v2776, %v2772
    %v2817 = vpack.c.b16 %v2777, %v2773
    %v2818 = vpack.c.b16 %v2782, %v2778
    %v2819 = vpack.c.b16 %v2783, %v2779
    %v2820 = vpack.c.b16 %v2784, %v2780
    %v2821 = vpack.c.b16 %v2785, %v2781
    %v2822 = vpack.c.b16 %v2790, %v2786
    %v2823 = vpack.c.b16 %v2791, %v2787
    %v2824 = vpack.c.b16 %v2792, %v2788
    %v2825 = vpack.c.b16 %v2793, %v2789
    %2858 = vmatpush.bf16.msra.mxu0 %v2822
    %2859 = vmatpush.bf16.msra.mxu0 %v2818
    %2860 = vmatpush.bf16.msra.mxu0 %v2814
    %2861 = vmatpush.bf16.msra.mxu0 %v2810
    %2862 = vmatpush.bf16.msra.mxu0 %v2806
    %2863 = vmatpush.bf16.msra.mxu0 %v2802
    %2864 = vmatpush.bf16.msra.mxu0 %v2798
    %2865 = vmatpush.bf16.msra.mxu0 %v2794
    %2866 = vmatmul.bf16.gmra.mxu0 %v2665
    %v2867 = vpop.f32.mrf.mxu0
    %v2868 = vadd.f32 %v1321, %v2867
    %v2869 = vpop.f32.mrf.mxu0
    %v2870 = vadd.f32 %v1321, %v2869
    %2871 = vdwg.mxu0
    %2872 = vmatpush.bf16.msra.mxu0 %v2823
    %2873 = vmatpush.bf16.msra.mxu0 %v2819
    %2874 = vmatpush.bf16.msra.mxu0 %v2815
    %2875 = vmatpush.bf16.msra.mxu0 %v2811
    %2876 = vmatpush.bf16.msra.mxu0 %v2807
    %2877 = vmatpush.bf16.msra.mxu0 %v2803
    %2878 = vmatpush.bf16.msra.mxu0 %v2799
    %2879 = vmatpush.bf16.msra.mxu0 %v2795
    %2880 = vmatmul.bf16.gmra.mxu0 %v2665
    %v2881 = vpop.f32.mrf.mxu0
    %v2882 = vadd.f32 %v1322, %v2881
    %v2883 = vpop.f32.mrf.mxu0
    %v2884 = vadd.f32 %v1322, %v2883
    %2885 = vdwg.mxu0
    %2886 = vmatpush.bf16.msra.mxu0 %v2824
    %2887 = vmatpush.bf16.msra.mxu0 %v2820
    %2888 = vmatpush.bf16.msra.mxu0 %v2816
    %2889 = vmatpush.bf16.msra.mxu0 %v2812
    %2890 = vmatpush.bf16.msra.mxu0 %v2808
    %2891 = vmatpush.bf16.msra.mxu0 %v2804
    %2892 = vmatpush.bf16.msra.mxu0 %v2800
    %2893 = vmatpush.bf16.msra.mxu0 %v2796
    %2894 = vmatmul.bf16.gmra.mxu0 %v2665
    %v2895 = vpop.f32.mrf.mxu0
    %v2896 = vadd.f32 %v1323, %v2895
    %v2897 = vpop.f32.mrf.mxu0
    %v2898 = vadd.f32 %v1323, %v2897
    %2899 = vdwg.mxu0
    %2900 = vmatpush.bf16.msra.mxu0 %v2825
    %2901 = vmatpush.bf16.msra.mxu0 %v2821
    %2902 = vmatpush.bf16.msra.mxu0 %v2817
    %2903 = vmatpush.bf16.msra.mxu0 %v2813
    %2904 = vmatpush.bf16.msra.mxu0 %v2809
    %2905 = vmatpush.bf16.msra.mxu0 %v2805
    %2906 = vmatpush.bf16.msra.mxu0 %v2801
    %2907 = vmatpush.bf16.msra.mxu0 %v2797
    %2908 = vmatmul.bf16.gmra.mxu0 %v2665
    %v2909 = vpop.f32.mrf.mxu0
    %v2910 = vadd.f32 %v1324, %v2909
    %v2911 = vpop.f32.mrf.mxu0
    %v2912 = vadd.f32 %v1324, %v2911
    %2913 = vdwg.mxu0
    %v2914 = vmul.f32 %v2868, 0.5
    %v2915 = vmul.f32 %v2882, 0.5
    %v2916 = vmul.f32 %v2896, 0.5
    %v2917 = vmul.f32 %v2910, 0.5
    %v2918 = vmul.f32 %v2870, 0.5
    %v2919 = vmul.f32 %v2884, 0.5
    %v2920 = vmul.f32 %v2898, 0.5
    %v2921 = vmul.f32 %v2912, 0.5
    %v2922 = vmul.f32 %v2868, 0.70710677
    %v2923 = vmul.f32 %v2882, 0.70710677
    %v2924 = vmul.f32 %v2896, 0.70710677
    %v2925 = vmul.f32 %v2910, 0.70710677
    %v2926 = vmul.f32 %v2870, 0.70710677
    %v2927 = vmul.f32 %v2884, 0.70710677
    %v2928 = vmul.f32 %v2898, 0.70710677
    %v2929 = vmul.f32 %v2912, 0.70710677
    %vm2930 = vcmp.ge.f32.partialorder %v2922, 0.0
    %vm2931 = vcmp.ge.f32.partialorder %v2923, 0.0
    %vm2932 = vcmp.ge.f32.partialorder %v2924, 0.0
    %vm2933 = vcmp.ge.f32.partialorder %v2925, 0.0
    %vm2934 = vcmp.ge.f32.partialorder %v2926, 0.0
    %vm2935 = vcmp.ge.f32.partialorder %v2927, 0.0
    %vm2936 = vcmp.ge.f32.partialorder %v2928, 0.0
    %vm2937 = vcmp.ge.f32.partialorder %v2929, 0.0
    %v2938 = vsel %vm2930, 1.0, -1.0
    %v2939 = vsel %vm2931, 1.0, -1.0
    %v2940 = vsel %vm2932, 1.0, -1.0
    %v2941 = vsel %vm2933, 1.0, -1.0
    %v2942 = vsel %vm2934, 1.0, -1.0
    %v2943 = vsel %vm2935, 1.0, -1.0
    %v2944 = vsel %vm2936, 1.0, -1.0
    %v2945 = vsel %vm2937, 1.0, -1.0
    %v2946 = vand.u32 2147483647, %v2922
    %v2947 = vand.u32 2147483647, %v2923
    %v2948 = vand.u32 2147483647, %v2924
    %v2949 = vand.u32 2147483647, %v2925
    %v2950 = vand.u32 2147483647, %v2926
    %v2951 = vand.u32 2147483647, %v2927
    %v2952 = vand.u32 2147483647, %v2928
    %v2953 = vand.u32 2147483647, %v2929
    %v2954 = vmul.f32 %v2946, 0.3275911
    %v2955 = vmul.f32 %v2947, 0.3275911
    %v2956 = vmul.f32 %v2948, 0.3275911
    %v2957 = vmul.f32 %v2949, 0.3275911
    %v2958 = vmul.f32 %v2950, 0.3275911
    %v2959 = vmul.f32 %v2951, 0.3275911
    %v2960 = vmul.f32 %v2952, 0.3275911
    %v2961 = vmul.f32 %v2953, 0.3275911
    %v2962 = vadd.f32 %v2954, 1.0
    %v2963 = vadd.f32 %v2955, 1.0
    %v2964 = vadd.f32 %v2956, 1.0
    %v2965 = vadd.f32 %v2957, 1.0
    %v2966 = vadd.f32 %v2958, 1.0
    %v2967 = vadd.f32 %v2959, 1.0
    %v2968 = vadd.f32 %v2960, 1.0
    %v2969 = vadd.f32 %v2961, 1.0
    %v2970 = vrcp.pop %v2962
    %v2971 = vmul.f32 %v2962, %v2970
    %v2972 = vsub.f32 1.0, %v2971
    %v2973 = vmul.f32 %v2970, %v2972
    %v2974 = vadd.f32 %v2970, %v2973
    %vm2975 = vweird.f32 %v2962
    %vm2976 = vweird.f32 %v2970
    %vm2977 = vmor %vm2975, %vm2976
    %v2978 = vsel %vm2977, %v2970, %v2974
    %v2979 = vand.u32 2147483647, %v2962
    %vm2980 = vcmp.eq.f32.partialorder %v2979, 8.507059e+37
    %v2981 = vand.u32 %v2962, 2147483648
    %v2982 = vor.u32 1.1754944e-38, %v2981
    %v2983 = vsel %vm2980, %v2982, %v2978
    %v2984 = vmul.f32 1.0, %v2983
    %v2985 = vrcp.pop %v2963
    %v2986 = vmul.f32 %v2963, %v2985
    %v2987 = vsub.f32 1.0, %v2986
    %v2988 = vmul.f32 %v2985, %v2987
    %v2989 = vadd.f32 %v2985, %v2988
    %vm2990 = vweird.f32 %v2963
    %vm2991 = vweird.f32 %v2985
    %vm2992 = vmor %vm2990, %vm2991
    %v2993 = vsel %vm2992, %v2985, %v2989
    %v2994 = vand.u32 2147483647, %v2963
    %vm2995 = vcmp.eq.f32.partialorder %v2994, 8.507059e+37
    %v2996 = vand.u32 %v2963, 2147483648
    %v2997 = vor.u32 1.1754944e-38, %v2996
    %v2998 = vsel %vm2995, %v2997, %v2993
    %v2999 = vmul.f32 1.0, %v2998
    %v3000 = vrcp.pop %v2964
    %v3001 = vmul.f32 %v2964, %v3000
    %v3002 = vsub.f32 1.0, %v3001
    %v3003 = vmul.f32 %v3000, %v3002
    %v3004 = vadd.f32 %v3000, %v3003
    %vm3005 = vweird.f32 %v2964
    %vm3006 = vweird.f32 %v3000
    %vm3007 = vmor %vm3005, %vm3006
    %v3008 = vsel %vm3007, %v3000, %v3004
    %v3009 = vand.u32 2147483647, %v2964
    %vm3010 = vcmp.eq.f32.partialorder %v3009, 8.507059e+37
    %v3011 = vand.u32 %v2964, 2147483648
    %v3012 = vor.u32 1.1754944e-38, %v3011
    %v3013 = vsel %vm3010, %v3012, %v3008
    %v3014 = vmul.f32 1.0, %v3013
    %v3015 = vrcp.pop %v2965
    %v3016 = vmul.f32 %v2965, %v3015
    %v3017 = vsub.f32 1.0, %v3016
    %v3018 = vmul.f32 %v3015, %v3017
    %v3019 = vadd.f32 %v3015, %v3018
    %vm3020 = vweird.f32 %v2965
    %vm3021 = vweird.f32 %v3015
    %vm3022 = vmor %vm3020, %vm3021
    %v3023 = vsel %vm3022, %v3015, %v3019
    %v3024 = vand.u32 2147483647, %v2965
    %vm3025 = vcmp.eq.f32.partialorder %v3024, 8.507059e+37
    %v3026 = vand.u32 %v2965, 2147483648
    %v3027 = vor.u32 1.1754944e-38, %v3026
    %v3028 = vsel %vm3025, %v3027, %v3023
    %v3029 = vmul.f32 1.0, %v3028
    %v3030 = vrcp.pop %v2966
    %v3031 = vmul.f32 %v2966, %v3030
    %v3032 = vsub.f32 1.0, %v3031
    %v3033 = vmul.f32 %v3030, %v3032
    %v3034 = vadd.f32 %v3030, %v3033
    %vm3035 = vweird.f32 %v2966
    %vm3036 = vweird.f32 %v3030
    %vm3037 = vmor %vm3035, %vm3036
    %v3038 = vsel %vm3037, %v3030, %v3034
    %v3039 = vand.u32 2147483647, %v2966
    %vm3040 = vcmp.eq.f32.partialorder %v3039, 8.507059e+37
    %v3041 = vand.u32 %v2966, 2147483648
    %v3042 = vor.u32 1.1754944e-38, %v3041
    %v3043 = vsel %vm3040, %v3042, %v3038
    %v3044 = vmul.f32 1.0, %v3043
    %v3045 = vrcp.pop %v2967
    %v3046 = vmul.f32 %v2967, %v3045
    %v3047 = vsub.f32 1.0, %v3046
    %v3048 = vmul.f32 %v3045, %v3047
    %v3049 = vadd.f32 %v3045, %v3048
    %vm3050 = vweird.f32 %v2967
    %vm3051 = vweird.f32 %v3045
    %vm3052 = vmor %vm3050, %vm3051
    %v3053 = vsel %vm3052, %v3045, %v3049
    %v3054 = vand.u32 2147483647, %v2967
    %vm3055 = vcmp.eq.f32.partialorder %v3054, 8.507059e+37
    %v3056 = vand.u32 %v2967, 2147483648
    %v3057 = vor.u32 1.1754944e-38, %v3056
    %v3058 = vsel %vm3055, %v3057, %v3053
    %v3059 = vmul.f32 1.0, %v3058
    %v3060 = vrcp.pop %v2968
    %v3061 = vmul.f32 %v2968, %v3060
    %v3062 = vsub.f32 1.0, %v3061
    %v3063 = vmul.f32 %v3060, %v3062
    %v3064 = vadd.f32 %v3060, %v3063
    %vm3065 = vweird.f32 %v2968
    %vm3066 = vweird.f32 %v3060
    %vm3067 = vmor %vm3065, %vm3066
    %v3068 = vsel %vm3067, %v3060, %v3064
    %v3069 = vand.u32 2147483647, %v2968
    %vm3070 = vcmp.eq.f32.partialorder %v3069, 8.507059e+37
    %v3071 = vand.u32 %v2968, 2147483648
    %v3072 = vor.u32 1.1754944e-38, %v3071
    %v3073 = vsel %vm3070, %v3072, %v3068
    %v3074 = vmul.f32 1.0, %v3073
    %v3075 = vrcp.pop %v2969
    %v3076 = vmul.f32 %v2969, %v3075
    %v3077 = vsub.f32 1.0, %v3076
    %v3078 = vmul.f32 %v3075, %v3077
    %v3079 = vadd.f32 %v3075, %v3078
    %vm3080 = vweird.f32 %v2969
    %vm3081 = vweird.f32 %v3075
    %vm3082 = vmor %vm3080, %vm3081
    %v3083 = vsel %vm3082, %v3075, %v3079
    %v3084 = vand.u32 2147483647, %v2969
    %vm3085 = vcmp.eq.f32.partialorder %v3084, 8.507059e+37
    %v3086 = vand.u32 %v2969, 2147483648
    %v3087 = vor.u32 1.1754944e-38, %v3086
    %v3088 = vsel %vm3085, %v3087, %v3083
    %v3089 = vmul.f32 1.0, %v3088
    %v3090 = vmul.f32 %v2984, 1.0614054
    %v3091 = vmul.f32 %v2999, 1.0614054
    %v3092 = vmul.f32 %v3014, 1.0614054
    %v3093 = vmul.f32 %v3029, 1.0614054
    %v3094 = vmul.f32 %v3044, 1.0614054
    %v3095 = vmul.f32 %v3059, 1.0614054
    %v3096 = vmul.f32 %v3074, 1.0614054
    %v3097 = vmul.f32 %v3089, 1.0614054
    %v3098 = vadd.f32 %v3090, -1.4531521
    %v3099 = vadd.f32 %v3091, -1.4531521
    %v3100 = vadd.f32 %v3092, -1.4531521
    %v3101 = vadd.f32 %v3093, -1.4531521
    %v3102 = vadd.f32 %v3094, -1.4531521
    %v3103 = vadd.f32 %v3095, -1.4531521
    %v3104 = vadd.f32 %v3096, -1.4531521
    %v3105 = vadd.f32 %v3097, -1.4531521
    %v3106 = vmul.f32 %v3098, %v2984
    %v3107 = vmul.f32 %v3099, %v2999
    %v3108 = vmul.f32 %v3100, %v3014
    %v3109 = vmul.f32 %v3101, %v3029
    %v3110 = vmul.f32 %v3102, %v3044
    %v3111 = vmul.f32 %v3103, %v3059
    %v3112 = vmul.f32 %v3104, %v3074
    %v3113 = vmul.f32 %v3105, %v3089
    %v3114 = vadd.f32 %v3106, 1.4214138
    %v3115 = vadd.f32 %v3107, 1.4214138
    %v3116 = vadd.f32 %v3108, 1.4214138
    %v3117 = vadd.f32 %v3109, 1.4214138
    %v3118 = vadd.f32 %v3110, 1.4214138
    %v3119 = vadd.f32 %v3111, 1.4214138
    %v3120 = vadd.f32 %v3112, 1.4214138
    %v3121 = vadd.f32 %v3113, 1.4214138
    %v3122 = vmul.f32 %v3114, %v2984
    %v3123 = vmul.f32 %v3115, %v2999
    %v3124 = vmul.f32 %v3116, %v3014
    %v3125 = vmul.f32 %v3117, %v3029
    %v3126 = vmul.f32 %v3118, %v3044
    %v3127 = vmul.f32 %v3119, %v3059
    %v3128 = vmul.f32 %v3120, %v3074
    %v3129 = vmul.f32 %v3121, %v3089
    %v3130 = vadd.f32 %v3122, -0.28449672
    %v3131 = vadd.f32 %v3123, -0.28449672
    %v3132 = vadd.f32 %v3124, -0.28449672
    %v3133 = vadd.f32 %v3125, -0.28449672
    %v3134 = vadd.f32 %v3126, -0.28449672
    %v3135 = vadd.f32 %v3127, -0.28449672
    %v3136 = vadd.f32 %v3128, -0.28449672
    %v3137 = vadd.f32 %v3129, -0.28449672
    %v3138 = vmul.f32 %v3130, %v2984
    %v3139 = vmul.f32 %v3131, %v2999
    %v3140 = vmul.f32 %v3132, %v3014
    %v3141 = vmul.f32 %v3133, %v3029
    %v3142 = vmul.f32 %v3134, %v3044
    %v3143 = vmul.f32 %v3135, %v3059
    %v3144 = vmul.f32 %v3136, %v3074
    %v3145 = vmul.f32 %v3137, %v3089
    %v3146 = vadd.f32 %v3138, 0.2548296
    %v3147 = vadd.f32 %v3139, 0.2548296
    %v3148 = vadd.f32 %v3140, 0.2548296
    %v3149 = vadd.f32 %v3141, 0.2548296
    %v3150 = vadd.f32 %v3142, 0.2548296
    %v3151 = vadd.f32 %v3143, 0.2548296
    %v3152 = vadd.f32 %v3144, 0.2548296
    %v3153 = vadd.f32 %v3145, 0.2548296
    %v3154 = vmul.f32 %v3146, %v2984
    %v3155 = vmul.f32 %v3147, %v2999
    %v3156 = vmul.f32 %v3148, %v3014
    %v3157 = vmul.f32 %v3149, %v3029
    %v3158 = vmul.f32 %v3150, %v3044
    %v3159 = vmul.f32 %v3151, %v3059
    %v3160 = vmul.f32 %v3152, %v3074
    %v3161 = vmul.f32 %v3153, %v3089
    %v3162 = vsub.f32 0.0, %v2946
    %v3163 = vsub.f32 0.0, %v2947
    %v3164 = vsub.f32 0.0, %v2948
    %v3165 = vsub.f32 0.0, %v2949
    %v3166 = vsub.f32 0.0, %v2950
    %v3167 = vsub.f32 0.0, %v2951
    %v3168 = vsub.f32 0.0, %v2952
    %v3169 = vsub.f32 0.0, %v2953
    %v3170 = vmul.f32 %v3162, %v2946
    %v3171 = vmul.f32 %v3163, %v2947
    %v3172 = vmul.f32 %v3164, %v2948
    %v3173 = vmul.f32 %v3165, %v2949
    %v3174 = vmul.f32 %v3166, %v2950
    %v3175 = vmul.f32 %v3167, %v2951
    %v3176 = vmul.f32 %v3168, %v2952
    %v3177 = vmul.f32 %v3169, %v2953
    %v3178 = vmul.f32 %v3170, 1.442695
    %v3179 = vpow.pop %v3178
    %v3180 = vmul.f32 %v3171, 1.442695
    %v3181 = vpow.pop %v3180
    %v3182 = vmul.f32 %v3172, 1.442695
    %v3183 = vpow.pop %v3182
    %v3184 = vmul.f32 %v3173, 1.442695
    %v3185 = vpow.pop %v3184
    %v3186 = vmul.f32 %v3174, 1.442695
    %v3187 = vpow.pop %v3186
    %v3188 = vmul.f32 %v3175, 1.442695
    %v3189 = vpow.pop %v3188
    %v3190 = vmul.f32 %v3176, 1.442695
    %v3191 = vpow.pop %v3190
    %v3192 = vmul.f32 %v3177, 1.442695
    %v3193 = vpow.pop %v3192
    %v3194 = vmul.f32 %v3154, %v3179
    %v3195 = vmul.f32 %v3155, %v3181
    %v3196 = vmul.f32 %v3156, %v3183
    %v3197 = vmul.f32 %v3157, %v3185
    %v3198 = vmul.f32 %v3158, %v3187
    %v3199 = vmul.f32 %v3159, %v3189
    %v3200 = vmul.f32 %v3160, %v3191
    %v3201 = vmul.f32 %v3161, %v3193
    %v3202 = vsub.f32 1.0, %v3194
    %v3203 = vsub.f32 1.0, %v3195
    %v3204 = vsub.f32 1.0, %v3196
    %v3205 = vsub.f32 1.0, %v3197
    %v3206 = vsub.f32 1.0, %v3198
    %v3207 = vsub.f32 1.0, %v3199
    %v3208 = vsub.f32 1.0, %v3200
    %v3209 = vsub.f32 1.0, %v3201
    %v3210 = vmul.f32 %v2938, %v3202
    %v3211 = vmul.f32 %v2939, %v3203
    %v3212 = vmul.f32 %v2940, %v3204
    %v3213 = vmul.f32 %v2941, %v3205
    %v3214 = vmul.f32 %v2942, %v3206
    %v3215 = vmul.f32 %v2943, %v3207
    %v3216 = vmul.f32 %v2944, %v3208
    %v3217 = vmul.f32 %v2945, %v3209
    %v3218 = vadd.f32 %v3210, 1.0
    %v3219 = vadd.f32 %v3211, 1.0
    %v3220 = vadd.f32 %v3212, 1.0
    %v3221 = vadd.f32 %v3213, 1.0
    %v3222 = vadd.f32 %v3214, 1.0
    %v3223 = vadd.f32 %v3215, 1.0
    %v3224 = vadd.f32 %v3216, 1.0
    %v3225 = vadd.f32 %v3217, 1.0
    %v3226 = vmul.f32 %v2914, %v3218
    %v3227 = vmul.f32 %v2915, %v3219
    %v3228 = vmul.f32 %v2916, %v3220
    %v3229 = vmul.f32 %v2917, %v3221
    %v3230 = vmul.f32 %v2918, %v3222
    %v3231 = vmul.f32 %v2919, %v3223
    %v3232 = vmul.f32 %v2920, %v3224
    %v3233 = vmul.f32 %v2921, %v3225
    %v3234 = vpack.c.bf16 %v3230, %v3226
    %v3235 = vpack.c.bf16 %v3231, %v3227
    %v3236 = vpack.c.bf16 %v3232, %v3228
    %v3237 = vpack.c.bf16 %v3233, %v3229
    %v3238 = vld [vmem:[#allocation19] sm:$0xf]
    %v3239 = vld [vmem:[#allocation19 + $0x4] sm:$0xf]
    %v3240 = vld [vmem:[#allocation19 + $0x8] sm:$0xf]
    %v3241 = vld [vmem:[#allocation19 + $0xc] sm:$0xf]
    %v3242 = vld [vmem:[#allocation19 + $0x10] sm:$0xf]
    %v3243 = vld [vmem:[#allocation19 + $0x14] sm:$0xf]
    %v3244 = vld [vmem:[#allocation19 + $0x18] sm:$0xf]
    %v3245 = vld [vmem:[#allocation19 + $0x1c] sm:$0xf]
    %v3246 = vld [vmem:[#allocation19 + $0x20] sm:$0xf]
    %v3247 = vld [vmem:[#allocation19 + $0x24] sm:$0xf]
    %v3248 = vld [vmem:[#allocation19 + $0x28] sm:$0xf]
    %v3249 = vld [vmem:[#allocation19 + $0x2c] sm:$0xf]
    %v3250 = vld [vmem:[#allocation19 + $0x30] sm:$0xf]
    %v3251 = vld [vmem:[#allocation19 + $0x34] sm:$0xf]
    %v3252 = vld [vmem:[#allocation19 + $0x38] sm:$0xf]
    %v3253 = vld [vmem:[#allocation19 + $0x3c] sm:$0xf]
    %v3254 = vld [vmem:[#allocation19 + $0x40] sm:$0xf]
    %v3255 = vld [vmem:[#allocation19 + $0x44] sm:$0xf]
    %v3256 = vld [vmem:[#allocation19 + $0x48] sm:$0xf]
    %v3257 = vld [vmem:[#allocation19 + $0x4c] sm:$0xf]
    %v3258 = vld [vmem:[#allocation19 + $0x50] sm:$0xf]
    %v3259 = vld [vmem:[#allocation19 + $0x54] sm:$0xf]
    %v3260 = vld [vmem:[#allocation19 + $0x58] sm:$0xf]
    %v3261 = vld [vmem:[#allocation19 + $0x5c] sm:$0xf]
    %v3262 = vld [vmem:[#allocation19 + $0x60] sm:$0xf]
    %v3263 = vld [vmem:[#allocation19 + $0x64] sm:$0xf]
    %v3264 = vld [vmem:[#allocation19 + $0x68] sm:$0xf]
    %v3265 = vld [vmem:[#allocation19 + $0x6c] sm:$0xf]
    %v3266 = vld [vmem:[#allocation19 + $0x70] sm:$0xf]
    %v3267 = vld [vmem:[#allocation19 + $0x74] sm:$0xf]
    %v3268 = vld [vmem:[#allocation19 + $0x78] sm:$0xf]
    %v3269 = vld [vmem:[#allocation19 + $0x7c] sm:$0xf]
    %v3270 = vld [vmem:[#allocation19 + $0x80] sm:$0xf]
    %v3271 = vld [vmem:[#allocation19 + $0x84] sm:$0xf]
    %v3272 = vld [vmem:[#allocation19 + $0x88] sm:$0xf]
    %v3273 = vld [vmem:[#allocation19 + $0x8c] sm:$0xf]
    %v3274 = vld [vmem:[#allocation19 + $0x90] sm:$0xf]
    %v3275 = vld [vmem:[#allocation19 + $0x94] sm:$0xf]
    %v3276 = vld [vmem:[#allocation19 + $0x98] sm:$0xf]
    %v3277 = vld [vmem:[#allocation19 + $0x9c] sm:$0xf]
    %v3278 = vld [vmem:[#allocation19 + $0xa0] sm:$0xf]
    %v3279 = vld [vmem:[#allocation19 + $0xa4] sm:$0xf]
    %v3280 = vld [vmem:[#allocation19 + $0xa8] sm:$0xf]
    %v3281 = vld [vmem:[#allocation19 + $0xac] sm:$0xf]
    %v3282 = vld [vmem:[#allocation19 + $0xb0] sm:$0xf]
    %v3283 = vld [vmem:[#allocation19 + $0xb4] sm:$0xf]
    %v3284 = vld [vmem:[#allocation19 + $0xb8] sm:$0xf]
    %v3285 = vld [vmem:[#allocation19 + $0xbc] sm:$0xf]
    %v3286 = vld [vmem:[#allocation19 + $0xc0] sm:$0xf]
    %v3287 = vld [vmem:[#allocation19 + $0xc4] sm:$0xf]
    %v3288 = vld [vmem:[#allocation19 + $0xc8] sm:$0xf]
    %v3289 = vld [vmem:[#allocation19 + $0xcc] sm:$0xf]
    %v3290 = vld [vmem:[#allocation19 + $0xd0] sm:$0xf]
    %v3291 = vld [vmem:[#allocation19 + $0xd4] sm:$0xf]
    %v3292 = vld [vmem:[#allocation19 + $0xd8] sm:$0xf]
    %v3293 = vld [vmem:[#allocation19 + $0xdc] sm:$0xf]
    %v3294 = vld [vmem:[#allocation19 + $0xe0] sm:$0xf]
    %v3295 = vld [vmem:[#allocation19 + $0xe4] sm:$0xf]
    %v3296 = vld [vmem:[#allocation19 + $0xe8] sm:$0xf]
    %v3297 = vld [vmem:[#allocation19 + $0xec] sm:$0xf]
    %v3298 = vld [vmem:[#allocation19 + $0xf0] sm:$0xf]
    %v3299 = vld [vmem:[#allocation19 + $0xf4] sm:$0xf]
    %v3300 = vld [vmem:[#allocation19 + $0xf8] sm:$0xf]
    %v3301 = vld [vmem:[#allocation19 + $0xfc] sm:$0xf]
    %v3366 = vunpack.c.l.b16 %v3238
    %v3367 = vunpack.c.l.b16 %v3239
    %v3368 = vunpack.c.l.b16 %v3240
    %v3369 = vunpack.c.l.b16 %v3241
    %v3370 = vunpack.c.l.b16 %v3242
    %v3371 = vunpack.c.l.b16 %v3243
    %v3372 = vunpack.c.l.b16 %v3244
    %v3373 = vunpack.c.l.b16 %v3245
    %v3374 = vunpack.c.l.b16 %v3246
    %v3375 = vunpack.c.l.b16 %v3247
    %v3376 = vunpack.c.l.b16 %v3248
    %v3377 = vunpack.c.l.b16 %v3249
    %v3378 = vunpack.c.l.b16 %v3250
    %v3379 = vunpack.c.l.b16 %v3251
    %v3380 = vunpack.c.l.b16 %v3252
    %v3381 = vunpack.c.l.b16 %v3253
    %v3382 = vunpack.c.l.b16 %v3254
    %v3383 = vunpack.c.l.b16 %v3255
    %v3384 = vunpack.c.l.b16 %v3256
    %v3385 = vunpack.c.l.b16 %v3257
    %v3386 = vunpack.c.l.b16 %v3258
    %v3387 = vunpack.c.l.b16 %v3259
    %v3388 = vunpack.c.l.b16 %v3260
    %v3389 = vunpack.c.l.b16 %v3261
    %v3390 = vunpack.c.l.b16 %v3262
    %v3391 = vunpack.c.l.b16 %v3263
    %v3392 = vunpack.c.l.b16 %v3264
    %v3393 = vunpack.c.l.b16 %v3265
    %v3394 = vunpack.c.l.b16 %v3266
    %v3395 = vunpack.c.l.b16 %v3267
    %v3396 = vunpack.c.l.b16 %v3268
    %v3397 = vunpack.c.l.b16 %v3269
    %v3398 = vunpack.c.l.b16 %v3270
    %v3399 = vunpack.c.l.b16 %v3271
    %v3400 = vunpack.c.l.b16 %v3272
    %v3401 = vunpack.c.l.b16 %v3273
    %v3402 = vunpack.c.l.b16 %v3274
    %v3403 = vunpack.c.l.b16 %v3275
    %v3404 = vunpack.c.l.b16 %v3276
    %v3405 = vunpack.c.l.b16 %v3277
    %v3406 = vunpack.c.l.b16 %v3278
    %v3407 = vunpack.c.l.b16 %v3279
    %v3408 = vunpack.c.l.b16 %v3280
    %v3409 = vunpack.c.l.b16 %v3281
    %v3410 = vunpack.c.l.b16 %v3282
    %v3411 = vunpack.c.l.b16 %v3283
    %v3412 = vunpack.c.l.b16 %v3284
    %v3413 = vunpack.c.l.b16 %v3285
    %v3414 = vunpack.c.l.b16 %v3286
    %v3415 = vunpack.c.l.b16 %v3287
    %v3416 = vunpack.c.l.b16 %v3288
    %v3417 = vunpack.c.l.b16 %v3289
    %v3418 = vunpack.c.l.b16 %v3290
    %v3419 = vunpack.c.l.b16 %v3291
    %v3420 = vunpack.c.l.b16 %v3292
    %v3421 = vunpack.c.l.b16 %v3293
    %v3422 = vunpack.c.l.b16 %v3294
    %v3423 = vunpack.c.l.b16 %v3295
    %v3424 = vunpack.c.l.b16 %v3296
    %v3425 = vunpack.c.l.b16 %v3297
    %v3426 = vunpack.c.l.b16 %v3298
    %v3427 = vunpack.c.l.b16 %v3299
    %v3428 = vunpack.c.l.b16 %v3300
    %v3429 = vunpack.c.l.b16 %v3301
    %v3430 = vpack.c.b16 %v3367, %v3366
    %v3431 = vpack.c.b16 %v3369, %v3368
    %v3432 = vpack.c.b16 %v3371, %v3370
    %v3433 = vpack.c.b16 %v3373, %v3372
    %v3434 = vpack.c.b16 %v3375, %v3374
    %v3435 = vpack.c.b16 %v3377, %v3376
    %v3436 = vpack.c.b16 %v3379, %v3378
    %v3437 = vpack.c.b16 %v3381, %v3380
    %v3438 = vpack.c.b16 %v3383, %v3382
    %v3439 = vpack.c.b16 %v3385, %v3384
    %v3440 = vpack.c.b16 %v3387, %v3386
    %v3441 = vpack.c.b16 %v3389, %v3388
    %v3442 = vpack.c.b16 %v3391, %v3390
    %v3443 = vpack.c.b16 %v3393, %v3392
    %v3444 = vpack.c.b16 %v3395, %v3394
    %v3445 = vpack.c.b16 %v3397, %v3396
    %v3446 = vpack.c.b16 %v3399, %v3398
    %v3447 = vpack.c.b16 %v3401, %v3400
    %v3448 = vpack.c.b16 %v3403, %v3402
    %v3449 = vpack.c.b16 %v3405, %v3404
    %v3450 = vpack.c.b16 %v3407, %v3406
    %v3451 = vpack.c.b16 %v3409, %v3408
    %v3452 = vpack.c.b16 %v3411, %v3410
    %v3453 = vpack.c.b16 %v3413, %v3412
    %v3454 = vpack.c.b16 %v3415, %v3414
    %v3455 = vpack.c.b16 %v3417, %v3416
    %v3456 = vpack.c.b16 %v3419, %v3418
    %v3457 = vpack.c.b16 %v3421, %v3420
    %v3458 = vpack.c.b16 %v3423, %v3422
    %v3459 = vpack.c.b16 %v3425, %v3424
    %v3460 = vpack.c.b16 %v3427, %v3426
    %v3461 = vpack.c.b16 %v3429, %v3428
    %3494 = vmatpush.bf16.msra.mxu0 %v3437
    %3495 = vmatpush.bf16.msra.mxu0 %v3436
    %3496 = vmatpush.bf16.msra.mxu0 %v3435
    %3497 = vmatpush.bf16.msra.mxu0 %v3434
    %3498 = vmatpush.bf16.msra.mxu0 %v3433
    %3499 = vmatpush.bf16.msra.mxu0 %v3432
    %3500 = vmatpush.bf16.msra.mxu0 %v3431
    %3501 = vmatpush.bf16.msra.mxu0 %v3430
    %3502 = vmatmul.bf16.gmra.mxu0 %v3234
    %v3503 = vpop.f32.mrf.mxu0
    %v3504 = vadd.f32 %v1929, %v3503
    %v3505 = vpop.f32.mrf.mxu0
    %v3506 = vadd.f32 %v1929, %v3505
    %3507 = vdwg.mxu0
    %3508 = vmatpush.bf16.msra.mxu0 %v3445
    %3509 = vmatpush.bf16.msra.mxu0 %v3444
    %3510 = vmatpush.bf16.msra.mxu0 %v3443
    %3511 = vmatpush.bf16.msra.mxu0 %v3442
    %3512 = vmatpush.bf16.msra.mxu0 %v3441
    %3513 = vmatpush.bf16.msra.mxu0 %v3440
    %3514 = vmatpush.bf16.msra.mxu0 %v3439
    %3515 = vmatpush.bf16.msra.mxu0 %v3438
    %3516 = vmatmul.bf16.gmra.mxu0 %v3235
    %v3517 = vpop.f32.mrf.mxu0
    %v3518 = vadd.f32 %v3504, %v3517
    %v3519 = vpop.f32.mrf.mxu0
    %v3520 = vadd.f32 %v3506, %v3519
    %3521 = vdwg.mxu0
    %3522 = vmatpush.bf16.msra.mxu0 %v3453
    %3523 = vmatpush.bf16.msra.mxu0 %v3452
    %3524 = vmatpush.bf16.msra.mxu0 %v3451
    %3525 = vmatpush.bf16.msra.mxu0 %v3450
    %3526 = vmatpush.bf16.msra.mxu0 %v3449
    %3527 = vmatpush.bf16.msra.mxu0 %v3448
    %3528 = vmatpush.bf16.msra.mxu0 %v3447
    %3529 = vmatpush.bf16.msra.mxu0 %v3446
    %3530 = vmatmul.bf16.gmra.mxu0 %v3236
    %v3531 = vpop.f32.mrf.mxu0
    %v3532 = vadd.f32 %v3518, %v3531
    %v3533 = vpop.f32.mrf.mxu0
    %v3534 = vadd.f32 %v3520, %v3533
    %3535 = vdwg.mxu0
    %3536 = vmatpush.bf16.msra.mxu0 %v3461
    %3537 = vmatpush.bf16.msra.mxu0 %v3460
    %3538 = vmatpush.bf16.msra.mxu0 %v3459
    %3539 = vmatpush.bf16.msra.mxu0 %v3458
    %3540 = vmatpush.bf16.msra.mxu0 %v3457
    %3541 = vmatpush.bf16.msra.mxu0 %v3456
    %3542 = vmatpush.bf16.msra.mxu0 %v3455
    %3543 = vmatpush.bf16.msra.mxu0 %v3454
    %3544 = vmatmul.bf16.gmra.mxu0 %v3237
    %v3545 = vpop.f32.mrf.mxu0
    %v3546 = vadd.f32 %v3532, %v3545
    %v3547 = vpop.f32.mrf.mxu0
    %v3548 = vadd.f32 %v3534, %v3547
    %3549 = vdwg.mxu0
    %v3550 = vadd.f32 %v2663, %v3546
    %v3551 = vadd.f32 %v2664, %v3548
    %3552 = vadd.xlane.f32.xlu0 %v3550
    %v3553 = vpop.xlane.xlu0 %3552
    %3554 = vadd.xlane.f32.xlu0 %v3551
    %v3555 = vpop.xlane.xlu0 %3554
    %v3556 = vmul.f32 %v3553, %v1245
    %v3557 = vmul.f32 %v3555, %v1245
    %v3558 = vsub.f32 %v3550, %v3556
    %v3559 = vsub.f32 %v3551, %v3557
    %v3560 = vmul.f32 %v3558, %v3558
    %v3561 = vmul.f32 %v3559, %v3559
    %3562 = vadd.xlane.f32.xlu0 %v3560
    %v3563 = vpop.xlane.xlu0 %3562
    %3564 = vadd.xlane.f32.xlu0 %v3561
    %v3565 = vpop.xlane.xlu0 %3564
    %v3566 = vmul.f32 %v3563, %v1245
    %v3567 = vmul.f32 %v3565, %v1245
    %v3568 = vadd.f32 %v3566, 1e-05
    %v3569 = vadd.f32 %v3567, 1e-05
    %v3570 = vrsqrt.pop %v3568
    %v3571 = vmul.f32 %v3570, %v3568
    %v3572 = vmul.f32 %v3571, %v3570
    %v3573 = vmul.f32 0.5, %v3572
    %v3574 = vsub.f32 1.5, %v3573
    %v3575 = vmul.f32 %v3570, %v3574
    %vm3576 = vweird.f32 %v3568
    %vm3577 = vweird.f32 %v3570
    %vm3578 = vmor %vm3576, %vm3577
    %v3579 = vsel %vm3578, %v3570, %v3575
    %v3580 = vrsqrt.pop %v3569
    %v3581 = vmul.f32 %v3580, %v3569
    %v3582 = vmul.f32 %v3581, %v3580
    %v3583 = vmul.f32 0.5, %v3582
    %v3584 = vsub.f32 1.5, %v3583
    %v3585 = vmul.f32 %v3580, %v3584
    %vm3586 = vweird.f32 %v3569
    %vm3587 = vweird.f32 %v3580
    %vm3588 = vmor %vm3586, %vm3587
    %v3589 = vsel %vm3588, %v3580, %v3585
    %v3590 = vmul.f32 %v3558, %v3579
    %v3591 = vmul.f32 %v3559, %v3589
    %v3592 = vperm.slane %v248, 0
    %v3593 = vmul.f32 %v3590, %v3592
    %v3594 = vmul.f32 %v3591, %v3592
    %v3595 = vperm.slane %v248, 1
    %v3596 = vadd.f32 %v3593, %v3595
    %v3597 = vadd.f32 %v3594, %v3595
    %s3598 = scalar_lea.vmem [#allocation23], 16
    %3599 = vst [vmem:[%s3598] sm:$0xff] %v3596
    %3600 = vst [vmem:[%s3598 + $0x8] sm:$0xff] %v3597
    %s3601 = scalar_lea.vmem [#allocation16], 128
    %v3602 = vld [vmem:[%s3601] sm:$0xf]
    %v3603 = vld [vmem:[%s3601 + $0x4] sm:$0xf]
    %v3604 = vld [vmem:[%s3601 + $0x8] sm:$0xf]
    %v3605 = vld [vmem:[%s3601 + $0xc] sm:$0xf]
    %v3606 = vld [vmem:[%s3601 + $0x10] sm:$0xf]
    %v3607 = vld [vmem:[%s3601 + $0x14] sm:$0xf]
    %v3608 = vld [vmem:[%s3601 + $0x18] sm:$0xf]
    %v3609 = vld [vmem:[%s3601 + $0x1c] sm:$0xf]
    %v3610 = vld [vmem:[%s3601 + $0x20] sm:$0xf]
    %v3611 = vld [vmem:[%s3601 + $0x24] sm:$0xf]
    %v3612 = vld [vmem:[%s3601 + $0x28] sm:$0xf]
    %v3613 = vld [vmem:[%s3601 + $0x2c] sm:$0xf]
    %v3614 = vld [vmem:[%s3601 + $0x30] sm:$0xf]
    %v3615 = vld [vmem:[%s3601 + $0x34] sm:$0xf]
    %v3616 = vld [vmem:[%s3601 + $0x38] sm:$0xf]
    %v3617 = vld [vmem:[%s3601 + $0x3c] sm:$0xf]
    %v3619 = vsel %vm840, %v819, 0
    %3621 = vmatpush.bf16.xpose.msra.mxu0 0
    %3622 = vmatpush.bf16.xpose.msra.mxu0 0
    %3623 = vmatpush.bf16.xpose.msra.mxu0 0
    %3624 = vmatpush.bf16.xpose.msra.mxu0 0
    %3625 = vmatpush.bf16.xpose.msra.mxu0 0
    %3626 = vmatpush.bf16.xpose.msra.mxu0 0
    %3627 = vmatpush.bf16.xpose.msra.mxu0 0
    %3628 = vmatpush.bf16.xpose.msra.mxu0 %v845
    %3629 = vmatmul.bf16.gmra.mxu0 %v3619
    %v3630 = vpop.f32.mrf.mxu0
    %v3631 = vadd.f32 %v254, %v3630
    %v3632 = vpop.f32.mrf.mxu0
    %v3633 = vadd.f32 %v255, %v3632
    %3634 = vdwg.mxu0
    %v3635 = vsel %vm861, %v3631, -inf
    %3636 = vmax.xlane.f32.xlu0 %v3635
    %v3637 = vpop.xlane.xlu0 %3636
    %v3638 = vsel %vm861, %v3633, -inf
    %3639 = vmax.xlane.f32.xlu0 %v3638
    %v3640 = vpop.xlane.xlu0 %3639
    %v3641 = vsub.f32 %v3631, %v3637
    %v3642 = vsub.f32 %v3633, %v3640
    %v3643 = vmul.f32 %v3641, 1.442695
    %v3644 = vpow.pop %v3643
    %v3645 = vmul.f32 %v3642, 1.442695
    %v3646 = vpow.pop %v3645
    %v3647 = vsel %vm861, %v3644, 0.0
    %3648 = vadd.xlane.f32.xlu0 %v3647
    %v3649 = vpop.xlane.xlu0 %3648
    %v3650 = vsel %vm861, %v3646, 0.0
    %3651 = vadd.xlane.f32.xlu0 %v3650
    %v3652 = vpop.xlane.xlu0 %3651
    %v3653 = vrcp.pop %v3649
    %v3654 = vrcp.pop %v3652
    %v3655 = vmul.f32 %v3644, %v3653
    %v3656 = vmul.f32 %v3646, %v3654
    %v3657 = vpack.c.bf16 %v3656, %v3655
    %v3659 = vsel %vm861, %v3657, 0
    %3661 = vmatpush.bf16.msra.mxu0 0
    %3662 = vmatpush.bf16.msra.mxu0 0
    %3663 = vmatpush.bf16.msra.mxu0 0
    %3664 = vmatpush.bf16.msra.mxu0 0
    %3665 = vmatpush.bf16.msra.mxu0 0
    %3666 = vmatpush.bf16.msra.mxu0 0
    %3667 = vmatpush.bf16.msra.mxu0 0
    %3668 = vmatpush.bf16.msra.mxu0 %v822
    %3669 = vmatmul.bf16.gmra.mxu0 %v3659
    %v3670 = vpop.f32.mrf.mxu0
    %v3671 = vadd.f32 0.0, %v3670
    %v3672 = vpop.f32.mrf.mxu0
    %v3673 = vadd.f32 0.0, %v3672
    %3674 = vdwg.mxu0
    %v3675 = vpack.c.bf16 %v3673, %v3671
    %3677 = vrot.lane.b32.xlu0 %v819, 96
    %v3678 = vpop.permute.xlu0 %3677
    %v3680 = vsel %vm840, %v3678, 0
    %3682 = vmatpush.bf16.xpose.msra.mxu0 0
    %3683 = vmatpush.bf16.xpose.msra.mxu0 0
    %3684 = vmatpush.bf16.xpose.msra.mxu0 0
    %3685 = vmatpush.bf16.xpose.msra.mxu0 0
    %3686 = vmatpush.bf16.xpose.msra.mxu0 0
    %3687 = vmatpush.bf16.xpose.msra.mxu0 0
    %3688 = vmatpush.bf16.xpose.msra.mxu0 0
    %3689 = vmatpush.bf16.xpose.msra.mxu0 %v913
    %3690 = vmatmul.bf16.gmra.mxu0 %v3680
    %v3691 = vpop.f32.mrf.mxu0
    %v3692 = vadd.f32 %v254, %v3691
    %v3693 = vpop.f32.mrf.mxu0
    %v3694 = vadd.f32 %v255, %v3693
    %3695 = vdwg.mxu0
    %v3696 = vsel %vm861, %v3692, -inf
    %3697 = vmax.xlane.f32.xlu0 %v3696
    %v3698 = vpop.xlane.xlu0 %3697
    %v3699 = vsel %vm861, %v3694, -inf
    %3700 = vmax.xlane.f32.xlu0 %v3699
    %v3701 = vpop.xlane.xlu0 %3700
    %v3702 = vsub.f32 %v3692, %v3698
    %v3703 = vsub.f32 %v3694, %v3701
    %v3704 = vmul.f32 %v3702, 1.442695
    %v3705 = vpow.pop %v3704
    %v3706 = vmul.f32 %v3703, 1.442695
    %v3707 = vpow.pop %v3706
    %v3708 = vsel %vm861, %v3705, 0.0
    %3709 = vadd.xlane.f32.xlu0 %v3708
    %v3710 = vpop.xlane.xlu0 %3709
    %v3711 = vsel %vm861, %v3707, 0.0
    %3712 = vadd.xlane.f32.xlu0 %v3711
    %v3713 = vpop.xlane.xlu0 %3712
    %v3714 = vrcp.pop %v3710
    %v3715 = vrcp.pop %v3713
    %v3716 = vmul.f32 %v3705, %v3714
    %v3717 = vmul.f32 %v3707, %v3715
    %v3718 = vpack.c.bf16 %v3717, %v3716
    %v3720 = vsel %vm861, %v3718, 0
    %3722 = vmatpush.bf16.msra.mxu0 0
    %3723 = vmatpush.bf16.msra.mxu0 0
    %3724 = vmatpush.bf16.msra.mxu0 0
    %3725 = vmatpush.bf16.msra.mxu0 0
    %3726 = vmatpush.bf16.msra.mxu0 0
    %3727 = vmatpush.bf16.msra.mxu0 0
    %3728 = vmatpush.bf16.msra.mxu0 0
    %3729 = vmatpush.bf16.msra.mxu0 %v954
    %3730 = vmatmul.bf16.gmra.mxu0 %v3720
    %v3731 = vpop.f32.mrf.mxu0
    %v3732 = vadd.f32 0.0, %v3731
    %v3733 = vpop.f32.mrf.mxu0
    %v3734 = vadd.f32 0.0, %v3733
    %3735 = vdwg.mxu0
    %v3736 = vpack.c.bf16 %v3734, %v3732
    %v3741 = vunpack.c.l.b16 %v3606
    %v3742 = vunpack.c.l.b16 %v3607
    %v3743 = vunpack.c.l.b16 %v3608
    %v3744 = vunpack.c.l.b16 %v3609
    %v3745 = vpack.c.b16 %v3742, %v3741
    %v3746 = vpack.c.b16 %v3744, %v3743
    %v3750 = vsel %vm840, %v3736, 0
    %3752 = vmatpush.bf16.msra.mxu0 0
    %3753 = vmatpush.bf16.msra.mxu0 0
    %3754 = vmatpush.bf16.msra.mxu0 0
    %3755 = vmatpush.bf16.msra.mxu0 0
    %3756 = vmatpush.bf16.msra.mxu0 0
    %3757 = vmatpush.bf16.msra.mxu0 0
    %3758 = vmatpush.bf16.msra.mxu0 %v3746
    %3759 = vmatpush.bf16.msra.mxu0 %v3745
    %3760 = vmatmul.bf16.gmra.mxu0 %v3750
    %v3761 = vpop.f32.mrf.mxu0
    %v3762 = vadd.f32 0.0, %v3761
    %v3763 = vpop.f32.mrf.mxu0
    %v3764 = vadd.f32 0.0, %v3763
    %3765 = vdwg.mxu0
    %v3770 = vunpack.c.l.b16 %v3602
    %v3771 = vunpack.c.l.b16 %v3603
    %v3772 = vunpack.c.l.b16 %v3604
    %v3773 = vunpack.c.l.b16 %v3605
    %v3774 = vpack.c.b16 %v3771, %v3770
    %v3775 = vpack.c.b16 %v3773, %v3772
    %v3779 = vsel %vm840, %v3675, 0
    %3781 = vmatpush.bf16.msra.mxu0 0
    %3782 = vmatpush.bf16.msra.mxu0 0
    %3783 = vmatpush.bf16.msra.mxu0 0
    %3784 = vmatpush.bf16.msra.mxu0 0
    %3785 = vmatpush.bf16.msra.mxu0 0
    %3786 = vmatpush.bf16.msra.mxu0 0
    %3787 = vmatpush.bf16.msra.mxu0 %v3775
    %3788 = vmatpush.bf16.msra.mxu0 %v3774
    %3789 = vmatmul.bf16.gmra.mxu0 %v3779
    %v3790 = vpop.f32.mrf.mxu0
    %v3791 = vadd.f32 %v3762, %v3790
    %v3792 = vpop.f32.mrf.mxu0
    %v3793 = vadd.f32 %v3764, %v3792
    %3794 = vdwg.mxu0
    %3795 = vrot.lane.b32.xlu0 %v819, 64
    %v3796 = vpop.permute.xlu0 %3795
    %v3798 = vsel %vm840, %v3796, 0
    %3800 = vmatpush.bf16.xpose.msra.mxu0 0
    %3801 = vmatpush.bf16.xpose.msra.mxu0 0
    %3802 = vmatpush.bf16.xpose.msra.mxu0 0
    %3803 = vmatpush.bf16.xpose.msra.mxu0 0
    %3804 = vmatpush.bf16.xpose.msra.mxu0 0
    %3805 = vmatpush.bf16.xpose.msra.mxu0 0
    %3806 = vmatpush.bf16.xpose.msra.mxu0 0
    %3807 = vmatpush.bf16.xpose.msra.mxu0 %v1040
    %3808 = vmatmul.bf16.gmra.mxu0 %v3798
    %v3809 = vpop.f32.mrf.mxu0
    %v3810 = vadd.f32 %v254, %v3809
    %v3811 = vpop.f32.mrf.mxu0
    %v3812 = vadd.f32 %v255, %v3811
    %3813 = vdwg.mxu0
    %v3814 = vsel %vm861, %v3810, -inf
    %3815 = vmax.xlane.f32.xlu0 %v3814
    %v3816 = vpop.xlane.xlu0 %3815
    %v3817 = vsel %vm861, %v3812, -inf
    %3818 = vmax.xlane.f32.xlu0 %v3817
    %v3819 = vpop.xlane.xlu0 %3818
    %v3820 = vsub.f32 %v3810, %v3816
    %v3821 = vsub.f32 %v3812, %v3819
    %v3822 = vmul.f32 %v3820, 1.442695
    %v3823 = vpow.pop %v3822
    %v3824 = vmul.f32 %v3821, 1.442695
    %v3825 = vpow.pop %v3824
    %v3826 = vsel %vm861, %v3823, 0.0
    %3827 = vadd.xlane.f32.xlu0 %v3826
    %v3828 = vpop.xlane.xlu0 %3827
    %v3829 = vsel %vm861, %v3825, 0.0
    %3830 = vadd.xlane.f32.xlu0 %v3829
    %v3831 = vpop.xlane.xlu0 %3830
    %v3832 = vrcp.pop %v3828
    %v3833 = vrcp.pop %v3831
    %v3834 = vmul.f32 %v3823, %v3832
    %v3835 = vmul.f32 %v3825, %v3833
    %v3836 = vpack.c.bf16 %v3835, %v3834
    %v3838 = vsel %vm861, %v3836, 0
    %3840 = vmatpush.bf16.msra.mxu0 0
    %3841 = vmatpush.bf16.msra.mxu0 0
    %3842 = vmatpush.bf16.msra.mxu0 0
    %3843 = vmatpush.bf16.msra.mxu0 0
    %3844 = vmatpush.bf16.msra.mxu0 0
    %3845 = vmatpush.bf16.msra.mxu0 0
    %3846 = vmatpush.bf16.msra.mxu0 0
    %3847 = vmatpush.bf16.msra.mxu0 %v1080
    %3848 = vmatmul.bf16.gmra.mxu0 %v3838
    %v3849 = vpop.f32.mrf.mxu0
    %v3850 = vadd.f32 0.0, %v3849
    %v3851 = vpop.f32.mrf.mxu0
    %v3852 = vadd.f32 0.0, %v3851
    %3853 = vdwg.mxu0
    %v3854 = vpack.c.bf16 %v3852, %v3850
    %v3859 = vunpack.c.l.b16 %v3610
    %v3860 = vunpack.c.l.b16 %v3611
    %v3861 = vunpack.c.l.b16 %v3612
    %v3862 = vunpack.c.l.b16 %v3613
    %v3863 = vpack.c.b16 %v3860, %v3859
    %v3864 = vpack.c.b16 %v3862, %v3861
    %v3868 = vsel %vm840, %v3854, 0
    %3870 = vmatpush.bf16.msra.mxu0 0
    %3871 = vmatpush.bf16.msra.mxu0 0
    %3872 = vmatpush.bf16.msra.mxu0 0
    %3873 = vmatpush.bf16.msra.mxu0 0
    %3874 = vmatpush.bf16.msra.mxu0 0
    %3875 = vmatpush.bf16.msra.mxu0 0
    %3876 = vmatpush.bf16.msra.mxu0 %v3864
    %3877 = vmatpush.bf16.msra.mxu0 %v3863
    %3878 = vmatmul.bf16.gmra.mxu0 %v3868
    %v3879 = vpop.f32.mrf.mxu0
    %v3880 = vadd.f32 0.0, %v3879
    %v3881 = vpop.f32.mrf.mxu0
    %v3882 = vadd.f32 0.0, %v3881
    %3883 = vdwg.mxu0
    %v3884 = vadd.f32 %v3791, %v3880
    %v3885 = vadd.f32 %v3793, %v3882
    %3886 = vrot.lane.b32.xlu0 %v819, 32
    %v3887 = vpop.permute.xlu0 %3886
    %v3889 = vsel %vm840, %v3887, 0
    %3891 = vmatpush.bf16.xpose.msra.mxu0 0
    %3892 = vmatpush.bf16.xpose.msra.mxu0 0
    %3893 = vmatpush.bf16.xpose.msra.mxu0 0
    %3894 = vmatpush.bf16.xpose.msra.mxu0 0
    %3895 = vmatpush.bf16.xpose.msra.mxu0 0
    %3896 = vmatpush.bf16.xpose.msra.mxu0 0
    %3897 = vmatpush.bf16.xpose.msra.mxu0 0
    %3898 = vmatpush.bf16.xpose.msra.mxu0 %v1139
    %3899 = vmatmul.bf16.gmra.mxu0 %v3889
    %v3900 = vpop.f32.mrf.mxu0
    %v3901 = vadd.f32 %v254, %v3900
    %v3902 = vpop.f32.mrf.mxu0
    %v3903 = vadd.f32 %v255, %v3902
    %3904 = vdwg.mxu0
    %v3905 = vsel %vm861, %v3901, -inf
    %3906 = vmax.xlane.f32.xlu0 %v3905
    %v3907 = vpop.xlane.xlu0 %3906
    %v3908 = vsel %vm861, %v3903, -inf
    %3909 = vmax.xlane.f32.xlu0 %v3908
    %v3910 = vpop.xlane.xlu0 %3909
    %v3911 = vsub.f32 %v3901, %v3907
    %v3912 = vsub.f32 %v3903, %v3910
    %v3913 = vmul.f32 %v3911, 1.442695
    %v3914 = vpow.pop %v3913
    %v3915 = vmul.f32 %v3912, 1.442695
    %v3916 = vpow.pop %v3915
    %v3917 = vsel %vm861, %v3914, 0.0
    %3918 = vadd.xlane.f32.xlu0 %v3917
    %v3919 = vpop.xlane.xlu0 %3918
    %v3920 = vsel %vm861, %v3916, 0.0
    %3921 = vadd.xlane.f32.xlu0 %v3920
    %v3922 = vpop.xlane.xlu0 %3921
    %v3923 = vrcp.pop %v3919
    %v3924 = vrcp.pop %v3922
    %v3925 = vmul.f32 %v3914, %v3923
    %v3926 = vmul.f32 %v3916, %v3924
    %v3927 = vpack.c.bf16 %v3926, %v3925
    %v3929 = vsel %vm861, %v3927, 0
    %3931 = vmatpush.bf16.msra.mxu0 0
    %3932 = vmatpush.bf16.msra.mxu0 0
    %3933 = vmatpush.bf16.msra.mxu0 0
    %3934 = vmatpush.bf16.msra.mxu0 0
    %3935 = vmatpush.bf16.msra.mxu0 0
    %3936 = vmatpush.bf16.msra.mxu0 0
    %3937 = vmatpush.bf16.msra.mxu0 0
    %3938 = vmatpush.bf16.msra.mxu0 %v1179
    %3939 = vmatmul.bf16.gmra.mxu0 %v3929
    %v3940 = vpop.f32.mrf.mxu0
    %v3941 = vadd.f32 0.0, %v3940
    %v3942 = vpop.f32.mrf.mxu0
    %v3943 = vadd.f32 0.0, %v3942
    %3944 = vdwg.mxu0
    %v3945 = vpack.c.bf16 %v3943, %v3941
    %v3950 = vunpack.c.l.b16 %v3614
    %v3951 = vunpack.c.l.b16 %v3615
    %v3952 = vunpack.c.l.b16 %v3616
    %v3953 = vunpack.c.l.b16 %v3617
    %v3954 = vpack.c.b16 %v3951, %v3950
    %v3955 = vpack.c.b16 %v3953, %v3952
    %v3959 = vsel %vm840, %v3945, 0
    %3961 = vmatpush.bf16.msra.mxu0 0
    %3962 = vmatpush.bf16.msra.mxu0 0
    %3963 = vmatpush.bf16.msra.mxu0 0
    %3964 = vmatpush.bf16.msra.mxu0 0
    %3965 = vmatpush.bf16.msra.mxu0 0
    %3966 = vmatpush.bf16.msra.mxu0 0
    %3967 = vmatpush.bf16.msra.mxu0 %v3955
    %3968 = vmatpush.bf16.msra.mxu0 %v3954
    %3969 = vmatmul.bf16.gmra.mxu0 %v3959
    %v3970 = vpop.f32.mrf.mxu0
    %v3971 = vadd.f32 0.0, %v3970
    %v3972 = vpop.f32.mrf.mxu0
    %v3973 = vadd.f32 0.0, %v3972
    %3974 = vdwg.mxu0
    %v3975 = vadd.f32 %v3884, %v3971
    %v3976 = vadd.f32 %v3885, %v3973
    %v3977 = vadd.f32 %v258, %v3975
    %v3978 = vadd.f32 %v259, %v3976
    %v3979 = vperm.slane %v248, 2
    %v3980 = vadd.f32 %v3977, %v3979
    %v3981 = vadd.f32 %v3978, %v3979
    %3982 = vadd.xlane.f32.xlu0 %v3980
    %v3983 = vpop.xlane.xlu0 %3982
    %3984 = vadd.xlane.f32.xlu0 %v3981
    %v3985 = vpop.xlane.xlu0 %3984
    %v3986 = vmul.f32 %v3983, %v1245
    %v3987 = vmul.f32 %v3985, %v1245
    %v3988 = vsub.f32 %v3980, %v3986
    %v3989 = vsub.f32 %v3981, %v3987
    %v3990 = vmul.f32 %v3988, %v3988
    %v3991 = vmul.f32 %v3989, %v3989
    %3992 = vadd.xlane.f32.xlu0 %v3990
    %v3993 = vpop.xlane.xlu0 %3992
    %3994 = vadd.xlane.f32.xlu0 %v3991
    %v3995 = vpop.xlane.xlu0 %3994
    %v3996 = vmul.f32 %v3993, %v1245
    %v3997 = vmul.f32 %v3995, %v1245
    %v3998 = vadd.f32 %v3996, 1e-05
    %v3999 = vadd.f32 %v3997, 1e-05
    %v4000 = vrsqrt.pop %v3998
    %v4001 = vmul.f32 %v4000, %v3998
    %v4002 = vmul.f32 %v4001, %v4000
    %v4003 = vmul.f32 0.5, %v4002
    %v4004 = vsub.f32 1.5, %v4003
    %v4005 = vmul.f32 %v4000, %v4004
    %vm4006 = vweird.f32 %v3998
    %vm4007 = vweird.f32 %v4000
    %vm4008 = vmor %vm4006, %vm4007
    %v4009 = vsel %vm4008, %v4000, %v4005
    %v4010 = vrsqrt.pop %v3999
    %v4011 = vmul.f32 %v4010, %v3999
    %v4012 = vmul.f32 %v4011, %v4010
    %v4013 = vmul.f32 0.5, %v4012
    %v4014 = vsub.f32 1.5, %v4013
    %v4015 = vmul.f32 %v4010, %v4014
    %vm4016 = vweird.f32 %v3999
    %vm4017 = vweird.f32 %v4010
    %vm4018 = vmor %vm4016, %vm4017
    %v4019 = vsel %vm4018, %v4010, %v4015
    %v4020 = vmul.f32 %v3988, %v4009
    %v4021 = vmul.f32 %v3989, %v4019
    %v4022 = vperm.slane %v248, 3
    %v4023 = vmul.f32 %v4020, %v4022
    %v4024 = vmul.f32 %v4021, %v4022
    %v4025 = vperm.slane %v248, 4
    %v4026 = vadd.f32 %v4023, %v4025
    %v4027 = vadd.f32 %v4024, %v4025
    %v4028 = vpack.c.bf16 %v4027, %v4026
    %s4029 = scalar_lea.vmem [#allocation17], 256
    %v4030 = vld [vmem:[%s4029] sm:$0xff]
    %v4031 = vld [vmem:[%s4029 + $0x8] sm:$0xff]
    %v4032 = vld [vmem:[%s4029 + $0x10] sm:$0xff]
    %v4033 = vld [vmem:[%s4029 + $0x18] sm:$0xff]
    %v4034 = vld [vmem:[%s4029 + $0x20] sm:$0xff]
    %v4035 = vld [vmem:[%s4029 + $0x28] sm:$0xff]
    %v4036 = vld [vmem:[%s4029 + $0x30] sm:$0xff]
    %v4037 = vld [vmem:[%s4029 + $0x38] sm:$0xff]
    %v4038 = vld [vmem:[%s4029 + $0x40] sm:$0xff]
    %v4039 = vld [vmem:[%s4029 + $0x48] sm:$0xff]
    %v4040 = vld [vmem:[%s4029 + $0x50] sm:$0xff]
    %v4041 = vld [vmem:[%s4029 + $0x58] sm:$0xff]
    %v4042 = vld [vmem:[%s4029 + $0x60] sm:$0xff]
    %v4043 = vld [vmem:[%s4029 + $0x68] sm:$0xff]
    %v4044 = vld [vmem:[%s4029 + $0x70] sm:$0xff]
    %v4045 = vld [vmem:[%s4029 + $0x78] sm:$0xff]
    %v4046 = vld [vmem:[%s4029 + $0x80] sm:$0xff]
    %v4047 = vld [vmem:[%s4029 + $0x88] sm:$0xff]
    %v4048 = vld [vmem:[%s4029 + $0x90] sm:$0xff]
    %v4049 = vld [vmem:[%s4029 + $0x98] sm:$0xff]
    %v4050 = vld [vmem:[%s4029 + $0xa0] sm:$0xff]
    %v4051 = vld [vmem:[%s4029 + $0xa8] sm:$0xff]
    %v4052 = vld [vmem:[%s4029 + $0xb0] sm:$0xff]
    %v4053 = vld [vmem:[%s4029 + $0xb8] sm:$0xff]
    %v4054 = vld [vmem:[%s4029 + $0xc0] sm:$0xff]
    %v4055 = vld [vmem:[%s4029 + $0xc8] sm:$0xff]
    %v4056 = vld [vmem:[%s4029 + $0xd0] sm:$0xff]
    %v4057 = vld [vmem:[%s4029 + $0xd8] sm:$0xff]
    %v4058 = vld [vmem:[%s4029 + $0xe0] sm:$0xff]
    %v4059 = vld [vmem:[%s4029 + $0xe8] sm:$0xff]
    %v4060 = vld [vmem:[%s4029 + $0xf0] sm:$0xff]
    %v4061 = vld [vmem:[%s4029 + $0xf8] sm:$0xff]
    %v4062 = vperm.slane %v250, 1
    %v4063 = vperm.slane %v251, 1
    %v4064 = vperm.slane %v252, 1
    %v4065 = vperm.slane %v253, 1
    %v4098 = vunpack.c.l.b16 %v4030
    %v4099 = vunpack.c.h.b16 %v4030
    %v4100 = vunpack.c.l.b16 %v4031
    %v4101 = vunpack.c.h.b16 %v4031
    %v4102 = vunpack.c.l.b16 %v4032
    %v4103 = vunpack.c.h.b16 %v4032
    %v4104 = vunpack.c.l.b16 %v4033
    %v4105 = vunpack.c.h.b16 %v4033
    %v4106 = vunpack.c.l.b16 %v4034
    %v4107 = vunpack.c.h.b16 %v4034
    %v4108 = vunpack.c.l.b16 %v4035
    %v4109 = vunpack.c.h.b16 %v4035
    %v4110 = vunpack.c.l.b16 %v4036
    %v4111 = vunpack.c.h.b16 %v4036
    %v4112 = vunpack.c.l.b16 %v4037
    %v4113 = vunpack.c.h.b16 %v4037
    %v4114 = vunpack.c.l.b16 %v4038
    %v4115 = vunpack.c.h.b16 %v4038
    %v4116 = vunpack.c.l.b16 %v4039
    %v4117 = vunpack.c.h.b16 %v4039
    %v4118 = vunpack.c.l.b16 %v4040
    %v4119 = vunpack.c.h.b16 %v4040
    %v4120 = vunpack.c.l.b16 %v4041
    %v4121 = vunpack.c.h.b16 %v4041
    %v4122 = vunpack.c.l.b16 %v4042
    %v4123 = vunpack.c.h.b16 %v4042
    %v4124 = vunpack.c.l.b16 %v4043
    %v4125 = vunpack.c.h.b16 %v4043
    %v4126 = vunpack.c.l.b16 %v4044
    %v4127 = vunpack.c.h.b16 %v4044
    %v4128 = vunpack.c.l.b16 %v4045
    %v4129 = vunpack.c.h.b16 %v4045
    %v4130 = vunpack.c.l.b16 %v4046
    %v4131 = vunpack.c.h.b16 %v4046
    %v4132 = vunpack.c.l.b16 %v4047
    %v4133 = vunpack.c.h.b16 %v4047
    %v4134 = vunpack.c.l.b16 %v4048
    %v4135 = vunpack.c.h.b16 %v4048
    %v4136 = vunpack.c.l.b16 %v4049
    %v4137 = vunpack.c.h.b16 %v4049
    %v4138 = vunpack.c.l.b16 %v4050
    %v4139 = vunpack.c.h.b16 %v4050
    %v4140 = vunpack.c.l.b16 %v4051
    %v4141 = vunpack.c.h.b16 %v4051
    %v4142 = vunpack.c.l.b16 %v4052
    %v4143 = vunpack.c.h.b16 %v4052
    %v4144 = vunpack.c.l.b16 %v4053
    %v4145 = vunpack.c.h.b16 %v4053
    %v4146 = vunpack.c.l.b16 %v4054
    %v4147 = vunpack.c.h.b16 %v4054
    %v4148 = vunpack.c.l.b16 %v4055
    %v4149 = vunpack.c.h.b16 %v4055
    %v4150 = vunpack.c.l.b16 %v4056
    %v4151 = vunpack.c.h.b16 %v4056
    %v4152 = vunpack.c.l.b16 %v4057
    %v4153 = vunpack.c.h.b16 %v4057
    %v4154 = vunpack.c.l.b16 %v4058
    %v4155 = vunpack.c.h.b16 %v4058
    %v4156 = vunpack.c.l.b16 %v4059
    %v4157 = vunpack.c.h.b16 %v4059
    %v4158 = vunpack.c.l.b16 %v4060
    %v4159 = vunpack.c.h.b16 %v4060
    %v4160 = vunpack.c.l.b16 %v4061
    %v4161 = vunpack.c.h.b16 %v4061
    %v4162 = vpack.c.b16 %v4102, %v4098
    %v4163 = vpack.c.b16 %v4103, %v4099
    %v4164 = vpack.c.b16 %v4104, %v4100
    %v4165 = vpack.c.b16 %v4105, %v4101
    %v4166 = vpack.c.b16 %v4110, %v4106
    %v4167 = vpack.c.b16 %v4111, %v4107
    %v4168 = vpack.c.b16 %v4112, %v4108
    %v4169 = vpack.c.b16 %v4113, %v4109
    %v4170 = vpack.c.b16 %v4118, %v4114
    %v4171 = vpack.c.b16 %v4119, %v4115
    %v4172 = vpack.c.b16 %v4120, %v4116
    %v4173 = vpack.c.b16 %v4121, %v4117
    %v4174 = vpack.c.b16 %v4126, %v4122
    %v4175 = vpack.c.b16 %v4127, %v4123
    %v4176 = vpack.c.b16 %v4128, %v4124
    %v4177 = vpack.c.b16 %v4129, %v4125
    %v4178 = vpack.c.b16 %v4134, %v4130
    %v4179 = vpack.c.b16 %v4135, %v4131
    %v4180 = vpack.c.b16 %v4136, %v4132
    %v4181 = vpack.c.b16 %v4137, %v4133
    %v4182 = vpack.c.b16 %v4142, %v4138
    %v4183 = vpack.c.b16 %v4143, %v4139
    %v4184 = vpack.c.b16 %v4144, %v4140
    %v4185 = vpack.c.b16 %v4145, %v4141
    %v4186 = vpack.c.b16 %v4150, %v4146
    %v4187 = vpack.c.b16 %v4151, %v4147
    %v4188 = vpack.c.b16 %v4152, %v4148
    %v4189 = vpack.c.b16 %v4153, %v4149
    %v4190 = vpack.c.b16 %v4158, %v4154
    %v4191 = vpack.c.b16 %v4159, %v4155
    %v4192 = vpack.c.b16 %v4160, %v4156
    %v4193 = vpack.c.b16 %v4161, %v4157
    %4226 = vmatpush.bf16.msra.mxu0 %v4190
    %4227 = vmatpush.bf16.msra.mxu0 %v4186
    %4228 = vmatpush.bf16.msra.mxu0 %v4182
    %4229 = vmatpush.bf16.msra.mxu0 %v4178
    %4230 = vmatpush.bf16.msra.mxu0 %v4174
    %4231 = vmatpush.bf16.msra.mxu0 %v4170
    %4232 = vmatpush.bf16.msra.mxu0 %v4166
    %4233 = vmatpush.bf16.msra.mxu0 %v4162
    %4234 = vmatmul.bf16.gmra.mxu0 %v4028
    %v4235 = vpop.f32.mrf.mxu0
    %v4236 = vadd.f32 %v4062, %v4235
    %v4237 = vpop.f32.mrf.mxu0
    %v4238 = vadd.f32 %v4062, %v4237
    %4239 = vdwg.mxu0
    %4240 = vmatpush.bf16.msra.mxu0 %v4191
    %4241 = vmatpush.bf16.msra.mxu0 %v4187
    %4242 = vmatpush.bf16.msra.mxu0 %v4183
    %4243 = vmatpush.bf16.msra.mxu0 %v4179
    %4244 = vmatpush.bf16.msra.mxu0 %v4175
    %4245 = vmatpush.bf16.msra.mxu0 %v4171
    %4246 = vmatpush.bf16.msra.mxu0 %v4167
    %4247 = vmatpush.bf16.msra.mxu0 %v4163
    %4248 = vmatmul.bf16.gmra.mxu0 %v4028
    %v4249 = vpop.f32.mrf.mxu0
    %v4250 = vadd.f32 %v4063, %v4249
    %v4251 = vpop.f32.mrf.mxu0
    %v4252 = vadd.f32 %v4063, %v4251
    %4253 = vdwg.mxu0
    %4254 = vmatpush.bf16.msra.mxu0 %v4192
    %4255 = vmatpush.bf16.msra.mxu0 %v4188
    %4256 = vmatpush.bf16.msra.mxu0 %v4184
    %4257 = vmatpush.bf16.msra.mxu0 %v4180
    %4258 = vmatpush.bf16.msra.mxu0 %v4176
    %4259 = vmatpush.bf16.msra.mxu0 %v4172
    %4260 = vmatpush.bf16.msra.mxu0 %v4168
    %4261 = vmatpush.bf16.msra.mxu0 %v4164
    %4262 = vmatmul.bf16.gmra.mxu0 %v4028
    %v4263 = vpop.f32.mrf.mxu0
    %v4264 = vadd.f32 %v4064, %v4263
    %v4265 = vpop.f32.mrf.mxu0
    %v4266 = vadd.f32 %v4064, %v4265
    %4267 = vdwg.mxu0
    %4268 = vmatpush.bf16.msra.mxu0 %v4193
    %4269 = vmatpush.bf16.msra.mxu0 %v4189
    %4270 = vmatpush.bf16.msra.mxu0 %v4185
    %4271 = vmatpush.bf16.msra.mxu0 %v4181
    %4272 = vmatpush.bf16.msra.mxu0 %v4177
    %4273 = vmatpush.bf16.msra.mxu0 %v4173
    %4274 = vmatpush.bf16.msra.mxu0 %v4169
    %4275 = vmatpush.bf16.msra.mxu0 %v4165
    %4276 = vmatmul.bf16.gmra.mxu0 %v4028
    %v4277 = vpop.f32.mrf.mxu0
    %v4278 = vadd.f32 %v4065, %v4277
    %v4279 = vpop.f32.mrf.mxu0
    %v4280 = vadd.f32 %v4065, %v4279
    %4281 = vdwg.mxu0
    %v4282 = vmul.f32 %v4236, 0.5
    %v4283 = vmul.f32 %v4250, 0.5
    %v4284 = vmul.f32 %v4264, 0.5
    %v4285 = vmul.f32 %v4278, 0.5
    %v4286 = vmul.f32 %v4238, 0.5
    %v4287 = vmul.f32 %v4252, 0.5
    %v4288 = vmul.f32 %v4266, 0.5
    %v4289 = vmul.f32 %v4280, 0.5
    %v4290 = vmul.f32 %v4236, 0.70710677
    %v4291 = vmul.f32 %v4250, 0.70710677
    %v4292 = vmul.f32 %v4264, 0.70710677
    %v4293 = vmul.f32 %v4278, 0.70710677
    %v4294 = vmul.f32 %v4238, 0.70710677
    %v4295 = vmul.f32 %v4252, 0.70710677
    %v4296 = vmul.f32 %v4266, 0.70710677
    %v4297 = vmul.f32 %v4280, 0.70710677
    %vm4298 = vcmp.ge.f32.partialorder %v4290, 0.0
    %vm4299 = vcmp.ge.f32.partialorder %v4291, 0.0
    %vm4300 = vcmp.ge.f32.partialorder %v4292, 0.0
    %vm4301 = vcmp.ge.f32.partialorder %v4293, 0.0
    %vm4302 = vcmp.ge.f32.partialorder %v4294, 0.0
    %vm4303 = vcmp.ge.f32.partialorder %v4295, 0.0
    %vm4304 = vcmp.ge.f32.partialorder %v4296, 0.0
    %vm4305 = vcmp.ge.f32.partialorder %v4297, 0.0
    %v4306 = vsel %vm4298, 1.0, -1.0
    %v4307 = vsel %vm4299, 1.0, -1.0
    %v4308 = vsel %vm4300, 1.0, -1.0
    %v4309 = vsel %vm4301, 1.0, -1.0
    %v4310 = vsel %vm4302, 1.0, -1.0
    %v4311 = vsel %vm4303, 1.0, -1.0
    %v4312 = vsel %vm4304, 1.0, -1.0
    %v4313 = vsel %vm4305, 1.0, -1.0
    %v4314 = vand.u32 2147483647, %v4290
    %v4315 = vand.u32 2147483647, %v4291
    %v4316 = vand.u32 2147483647, %v4292
    %v4317 = vand.u32 2147483647, %v4293
    %v4318 = vand.u32 2147483647, %v4294
    %v4319 = vand.u32 2147483647, %v4295
    %v4320 = vand.u32 2147483647, %v4296
    %v4321 = vand.u32 2147483647, %v4297
    %v4322 = vmul.f32 %v4314, 0.3275911
    %v4323 = vmul.f32 %v4315, 0.3275911
    %v4324 = vmul.f32 %v4316, 0.3275911
    %v4325 = vmul.f32 %v4317, 0.3275911
    %v4326 = vmul.f32 %v4318, 0.3275911
    %v4327 = vmul.f32 %v4319, 0.3275911
    %v4328 = vmul.f32 %v4320, 0.3275911
    %v4329 = vmul.f32 %v4321, 0.3275911
    %v4330 = vadd.f32 %v4322, 1.0
    %v4331 = vadd.f32 %v4323, 1.0
    %v4332 = vadd.f32 %v4324, 1.0
    %v4333 = vadd.f32 %v4325, 1.0
    %v4334 = vadd.f32 %v4326, 1.0
    %v4335 = vadd.f32 %v4327, 1.0
    %v4336 = vadd.f32 %v4328, 1.0
    %v4337 = vadd.f32 %v4329, 1.0
    %v4338 = vrcp.pop %v4330
    %v4339 = vmul.f32 %v4330, %v4338
    %v4340 = vsub.f32 1.0, %v4339
    %v4341 = vmul.f32 %v4338, %v4340
    %v4342 = vadd.f32 %v4338, %v4341
    %vm4343 = vweird.f32 %v4330
    %vm4344 = vweird.f32 %v4338
    %vm4345 = vmor %vm4343, %vm4344
    %v4346 = vsel %vm4345, %v4338, %v4342
    %v4347 = vand.u32 2147483647, %v4330
    %vm4348 = vcmp.eq.f32.partialorder %v4347, 8.507059e+37
    %v4349 = vand.u32 %v4330, 2147483648
    %v4350 = vor.u32 1.1754944e-38, %v4349
    %v4351 = vsel %vm4348, %v4350, %v4346
    %v4352 = vmul.f32 1.0, %v4351
    %v4353 = vrcp.pop %v4331
    %v4354 = vmul.f32 %v4331, %v4353
    %v4355 = vsub.f32 1.0, %v4354
    %v4356 = vmul.f32 %v4353, %v4355
    %v4357 = vadd.f32 %v4353, %v4356
    %vm4358 = vweird.f32 %v4331
    %vm4359 = vweird.f32 %v4353
    %vm4360 = vmor %vm4358, %vm4359
    %v4361 = vsel %vm4360, %v4353, %v4357
    %v4362 = vand.u32 2147483647, %v4331
    %vm4363 = vcmp.eq.f32.partialorder %v4362, 8.507059e+37
    %v4364 = vand.u32 %v4331, 2147483648
    %v4365 = vor.u32 1.1754944e-38, %v4364
    %v4366 = vsel %vm4363, %v4365, %v4361
    %v4367 = vmul.f32 1.0, %v4366
    %v4368 = vrcp.pop %v4332
    %v4369 = vmul.f32 %v4332, %v4368
    %v4370 = vsub.f32 1.0, %v4369
    %v4371 = vmul.f32 %v4368, %v4370
    %v4372 = vadd.f32 %v4368, %v4371
    %vm4373 = vweird.f32 %v4332
    %vm4374 = vweird.f32 %v4368
    %vm4375 = vmor %vm4373, %vm4374
    %v4376 = vsel %vm4375, %v4368, %v4372
    %v4377 = vand.u32 2147483647, %v4332
    %vm4378 = vcmp.eq.f32.partialorder %v4377, 8.507059e+37
    %v4379 = vand.u32 %v4332, 2147483648
    %v4380 = vor.u32 1.1754944e-38, %v4379
    %v4381 = vsel %vm4378, %v4380, %v4376
    %v4382 = vmul.f32 1.0, %v4381
    %v4383 = vrcp.pop %v4333
    %v4384 = vmul.f32 %v4333, %v4383
    %v4385 = vsub.f32 1.0, %v4384
    %v4386 = vmul.f32 %v4383, %v4385
    %v4387 = vadd.f32 %v4383, %v4386
    %vm4388 = vweird.f32 %v4333
    %vm4389 = vweird.f32 %v4383
    %vm4390 = vmor %vm4388, %vm4389
    %v4391 = vsel %vm4390, %v4383, %v4387
    %v4392 = vand.u32 2147483647, %v4333
    %vm4393 = vcmp.eq.f32.partialorder %v4392, 8.507059e+37
    %v4394 = vand.u32 %v4333, 2147483648
    %v4395 = vor.u32 1.1754944e-38, %v4394
    %v4396 = vsel %vm4393, %v4395, %v4391
    %v4397 = vmul.f32 1.0, %v4396
    %v4398 = vrcp.pop %v4334
    %v4399 = vmul.f32 %v4334, %v4398
    %v4400 = vsub.f32 1.0, %v4399
    %v4401 = vmul.f32 %v4398, %v4400
    %v4402 = vadd.f32 %v4398, %v4401
    %vm4403 = vweird.f32 %v4334
    %vm4404 = vweird.f32 %v4398
    %vm4405 = vmor %vm4403, %vm4404
    %v4406 = vsel %vm4405, %v4398, %v4402
    %v4407 = vand.u32 2147483647, %v4334
    %vm4408 = vcmp.eq.f32.partialorder %v4407, 8.507059e+37
    %v4409 = vand.u32 %v4334, 2147483648
    %v4410 = vor.u32 1.1754944e-38, %v4409
    %v4411 = vsel %vm4408, %v4410, %v4406
    %v4412 = vmul.f32 1.0, %v4411
    %v4413 = vrcp.pop %v4335
    %v4414 = vmul.f32 %v4335, %v4413
    %v4415 = vsub.f32 1.0, %v4414
    %v4416 = vmul.f32 %v4413, %v4415
    %v4417 = vadd.f32 %v4413, %v4416
    %vm4418 = vweird.f32 %v4335
    %vm4419 = vweird.f32 %v4413
    %vm4420 = vmor %vm4418, %vm4419
    %v4421 = vsel %vm4420, %v4413, %v4417
    %v4422 = vand.u32 2147483647, %v4335
    %vm4423 = vcmp.eq.f32.partialorder %v4422, 8.507059e+37
    %v4424 = vand.u32 %v4335, 2147483648
    %v4425 = vor.u32 1.1754944e-38, %v4424
    %v4426 = vsel %vm4423, %v4425, %v4421
    %v4427 = vmul.f32 1.0, %v4426
    %v4428 = vrcp.pop %v4336
    %v4429 = vmul.f32 %v4336, %v4428
    %v4430 = vsub.f32 1.0, %v4429
    %v4431 = vmul.f32 %v4428, %v4430
    %v4432 = vadd.f32 %v4428, %v4431
    %vm4433 = vweird.f32 %v4336
    %vm4434 = vweird.f32 %v4428
    %vm4435 = vmor %vm4433, %vm4434
    %v4436 = vsel %vm4435, %v4428, %v4432
    %v4437 = vand.u32 2147483647, %v4336
    %vm4438 = vcmp.eq.f32.partialorder %v4437, 8.507059e+37
    %v4439 = vand.u32 %v4336, 2147483648
    %v4440 = vor.u32 1.1754944e-38, %v4439
    %v4441 = vsel %vm4438, %v4440, %v4436
    %v4442 = vmul.f32 1.0, %v4441
    %v4443 = vrcp.pop %v4337
    %v4444 = vmul.f32 %v4337, %v4443
    %v4445 = vsub.f32 1.0, %v4444
    %v4446 = vmul.f32 %v4443, %v4445
    %v4447 = vadd.f32 %v4443, %v4446
    %vm4448 = vweird.f32 %v4337
    %vm4449 = vweird.f32 %v4443
    %vm4450 = vmor %vm4448, %vm4449
    %v4451 = vsel %vm4450, %v4443, %v4447
    %v4452 = vand.u32 2147483647, %v4337
    %vm4453 = vcmp.eq.f32.partialorder %v4452, 8.507059e+37
    %v4454 = vand.u32 %v4337, 2147483648
    %v4455 = vor.u32 1.1754944e-38, %v4454
    %v4456 = vsel %vm4453, %v4455, %v4451
    %v4457 = vmul.f32 1.0, %v4456
    %v4458 = vmul.f32 %v4352, 1.0614054
    %v4459 = vmul.f32 %v4367, 1.0614054
    %v4460 = vmul.f32 %v4382, 1.0614054
    %v4461 = vmul.f32 %v4397, 1.0614054
    %v4462 = vmul.f32 %v4412, 1.0614054
    %v4463 = vmul.f32 %v4427, 1.0614054
    %v4464 = vmul.f32 %v4442, 1.0614054
    %v4465 = vmul.f32 %v4457, 1.0614054
    %v4466 = vadd.f32 %v4458, -1.4531521
    %v4467 = vadd.f32 %v4459, -1.4531521
    %v4468 = vadd.f32 %v4460, -1.4531521
    %v4469 = vadd.f32 %v4461, -1.4531521
    %v4470 = vadd.f32 %v4462, -1.4531521
    %v4471 = vadd.f32 %v4463, -1.4531521
    %v4472 = vadd.f32 %v4464, -1.4531521
    %v4473 = vadd.f32 %v4465, -1.4531521
    %v4474 = vmul.f32 %v4466, %v4352
    %v4475 = vmul.f32 %v4467, %v4367
    %v4476 = vmul.f32 %v4468, %v4382
    %v4477 = vmul.f32 %v4469, %v4397
    %v4478 = vmul.f32 %v4470, %v4412
    %v4479 = vmul.f32 %v4471, %v4427
    %v4480 = vmul.f32 %v4472, %v4442
    %v4481 = vmul.f32 %v4473, %v4457
    %v4482 = vadd.f32 %v4474, 1.4214138
    %v4483 = vadd.f32 %v4475, 1.4214138
    %v4484 = vadd.f32 %v4476, 1.4214138
    %v4485 = vadd.f32 %v4477, 1.4214138
    %v4486 = vadd.f32 %v4478, 1.4214138
    %v4487 = vadd.f32 %v4479, 1.4214138
    %v4488 = vadd.f32 %v4480, 1.4214138
    %v4489 = vadd.f32 %v4481, 1.4214138
    %v4490 = vmul.f32 %v4482, %v4352
    %v4491 = vmul.f32 %v4483, %v4367
    %v4492 = vmul.f32 %v4484, %v4382
    %v4493 = vmul.f32 %v4485, %v4397
    %v4494 = vmul.f32 %v4486, %v4412
    %v4495 = vmul.f32 %v4487, %v4427
    %v4496 = vmul.f32 %v4488, %v4442
    %v4497 = vmul.f32 %v4489, %v4457
    %v4498 = vadd.f32 %v4490, -0.28449672
    %v4499 = vadd.f32 %v4491, -0.28449672
    %v4500 = vadd.f32 %v4492, -0.28449672
    %v4501 = vadd.f32 %v4493, -0.28449672
    %v4502 = vadd.f32 %v4494, -0.28449672
    %v4503 = vadd.f32 %v4495, -0.28449672
    %v4504 = vadd.f32 %v4496, -0.28449672
    %v4505 = vadd.f32 %v4497, -0.28449672
    %v4506 = vmul.f32 %v4498, %v4352
    %v4507 = vmul.f32 %v4499, %v4367
    %v4508 = vmul.f32 %v4500, %v4382
    %v4509 = vmul.f32 %v4501, %v4397
    %v4510 = vmul.f32 %v4502, %v4412
    %v4511 = vmul.f32 %v4503, %v4427
    %v4512 = vmul.f32 %v4504, %v4442
    %v4513 = vmul.f32 %v4505, %v4457
    %v4514 = vadd.f32 %v4506, 0.2548296
    %v4515 = vadd.f32 %v4507, 0.2548296
    %v4516 = vadd.f32 %v4508, 0.2548296
    %v4517 = vadd.f32 %v4509, 0.2548296
    %v4518 = vadd.f32 %v4510, 0.2548296
    %v4519 = vadd.f32 %v4511, 0.2548296
    %v4520 = vadd.f32 %v4512, 0.2548296
    %v4521 = vadd.f32 %v4513, 0.2548296
    %v4522 = vmul.f32 %v4514, %v4352
    %v4523 = vmul.f32 %v4515, %v4367
    %v4524 = vmul.f32 %v4516, %v4382
    %v4525 = vmul.f32 %v4517, %v4397
    %v4526 = vmul.f32 %v4518, %v4412
    %v4527 = vmul.f32 %v4519, %v4427
    %v4528 = vmul.f32 %v4520, %v4442
    %v4529 = vmul.f32 %v4521, %v4457
    %v4530 = vsub.f32 0.0, %v4314
    %v4531 = vsub.f32 0.0, %v4315
    %v4532 = vsub.f32 0.0, %v4316
    %v4533 = vsub.f32 0.0, %v4317
    %v4534 = vsub.f32 0.0, %v4318
    %v4535 = vsub.f32 0.0, %v4319
    %v4536 = vsub.f32 0.0, %v4320
    %v4537 = vsub.f32 0.0, %v4321
    %v4538 = vmul.f32 %v4530, %v4314
    %v4539 = vmul.f32 %v4531, %v4315
    %v4540 = vmul.f32 %v4532, %v4316
    %v4541 = vmul.f32 %v4533, %v4317
    %v4542 = vmul.f32 %v4534, %v4318
    %v4543 = vmul.f32 %v4535, %v4319
    %v4544 = vmul.f32 %v4536, %v4320
    %v4545 = vmul.f32 %v4537, %v4321
    %v4546 = vmul.f32 %v4538, 1.442695
    %v4547 = vpow.pop %v4546
    %v4548 = vmul.f32 %v4539, 1.442695
    %v4549 = vpow.pop %v4548
    %v4550 = vmul.f32 %v4540, 1.442695
    %v4551 = vpow.pop %v4550
    %v4552 = vmul.f32 %v4541, 1.442695
    %v4553 = vpow.pop %v4552
    %v4554 = vmul.f32 %v4542, 1.442695
    %v4555 = vpow.pop %v4554
    %v4556 = vmul.f32 %v4543, 1.442695
    %v4557 = vpow.pop %v4556
    %v4558 = vmul.f32 %v4544, 1.442695
    %v4559 = vpow.pop %v4558
    %v4560 = vmul.f32 %v4545, 1.442695
    %v4561 = vpow.pop %v4560
    %v4562 = vmul.f32 %v4522, %v4547
    %v4563 = vmul.f32 %v4523, %v4549
    %v4564 = vmul.f32 %v4524, %v4551
    %v4565 = vmul.f32 %v4525, %v4553
    %v4566 = vmul.f32 %v4526, %v4555
    %v4567 = vmul.f32 %v4527, %v4557
    %v4568 = vmul.f32 %v4528, %v4559
    %v4569 = vmul.f32 %v4529, %v4561
    %v4570 = vsub.f32 1.0, %v4562
    %v4571 = vsub.f32 1.0, %v4563
    %v4572 = vsub.f32 1.0, %v4564
    %v4573 = vsub.f32 1.0, %v4565
    %v4574 = vsub.f32 1.0, %v4566
    %v4575 = vsub.f32 1.0, %v4567
    %v4576 = vsub.f32 1.0, %v4568
    %v4577 = vsub.f32 1.0, %v4569
    %v4578 = vmul.f32 %v4306, %v4570
    %v4579 = vmul.f32 %v4307, %v4571
    %v4580 = vmul.f32 %v4308, %v4572
    %v4581 = vmul.f32 %v4309, %v4573
    %v4582 = vmul.f32 %v4310, %v4574
    %v4583 = vmul.f32 %v4311, %v4575
    %v4584 = vmul.f32 %v4312, %v4576
    %v4585 = vmul.f32 %v4313, %v4577
    %v4586 = vadd.f32 %v4578, 1.0
    %v4587 = vadd.f32 %v4579, 1.0
    %v4588 = vadd.f32 %v4580, 1.0
    %v4589 = vadd.f32 %v4581, 1.0
    %v4590 = vadd.f32 %v4582, 1.0
    %v4591 = vadd.f32 %v4583, 1.0
    %v4592 = vadd.f32 %v4584, 1.0
    %v4593 = vadd.f32 %v4585, 1.0
    %v4594 = vmul.f32 %v4282, %v4586
    %v4595 = vmul.f32 %v4283, %v4587
    %v4596 = vmul.f32 %v4284, %v4588
    %v4597 = vmul.f32 %v4285, %v4589
    %v4598 = vmul.f32 %v4286, %v4590
    %v4599 = vmul.f32 %v4287, %v4591
    %v4600 = vmul.f32 %v4288, %v4592
    %v4601 = vmul.f32 %v4289, %v4593
    %v4602 = vpack.c.bf16 %v4598, %v4594
    %v4603 = vpack.c.bf16 %v4599, %v4595
    %v4604 = vpack.c.bf16 %v4600, %v4596
    %v4605 = vpack.c.bf16 %v4601, %v4597
    %s4606 = scalar_lea.vmem [#allocation19], 256
    %v4607 = vld [vmem:[%s4606] sm:$0xf]
    %v4608 = vld [vmem:[%s4606 + $0x4] sm:$0xf]
    %v4609 = vld [vmem:[%s4606 + $0x8] sm:$0xf]
    %v4610 = vld [vmem:[%s4606 + $0xc] sm:$0xf]
    %v4611 = vld [vmem:[%s4606 + $0x10] sm:$0xf]
    %v4612 = vld [vmem:[%s4606 + $0x14] sm:$0xf]
    %v4613 = vld [vmem:[%s4606 + $0x18] sm:$0xf]
    %v4614 = vld [vmem:[%s4606 + $0x1c] sm:$0xf]
    %v4615 = vld [vmem:[%s4606 + $0x20] sm:$0xf]
    %v4616 = vld [vmem:[%s4606 + $0x24] sm:$0xf]
    %v4617 = vld [vmem:[%s4606 + $0x28] sm:$0xf]
    %v4618 = vld [vmem:[%s4606 + $0x2c] sm:$0xf]
    %v4619 = vld [vmem:[%s4606 + $0x30] sm:$0xf]
    %v4620 = vld [vmem:[%s4606 + $0x34] sm:$0xf]
    %v4621 = vld [vmem:[%s4606 + $0x38] sm:$0xf]
    %v4622 = vld [vmem:[%s4606 + $0x3c] sm:$0xf]
    %v4623 = vld [vmem:[%s4606 + $0x40] sm:$0xf]
    %v4624 = vld [vmem:[%s4606 + $0x44] sm:$0xf]
    %v4625 = vld [vmem:[%s4606 + $0x48] sm:$0xf]
    %v4626 = vld [vmem:[%s4606 + $0x4c] sm:$0xf]
    %v4627 = vld [vmem:[%s4606 + $0x50] sm:$0xf]
    %v4628 = vld [vmem:[%s4606 + $0x54] sm:$0xf]
    %v4629 = vld [vmem:[%s4606 + $0x58] sm:$0xf]
    %v4630 = vld [vmem:[%s4606 + $0x5c] sm:$0xf]
    %v4631 = vld [vmem:[%s4606 + $0x60] sm:$0xf]
    %v4632 = vld [vmem:[%s4606 + $0x64] sm:$0xf]
    %v4633 = vld [vmem:[%s4606 + $0x68] sm:$0xf]
    %v4634 = vld [vmem:[%s4606 + $0x6c] sm:$0xf]
    %v4635 = vld [vmem:[%s4606 + $0x70] sm:$0xf]
    %v4636 = vld [vmem:[%s4606 + $0x74] sm:$0xf]
    %v4637 = vld [vmem:[%s4606 + $0x78] sm:$0xf]
    %v4638 = vld [vmem:[%s4606 + $0x7c] sm:$0xf]
    %v4639 = vld [vmem:[%s4606 + $0x80] sm:$0xf]
    %v4640 = vld [vmem:[%s4606 + $0x84] sm:$0xf]
    %v4641 = vld [vmem:[%s4606 + $0x88] sm:$0xf]
    %v4642 = vld [vmem:[%s4606 + $0x8c] sm:$0xf]
    %v4643 = vld [vmem:[%s4606 + $0x90] sm:$0xf]
    %v4644 = vld [vmem:[%s4606 + $0x94] sm:$0xf]
    %v4645 = vld [vmem:[%s4606 + $0x98] sm:$0xf]
    %v4646 = vld [vmem:[%s4606 + $0x9c] sm:$0xf]
    %v4647 = vld [vmem:[%s4606 + $0xa0] sm:$0xf]
    %v4648 = vld [vmem:[%s4606 + $0xa4] sm:$0xf]
    %v4649 = vld [vmem:[%s4606 + $0xa8] sm:$0xf]
    %v4650 = vld [vmem:[%s4606 + $0xac] sm:$0xf]
    %v4651 = vld [vmem:[%s4606 + $0xb0] sm:$0xf]
    %v4652 = vld [vmem:[%s4606 + $0xb4] sm:$0xf]
    %v4653 = vld [vmem:[%s4606 + $0xb8] sm:$0xf]
    %v4654 = vld [vmem:[%s4606 + $0xbc] sm:$0xf]
    %v4655 = vld [vmem:[%s4606 + $0xc0] sm:$0xf]
    %v4656 = vld [vmem:[%s4606 + $0xc4] sm:$0xf]
    %v4657 = vld [vmem:[%s4606 + $0xc8] sm:$0xf]
    %v4658 = vld [vmem:[%s4606 + $0xcc] sm:$0xf]
    %v4659 = vld [vmem:[%s4606 + $0xd0] sm:$0xf]
    %v4660 = vld [vmem:[%s4606 + $0xd4] sm:$0xf]
    %v4661 = vld [vmem:[%s4606 + $0xd8] sm:$0xf]
    %v4662 = vld [vmem:[%s4606 + $0xdc] sm:$0xf]
    %v4663 = vld [vmem:[%s4606 + $0xe0] sm:$0xf]
    %v4664 = vld [vmem:[%s4606 + $0xe4] sm:$0xf]
    %v4665 = vld [vmem:[%s4606 + $0xe8] sm:$0xf]
    %v4666 = vld [vmem:[%s4606 + $0xec] sm:$0xf]
    %v4667 = vld [vmem:[%s4606 + $0xf0] sm:$0xf]
    %v4668 = vld [vmem:[%s4606 + $0xf4] sm:$0xf]
    %v4669 = vld [vmem:[%s4606 + $0xf8] sm:$0xf]
    %v4670 = vld [vmem:[%s4606 + $0xfc] sm:$0xf]
    %v4671 = vperm.slane %v246, 7
    %v4736 = vunpack.c.l.b16 %v4607
    %v4737 = vunpack.c.l.b16 %v4608
    %v4738 = vunpack.c.l.b16 %v4609
    %v4739 = vunpack.c.l.b16 %v4610
    %v4740 = vunpack.c.l.b16 %v4611
    %v4741 = vunpack.c.l.b16 %v4612
    %v4742 = vunpack.c.l.b16 %v4613
    %v4743 = vunpack.c.l.b16 %v4614
    %v4744 = vunpack.c.l.b16 %v4615
    %v4745 = vunpack.c.l.b16 %v4616
    %v4746 = vunpack.c.l.b16 %v4617
    %v4747 = vunpack.c.l.b16 %v4618
    %v4748 = vunpack.c.l.b16 %v4619
    %v4749 = vunpack.c.l.b16 %v4620
    %v4750 = vunpack.c.l.b16 %v4621
    %v4751 = vunpack.c.l.b16 %v4622
    %v4752 = vunpack.c.l.b16 %v4623
    %v4753 = vunpack.c.l.b16 %v4624
    %v4754 = vunpack.c.l.b16 %v4625
    %v4755 = vunpack.c.l.b16 %v4626
    %v4756 = vunpack.c.l.b16 %v4627
    %v4757 = vunpack.c.l.b16 %v4628
    %v4758 = vunpack.c.l.b16 %v4629
    %v4759 = vunpack.c.l.b16 %v4630
    %v4760 = vunpack.c.l.b16 %v4631
    %v4761 = vunpack.c.l.b16 %v4632
    %v4762 = vunpack.c.l.b16 %v4633
    %v4763 = vunpack.c.l.b16 %v4634
    %v4764 = vunpack.c.l.b16 %v4635
    %v4765 = vunpack.c.l.b16 %v4636
    %v4766 = vunpack.c.l.b16 %v4637
    %v4767 = vunpack.c.l.b16 %v4638
    %v4768 = vunpack.c.l.b16 %v4639
    %v4769 = vunpack.c.l.b16 %v4640
    %v4770 = vunpack.c.l.b16 %v4641
    %v4771 = vunpack.c.l.b16 %v4642
    %v4772 = vunpack.c.l.b16 %v4643
    %v4773 = vunpack.c.l.b16 %v4644
    %v4774 = vunpack.c.l.b16 %v4645
    %v4775 = vunpack.c.l.b16 %v4646
    %v4776 = vunpack.c.l.b16 %v4647
    %v4777 = vunpack.c.l.b16 %v4648
    %v4778 = vunpack.c.l.b16 %v4649
    %v4779 = vunpack.c.l.b16 %v4650
    %v4780 = vunpack.c.l.b16 %v4651
    %v4781 = vunpack.c.l.b16 %v4652
    %v4782 = vunpack.c.l.b16 %v4653
    %v4783 = vunpack.c.l.b16 %v4654
    %v4784 = vunpack.c.l.b16 %v4655
    %v4785 = vunpack.c.l.b16 %v4656
    %v4786 = vunpack.c.l.b16 %v4657
    %v4787 = vunpack.c.l.b16 %v4658
    %v4788 = vunpack.c.l.b16 %v4659
    %v4789 = vunpack.c.l.b16 %v4660
    %v4790 = vunpack.c.l.b16 %v4661
    %v4791 = vunpack.c.l.b16 %v4662
    %v4792 = vunpack.c.l.b16 %v4663
    %v4793 = vunpack.c.l.b16 %v4664
    %v4794 = vunpack.c.l.b16 %v4665
    %v4795 = vunpack.c.l.b16 %v4666
    %v4796 = vunpack.c.l.b16 %v4667
    %v4797 = vunpack.c.l.b16 %v4668
    %v4798 = vunpack.c.l.b16 %v4669
    %v4799 = vunpack.c.l.b16 %v4670
    %v4800 = vpack.c.b16 %v4737, %v4736
    %v4801 = vpack.c.b16 %v4739, %v4738
    %v4802 = vpack.c.b16 %v4741, %v4740
    %v4803 = vpack.c.b16 %v4743, %v4742
    %v4804 = vpack.c.b16 %v4745, %v4744
    %v4805 = vpack.c.b16 %v4747, %v4746
    %v4806 = vpack.c.b16 %v4749, %v4748
    %v4807 = vpack.c.b16 %v4751, %v4750
    %v4808 = vpack.c.b16 %v4753, %v4752
    %v4809 = vpack.c.b16 %v4755, %v4754
    %v4810 = vpack.c.b16 %v4757, %v4756
    %v4811 = vpack.c.b16 %v4759, %v4758
    %v4812 = vpack.c.b16 %v4761, %v4760
    %v4813 = vpack.c.b16 %v4763, %v4762
    %v4814 = vpack.c.b16 %v4765, %v4764
    %v4815 = vpack.c.b16 %v4767, %v4766
    %v4816 = vpack.c.b16 %v4769, %v4768
    %v4817 = vpack.c.b16 %v4771, %v4770
    %v4818 = vpack.c.b16 %v4773, %v4772
    %v4819 = vpack.c.b16 %v4775, %v4774
    %v4820 = vpack.c.b16 %v4777, %v4776
    %v4821 = vpack.c.b16 %v4779, %v4778
    %v4822 = vpack.c.b16 %v4781, %v4780
    %v4823 = vpack.c.b16 %v4783, %v4782
    %v4824 = vpack.c.b16 %v4785, %v4784
    %v4825 = vpack.c.b16 %v4787, %v4786
    %v4826 = vpack.c.b16 %v4789, %v4788
    %v4827 = vpack.c.b16 %v4791, %v4790
    %v4828 = vpack.c.b16 %v4793, %v4792
    %v4829 = vpack.c.b16 %v4795, %v4794
    %v4830 = vpack.c.b16 %v4797, %v4796
    %v4831 = vpack.c.b16 %v4799, %v4798
    %4864 = vmatpush.bf16.msra.mxu0 %v4807
    %4865 = vmatpush.bf16.msra.mxu0 %v4806
    %4866 = vmatpush.bf16.msra.mxu0 %v4805
    %4867 = vmatpush.bf16.msra.mxu0 %v4804
    %4868 = vmatpush.bf16.msra.mxu0 %v4803
    %4869 = vmatpush.bf16.msra.mxu0 %v4802
    %4870 = vmatpush.bf16.msra.mxu0 %v4801
    %4871 = vmatpush.bf16.msra.mxu0 %v4800
    %4872 = vmatmul.bf16.gmra.mxu0 %v4602
    %v4873 = vpop.f32.mrf.mxu0
    %v4874 = vadd.f32 %v4671, %v4873
    %v4875 = vpop.f32.mrf.mxu0
    %v4876 = vadd.f32 %v4671, %v4875
    %4877 = vdwg.mxu0
    %4878 = vmatpush.bf16.msra.mxu0 %v4815
    %4879 = vmatpush.bf16.msra.mxu0 %v4814
    %4880 = vmatpush.bf16.msra.mxu0 %v4813
    %4881 = vmatpush.bf16.msra.mxu0 %v4812
    %4882 = vmatpush.bf16.msra.mxu0 %v4811
    %4883 = vmatpush.bf16.msra.mxu0 %v4810
    %4884 = vmatpush.bf16.msra.mxu0 %v4809
    %4885 = vmatpush.bf16.msra.mxu0 %v4808
    %4886 = vmatmul.bf16.gmra.mxu0 %v4603
    %v4887 = vpop.f32.mrf.mxu0
    %v4888 = vadd.f32 %v4874, %v4887
    %v4889 = vpop.f32.mrf.mxu0
    %v4890 = vadd.f32 %v4876, %v4889
    %4891 = vdwg.mxu0
    %4892 = vmatpush.bf16.msra.mxu0 %v4823
    %4893 = vmatpush.bf16.msra.mxu0 %v4822
    %4894 = vmatpush.bf16.msra.mxu0 %v4821
    %4895 = vmatpush.bf16.msra.mxu0 %v4820
    %4896 = vmatpush.bf16.msra.mxu0 %v4819
    %4897 = vmatpush.bf16.msra.mxu0 %v4818
    %4898 = vmatpush.bf16.msra.mxu0 %v4817
    %4899 = vmatpush.bf16.msra.mxu0 %v4816
    %4900 = vmatmul.bf16.gmra.mxu0 %v4604
    %v4901 = vpop.f32.mrf.mxu0
    %v4902 = vadd.f32 %v4888, %v4901
    %v4903 = vpop.f32.mrf.mxu0
    %v4904 = vadd.f32 %v4890, %v4903
    %4905 = vdwg.mxu0
    %4906 = vmatpush.bf16.msra.mxu0 %v4831
    %4907 = vmatpush.bf16.msra.mxu0 %v4830
    %4908 = vmatpush.bf16.msra.mxu0 %v4829
    %4909 = vmatpush.bf16.msra.mxu0 %v4828
    %4910 = vmatpush.bf16.msra.mxu0 %v4827
    %4911 = vmatpush.bf16.msra.mxu0 %v4826
    %4912 = vmatpush.bf16.msra.mxu0 %v4825
    %4913 = vmatpush.bf16.msra.mxu0 %v4824
    %4914 = vmatmul.bf16.gmra.mxu0 %v4605
    %v4915 = vpop.f32.mrf.mxu0
    %v4916 = vadd.f32 %v4902, %v4915
    %v4917 = vpop.f32.mrf.mxu0
    %v4918 = vadd.f32 %v4904, %v4917
    %4919 = vdwg.mxu0
    %v4920 = vadd.f32 %v4026, %v4916
    %v4921 = vadd.f32 %v4027, %v4918
    %4922 = vadd.xlane.f32.xlu0 %v4920
    %v4923 = vpop.xlane.xlu0 %4922
    %4924 = vadd.xlane.f32.xlu0 %v4921
    %v4925 = vpop.xlane.xlu0 %4924
    %v4926 = vmul.f32 %v4923, %v1245
    %v4927 = vmul.f32 %v4925, %v1245
    %v4928 = vsub.f32 %v4920, %v4926
    %v4929 = vsub.f32 %v4921, %v4927
    %v4930 = vmul.f32 %v4928, %v4928
    %v4931 = vmul.f32 %v4929, %v4929
    %4932 = vadd.xlane.f32.xlu0 %v4930
    %v4933 = vpop.xlane.xlu0 %4932
    %4934 = vadd.xlane.f32.xlu0 %v4931
    %v4935 = vpop.xlane.xlu0 %4934
    %v4936 = vmul.f32 %v4933, %v1245
    %v4937 = vmul.f32 %v4935, %v1245
    %v4938 = vadd.f32 %v4936, 1e-05
    %v4939 = vadd.f32 %v4937, 1e-05
    %v4940 = vrsqrt.pop %v4938
    %v4941 = vmul.f32 %v4940, %v4938
    %v4942 = vmul.f32 %v4941, %v4940
    %v4943 = vmul.f32 0.5, %v4942
    %v4944 = vsub.f32 1.5, %v4943
    %v4945 = vmul.f32 %v4940, %v4944
    %vm4946 = vweird.f32 %v4938
    %vm4947 = vweird.f32 %v4940
    %vm4948 = vmor %vm4946, %vm4947
    %v4949 = vsel %vm4948, %v4940, %v4945
    %v4950 = vrsqrt.pop %v4939
    %v4951 = vmul.f32 %v4950, %v4939
    %v4952 = vmul.f32 %v4951, %v4950
    %v4953 = vmul.f32 0.5, %v4952
    %v4954 = vsub.f32 1.5, %v4953
    %v4955 = vmul.f32 %v4950, %v4954
    %vm4956 = vweird.f32 %v4939
    %vm4957 = vweird.f32 %v4950
    %vm4958 = vmor %vm4956, %vm4957
    %v4959 = vsel %vm4958, %v4950, %v4955
    %v4960 = vmul.f32 %v4928, %v4949
    %v4961 = vmul.f32 %v4929, %v4959
    %v4962 = vperm.slane %v248, 5
    %v4963 = vmul.f32 %v4960, %v4962
    %v4964 = vmul.f32 %v4961, %v4962
    %v4965 = vperm.slane %v248, 6
    %v4966 = vadd.f32 %v4963, %v4965
    %v4967 = vadd.f32 %v4964, %v4965
    %s4968 = scalar_lea.vmem [#allocation23], 32
    %4969 = vst [vmem:[%s4968] sm:$0xff] %v4966
    %4970 = vst [vmem:[%s4968 + $0x8] sm:$0xff] %v4967
    %s4971 = scalar_lea.vmem [#allocation16], 192
    %v4972 = vld [vmem:[%s4971] sm:$0xf]
    %v4973 = vld [vmem:[%s4971 + $0x4] sm:$0xf]
    %v4974 = vld [vmem:[%s4971 + $0x8] sm:$0xf]
    %v4975 = vld [vmem:[%s4971 + $0xc] sm:$0xf]
    %v4976 = vld [vmem:[%s4971 + $0x10] sm:$0xf]
    %v4977 = vld [vmem:[%s4971 + $0x14] sm:$0xf]
    %v4978 = vld [vmem:[%s4971 + $0x18] sm:$0xf]
    %v4979 = vld [vmem:[%s4971 + $0x1c] sm:$0xf]
    %v4980 = vld [vmem:[%s4971 + $0x20] sm:$0xf]
    %v4981 = vld [vmem:[%s4971 + $0x24] sm:$0xf]
    %v4982 = vld [vmem:[%s4971 + $0x28] sm:$0xf]
    %v4983 = vld [vmem:[%s4971 + $0x2c] sm:$0xf]
    %v4984 = vld [vmem:[%s4971 + $0x30] sm:$0xf]
    %v4985 = vld [vmem:[%s4971 + $0x34] sm:$0xf]
    %v4986 = vld [vmem:[%s4971 + $0x38] sm:$0xf]
    %v4987 = vld [vmem:[%s4971 + $0x3c] sm:$0xf]
    %4988 = vmatpush.bf16.xpose.msra.mxu0 0
    %4989 = vmatpush.bf16.xpose.msra.mxu0 0
    %4990 = vmatpush.bf16.xpose.msra.mxu0 0
    %4991 = vmatpush.bf16.xpose.msra.mxu0 0
    %4992 = vmatpush.bf16.xpose.msra.mxu0 0
    %4993 = vmatpush.bf16.xpose.msra.mxu0 0
    %4994 = vmatpush.bf16.xpose.msra.mxu0 0
    %4995 = vmatpush.bf16.xpose.msra.mxu0 %v2246
    %4996 = vmatmul.bf16.gmra.mxu0 %v3619
    %v4997 = vpop.f32.mrf.mxu0
    %v4998 = vadd.f32 %v254, %v4997
    %v4999 = vpop.f32.mrf.mxu0
    %v5000 = vadd.f32 %v255, %v4999
    %5001 = vdwg.mxu0
    %v5002 = vsel %vm861, %v4998, -inf
    %5003 = vmax.xlane.f32.xlu0 %v5002
    %v5004 = vpop.xlane.xlu0 %5003
    %v5005 = vsel %vm861, %v5000, -inf
    %5006 = vmax.xlane.f32.xlu0 %v5005
    %v5007 = vpop.xlane.xlu0 %5006
    %v5008 = vsub.f32 %v4998, %v5004
    %v5009 = vsub.f32 %v5000, %v5007
    %v5010 = vmul.f32 %v5008, 1.442695
    %v5011 = vpow.pop %v5010
    %v5012 = vmul.f32 %v5009, 1.442695
    %v5013 = vpow.pop %v5012
    %v5014 = vsel %vm861, %v5011, 0.0
    %5015 = vadd.xlane.f32.xlu0 %v5014
    %v5016 = vpop.xlane.xlu0 %5015
    %v5017 = vsel %vm861, %v5013, 0.0
    %5018 = vadd.xlane.f32.xlu0 %v5017
    %v5019 = vpop.xlane.xlu0 %5018
    %v5020 = vrcp.pop %v5016
    %v5021 = vrcp.pop %v5019
    %v5022 = vmul.f32 %v5011, %v5020
    %v5023 = vmul.f32 %v5013, %v5021
    %v5024 = vpack.c.bf16 %v5023, %v5022
    %v5026 = vsel %vm861, %v5024, 0
    %5028 = vmatpush.bf16.msra.mxu0 0
    %5029 = vmatpush.bf16.msra.mxu0 0
    %5030 = vmatpush.bf16.msra.mxu0 0
    %5031 = vmatpush.bf16.msra.mxu0 0
    %5032 = vmatpush.bf16.msra.mxu0 0
    %5033 = vmatpush.bf16.msra.mxu0 0
    %5034 = vmatpush.bf16.msra.mxu0 0
    %5035 = vmatpush.bf16.msra.mxu0 %v823
    %5036 = vmatmul.bf16.gmra.mxu0 %v5026
    %v5037 = vpop.f32.mrf.mxu0
    %v5038 = vadd.f32 0.0, %v5037
    %v5039 = vpop.f32.mrf.mxu0
    %v5040 = vadd.f32 0.0, %v5039
    %5041 = vdwg.mxu0
    %v5042 = vpack.c.bf16 %v5040, %v5038
    %5043 = vmatpush.bf16.xpose.msra.mxu0 0
    %5044 = vmatpush.bf16.xpose.msra.mxu0 0
    %5045 = vmatpush.bf16.xpose.msra.mxu0 0
    %5046 = vmatpush.bf16.xpose.msra.mxu0 0
    %5047 = vmatpush.bf16.xpose.msra.mxu0 0
    %5048 = vmatpush.bf16.xpose.msra.mxu0 0
    %5049 = vmatpush.bf16.xpose.msra.mxu0 0
    %5050 = vmatpush.bf16.xpose.msra.mxu0 %v2307
    %5051 = vmatmul.bf16.gmra.mxu0 %v3680
    %v5052 = vpop.f32.mrf.mxu0
    %v5053 = vadd.f32 %v254, %v5052
    %v5054 = vpop.f32.mrf.mxu0
    %v5055 = vadd.f32 %v255, %v5054
    %5056 = vdwg.mxu0
    %v5057 = vsel %vm861, %v5053, -inf
    %5058 = vmax.xlane.f32.xlu0 %v5057
    %v5059 = vpop.xlane.xlu0 %5058
    %v5060 = vsel %vm861, %v5055, -inf
    %5061 = vmax.xlane.f32.xlu0 %v5060
    %v5062 = vpop.xlane.xlu0 %5061
    %v5063 = vsub.f32 %v5053, %v5059
    %v5064 = vsub.f32 %v5055, %v5062
    %v5065 = vmul.f32 %v5063, 1.442695
    %v5066 = vpow.pop %v5065
    %v5067 = vmul.f32 %v5064, 1.442695
    %v5068 = vpow.pop %v5067
    %v5069 = vsel %vm861, %v5066, 0.0
    %5070 = vadd.xlane.f32.xlu0 %v5069
    %v5071 = vpop.xlane.xlu0 %5070
    %v5072 = vsel %vm861, %v5068, 0.0
    %5073 = vadd.xlane.f32.xlu0 %v5072
    %v5074 = vpop.xlane.xlu0 %5073
    %v5075 = vrcp.pop %v5071
    %v5076 = vrcp.pop %v5074
    %v5077 = vmul.f32 %v5066, %v5075
    %v5078 = vmul.f32 %v5068, %v5076
    %v5079 = vpack.c.bf16 %v5078, %v5077
    %v5081 = vsel %vm861, %v5079, 0
    %5083 = vmatpush.bf16.msra.mxu0 0
    %5084 = vmatpush.bf16.msra.mxu0 0
    %5085 = vmatpush.bf16.msra.mxu0 0
    %5086 = vmatpush.bf16.msra.mxu0 0
    %5087 = vmatpush.bf16.msra.mxu0 0
    %5088 = vmatpush.bf16.msra.mxu0 0
    %5089 = vmatpush.bf16.msra.mxu0 0
    %5090 = vmatpush.bf16.msra.mxu0 %v2348
    %5091 = vmatmul.bf16.gmra.mxu0 %v5081
    %v5092 = vpop.f32.mrf.mxu0
    %v5093 = vadd.f32 0.0, %v5092
    %v5094 = vpop.f32.mrf.mxu0
    %v5095 = vadd.f32 0.0, %v5094
    %5096 = vdwg.mxu0
    %v5097 = vpack.c.bf16 %v5095, %v5093
    %v5102 = vunpack.c.l.b16 %v4976
    %v5103 = vunpack.c.l.b16 %v4977
    %v5104 = vunpack.c.l.b16 %v4978
    %v5105 = vunpack.c.l.b16 %v4979
    %v5106 = vpack.c.b16 %v5103, %v5102
    %v5107 = vpack.c.b16 %v5105, %v5104
    %v5111 = vsel %vm840, %v5097, 0
    %5113 = vmatpush.bf16.msra.mxu0 0
    %5114 = vmatpush.bf16.msra.mxu0 0
    %5115 = vmatpush.bf16.msra.mxu0 0
    %5116 = vmatpush.bf16.msra.mxu0 0
    %5117 = vmatpush.bf16.msra.mxu0 0
    %5118 = vmatpush.bf16.msra.mxu0 0
    %5119 = vmatpush.bf16.msra.mxu0 %v5107
    %5120 = vmatpush.bf16.msra.mxu0 %v5106
    %5121 = vmatmul.bf16.gmra.mxu0 %v5111
    %v5122 = vpop.f32.mrf.mxu0
    %v5123 = vadd.f32 0.0, %v5122
    %v5124 = vpop.f32.mrf.mxu0
    %v5125 = vadd.f32 0.0, %v5124
    %5126 = vdwg.mxu0
    %v5131 = vunpack.c.l.b16 %v4972
    %v5132 = vunpack.c.l.b16 %v4973
    %v5133 = vunpack.c.l.b16 %v4974
    %v5134 = vunpack.c.l.b16 %v4975
    %v5135 = vpack.c.b16 %v5132, %v5131
    %v5136 = vpack.c.b16 %v5134, %v5133
    %v5140 = vsel %vm840, %v5042, 0
    %5142 = vmatpush.bf16.msra.mxu0 0
    %5143 = vmatpush.bf16.msra.mxu0 0
    %5144 = vmatpush.bf16.msra.mxu0 0
    %5145 = vmatpush.bf16.msra.mxu0 0
    %5146 = vmatpush.bf16.msra.mxu0 0
    %5147 = vmatpush.bf16.msra.mxu0 0
    %5148 = vmatpush.bf16.msra.mxu0 %v5136
    %5149 = vmatpush.bf16.msra.mxu0 %v5135
    %5150 = vmatmul.bf16.gmra.mxu0 %v5140
    %v5151 = vpop.f32.mrf.mxu0
    %v5152 = vadd.f32 %v5123, %v5151
    %v5153 = vpop.f32.mrf.mxu0
    %v5154 = vadd.f32 %v5125, %v5153
    %5155 = vdwg.mxu0
    %5156 = vmatpush.bf16.xpose.msra.mxu0 0
    %5157 = vmatpush.bf16.xpose.msra.mxu0 0
    %5158 = vmatpush.bf16.xpose.msra.mxu0 0
    %5159 = vmatpush.bf16.xpose.msra.mxu0 0
    %5160 = vmatpush.bf16.xpose.msra.mxu0 0
    %5161 = vmatpush.bf16.xpose.msra.mxu0 0
    %5162 = vmatpush.bf16.xpose.msra.mxu0 0
    %5163 = vmatpush.bf16.xpose.msra.mxu0 %v2429
    %5164 = vmatmul.bf16.gmra.mxu0 %v3798
    %v5165 = vpop.f32.mrf.mxu0
    %v5166 = vadd.f32 %v254, %v5165
    %v5167 = vpop.f32.mrf.mxu0
    %v5168 = vadd.f32 %v255, %v5167
    %5169 = vdwg.mxu0
    %v5170 = vsel %vm861, %v5166, -inf
    %5171 = vmax.xlane.f32.xlu0 %v5170
    %v5172 = vpop.xlane.xlu0 %5171
    %v5173 = vsel %vm861, %v5168, -inf
    %5174 = vmax.xlane.f32.xlu0 %v5173
    %v5175 = vpop.xlane.xlu0 %5174
    %v5176 = vsub.f32 %v5166, %v5172
    %v5177 = vsub.f32 %v5168, %v5175
    %v5178 = vmul.f32 %v5176, 1.442695
    %v5179 = vpow.pop %v5178
    %v5180 = vmul.f32 %v5177, 1.442695
    %v5181 = vpow.pop %v5180
    %v5182 = vsel %vm861, %v5179, 0.0
    %5183 = vadd.xlane.f32.xlu0 %v5182
    %v5184 = vpop.xlane.xlu0 %5183
    %v5185 = vsel %vm861, %v5181, 0.0
    %5186 = vadd.xlane.f32.xlu0 %v5185
    %v5187 = vpop.xlane.xlu0 %5186
    %v5188 = vrcp.pop %v5184
    %v5189 = vrcp.pop %v5187
    %v5190 = vmul.f32 %v5179, %v5188
    %v5191 = vmul.f32 %v5181, %v5189
    %v5192 = vpack.c.bf16 %v5191, %v5190
    %v5194 = vsel %vm861, %v5192, 0
    %5196 = vmatpush.bf16.msra.mxu0 0
    %5197 = vmatpush.bf16.msra.mxu0 0
    %5198 = vmatpush.bf16.msra.mxu0 0
    %5199 = vmatpush.bf16.msra.mxu0 0
    %5200 = vmatpush.bf16.msra.mxu0 0
    %5201 = vmatpush.bf16.msra.mxu0 0
    %5202 = vmatpush.bf16.msra.mxu0 0
    %5203 = vmatpush.bf16.msra.mxu0 %v2469
    %5204 = vmatmul.bf16.gmra.mxu0 %v5194
    %v5205 = vpop.f32.mrf.mxu0
    %v5206 = vadd.f32 0.0, %v5205
    %v5207 = vpop.f32.mrf.mxu0
    %v5208 = vadd.f32 0.0, %v5207
    %5209 = vdwg.mxu0
    %v5210 = vpack.c.bf16 %v5208, %v5206
    %v5215 = vunpack.c.l.b16 %v4980
    %v5216 = vunpack.c.l.b16 %v4981
    %v5217 = vunpack.c.l.b16 %v4982
    %v5218 = vunpack.c.l.b16 %v4983
    %v5219 = vpack.c.b16 %v5216, %v5215
    %v5220 = vpack.c.b16 %v5218, %v5217
    %v5224 = vsel %vm840, %v5210, 0
    %5226 = vmatpush.bf16.msra.mxu0 0
    %5227 = vmatpush.bf16.msra.mxu0 0
    %5228 = vmatpush.bf16.msra.mxu0 0
    %5229 = vmatpush.bf16.msra.mxu0 0
    %5230 = vmatpush.bf16.msra.mxu0 0
    %5231 = vmatpush.bf16.msra.mxu0 0
    %5232 = vmatpush.bf16.msra.mxu0 %v5220
    %5233 = vmatpush.bf16.msra.mxu0 %v5219
    %5234 = vmatmul.bf16.gmra.mxu0 %v5224
    %v5235 = vpop.f32.mrf.mxu0
    %v5236 = vadd.f32 0.0, %v5235
    %v5237 = vpop.f32.mrf.mxu0
    %v5238 = vadd.f32 0.0, %v5237
    %5239 = vdwg.mxu0
    %v5240 = vadd.f32 %v5152, %v5236
    %v5241 = vadd.f32 %v5154, %v5238
    %5242 = vmatpush.bf16.xpose.msra.mxu0 0
    %5243 = vmatpush.bf16.xpose.msra.mxu0 0
    %5244 = vmatpush.bf16.xpose.msra.mxu0 0
    %5245 = vmatpush.bf16.xpose.msra.mxu0 0
    %5246 = vmatpush.bf16.xpose.msra.mxu0 0
    %5247 = vmatpush.bf16.xpose.msra.mxu0 0
    %5248 = vmatpush.bf16.xpose.msra.mxu0 0
    %5249 = vmatpush.bf16.xpose.msra.mxu0 %v2523
    %5250 = vmatmul.bf16.gmra.mxu0 %v3889
    %v5251 = vpop.f32.mrf.mxu0
    %v5252 = vadd.f32 %v254, %v5251
    %v5253 = vpop.f32.mrf.mxu0
    %v5254 = vadd.f32 %v255, %v5253
    %5255 = vdwg.mxu0
    %v5256 = vsel %vm861, %v5252, -inf
    %5257 = vmax.xlane.f32.xlu0 %v5256
    %v5258 = vpop.xlane.xlu0 %5257
    %v5259 = vsel %vm861, %v5254, -inf
    %5260 = vmax.xlane.f32.xlu0 %v5259
    %v5261 = vpop.xlane.xlu0 %5260
    %v5262 = vsub.f32 %v5252, %v5258
    %v5263 = vsub.f32 %v5254, %v5261
    %v5264 = vmul.f32 %v5262, 1.442695
    %v5265 = vpow.pop %v5264
    %v5266 = vmul.f32 %v5263, 1.442695
    %v5267 = vpow.pop %v5266
    %v5268 = vsel %vm861, %v5265, 0.0
    %5269 = vadd.xlane.f32.xlu0 %v5268
    %v5270 = vpop.xlane.xlu0 %5269
    %v5271 = vsel %vm861, %v5267, 0.0
    %5272 = vadd.xlane.f32.xlu0 %v5271
    %v5273 = vpop.xlane.xlu0 %5272
    %v5274 = vrcp.pop %v5270
    %v5275 = vrcp.pop %v5273
    %v5276 = vmul.f32 %v5265, %v5274
    %v5277 = vmul.f32 %v5267, %v5275
    %v5278 = vpack.c.bf16 %v5277, %v5276
    %v5280 = vsel %vm861, %v5278, 0
    %5282 = vmatpush.bf16.msra.mxu0 0
    %5283 = vmatpush.bf16.msra.mxu0 0
    %5284 = vmatpush.bf16.msra.mxu0 0
    %5285 = vmatpush.bf16.msra.mxu0 0
    %5286 = vmatpush.bf16.msra.mxu0 0
    %5287 = vmatpush.bf16.msra.mxu0 0
    %5288 = vmatpush.bf16.msra.mxu0 0
    %5289 = vmatpush.bf16.msra.mxu0 %v2563
    %5290 = vmatmul.bf16.gmra.mxu0 %v5280
    %v5291 = vpop.f32.mrf.mxu0
    %v5292 = vadd.f32 0.0, %v5291
    %v5293 = vpop.f32.mrf.mxu0
    %v5294 = vadd.f32 0.0, %v5293
    %5295 = vdwg.mxu0
    %v5296 = vpack.c.bf16 %v5294, %v5292
    %v5301 = vunpack.c.l.b16 %v4984
    %v5302 = vunpack.c.l.b16 %v4985
    %v5303 = vunpack.c.l.b16 %v4986
    %v5304 = vunpack.c.l.b16 %v4987
    %v5305 = vpack.c.b16 %v5302, %v5301
    %v5306 = vpack.c.b16 %v5304, %v5303
    %v5310 = vsel %vm840, %v5296, 0
    %5312 = vmatpush.bf16.msra.mxu0 0
    %5313 = vmatpush.bf16.msra.mxu0 0
    %5314 = vmatpush.bf16.msra.mxu0 0
    %5315 = vmatpush.bf16.msra.mxu0 0
    %5316 = vmatpush.bf16.msra.mxu0 0
    %5317 = vmatpush.bf16.msra.mxu0 0
    %5318 = vmatpush.bf16.msra.mxu0 %v5306
    %5319 = vmatpush.bf16.msra.mxu0 %v5305
    %5320 = vmatmul.bf16.gmra.mxu0 %v5310
    %v5321 = vpop.f32.mrf.mxu0
    %v5322 = vadd.f32 0.0, %v5321
    %v5323 = vpop.f32.mrf.mxu0
    %v5324 = vadd.f32 0.0, %v5323
    %5325 = vdwg.mxu0
    %v5326 = vadd.f32 %v5240, %v5322
    %v5327 = vadd.f32 %v5241, %v5324
    %v5328 = vadd.f32 %v258, %v5326
    %v5329 = vadd.f32 %v259, %v5327
    %v5330 = vperm.slane %v248, 7
    %v5331 = vadd.f32 %v5328, %v5330
    %v5332 = vadd.f32 %v5329, %v5330
    %5333 = vadd.xlane.f32.xlu0 %v5331
    %v5334 = vpop.xlane.xlu0 %5333
    %5335 = vadd.xlane.f32.xlu0 %v5332
    %v5336 = vpop.xlane.xlu0 %5335
    %v5337 = vmul.f32 %v5334, %v1245
    %v5338 = vmul.f32 %v5336, %v1245
    %v5339 = vsub.f32 %v5331, %v5337
    %v5340 = vsub.f32 %v5332, %v5338
    %v5341 = vmul.f32 %v5339, %v5339
    %v5342 = vmul.f32 %v5340, %v5340
    %5343 = vadd.xlane.f32.xlu0 %v5341
    %v5344 = vpop.xlane.xlu0 %5343
    %5345 = vadd.xlane.f32.xlu0 %v5342
    %v5346 = vpop.xlane.xlu0 %5345
    %v5347 = vmul.f32 %v5344, %v1245
    %v5348 = vmul.f32 %v5346, %v1245
    %v5349 = vadd.f32 %v5347, 1e-05
    %v5350 = vadd.f32 %v5348, 1e-05
    %v5351 = vrsqrt.pop %v5349
    %v5352 = vmul.f32 %v5351, %v5349
    %v5353 = vmul.f32 %v5352, %v5351
    %v5354 = vmul.f32 0.5, %v5353
    %v5355 = vsub.f32 1.5, %v5354
    %v5356 = vmul.f32 %v5351, %v5355
    %vm5357 = vweird.f32 %v5349
    %vm5358 = vweird.f32 %v5351
    %vm5359 = vmor %vm5357, %vm5358
    %v5360 = vsel %vm5359, %v5351, %v5356
    %v5361 = vrsqrt.pop %v5350
    %v5362 = vmul.f32 %v5361, %v5350
    %v5363 = vmul.f32 %v5362, %v5361
    %v5364 = vmul.f32 0.5, %v5363
    %v5365 = vsub.f32 1.5, %v5364
    %v5366 = vmul.f32 %v5361, %v5365
    %vm5367 = vweird.f32 %v5350
    %vm5368 = vweird.f32 %v5361
    %vm5369 = vmor %vm5367, %vm5368
    %v5370 = vsel %vm5369, %v5361, %v5366
    %v5371 = vmul.f32 %v5339, %v5360
    %v5372 = vmul.f32 %v5340, %v5370
    %v5373 = vperm.slane %v249, 0
    %v5374 = vmul.f32 %v5371, %v5373
    %v5375 = vmul.f32 %v5372, %v5373
    %v5376 = vperm.slane %v249, 1
    %v5377 = vadd.f32 %v5374, %v5376
    %v5378 = vadd.f32 %v5375, %v5376
    %v5379 = vpack.c.bf16 %v5378, %v5377
    %v5380 = vld [vmem:[%s4029] sm:$0xff]
    %v5381 = vld [vmem:[%s4029 + $0x8] sm:$0xff]
    %v5382 = vld [vmem:[%s4029 + $0x10] sm:$0xff]
    %v5383 = vld [vmem:[%s4029 + $0x18] sm:$0xff]
    %v5384 = vld [vmem:[%s4029 + $0x20] sm:$0xff]
    %v5385 = vld [vmem:[%s4029 + $0x28] sm:$0xff]
    %v5386 = vld [vmem:[%s4029 + $0x30] sm:$0xff]
    %v5387 = vld [vmem:[%s4029 + $0x38] sm:$0xff]
    %v5388 = vld [vmem:[%s4029 + $0x40] sm:$0xff]
    %v5389 = vld [vmem:[%s4029 + $0x48] sm:$0xff]
    %v5390 = vld [vmem:[%s4029 + $0x50] sm:$0xff]
    %v5391 = vld [vmem:[%s4029 + $0x58] sm:$0xff]
    %v5392 = vld [vmem:[%s4029 + $0x60] sm:$0xff]
    %v5393 = vld [vmem:[%s4029 + $0x68] sm:$0xff]
    %v5394 = vld [vmem:[%s4029 + $0x70] sm:$0xff]
    %v5395 = vld [vmem:[%s4029 + $0x78] sm:$0xff]
    %v5396 = vld [vmem:[%s4029 + $0x80] sm:$0xff]
    %v5397 = vld [vmem:[%s4029 + $0x88] sm:$0xff]
    %v5398 = vld [vmem:[%s4029 + $0x90] sm:$0xff]
    %v5399 = vld [vmem:[%s4029 + $0x98] sm:$0xff]
    %v5400 = vld [vmem:[%s4029 + $0xa0] sm:$0xff]
    %v5401 = vld [vmem:[%s4029 + $0xa8] sm:$0xff]
    %v5402 = vld [vmem:[%s4029 + $0xb0] sm:$0xff]
    %v5403 = vld [vmem:[%s4029 + $0xb8] sm:$0xff]
    %v5404 = vld [vmem:[%s4029 + $0xc0] sm:$0xff]
    %v5405 = vld [vmem:[%s4029 + $0xc8] sm:$0xff]
    %v5406 = vld [vmem:[%s4029 + $0xd0] sm:$0xff]
    %v5407 = vld [vmem:[%s4029 + $0xd8] sm:$0xff]
    %v5408 = vld [vmem:[%s4029 + $0xe0] sm:$0xff]
    %v5409 = vld [vmem:[%s4029 + $0xe8] sm:$0xff]
    %v5410 = vld [vmem:[%s4029 + $0xf0] sm:$0xff]
    %v5411 = vld [vmem:[%s4029 + $0xf8] sm:$0xff]
    %v5444 = vunpack.c.l.b16 %v5380
    %v5445 = vunpack.c.h.b16 %v5380
    %v5446 = vunpack.c.l.b16 %v5381
    %v5447 = vunpack.c.h.b16 %v5381
    %v5448 = vunpack.c.l.b16 %v5382
    %v5449 = vunpack.c.h.b16 %v5382
    %v5450 = vunpack.c.l.b16 %v5383
    %v5451 = vunpack.c.h.b16 %v5383
    %v5452 = vunpack.c.l.b16 %v5384
    %v5453 = vunpack.c.h.b16 %v5384
    %v5454 = vunpack.c.l.b16 %v5385
    %v5455 = vunpack.c.h.b16 %v5385
    %v5456 = vunpack.c.l.b16 %v5386
    %v5457 = vunpack.c.h.b16 %v5386
    %v5458 = vunpack.c.l.b16 %v5387
    %v5459 = vunpack.c.h.b16 %v5387
    %v5460 = vunpack.c.l.b16 %v5388
    %v5461 = vunpack.c.h.b16 %v5388
    %v5462 = vunpack.c.l.b16 %v5389
    %v5463 = vunpack.c.h.b16 %v5389
    %v5464 = vunpack.c.l.b16 %v5390
    %v5465 = vunpack.c.h.b16 %v5390
    %v5466 = vunpack.c.l.b16 %v5391
    %v5467 = vunpack.c.h.b16 %v5391
    %v5468 = vunpack.c.l.b16 %v5392
    %v5469 = vunpack.c.h.b16 %v5392
    %v5470 = vunpack.c.l.b16 %v5393
    %v5471 = vunpack.c.h.b16 %v5393
    %v5472 = vunpack.c.l.b16 %v5394
    %v5473 = vunpack.c.h.b16 %v5394
    %v5474 = vunpack.c.l.b16 %v5395
    %v5475 = vunpack.c.h.b16 %v5395
    %v5476 = vunpack.c.l.b16 %v5396
    %v5477 = vunpack.c.h.b16 %v5396
    %v5478 = vunpack.c.l.b16 %v5397
    %v5479 = vunpack.c.h.b16 %v5397
    %v5480 = vunpack.c.l.b16 %v5398
    %v5481 = vunpack.c.h.b16 %v5398
    %v5482 = vunpack.c.l.b16 %v5399
    %v5483 = vunpack.c.h.b16 %v5399
    %v5484 = vunpack.c.l.b16 %v5400
    %v5485 = vunpack.c.h.b16 %v5400
    %v5486 = vunpack.c.l.b16 %v5401
    %v5487 = vunpack.c.h.b16 %v5401
    %v5488 = vunpack.c.l.b16 %v5402
    %v5489 = vunpack.c.h.b16 %v5402
    %v5490 = vunpack.c.l.b16 %v5403
    %v5491 = vunpack.c.h.b16 %v5403
    %v5492 = vunpack.c.l.b16 %v5404
    %v5493 = vunpack.c.h.b16 %v5404
    %v5494 = vunpack.c.l.b16 %v5405
    %v5495 = vunpack.c.h.b16 %v5405
    %v5496 = vunpack.c.l.b16 %v5406
    %v5497 = vunpack.c.h.b16 %v5406
    %v5498 = vunpack.c.l.b16 %v5407
    %v5499 = vunpack.c.h.b16 %v5407
    %v5500 = vunpack.c.l.b16 %v5408
    %v5501 = vunpack.c.h.b16 %v5408
    %v5502 = vunpack.c.l.b16 %v5409
    %v5503 = vunpack.c.h.b16 %v5409
    %v5504 = vunpack.c.l.b16 %v5410
    %v5505 = vunpack.c.h.b16 %v5410
    %v5506 = vunpack.c.l.b16 %v5411
    %v5507 = vunpack.c.h.b16 %v5411
    %v5508 = vpack.c.b16 %v5448, %v5444
    %v5509 = vpack.c.b16 %v5449, %v5445
    %v5510 = vpack.c.b16 %v5450, %v5446
    %v5511 = vpack.c.b16 %v5451, %v5447
    %v5512 = vpack.c.b16 %v5456, %v5452
    %v5513 = vpack.c.b16 %v5457, %v5453
    %v5514 = vpack.c.b16 %v5458, %v5454
    %v5515 = vpack.c.b16 %v5459, %v5455
    %v5516 = vpack.c.b16 %v5464, %v5460
    %v5517 = vpack.c.b16 %v5465, %v5461
    %v5518 = vpack.c.b16 %v5466, %v5462
    %v5519 = vpack.c.b16 %v5467, %v5463
    %v5520 = vpack.c.b16 %v5472, %v5468
    %v5521 = vpack.c.b16 %v5473, %v5469
    %v5522 = vpack.c.b16 %v5474, %v5470
    %v5523 = vpack.c.b16 %v5475, %v5471
    %v5524 = vpack.c.b16 %v5480, %v5476
    %v5525 = vpack.c.b16 %v5481, %v5477
    %v5526 = vpack.c.b16 %v5482, %v5478
    %v5527 = vpack.c.b16 %v5483, %v5479
    %v5528 = vpack.c.b16 %v5488, %v5484
    %v5529 = vpack.c.b16 %v5489, %v5485
    %v5530 = vpack.c.b16 %v5490, %v5486
    %v5531 = vpack.c.b16 %v5491, %v5487
    %v5532 = vpack.c.b16 %v5496, %v5492
    %v5533 = vpack.c.b16 %v5497, %v5493
    %v5534 = vpack.c.b16 %v5498, %v5494
    %v5535 = vpack.c.b16 %v5499, %v5495
    %v5536 = vpack.c.b16 %v5504, %v5500
    %v5537 = vpack.c.b16 %v5505, %v5501
    %v5538 = vpack.c.b16 %v5506, %v5502
    %v5539 = vpack.c.b16 %v5507, %v5503
    %5572 = vmatpush.bf16.msra.mxu0 %v5536
    %5573 = vmatpush.bf16.msra.mxu0 %v5532
    %5574 = vmatpush.bf16.msra.mxu0 %v5528
    %5575 = vmatpush.bf16.msra.mxu0 %v5524
    %5576 = vmatpush.bf16.msra.mxu0 %v5520
    %5577 = vmatpush.bf16.msra.mxu0 %v5516
    %5578 = vmatpush.bf16.msra.mxu0 %v5512
    %5579 = vmatpush.bf16.msra.mxu0 %v5508
    %5580 = vmatmul.bf16.gmra.mxu0 %v5379
    %v5581 = vpop.f32.mrf.mxu0
    %v5582 = vadd.f32 %v4062, %v5581
    %v5583 = vpop.f32.mrf.mxu0
    %v5584 = vadd.f32 %v4062, %v5583
    %5585 = vdwg.mxu0
    %5586 = vmatpush.bf16.msra.mxu0 %v5537
    %5587 = vmatpush.bf16.msra.mxu0 %v5533
    %5588 = vmatpush.bf16.msra.mxu0 %v5529
    %5589 = vmatpush.bf16.msra.mxu0 %v5525
    %5590 = vmatpush.bf16.msra.mxu0 %v5521
    %5591 = vmatpush.bf16.msra.mxu0 %v5517
    %5592 = vmatpush.bf16.msra.mxu0 %v5513
    %5593 = vmatpush.bf16.msra.mxu0 %v5509
    %5594 = vmatmul.bf16.gmra.mxu0 %v5379
    %v5595 = vpop.f32.mrf.mxu0
    %v5596 = vadd.f32 %v4063, %v5595
    %v5597 = vpop.f32.mrf.mxu0
    %v5598 = vadd.f32 %v4063, %v5597
    %5599 = vdwg.mxu0
    %5600 = vmatpush.bf16.msra.mxu0 %v5538
    %5601 = vmatpush.bf16.msra.mxu0 %v5534
    %5602 = vmatpush.bf16.msra.mxu0 %v5530
    %5603 = vmatpush.bf16.msra.mxu0 %v5526
    %5604 = vmatpush.bf16.msra.mxu0 %v5522
    %5605 = vmatpush.bf16.msra.mxu0 %v5518
    %5606 = vmatpush.bf16.msra.mxu0 %v5514
    %5607 = vmatpush.bf16.msra.mxu0 %v5510
    %5608 = vmatmul.bf16.gmra.mxu0 %v5379
    %v5609 = vpop.f32.mrf.mxu0
    %v5610 = vadd.f32 %v4064, %v5609
    %v5611 = vpop.f32.mrf.mxu0
    %v5612 = vadd.f32 %v4064, %v5611
    %5613 = vdwg.mxu0
    %5614 = vmatpush.bf16.msra.mxu0 %v5539
    %5615 = vmatpush.bf16.msra.mxu0 %v5535
    %5616 = vmatpush.bf16.msra.mxu0 %v5531
    %5617 = vmatpush.bf16.msra.mxu0 %v5527
    %5618 = vmatpush.bf16.msra.mxu0 %v5523
    %5619 = vmatpush.bf16.msra.mxu0 %v5519
    %5620 = vmatpush.bf16.msra.mxu0 %v5515
    %5621 = vmatpush.bf16.msra.mxu0 %v5511
    %5622 = vmatmul.bf16.gmra.mxu0 %v5379
    %v5623 = vpop.f32.mrf.mxu0
    %v5624 = vadd.f32 %v4065, %v5623
    %v5625 = vpop.f32.mrf.mxu0
    %v5626 = vadd.f32 %v4065, %v5625
    %5627 = vdwg.mxu0
    %v5628 = vmul.f32 %v5582, 0.5
    %v5629 = vmul.f32 %v5596, 0.5
    %v5630 = vmul.f32 %v5610, 0.5
    %v5631 = vmul.f32 %v5624, 0.5
    %v5632 = vmul.f32 %v5584, 0.5
    %v5633 = vmul.f32 %v5598, 0.5
    %v5634 = vmul.f32 %v5612, 0.5
    %v5635 = vmul.f32 %v5626, 0.5
    %v5636 = vmul.f32 %v5582, 0.70710677
    %v5637 = vmul.f32 %v5596, 0.70710677
    %v5638 = vmul.f32 %v5610, 0.70710677
    %v5639 = vmul.f32 %v5624, 0.70710677
    %v5640 = vmul.f32 %v5584, 0.70710677
    %v5641 = vmul.f32 %v5598, 0.70710677
    %v5642 = vmul.f32 %v5612, 0.70710677
    %v5643 = vmul.f32 %v5626, 0.70710677
    %vm5644 = vcmp.ge.f32.partialorder %v5636, 0.0
    %vm5645 = vcmp.ge.f32.partialorder %v5637, 0.0
    %vm5646 = vcmp.ge.f32.partialorder %v5638, 0.0
    %vm5647 = vcmp.ge.f32.partialorder %v5639, 0.0
    %vm5648 = vcmp.ge.f32.partialorder %v5640, 0.0
    %vm5649 = vcmp.ge.f32.partialorder %v5641, 0.0
    %vm5650 = vcmp.ge.f32.partialorder %v5642, 0.0
    %vm5651 = vcmp.ge.f32.partialorder %v5643, 0.0
    %v5652 = vsel %vm5644, 1.0, -1.0
    %v5653 = vsel %vm5645, 1.0, -1.0
    %v5654 = vsel %vm5646, 1.0, -1.0
    %v5655 = vsel %vm5647, 1.0, -1.0
    %v5656 = vsel %vm5648, 1.0, -1.0
    %v5657 = vsel %vm5649, 1.0, -1.0
    %v5658 = vsel %vm5650, 1.0, -1.0
    %v5659 = vsel %vm5651, 1.0, -1.0
    %v5660 = vand.u32 2147483647, %v5636
    %v5661 = vand.u32 2147483647, %v5637
    %v5662 = vand.u32 2147483647, %v5638
    %v5663 = vand.u32 2147483647, %v5639
    %v5664 = vand.u32 2147483647, %v5640
    %v5665 = vand.u32 2147483647, %v5641
    %v5666 = vand.u32 2147483647, %v5642
    %v5667 = vand.u32 2147483647, %v5643
    %v5668 = vmul.f32 %v5660, 0.3275911
    %v5669 = vmul.f32 %v5661, 0.3275911
    %v5670 = vmul.f32 %v5662, 0.3275911
    %v5671 = vmul.f32 %v5663, 0.3275911
    %v5672 = vmul.f32 %v5664, 0.3275911
    %v5673 = vmul.f32 %v5665, 0.3275911
    %v5674 = vmul.f32 %v5666, 0.3275911
    %v5675 = vmul.f32 %v5667, 0.3275911
    %v5676 = vadd.f32 %v5668, 1.0
    %v5677 = vadd.f32 %v5669, 1.0
    %v5678 = vadd.f32 %v5670, 1.0
    %v5679 = vadd.f32 %v5671, 1.0
    %v5680 = vadd.f32 %v5672, 1.0
    %v5681 = vadd.f32 %v5673, 1.0
    %v5682 = vadd.f32 %v5674, 1.0
    %v5683 = vadd.f32 %v5675, 1.0
    %v5684 = vrcp.pop %v5676
    %v5685 = vmul.f32 %v5676, %v5684
    %v5686 = vsub.f32 1.0, %v5685
    %v5687 = vmul.f32 %v5684, %v5686
    %v5688 = vadd.f32 %v5684, %v5687
    %vm5689 = vweird.f32 %v5676
    %vm5690 = vweird.f32 %v5684
    %vm5691 = vmor %vm5689, %vm5690
    %v5692 = vsel %vm5691, %v5684, %v5688
    %v5693 = vand.u32 2147483647, %v5676
    %vm5694 = vcmp.eq.f32.partialorder %v5693, 8.507059e+37
    %v5695 = vand.u32 %v5676, 2147483648
    %v5696 = vor.u32 1.1754944e-38, %v5695
    %v5697 = vsel %vm5694, %v5696, %v5692
    %v5698 = vmul.f32 1.0, %v5697
    %v5699 = vrcp.pop %v5677
    %v5700 = vmul.f32 %v5677, %v5699
    %v5701 = vsub.f32 1.0, %v5700
    %v5702 = vmul.f32 %v5699, %v5701
    %v5703 = vadd.f32 %v5699, %v5702
    %vm5704 = vweird.f32 %v5677
    %vm5705 = vweird.f32 %v5699
    %vm5706 = vmor %vm5704, %vm5705
    %v5707 = vsel %vm5706, %v5699, %v5703
    %v5708 = vand.u32 2147483647, %v5677
    %vm5709 = vcmp.eq.f32.partialorder %v5708, 8.507059e+37
    %v5710 = vand.u32 %v5677, 2147483648
    %v5711 = vor.u32 1.1754944e-38, %v5710
    %v5712 = vsel %vm5709, %v5711, %v5707
    %v5713 = vmul.f32 1.0, %v5712
    %v5714 = vrcp.pop %v5678
    %v5715 = vmul.f32 %v5678, %v5714
    %v5716 = vsub.f32 1.0, %v5715
    %v5717 = vmul.f32 %v5714, %v5716
    %v5718 = vadd.f32 %v5714, %v5717
    %vm5719 = vweird.f32 %v5678
    %vm5720 = vweird.f32 %v5714
    %vm5721 = vmor %vm5719, %vm5720
    %v5722 = vsel %vm5721, %v5714, %v5718
    %v5723 = vand.u32 2147483647, %v5678
    %vm5724 = vcmp.eq.f32.partialorder %v5723, 8.507059e+37
    %v5725 = vand.u32 %v5678, 2147483648
    %v5726 = vor.u32 1.1754944e-38, %v5725
    %v5727 = vsel %vm5724, %v5726, %v5722
    %v5728 = vmul.f32 1.0, %v5727
    %v5729 = vrcp.pop %v5679
    %v5730 = vmul.f32 %v5679, %v5729
    %v5731 = vsub.f32 1.0, %v5730
    %v5732 = vmul.f32 %v5729, %v5731
    %v5733 = vadd.f32 %v5729, %v5732
    %vm5734 = vweird.f32 %v5679
    %vm5735 = vweird.f32 %v5729
    %vm5736 = vmor %vm5734, %vm5735
    %v5737 = vsel %vm5736, %v5729, %v5733
    %v5738 = vand.u32 2147483647, %v5679
    %vm5739 = vcmp.eq.f32.partialorder %v5738, 8.507059e+37
    %v5740 = vand.u32 %v5679, 2147483648
    %v5741 = vor.u32 1.1754944e-38, %v5740
    %v5742 = vsel %vm5739, %v5741, %v5737
    %v5743 = vmul.f32 1.0, %v5742
    %v5744 = vrcp.pop %v5680
    %v5745 = vmul.f32 %v5680, %v5744
    %v5746 = vsub.f32 1.0, %v5745
    %v5747 = vmul.f32 %v5744, %v5746
    %v5748 = vadd.f32 %v5744, %v5747
    %vm5749 = vweird.f32 %v5680
    %vm5750 = vweird.f32 %v5744
    %vm5751 = vmor %vm5749, %vm5750
    %v5752 = vsel %vm5751, %v5744, %v5748
    %v5753 = vand.u32 2147483647, %v5680
    %vm5754 = vcmp.eq.f32.partialorder %v5753, 8.507059e+37
    %v5755 = vand.u32 %v5680, 2147483648
    %v5756 = vor.u32 1.1754944e-38, %v5755
    %v5757 = vsel %vm5754, %v5756, %v5752
    %v5758 = vmul.f32 1.0, %v5757
    %v5759 = vrcp.pop %v5681
    %v5760 = vmul.f32 %v5681, %v5759
    %v5761 = vsub.f32 1.0, %v5760
    %v5762 = vmul.f32 %v5759, %v5761
    %v5763 = vadd.f32 %v5759, %v5762
    %vm5764 = vweird.f32 %v5681
    %vm5765 = vweird.f32 %v5759
    %vm5766 = vmor %vm5764, %vm5765
    %v5767 = vsel %vm5766, %v5759, %v5763
    %v5768 = vand.u32 2147483647, %v5681
    %vm5769 = vcmp.eq.f32.partialorder %v5768, 8.507059e+37
    %v5770 = vand.u32 %v5681, 2147483648
    %v5771 = vor.u32 1.1754944e-38, %v5770
    %v5772 = vsel %vm5769, %v5771, %v5767
    %v5773 = vmul.f32 1.0, %v5772
    %v5774 = vrcp.pop %v5682
    %v5775 = vmul.f32 %v5682, %v5774
    %v5776 = vsub.f32 1.0, %v5775
    %v5777 = vmul.f32 %v5774, %v5776
    %v5778 = vadd.f32 %v5774, %v5777
    %vm5779 = vweird.f32 %v5682
    %vm5780 = vweird.f32 %v5774
    %vm5781 = vmor %vm5779, %vm5780
    %v5782 = vsel %vm5781, %v5774, %v5778
    %v5783 = vand.u32 2147483647, %v5682
    %vm5784 = vcmp.eq.f32.partialorder %v5783, 8.507059e+37
    %v5785 = vand.u32 %v5682, 2147483648
    %v5786 = vor.u32 1.1754944e-38, %v5785
    %v5787 = vsel %vm5784, %v5786, %v5782
    %v5788 = vmul.f32 1.0, %v5787
    %v5789 = vrcp.pop %v5683
    %v5790 = vmul.f32 %v5683, %v5789
    %v5791 = vsub.f32 1.0, %v5790
    %v5792 = vmul.f32 %v5789, %v5791
    %v5793 = vadd.f32 %v5789, %v5792
    %vm5794 = vweird.f32 %v5683
    %vm5795 = vweird.f32 %v5789
    %vm5796 = vmor %vm5794, %vm5795
    %v5797 = vsel %vm5796, %v5789, %v5793
    %v5798 = vand.u32 2147483647, %v5683
    %vm5799 = vcmp.eq.f32.partialorder %v5798, 8.507059e+37
    %v5800 = vand.u32 %v5683, 2147483648
    %v5801 = vor.u32 1.1754944e-38, %v5800
    %v5802 = vsel %vm5799, %v5801, %v5797
    %v5803 = vmul.f32 1.0, %v5802
    %v5804 = vmul.f32 %v5698, 1.0614054
    %v5805 = vmul.f32 %v5713, 1.0614054
    %v5806 = vmul.f32 %v5728, 1.0614054
    %v5807 = vmul.f32 %v5743, 1.0614054
    %v5808 = vmul.f32 %v5758, 1.0614054
    %v5809 = vmul.f32 %v5773, 1.0614054
    %v5810 = vmul.f32 %v5788, 1.0614054
    %v5811 = vmul.f32 %v5803, 1.0614054
    %v5812 = vadd.f32 %v5804, -1.4531521
    %v5813 = vadd.f32 %v5805, -1.4531521
    %v5814 = vadd.f32 %v5806, -1.4531521
    %v5815 = vadd.f32 %v5807, -1.4531521
    %v5816 = vadd.f32 %v5808, -1.4531521
    %v5817 = vadd.f32 %v5809, -1.4531521
    %v5818 = vadd.f32 %v5810, -1.4531521
    %v5819 = vadd.f32 %v5811, -1.4531521
    %v5820 = vmul.f32 %v5812, %v5698
    %v5821 = vmul.f32 %v5813, %v5713
    %v5822 = vmul.f32 %v5814, %v5728
    %v5823 = vmul.f32 %v5815, %v5743
    %v5824 = vmul.f32 %v5816, %v5758
    %v5825 = vmul.f32 %v5817, %v5773
    %v5826 = vmul.f32 %v5818, %v5788
    %v5827 = vmul.f32 %v5819, %v5803
    %v5828 = vadd.f32 %v5820, 1.4214138
    %v5829 = vadd.f32 %v5821, 1.4214138
    %v5830 = vadd.f32 %v5822, 1.4214138
    %v5831 = vadd.f32 %v5823, 1.4214138
    %v5832 = vadd.f32 %v5824, 1.4214138
    %v5833 = vadd.f32 %v5825, 1.4214138
    %v5834 = vadd.f32 %v5826, 1.4214138
    %v5835 = vadd.f32 %v5827, 1.4214138
    %v5836 = vmul.f32 %v5828, %v5698
    %v5837 = vmul.f32 %v5829, %v5713
    %v5838 = vmul.f32 %v5830, %v5728
    %v5839 = vmul.f32 %v5831, %v5743
    %v5840 = vmul.f32 %v5832, %v5758
    %v5841 = vmul.f32 %v5833, %v5773
    %v5842 = vmul.f32 %v5834, %v5788
    %v5843 = vmul.f32 %v5835, %v5803
    %v5844 = vadd.f32 %v5836, -0.28449672
    %v5845 = vadd.f32 %v5837, -0.28449672
    %v5846 = vadd.f32 %v5838, -0.28449672
    %v5847 = vadd.f32 %v5839, -0.28449672
    %v5848 = vadd.f32 %v5840, -0.28449672
    %v5849 = vadd.f32 %v5841, -0.28449672
    %v5850 = vadd.f32 %v5842, -0.28449672
    %v5851 = vadd.f32 %v5843, -0.28449672
    %v5852 = vmul.f32 %v5844, %v5698
    %v5853 = vmul.f32 %v5845, %v5713
    %v5854 = vmul.f32 %v5846, %v5728
    %v5855 = vmul.f32 %v5847, %v5743
    %v5856 = vmul.f32 %v5848, %v5758
    %v5857 = vmul.f32 %v5849, %v5773
    %v5858 = vmul.f32 %v5850, %v5788
    %v5859 = vmul.f32 %v5851, %v5803
    %v5860 = vadd.f32 %v5852, 0.2548296
    %v5861 = vadd.f32 %v5853, 0.2548296
    %v5862 = vadd.f32 %v5854, 0.2548296
    %v5863 = vadd.f32 %v5855, 0.2548296
    %v5864 = vadd.f32 %v5856, 0.2548296
    %v5865 = vadd.f32 %v5857, 0.2548296
    %v5866 = vadd.f32 %v5858, 0.2548296
    %v5867 = vadd.f32 %v5859, 0.2548296
    %v5868 = vmul.f32 %v5860, %v5698
    %v5869 = vmul.f32 %v5861, %v5713
    %v5870 = vmul.f32 %v5862, %v5728
    %v5871 = vmul.f32 %v5863, %v5743
    %v5872 = vmul.f32 %v5864, %v5758
    %v5873 = vmul.f32 %v5865, %v5773
    %v5874 = vmul.f32 %v5866, %v5788
    %v5875 = vmul.f32 %v5867, %v5803
    %v5876 = vsub.f32 0.0, %v5660
    %v5877 = vsub.f32 0.0, %v5661
    %v5878 = vsub.f32 0.0, %v5662
    %v5879 = vsub.f32 0.0, %v5663
    %v5880 = vsub.f32 0.0, %v5664
    %v5881 = vsub.f32 0.0, %v5665
    %v5882 = vsub.f32 0.0, %v5666
    %v5883 = vsub.f32 0.0, %v5667
    %v5884 = vmul.f32 %v5876, %v5660
    %v5885 = vmul.f32 %v5877, %v5661
    %v5886 = vmul.f32 %v5878, %v5662
    %v5887 = vmul.f32 %v5879, %v5663
    %v5888 = vmul.f32 %v5880, %v5664
    %v5889 = vmul.f32 %v5881, %v5665
    %v5890 = vmul.f32 %v5882, %v5666
    %v5891 = vmul.f32 %v5883, %v5667
    %v5892 = vmul.f32 %v5884, 1.442695
    %v5893 = vpow.pop %v5892
    %v5894 = vmul.f32 %v5885, 1.442695
    %v5895 = vpow.pop %v5894
    %v5896 = vmul.f32 %v5886, 1.442695
    %v5897 = vpow.pop %v5896
    %v5898 = vmul.f32 %v5887, 1.442695
    %v5899 = vpow.pop %v5898
    %v5900 = vmul.f32 %v5888, 1.442695
    %v5901 = vpow.pop %v5900
    %v5902 = vmul.f32 %v5889, 1.442695
    %v5903 = vpow.pop %v5902
    %v5904 = vmul.f32 %v5890, 1.442695
    %v5905 = vpow.pop %v5904
    %v5906 = vmul.f32 %v5891, 1.442695
    %v5907 = vpow.pop %v5906
    %v5908 = vmul.f32 %v5868, %v5893
    %v5909 = vmul.f32 %v5869, %v5895
    %v5910 = vmul.f32 %v5870, %v5897
    %v5911 = vmul.f32 %v5871, %v5899
    %v5912 = vmul.f32 %v5872, %v5901
    %v5913 = vmul.f32 %v5873, %v5903
    %v5914 = vmul.f32 %v5874, %v5905
    %v5915 = vmul.f32 %v5875, %v5907
    %v5916 = vsub.f32 1.0, %v5908
    %v5917 = vsub.f32 1.0, %v5909
    %v5918 = vsub.f32 1.0, %v5910
    %v5919 = vsub.f32 1.0, %v5911
    %v5920 = vsub.f32 1.0, %v5912
    %v5921 = vsub.f32 1.0, %v5913
    %v5922 = vsub.f32 1.0, %v5914
    %v5923 = vsub.f32 1.0, %v5915
    %v5924 = vmul.f32 %v5652, %v5916
    %v5925 = vmul.f32 %v5653, %v5917
    %v5926 = vmul.f32 %v5654, %v5918
    %v5927 = vmul.f32 %v5655, %v5919
    %v5928 = vmul.f32 %v5656, %v5920
    %v5929 = vmul.f32 %v5657, %v5921
    %v5930 = vmul.f32 %v5658, %v5922
    %v5931 = vmul.f32 %v5659, %v5923
    %v5932 = vadd.f32 %v5924, 1.0
    %v5933 = vadd.f32 %v5925, 1.0
    %v5934 = vadd.f32 %v5926, 1.0
    %v5935 = vadd.f32 %v5927, 1.0
    %v5936 = vadd.f32 %v5928, 1.0
    %v5937 = vadd.f32 %v5929, 1.0
    %v5938 = vadd.f32 %v5930, 1.0
    %v5939 = vadd.f32 %v5931, 1.0
    %v5940 = vmul.f32 %v5628, %v5932
    %v5941 = vmul.f32 %v5629, %v5933
    %v5942 = vmul.f32 %v5630, %v5934
    %v5943 = vmul.f32 %v5631, %v5935
    %v5944 = vmul.f32 %v5632, %v5936
    %v5945 = vmul.f32 %v5633, %v5937
    %v5946 = vmul.f32 %v5634, %v5938
    %v5947 = vmul.f32 %v5635, %v5939
    %v5948 = vpack.c.bf16 %v5944, %v5940
    %v5949 = vpack.c.bf16 %v5945, %v5941
    %v5950 = vpack.c.bf16 %v5946, %v5942
    %v5951 = vpack.c.bf16 %v5947, %v5943
    %v5952 = vld [vmem:[%s4606] sm:$0xf]
    %v5953 = vld [vmem:[%s4606 + $0x4] sm:$0xf]
    %v5954 = vld [vmem:[%s4606 + $0x8] sm:$0xf]
    %v5955 = vld [vmem:[%s4606 + $0xc] sm:$0xf]
    %v5956 = vld [vmem:[%s4606 + $0x10] sm:$0xf]
    %v5957 = vld [vmem:[%s4606 + $0x14] sm:$0xf]
    %v5958 = vld [vmem:[%s4606 + $0x18] sm:$0xf]
    %v5959 = vld [vmem:[%s4606 + $0x1c] sm:$0xf]
    %v5960 = vld [vmem:[%s4606 + $0x20] sm:$0xf]
    %v5961 = vld [vmem:[%s4606 + $0x24] sm:$0xf]
    %v5962 = vld [vmem:[%s4606 + $0x28] sm:$0xf]
    %v5963 = vld [vmem:[%s4606 + $0x2c] sm:$0xf]
    %v5964 = vld [vmem:[%s4606 + $0x30] sm:$0xf]
    %v5965 = vld [vmem:[%s4606 + $0x34] sm:$0xf]
    %v5966 = vld [vmem:[%s4606 + $0x38] sm:$0xf]
    %v5967 = vld [vmem:[%s4606 + $0x3c] sm:$0xf]
    %v5968 = vld [vmem:[%s4606 + $0x40] sm:$0xf]
    %v5969 = vld [vmem:[%s4606 + $0x44] sm:$0xf]
    %v5970 = vld [vmem:[%s4606 + $0x48] sm:$0xf]
    %v5971 = vld [vmem:[%s4606 + $0x4c] sm:$0xf]
    %v5972 = vld [vmem:[%s4606 + $0x50] sm:$0xf]
    %v5973 = vld [vmem:[%s4606 + $0x54] sm:$0xf]
    %v5974 = vld [vmem:[%s4606 + $0x58] sm:$0xf]
    %v5975 = vld [vmem:[%s4606 + $0x5c] sm:$0xf]
    %v5976 = vld [vmem:[%s4606 + $0x60] sm:$0xf]
    %v5977 = vld [vmem:[%s4606 + $0x64] sm:$0xf]
    %v5978 = vld [vmem:[%s4606 + $0x68] sm:$0xf]
    %v5979 = vld [vmem:[%s4606 + $0x6c] sm:$0xf]
    %v5980 = vld [vmem:[%s4606 + $0x70] sm:$0xf]
    %v5981 = vld [vmem:[%s4606 + $0x74] sm:$0xf]
    %v5982 = vld [vmem:[%s4606 + $0x78] sm:$0xf]
    %v5983 = vld [vmem:[%s4606 + $0x7c] sm:$0xf]
    %v5984 = vld [vmem:[%s4606 + $0x80] sm:$0xf]
    %v5985 = vld [vmem:[%s4606 + $0x84] sm:$0xf]
    %v5986 = vld [vmem:[%s4606 + $0x88] sm:$0xf]
    %v5987 = vld [vmem:[%s4606 + $0x8c] sm:$0xf]
    %v5988 = vld [vmem:[%s4606 + $0x90] sm:$0xf]
    %v5989 = vld [vmem:[%s4606 + $0x94] sm:$0xf]
    %v5990 = vld [vmem:[%s4606 + $0x98] sm:$0xf]
    %v5991 = vld [vmem:[%s4606 + $0x9c] sm:$0xf]
    %v5992 = vld [vmem:[%s4606 + $0xa0] sm:$0xf]
    %v5993 = vld [vmem:[%s4606 + $0xa4] sm:$0xf]
    %v5994 = vld [vmem:[%s4606 + $0xa8] sm:$0xf]
    %v5995 = vld [vmem:[%s4606 + $0xac] sm:$0xf]
    %v5996 = vld [vmem:[%s4606 + $0xb0] sm:$0xf]
    %v5997 = vld [vmem:[%s4606 + $0xb4] sm:$0xf]
    %v5998 = vld [vmem:[%s4606 + $0xb8] sm:$0xf]
    %v5999 = vld [vmem:[%s4606 + $0xbc] sm:$0xf]
    %v6000 = vld [vmem:[%s4606 + $0xc0] sm:$0xf]
    %v6001 = vld [vmem:[%s4606 + $0xc4] sm:$0xf]
    %v6002 = vld [vmem:[%s4606 + $0xc8] sm:$0xf]
    %v6003 = vld [vmem:[%s4606 + $0xcc] sm:$0xf]
    %v6004 = vld [vmem:[%s4606 + $0xd0] sm:$0xf]
    %v6005 = vld [vmem:[%s4606 + $0xd4] sm:$0xf]
    %v6006 = vld [vmem:[%s4606 + $0xd8] sm:$0xf]
    %v6007 = vld [vmem:[%s4606 + $0xdc] sm:$0xf]
    %v6008 = vld [vmem:[%s4606 + $0xe0] sm:$0xf]
    %v6009 = vld [vmem:[%s4606 + $0xe4] sm:$0xf]
    %v6010 = vld [vmem:[%s4606 + $0xe8] sm:$0xf]
    %v6011 = vld [vmem:[%s4606 + $0xec] sm:$0xf]
    %v6012 = vld [vmem:[%s4606 + $0xf0] sm:$0xf]
    %v6013 = vld [vmem:[%s4606 + $0xf4] sm:$0xf]
    %v6014 = vld [vmem:[%s4606 + $0xf8] sm:$0xf]
    %v6015 = vld [vmem:[%s4606 + $0xfc] sm:$0xf]
    %v6080 = vunpack.c.l.b16 %v5952
    %v6081 = vunpack.c.l.b16 %v5953
    %v6082 = vunpack.c.l.b16 %v5954
    %v6083 = vunpack.c.l.b16 %v5955
    %v6084 = vunpack.c.l.b16 %v5956
    %v6085 = vunpack.c.l.b16 %v5957
    %v6086 = vunpack.c.l.b16 %v5958
    %v6087 = vunpack.c.l.b16 %v5959
    %v6088 = vunpack.c.l.b16 %v5960
    %v6089 = vunpack.c.l.b16 %v5961
    %v6090 = vunpack.c.l.b16 %v5962
    %v6091 = vunpack.c.l.b16 %v5963
    %v6092 = vunpack.c.l.b16 %v5964
    %v6093 = vunpack.c.l.b16 %v5965
    %v6094 = vunpack.c.l.b16 %v5966
    %v6095 = vunpack.c.l.b16 %v5967
    %v6096 = vunpack.c.l.b16 %v5968
    %v6097 = vunpack.c.l.b16 %v5969
    %v6098 = vunpack.c.l.b16 %v5970
    %v6099 = vunpack.c.l.b16 %v5971
    %v6100 = vunpack.c.l.b16 %v5972
    %v6101 = vunpack.c.l.b16 %v5973
    %v6102 = vunpack.c.l.b16 %v5974
    %v6103 = vunpack.c.l.b16 %v5975
    %v6104 = vunpack.c.l.b16 %v5976
    %v6105 = vunpack.c.l.b16 %v5977
    %v6106 = vunpack.c.l.b16 %v5978
    %v6107 = vunpack.c.l.b16 %v5979
    %v6108 = vunpack.c.l.b16 %v5980
    %v6109 = vunpack.c.l.b16 %v5981
    %v6110 = vunpack.c.l.b16 %v5982
    %v6111 = vunpack.c.l.b16 %v5983
    %v6112 = vunpack.c.l.b16 %v5984
    %v6113 = vunpack.c.l.b16 %v5985
    %v6114 = vunpack.c.l.b16 %v5986
    %v6115 = vunpack.c.l.b16 %v5987
    %v6116 = vunpack.c.l.b16 %v5988
    %v6117 = vunpack.c.l.b16 %v5989
    %v6118 = vunpack.c.l.b16 %v5990
    %v6119 = vunpack.c.l.b16 %v5991
    %v6120 = vunpack.c.l.b16 %v5992
    %v6121 = vunpack.c.l.b16 %v5993
    %v6122 = vunpack.c.l.b16 %v5994
    %v6123 = vunpack.c.l.b16 %v5995
    %v6124 = vunpack.c.l.b16 %v5996
    %v6125 = vunpack.c.l.b16 %v5997
    %v6126 = vunpack.c.l.b16 %v5998
    %v6127 = vunpack.c.l.b16 %v5999
    %v6128 = vunpack.c.l.b16 %v6000
    %v6129 = vunpack.c.l.b16 %v6001
    %v6130 = vunpack.c.l.b16 %v6002
    %v6131 = vunpack.c.l.b16 %v6003
    %v6132 = vunpack.c.l.b16 %v6004
    %v6133 = vunpack.c.l.b16 %v6005
    %v6134 = vunpack.c.l.b16 %v6006
    %v6135 = vunpack.c.l.b16 %v6007
    %v6136 = vunpack.c.l.b16 %v6008
    %v6137 = vunpack.c.l.b16 %v6009
    %v6138 = vunpack.c.l.b16 %v6010
    %v6139 = vunpack.c.l.b16 %v6011
    %v6140 = vunpack.c.l.b16 %v6012
    %v6141 = vunpack.c.l.b16 %v6013
    %v6142 = vunpack.c.l.b16 %v6014
    %v6143 = vunpack.c.l.b16 %v6015
    %v6144 = vpack.c.b16 %v6081, %v6080
    %v6145 = vpack.c.b16 %v6083, %v6082
    %v6146 = vpack.c.b16 %v6085, %v6084
    %v6147 = vpack.c.b16 %v6087, %v6086
    %v6148 = vpack.c.b16 %v6089, %v6088
    %v6149 = vpack.c.b16 %v6091, %v6090
    %v6150 = vpack.c.b16 %v6093, %v6092
    %v6151 = vpack.c.b16 %v6095, %v6094
    %v6152 = vpack.c.b16 %v6097, %v6096
    %v6153 = vpack.c.b16 %v6099, %v6098
    %v6154 = vpack.c.b16 %v6101, %v6100
    %v6155 = vpack.c.b16 %v6103, %v6102
    %v6156 = vpack.c.b16 %v6105, %v6104
    %v6157 = vpack.c.b16 %v6107, %v6106
    %v6158 = vpack.c.b16 %v6109, %v6108
    %v6159 = vpack.c.b16 %v6111, %v6110
    %v6160 = vpack.c.b16 %v6113, %v6112
    %v6161 = vpack.c.b16 %v6115, %v6114
    %v6162 = vpack.c.b16 %v6117, %v6116
    %v6163 = vpack.c.b16 %v6119, %v6118
    %v6164 = vpack.c.b16 %v6121, %v6120
    %v6165 = vpack.c.b16 %v6123, %v6122
    %v6166 = vpack.c.b16 %v6125, %v6124
    %v6167 = vpack.c.b16 %v6127, %v6126
    %v6168 = vpack.c.b16 %v6129, %v6128
    %v6169 = vpack.c.b16 %v6131, %v6130
    %v6170 = vpack.c.b16 %v6133, %v6132
    %v6171 = vpack.c.b16 %v6135, %v6134
    %v6172 = vpack.c.b16 %v6137, %v6136
    %v6173 = vpack.c.b16 %v6139, %v6138
    %v6174 = vpack.c.b16 %v6141, %v6140
    %v6175 = vpack.c.b16 %v6143, %v6142
    %6208 = vmatpush.bf16.msra.mxu0 %v6151
    %6209 = vmatpush.bf16.msra.mxu0 %v6150
    %6210 = vmatpush.bf16.msra.mxu0 %v6149
    %6211 = vmatpush.bf16.msra.mxu0 %v6148
    %6212 = vmatpush.bf16.msra.mxu0 %v6147
    %6213 = vmatpush.bf16.msra.mxu0 %v6146
    %6214 = vmatpush.bf16.msra.mxu0 %v6145
    %6215 = vmatpush.bf16.msra.mxu0 %v6144
    %6216 = vmatmul.bf16.gmra.mxu0 %v5948
    %v6217 = vpop.f32.mrf.mxu0
    %v6218 = vadd.f32 %v4671, %v6217
    %v6219 = vpop.f32.mrf.mxu0
    %v6220 = vadd.f32 %v4671, %v6219
    %6221 = vdwg.mxu0
    %6222 = vmatpush.bf16.msra.mxu0 %v6159
    %6223 = vmatpush.bf16.msra.mxu0 %v6158
    %6224 = vmatpush.bf16.msra.mxu0 %v6157
    %6225 = vmatpush.bf16.msra.mxu0 %v6156
    %6226 = vmatpush.bf16.msra.mxu0 %v6155
    %6227 = vmatpush.bf16.msra.mxu0 %v6154
    %6228 = vmatpush.bf16.msra.mxu0 %v6153
    %6229 = vmatpush.bf16.msra.mxu0 %v6152
    %6230 = vmatmul.bf16.gmra.mxu0 %v5949
    %v6231 = vpop.f32.mrf.mxu0
    %v6232 = vadd.f32 %v6218, %v6231
    %v6233 = vpop.f32.mrf.mxu0
    %v6234 = vadd.f32 %v6220, %v6233
    %6235 = vdwg.mxu0
    %6236 = vmatpush.bf16.msra.mxu0 %v6167
    %6237 = vmatpush.bf16.msra.mxu0 %v6166
    %6238 = vmatpush.bf16.msra.mxu0 %v6165
    %6239 = vmatpush.bf16.msra.mxu0 %v6164
    %6240 = vmatpush.bf16.msra.mxu0 %v6163
    %6241 = vmatpush.bf16.msra.mxu0 %v6162
    %6242 = vmatpush.bf16.msra.mxu0 %v6161
    %6243 = vmatpush.bf16.msra.mxu0 %v6160
    %6244 = vmatmul.bf16.gmra.mxu0 %v5950
    %v6245 = vpop.f32.mrf.mxu0
    %v6246 = vadd.f32 %v6232, %v6245
    %v6247 = vpop.f32.mrf.mxu0
    %v6248 = vadd.f32 %v6234, %v6247
    %6249 = vdwg.mxu0
    %6250 = vmatpush.bf16.msra.mxu0 %v6175
    %6251 = vmatpush.bf16.msra.mxu0 %v6174
    %6252 = vmatpush.bf16.msra.mxu0 %v6173
    %6253 = vmatpush.bf16.msra.mxu0 %v6172
    %6254 = vmatpush.bf16.msra.mxu0 %v6171
    %6255 = vmatpush.bf16.msra.mxu0 %v6170
    %6256 = vmatpush.bf16.msra.mxu0 %v6169
    %6257 = vmatpush.bf16.msra.mxu0 %v6168
    %6258 = vmatmul.bf16.gmra.mxu0 %v5951
    %v6259 = vpop.f32.mrf.mxu0
    %v6260 = vadd.f32 %v6246, %v6259
    %v6261 = vpop.f32.mrf.mxu0
    %v6262 = vadd.f32 %v6248, %v6261
    %6263 = vdwg.mxu0
    %v6264 = vadd.f32 %v5377, %v6260
    %v6265 = vadd.f32 %v5378, %v6262
    %6266 = vadd.xlane.f32.xlu0 %v6264
    %v6267 = vpop.xlane.xlu0 %6266
    %6268 = vadd.xlane.f32.xlu0 %v6265
    %v6269 = vpop.xlane.xlu0 %6268
    %v6270 = vmul.f32 %v6267, %v1245
    %v6271 = vmul.f32 %v6269, %v1245
    %v6272 = vsub.f32 %v6264, %v6270
    %v6273 = vsub.f32 %v6265, %v6271
    %v6274 = vmul.f32 %v6272, %v6272
    %v6275 = vmul.f32 %v6273, %v6273
    %6276 = vadd.xlane.f32.xlu0 %v6274
    %v6277 = vpop.xlane.xlu0 %6276
    %6278 = vadd.xlane.f32.xlu0 %v6275
    %v6279 = vpop.xlane.xlu0 %6278
    %v6280 = vmul.f32 %v6277, %v1245
    %v6281 = vmul.f32 %v6279, %v1245
    %v6282 = vadd.f32 %v6280, 1e-05
    %v6283 = vadd.f32 %v6281, 1e-05
    %v6284 = vrsqrt.pop %v6282
    %v6285 = vmul.f32 %v6284, %v6282
    %v6286 = vmul.f32 %v6285, %v6284
    %v6287 = vmul.f32 0.5, %v6286
    %v6288 = vsub.f32 1.5, %v6287
    %v6289 = vmul.f32 %v6284, %v6288
    %vm6290 = vweird.f32 %v6282
    %vm6291 = vweird.f32 %v6284
    %vm6292 = vmor %vm6290, %vm6291
    %v6293 = vsel %vm6292, %v6284, %v6289
    %v6294 = vrsqrt.pop %v6283
    %v6295 = vmul.f32 %v6294, %v6283
    %v6296 = vmul.f32 %v6295, %v6294
    %v6297 = vmul.f32 0.5, %v6296
    %v6298 = vsub.f32 1.5, %v6297
    %v6299 = vmul.f32 %v6294, %v6298
    %vm6300 = vweird.f32 %v6283
    %vm6301 = vweird.f32 %v6294
    %vm6302 = vmor %vm6300, %vm6301
    %v6303 = vsel %vm6302, %v6294, %v6299
    %v6304 = vmul.f32 %v6272, %v6293
    %v6305 = vmul.f32 %v6273, %v6303
    %v6306 = vperm.slane %v249, 2
    %v6307 = vmul.f32 %v6304, %v6306
    %v6308 = vmul.f32 %v6305, %v6306
    %v6309 = vperm.slane %v249, 3
    %v6310 = vadd.f32 %v6307, %v6309
    %v6311 = vadd.f32 %v6308, %v6309
    %s6312 = scalar_lea.vmem [#allocation23], 48
    %6313 = vst [vmem:[%s6312] sm:$0xff] %v6310
    %6314 = vst [vmem:[%s6312 + $0x8] sm:$0xff] %v6311
    // Predicated region
    $region106: #{_fused_forward.1} parent=1 // pred_check
      _
    $region107: #{_fused_forward.1} parent=1 // pred_check_branch
      %6316 = sbr.rel (0) target = $region109
    $region108: #{_fused_forward.1} parent=1 // pred_region
      %6318 = vsyncadd [#allocation4], 0
      %s6319 = sshll.u32 [#allocation23], 4
      %s6320 = int_to_ptr.vmem [resolvable:$true] %s6319
      %s6321 = sshll.u32 %s13, 4
      %s6322 = int_to_ptr.hbm [resolvable:$true] %s6321
      %6327 = dma.vmem_to_hbm [thread:$0]  %s6320, 1024, %s6322, [#allocation4], 128, 128, 8
    $region109: #{_fused_forward.1} parent=1 // pred_fallthru
      _
    // Predicated region
    $region110: #{_fused_forward.1} parent=1 // pred_check
      _
    $region111: #{_fused_forward.1} parent=1 // pred_check_branch
      %6329 = sbr.rel (0) target = $region113
    $region112: #{_fused_forward.1} parent=1 // pred_region
      %6331 = dma.done [#allocation4], 1024
    $region113: #{_fused_forward.1} parent=1 // pred_fallthru
      _
    %6332 = vsyncpa [#allocation3], 1
    %6333 = vsyncpa [#allocation6], 1
    %6334 = vsyncpa [#allocation9], 1
    %6335 = vsyncpa [#allocation12], 1
    %6336 = vsyncpa [#allocation15], 1
    %6337 = vsyncpa [#allocation18], 1
    %6338 = vsyncpa [#allocation21], 1
    %6339 = vsyncpa [#allocation4], 1

</llo_original>
